<compile_context>
chip_gen: v6e
topology: v6e:2x2x1
jax: 0.10.0
libtpu: 0.0.40
codegen_flags: <defaults>
</compile_context>

<pallas_src>
import functools

import jax
import jax.numpy as jnp
from jax.experimental import pallas as pl
from jax.experimental.pallas import tpu as pltpu


# ----------------------------- helpers ---------------------------------------

def _round_up(x, m):
    return ((x + m - 1) // m) * m


def _pad_last2(x, rows, cols):
    *lead, r, c = x.shape
    if r == rows and c == cols:
        return x
    pad = [(0, 0)] * len(lead) + [(0, rows - r), (0, cols - c)]
    return jnp.pad(x, pad)


def _pad_spatial(x, fill=None):
    """Pad a 1-px spatial ring.  With a deferred-BN source, pad with the
    per-channel value v_c = -shift_c/scale_c so the consumer's fused
    scale/shift maps pad positions back to (approximately) zero."""
    if fill is None:
        return jnp.pad(x, ((0, 0), (1, 1), (1, 1), (0, 0)))
    N, H, W, C = x.shape
    base = jnp.broadcast_to(fill.astype(x.dtype), (N, H + 2, W + 2, C))
    return jax.lax.dynamic_update_slice(base, x, (0, 1, 1, 0))


# ------------------------ fused batched matmul kernel -------------------------

def _mm_kernel(*refs, pre_act, post_act, has_bias, has_prescale, with_stats,
               multi_k, m_valid, tm):
    it = iter(refs)
    a_ref = next(it)
    b_ref = next(it)
    bias_ref = next(it) if has_bias else None
    scale_ref = next(it) if has_prescale else None
    shift_ref = next(it) if has_prescale else None
    out_ref = next(it)
    stats_ref = next(it) if with_stats else None
    acc_ref = next(it) if multi_k else None

    a = a_ref[0]                                       # (tm, tk) bf16
    if has_prescale:                                   # deferred BatchNorm of producer
        a = a.astype(jnp.float32) * scale_ref[...] + shift_ref[...]
    if pre_act == "leaky_relu":
        a = jnp.where(a >= 0, a, 0.2 * a)
    elif pre_act == "relu":
        a = jnp.maximum(a, 0)
    a = a.astype(jnp.bfloat16)
    part = jnp.dot(a, b_ref[0], preferred_element_type=jnp.float32)

    def finalize(y):
        if has_bias:
            y = y + bias_ref[...]
        if post_act == "relu":
            y = jnp.maximum(y, 0.0)
        elif post_act == "tanh":
            y = jnp.tanh(y)
        out_ref[0] = y.astype(out_ref.dtype)
        if with_stats:
            # Mask padded M rows so BatchNorm statistics stay exact.
            rows = (jax.lax.broadcasted_iota(jnp.int32, y.shape, 0)
                    + pl.program_id(1) * tm)
            ym = jnp.where(rows < m_valid, y, 0.0)
            s1 = jnp.sum(ym, axis=0, keepdims=True)
            s2 = jnp.sum(ym * ym, axis=0, keepdims=True)
            stats_ref[0, 0] = jnp.concatenate([s1, s2], axis=0)

    if multi_k:
        k = pl.program_id(3)

        @pl.when(k == 0)
        def _():
            acc_ref[...] = jnp.zeros_like(acc_ref)

        acc_ref[...] += part

        @pl.when(k == pl.num_programs(3) - 1)
        def _():
            finalize(acc_ref[...])
    else:
        finalize(part)


def matmul_fused(a, b, *, bias=None, scale=None, shift=None, pre_act=None,
                 post_act=None, compute_stats=False, out_dtype=jnp.bfloat16):
    """Batched y[p] = post_act(pre_act(a[p]*scale + shift) @ b[p] + bias).

    a: [P, M, K] (bf16 activations), b: [P, K, N] bf16 weights,
    scale/shift: [K] f32 deferred-BN vectors, bias: [N] f32.
    Returns [P, M, N] (out_dtype) and, if compute_stats, per-channel
    (sum, sum_sq) of y reduced over P and M (f32).
    """
    P, M, K = a.shape
    Pb, Kb, N = b.shape
    assert Kb == K and Pb == P

    m16 = _round_up(M, 16)
    tm = m16 if m16 <= 512 else 512
    Mp = _round_up(M, tm)
    Np = _round_up(N, 128)
    tn = 128
    for cand in (512, 256):
        if Np % cand == 0:
            tn = cand
            break
    if K <= 2048:
        tk, Kp = K, K                 # full-K block: no zero-FLOP padding of small K
    else:
        tk = 1024
        Kp = _round_up(K, tk)
    multi_k = Kp > tk

    # v7x megacore: try to expose >=2 blocks on the parallel axes.
    if P * (Mp // tm) * (Np // tn) < 2 and tm % 32 == 0:
        tm //= 2
    nM, nN, nK = Mp // tm, Np // tn, Kp // tk

    a_p = _pad_last2(a.astype(jnp.bfloat16), Mp, Kp)
    b_p = _pad_last2(b.astype(jnp.bfloat16), Kp, Np)

    has_bias = bias is not None
    has_prescale = scale is not None

    if multi_k:
        grid = (P, nM, nN, nK)
        im_a = lambda p, i, j, k: (p, i, k)
        im_b = lambda p, i, j, k: (p, k, j)
        im_bias = lambda p, i, j, k: (0, j)
        im_ss = lambda p, i, j, k: (0, k)
        im_out = lambda p, i, j, k: (p, i, j)
        im_stats = lambda p, i, j, k: (p, i, 0, j)
        sem = ("parallel", "parallel", "parallel", "arbitrary")
    else:
        grid = (P, nM, nN)
        im_a = lambda p, i, j: (p, i, 0)
        im_b = lambda p, i, j: (p, 0, j)
        im_bias = lambda p, i, j: (0, j)
        im_ss = lambda p, i, j: (0, 0)
        im_out = lambda p, i, j: (p, i, j)
        im_stats = lambda p, i, j: (p, i, 0, j)
        sem = ("parallel", "parallel", "parallel")

    in_specs = [pl.BlockSpec((1, tm, tk), im_a),
                pl.BlockSpec((1, tk, tn), im_b)]
    args = [a_p, b_p]
    if has_bias:
        in_specs.append(pl.BlockSpec((1, tn), im_bias))
        args.append(_pad_last2(bias.reshape(1, -1).astype(jnp.float32), 1, Np))
    if has_prescale:
        in_specs.append(pl.BlockSpec((1, tk), im_ss))
        in_specs.append(pl.BlockSpec((1, tk), im_ss))
        args.append(_pad_last2(scale.reshape(1, -1).astype(jnp.float32), 1, Kp))
        args.append(_pad_last2(shift.reshape(1, -1).astype(jnp.float32), 1, Kp))

    out_shapes = [jax.ShapeDtypeStruct((P, Mp, Np), out_dtype)]
    out_specs = [pl.BlockSpec((1, tm, tn), im_out)]
    if compute_stats:
        out_shapes.append(jax.ShapeDtypeStruct((P, nM, 2, Np), jnp.float32))
        out_specs.append(pl.BlockSpec((1, 1, 2, tn), im_stats))

    scratch = [pltpu.VMEM((tm, tn), jnp.float32)] if multi_k else []

    kernel = functools.partial(
        _mm_kernel, pre_act=pre_act, post_act=post_act, has_bias=has_bias,
        has_prescale=has_prescale, with_stats=compute_stats, multi_k=multi_k,
        m_valid=M, tm=tm)

    res = pl.pallas_call(
        kernel,
        out_shape=tuple(out_shapes),
        grid=grid,
        in_specs=in_specs,
        out_specs=tuple(out_specs),
        scratch_shapes=scratch,
        compiler_params=pltpu.CompilerParams(
            dimension_semantics=sem,
            vmem_limit_bytes=48 * 1024 * 1024,
        ),
    )(*args)

    if compute_stats:
        y_p, stats = res
        s1 = jnp.sum(stats[:, :, 0, :N], axis=(0, 1))
        s2 = jnp.sum(stats[:, :, 1, :N], axis=(0, 1))
        return y_p[:, :M, :N], s1, s2
    (y_p,) = res
    return y_p[:, :M, :N]


# ----------------------- deferred BatchNorm helpers ----------------------------

def bn_scale_shift(gamma, beta, s1, s2, count, eps=1e-5):
    """Training-mode BatchNorm2d turned into the (scale, shift) that the
    CONSUMER matmul applies in its fused prologue (no standalone BN pass)."""
    mean = s1 / count
    var = jnp.maximum(s2 / count - mean * mean, 0.0)      # biased variance
    # TODO(synk): E[x^2]-E[x]^2 in f32 can cancel for large-mean channels;
    # switch to a shifted two-pass accumulation if channels drift.
    scale = gamma * jax.lax.rsqrt(var + eps)
    shift = beta - mean * scale
    return scale, shift


# --------------------- conv / conv-transpose wrappers -------------------------

def conv2d_4x4_s2_p1(x, w_mat, *, scale=None, shift=None, pre_act=None,
                     compute_stats=False):
    """Conv2d(k=4, s=2, p=1, bias=False) on a raw (pre-BN) bf16 NHWC tensor.
    The producer's deferred BN (scale/shift) + this layer's activation are fused
    into the matmul prologue; per-channel stats of the raw output are fused into
    the epilogue when this layer itself is followed by BatchNorm."""
    N, H, W, Cin = x.shape
    Cout = w_mat.shape[1]
    Ho, Wo = H // 2, W // 2
    fill = None if scale is None else (-shift / scale)    # gamma!=0 assumed
    xp = _pad_spatial(x, fill)
    # TODO(synk): replace the materialized im2col slab with in-kernel tap
    # accumulation (space-to-depth + per-tap offset index_map) to remove the
    # 16x HBM blow-up at large resolutions.
    patches = [xp[:, kh:kh + 2 * Ho - 1:2, kw:kw + 2 * Wo - 1:2, :]
               for kh in range(4) for kw in range(4)]
    a = jnp.stack(patches, axis=3).reshape(1, N * Ho * Wo, 16 * Cin)
    scale_k = None if scale is None else jnp.tile(scale, 16)
    shift_k = None if shift is None else jnp.tile(shift, 16)
    res = matmul_fused(a, w_mat[None], scale=scale_k, shift=shift_k,
                       pre_act=pre_act, compute_stats=compute_stats)
    if compute_stats:
        y, s1, s2 = res
        return y[0].reshape(N, Ho, Wo, Cout), s1, s2, N * Ho * Wo
    return res[0].reshape(N, Ho, Wo, Cout)


def conv_transpose2d_4x4_s2_p1(srcs, w_phases, *, bias=None, scales=None,
                               shifts=None, pre_act="relu", post_act=None,
                               compute_stats=False):
    """Sub-pixel (phase-decomposed) ConvTranspose2d(k=4, s=2, p=1).

    srcs: list of NHWC raw tensors forming the logical channel concat of the
    skip connection (never materialized as a standalone concat).
    w_phases: [4, 4*Ctot, Cout] bf16 (one 2x2-tap matrix per output parity).
    scales/shifts: per-source deferred-BN vectors (None = identity).
    All 4 phases run as one batched pallas_call (leading 'parallel' axis).
    """
    N, H, W, _ = srcs[0].shape
    Cout = w_phases.shape[-1]
    if scales is None:
        scales = [None] * len(srcs)
        shifts = [None] * len(srcs)
    fills = [None if sc is None else (-sh / sc) for sc, sh in zip(scales, shifts)]
    padded = [_pad_spatial(s, f) for s, f in zip(srcs, fills)]

    a_phases = []
    for ph in range(2):
        for pw in range(2):
            taps = []
            for da in range(2):
                for db in range(2):
                    taps.append(jnp.concatenate(
                        [p[:, ph + da:ph + da + H, pw + db:pw + db + W, :]
                         for p in padded], axis=-1))
            a_phases.append(jnp.stack(taps, axis=3).reshape(N * H * W, -1))
    a = jnp.stack(a_phases, axis=0)                       # [4, M, 4*Ctot]

    scale_k = shift_k = None
    if any(sc is not None for sc in scales):
        per_c_scale = jnp.concatenate(
            [jnp.ones((s.shape[-1],), jnp.float32) if sc is None else sc
             for s, sc in zip(srcs, scales)])
        per_c_shift = jnp.concatenate(
            [jnp.zeros((s.shape[-1],), jnp.float32) if sh is None else sh
             for s, sh in zip(srcs, shifts)])
        scale_k = jnp.tile(per_c_scale, 4)
        shift_k = jnp.tile(per_c_shift, 4)

    res = matmul_fused(a, w_phases, bias=bias, scale=scale_k, shift=shift_k,
                       pre_act=pre_act, post_act=post_act,
                       compute_stats=compute_stats)
    if compute_stats:
        y, s1, s2 = res
    else:
        y = res
    # Interleave output parities: (4, M, C) -> (N, 2H, 2W, C) (bf16, half bytes).
    # TODO(synk): fuse this interleave into the kernel's out index_map
    # (write phases straight into an (N, H, 2, W, 2*C) slab) to save a shuffle.
    y = y.reshape(2, 2, N, H, W, Cout)
    out = jnp.transpose(y, (2, 3, 0, 4, 1, 5)).reshape(N, 2 * H, 2 * W, Cout)
    if compute_stats:
        return out, s1, s2, N * 2 * H * 2 * W
    return out


# ----------------------- parameter init / pre-packing -------------------------

def prep_conv_weight(w):
    """PyTorch Conv2d weight [Cout,Cin,4,4] -> [(kh,kw,ci), Cout] bf16."""
    cout = w.shape[0]
    return jnp.transpose(w, (2, 3, 1, 0)).reshape(-1, cout).astype(jnp.bfloat16)


def prep_convt_weight(w):
    """PyTorch ConvTranspose2d weight [Cin,Cout,4,4] -> stacked [4, 4*Cin, Cout]."""
    cin, cout = w.shape[0], w.shape[1]
    mats = []
    for ph in range(2):
        for pw in range(2):
            kh_idx = jnp.array([3 - ph, 1 - ph])
            kw_idx = jnp.array([3 - pw, 1 - pw])
            wsub = w[:, :, kh_idx, :][:, :, :, kw_idx]          # [Cin,Cout,2,2]
            mats.append(jnp.transpose(wsub, (2, 3, 0, 1)).reshape(4 * cin, cout))
    return jnp.stack(mats, axis=0).astype(jnp.bfloat16)


def make_block(key, outer_nc, inner_nc, input_nc=None, submodule=None,
               outermost=False, innermost=False):
    # norm = BatchNorm2d => conv/convT bias=False (only the outermost up has bias).
    if input_nc is None:
        input_nc = outer_nc
    k = jax.random.split(key, 3)
    p = {"outermost": outermost, "innermost": innermost, "submodule": submodule}
    down_w = jax.random.normal(k[0], (inner_nc, input_nc, 4, 4), jnp.float32) * 0.05
    p["down_w"] = prep_conv_weight(down_w)
    up_in = inner_nc if innermost else inner_nc * 2
    up_w = jax.random.normal(k[1], (up_in, outer_nc, 4, 4), jnp.float32) * 0.05
    p["up_w"] = prep_convt_weight(up_w)
    p["up_b"] = (jax.random.normal(k[2], (outer_nc,), jnp.float32) * 0.05
                 if outermost else None)
    if not innermost and not outermost:
        p["downnorm_g"] = jnp.ones((inner_nc,), jnp.float32)
        p["downnorm_b"] = jnp.zeros((inner_nc,), jnp.float32)
    if not outermost:
        p["upnorm_g"] = jnp.ones((outer_nc,), jnp.float32)
        p["upnorm_b"] = jnp.zeros((outer_nc,), jnp.float32)
    return p


def build_unet(key, num_downs, ngf, input_nc, output_nc):
    keys = iter(jax.random.split(key, num_downs))
    blk = make_block(next(keys), ngf * 8, ngf * 8, innermost=True)
    for _ in range(num_downs - 5):
        blk = make_block(next(keys), ngf * 8, ngf * 8, submodule=blk)
    blk = make_block(next(keys), ngf * 4, ngf * 8, submodule=blk)
    blk = make_block(next(keys), ngf * 2, ngf * 4, submodule=blk)
    blk = make_block(next(keys), ngf, ngf * 2, submodule=blk)
    blk = make_block(next(keys), output_nc, ngf, input_nc=input_nc,
                     submodule=blk, outermost=True)
    return blk


# ------------------------------- forward --------------------------------------
# Every tensor flowing between layers is the RAW (pre-BatchNorm) conv output in
# bf16, plus per-channel (scale, shift) vectors that the consumer applies in its
# fused matmul prologue.  Skip connections are returned as source LISTS so the
# channel concat is folded into the consumer's im2col build (never materialized).

def block_forward(p, x, scale, shift):
    if p["innermost"]:
        # (deferred parent-BN) -> LeakyReLU -> Conv ; ReLU -> ConvT -> (BN deferred)
        d = conv2d_4x4_s2_p1(x, p["down_w"], scale=scale, shift=shift,
                             pre_act="leaky_relu")
        u, s1, s2, cnt = conv_transpose2d_4x4_s2_p1(
            [d], p["up_w"], pre_act="relu", compute_stats=True)
        usc, ush = bn_scale_shift(p["upnorm_g"], p["upnorm_b"], s1, s2, cnt)
        return [x, u], [scale, usc], [shift, ush]
    elif p["outermost"]:
        # Conv -> submodule -> ReLU -> ConvT(+bias) -> Tanh
        d = conv2d_4x4_s2_p1(x, p["down_w"])
        subs, sub_sc, sub_sh = block_forward(p["submodule"], d, None, None)
        return conv_transpose2d_4x4_s2_p1(
            subs, p["up_w"], bias=p["up_b"], scales=sub_sc, shifts=sub_sh,
            pre_act="relu", post_act="tanh")
    else:
        # (deferred BN) -> LeakyReLU -> Conv -> (BN deferred) -> submodule
        # -> ReLU -> ConvT -> (BN deferred) ; skip list [x, u]
        d, s1, s2, cnt = conv2d_4x4_s2_p1(x, p["down_w"], scale=scale,
                                          shift=shift, pre_act="leaky_relu",
                                          compute_stats=True)
        dsc, dsh = bn_scale_shift(p["downnorm_g"], p["downnorm_b"], s1, s2, cnt)
        subs, sub_sc, sub_sh = block_forward(p["submodule"], d, dsc, dsh)
        u, s1, s2, cnt = conv_transpose2d_4x4_s2_p1(
            subs, p["up_w"], scales=sub_sc, shifts=sub_sh, pre_act="relu",
            compute_stats=True)
        usc, ush = bn_scale_shift(p["upnorm_g"], p["upnorm_b"], s1, s2, cnt)
        return [x, u], [scale, usc], [shift, ush]
    # TODO(synk): nn.Dropout branch unused (use_dropout=False default).
    # TODO(synk): label!=None loss path (kl_div + mse) not implemented.


def unet_forward(params, x_nchw):
    x = jnp.transpose(x_nchw, (0, 2, 3, 1)).astype(jnp.bfloat16)   # NCHW -> NHWC bf16
    y = block_forward(params, x, None, None)                       # outermost -> tensor
    return jnp.transpose(y, (0, 3, 1, 2)).astype(jnp.float32)      # NHWC -> NCHW f32


# --------------------------------- main ----------------------------------------

if __name__ == "__main__":
    # Small config consistent with the module: num_downs=5 requires spatial 2^5=32.
    num_downs, ngf, input_nc, output_nc = 5, 8, 3, 3
    batch, spatial = 2, 32

    key = jax.random.PRNGKey(0)
    kp, kx = jax.random.split(key)
    params = build_unet(kp, num_downs, ngf, input_nc, output_nc)
    x = jax.random.normal(kx, (batch, input_nc, spatial, spatial), jnp.float32)

    fwd = jax.jit(lambda inp: unet_forward(params, inp))
    out = jax.block_until_ready(fwd(x))

    assert out.shape == (batch, output_nc, spatial, spatial), out.shape
    assert bool(jnp.isfinite(out).all())
    assert bool((jnp.abs(out) <= 1.0 + 1e-6).all())   # final Tanh bound
    print("KERNEL_OK")
</pallas_src>

<mosaic_0001>
module attributes {stable_mosaic.version = 11 : i64} {
  func.func @_mm_kernel(%arg0: i32, %arg1: i32, %arg2: i32, %arg3: memref<1x256x48xbf16, #tpu.memory_space<vmem>>, %arg4: memref<1x48x128xbf16, #tpu.memory_space<vmem>>, %arg5: memref<1x256x128xbf16, #tpu.memory_space<vmem>>) attributes {dimension_semantics = [#tpu.dimension_semantics<parallel>, #tpu.dimension_semantics<parallel>, #tpu.dimension_semantics<parallel>], iteration_bounds = array<i64: 1, 2, 1>, scalar_prefetch = 0 : i64, scratch_operands = 0 : i64, tpu.core_type = #tpu.core_type<tc>, window_params = [{transform_indices = @transform_0, window_bounds = array<i64: 1, 256, 48>}, {transform_indices = @transform_1, window_bounds = array<i64: 1, 48, 128>}, {transform_indices = @transform_2, window_bounds = array<i64: 1, 256, 128>}]} {
    %c0 = arith.constant 0 : index
    %c0_0 = arith.constant 0 : index
    %c0_1 = arith.constant 0 : index
    %0 = vector.load %arg3[%c0, %c0_0, %c0_1] : memref<1x256x48xbf16, #tpu.memory_space<vmem>>, vector<1x256x48xbf16>
    %1 = vector.shape_cast %0 : vector<1x256x48xbf16> to vector<256x48xbf16>
    %c0_2 = arith.constant 0 : index
    %c0_3 = arith.constant 0 : index
    %c0_4 = arith.constant 0 : index
    %2 = vector.load %arg4[%c0_2, %c0_3, %c0_4] : memref<1x48x128xbf16, #tpu.memory_space<vmem>>, vector<1x48x128xbf16>
    %3 = vector.shape_cast %2 : vector<1x48x128xbf16> to vector<48x128xbf16>
    %cst = arith.constant dense<0.000000e+00> : vector<256x128xf32>
    %4 = tpu.matmul %1, %3, %cst {dimension_numbers = #tpu.dot_dimension_numbers<[1], [0], [0], [1], [0, 0, 1, 1], [], []>} : vector<256x48xbf16>, vector<48x128xbf16>, vector<256x128xf32> -> vector<256x128xf32>
    %5 = arith.truncf %4 : vector<256x128xf32> to vector<256x128xbf16>
    %c0_5 = arith.constant 0 : index
    %c0_6 = arith.constant 0 : index
    %c0_7 = arith.constant 0 : index
    %6 = vector.load %arg5[%c0_5, %c0_6, %c0_7] : memref<1x256x128xbf16, #tpu.memory_space<vmem>>, vector<1x256x128xbf16>
    %7 = vector.shape_cast %6 : vector<1x256x128xbf16> to vector<256x128xbf16>
    %8 = vector.shape_cast %5 : vector<256x128xbf16> to vector<1x256x128xbf16>
    tpu.vector_store %arg5[%c0_5, %c0_6, %c0_7], %8 {strides = array<i32>} : memref<1x256x128xbf16, #tpu.memory_space<vmem>>, vector<1x256x128xbf16>,
    return
  }
  func.func @transform_0(%arg0: i32, %arg1: i32, %arg2: i32) -> (i32, i32, i32) {
    %c0_i32 = arith.constant 0 : i32
    %c0_i32_0 = arith.constant 0 : i32
    return %arg0, %arg1, %c0_i32 : i32, i32, i32
  }
  func.func @transform_1(%arg0: i32, %arg1: i32, %arg2: i32) -> (i32, i32, i32) {
    %c0_i32 = arith.constant 0 : i32
    %c0_i32_0 = arith.constant 0 : i32
    return %arg0, %c0_i32, %arg2 : i32, i32, i32
  }
  func.func @transform_2(%arg0: i32, %arg1: i32, %arg2: i32) -> (i32, i32, i32) {
    %c0_i32 = arith.constant 0 : i32
    return %arg0, %arg1, %arg2 : i32, i32, i32
  }
}

module attributes {stable_mosaic.version = 11 : i64} {
  func.func @_mm_kernel(%arg0: i32, %arg1: i32, %arg2: i32, %arg3: memref<1x64x128xbf16, #tpu.memory_space<vmem>>, %arg4: memref<1x128x128xbf16, #tpu.memory_space<vmem>>, %arg5: memref<1x64x128xbf16, #tpu.memory_space<vmem>>, %arg6: memref<1x1x2x128xf32, #tpu.memory_space<vmem>>) attributes {dimension_semantics = [#tpu.dimension_semantics<parallel>, #tpu.dimension_semantics<parallel>, #tpu.dimension_semantics<parallel>], iteration_bounds = array<i64: 1, 2, 1>, scalar_prefetch = 0 : i64, scratch_operands = 0 : i64, tpu.core_type = #tpu.core_type<tc>, window_params = [{transform_indices = @transform_0, window_bounds = array<i64: 1, 64, 128>}, {transform_indices = @transform_1, window_bounds = array<i64: 1, 128, 128>}, {transform_indices = @transform_2, window_bounds = array<i64: 1, 64, 128>}, {transform_indices = @transform_3, window_bounds = array<i64: 1, 1, 2, 128>}]} {
    %c0 = arith.constant 0 : index
    %c0_0 = arith.constant 0 : index
    %c0_1 = arith.constant 0 : index
    %0 = vector.load %arg3[%c0, %c0_0, %c0_1] : memref<1x64x128xbf16, #tpu.memory_space<vmem>>, vector<1x64x128xbf16>
    %1 = vector.shape_cast %0 : vector<1x64x128xbf16> to vector<64x128xbf16>
    %cst = arith.constant 0.000000e+00 : bf16
    %2 = vector.broadcast %cst : bf16 to vector<64x128xbf16>
    %3 = arith.cmpf oge, %1, %2 : vector<64x128xbf16>
    %cst_2 = arith.constant 2.001950e-01 : bf16
    %4 = vector.broadcast %cst_2 : bf16 to vector<64x128xbf16>
    %5 = arith.mulf %4, %1 : vector<64x128xbf16>
    %6 = arith.select %3, %1, %5 : vector<64x128xi1>, vector<64x128xbf16>
    %c0_3 = arith.constant 0 : index
    %c0_4 = arith.constant 0 : index
    %c0_5 = arith.constant 0 : index
    %7 = vector.load %arg4[%c0_3, %c0_4, %c0_5] : memref<1x128x128xbf16, #tpu.memory_space<vmem>>, vector<1x128x128xbf16>
    %8 = vector.shape_cast %7 : vector<1x128x128xbf16> to vector<128x128xbf16>
    %cst_6 = arith.constant dense<0.000000e+00> : vector<64x128xf32>
    %9 = tpu.matmul %6, %8, %cst_6 {dimension_numbers = #tpu.dot_dimension_numbers<[1], [0], [0], [1], [0, 0, 1, 1], [], []>} : vector<64x128xbf16>, vector<128x128xbf16>, vector<64x128xf32> -> vector<64x128xf32>
    %10 = arith.truncf %9 : vector<64x128xf32> to vector<64x128xbf16>
    %c0_7 = arith.constant 0 : index
    %c0_8 = arith.constant 0 : index
    %c0_9 = arith.constant 0 : index
    %11 = vector.load %arg5[%c0_7, %c0_8, %c0_9] : memref<1x64x128xbf16, #tpu.memory_space<vmem>>, vector<1x64x128xbf16>
    %12 = vector.shape_cast %11 : vector<1x64x128xbf16> to vector<64x128xbf16>
    %13 = vector.shape_cast %10 : vector<64x128xbf16> to vector<1x64x128xbf16>
    tpu.vector_store %arg5[%c0_7, %c0_8, %c0_9], %13 {strides = array<i32>} : memref<1x64x128xbf16, #tpu.memory_space<vmem>>, vector<1x64x128xbf16>,
    %14 = tpu.iota {dimensions = array<i32: 0>} : vector<64x128xi32>
    %c64_i32 = arith.constant 64 : i32
    %15 = arith.muli %arg1, %c64_i32 : i32
    %16 = vector.broadcast %15 : i32 to vector<64x128xi32>
    %17 = arith.addi %14, %16 : vector<64x128xi32>
    %c128_i32 = arith.constant 128 : i32
    %18 = vector.broadcast %c128_i32 : i32 to vector<64x128xi32>
    %19 = arith.cmpi slt, %17, %18 : vector<64x128xi32>
    %cst_10 = arith.constant 0.000000e+00 : f32
    %20 = vector.broadcast %cst_10 : f32 to vector<64x128xf32>
    %21 = arith.select %19, %9, %20 : vector<64x128xi1>, vector<64x128xf32>
    %cst_11 = arith.constant dense<0.000000e+00> : vector<128xf32>
    %22 = vector.multi_reduction <add>, %21, %cst_11 [0] : vector<64x128xf32> to vector<128xf32>
    %23 = vector.shape_cast %22 : vector<128xf32> to vector<1x128xf32>
    %24 = arith.mulf %21, %21 : vector<64x128xf32>
    %cst_12 = arith.constant dense<0.000000e+00> : vector<128xf32>
    %25 = vector.multi_reduction <add>, %24, %cst_12 [0] : vector<64x128xf32> to vector<128xf32>
    %26 = vector.shape_cast %25 : vector<128xf32> to vector<1x128xf32>
    %27 = tpu.concatenate %23, %26 in 0 : vector<1x128xf32>, vector<1x128xf32> -> vector<2x128xf32>
    %c0_13 = arith.constant 0 : index
    %c0_14 = arith.constant 0 : index
    %c0_15 = arith.constant 0 : index
    %c0_16 = arith.constant 0 : index
    %28 = vector.load %arg6[%c0_13, %c0_14, %c0_15, %c0_16] : memref<1x1x2x128xf32, #tpu.memory_space<vmem>>, vector<1x1x2x128xf32>
    %29 = vector.shape_cast %28 : vector<1x1x2x128xf32> to vector<2x128xf32>
    %30 = vector.shape_cast %27 : vector<2x128xf32> to vector<1x1x2x128xf32>
    tpu.vector_store %arg6[%c0_13, %c0_14, %c0_15, %c0_16], %30 {strides = array<i32>} : memref<1x1x2x128xf32, #tpu.memory_space<vmem>>, vector<1x1x2x128xf32>,
    return
  }
  func.func @transform_0(%arg0: i32, %arg1: i32, %arg2: i32) -> (i32, i32, i32) {
    %c0_i32 = arith.constant 0 : i32
    %c0_i32_0 = arith.constant 0 : i32
    return %arg0, %arg1, %c0_i32 : i32, i32, i32
  }
  func.func @transform_1(%arg0: i32, %arg1: i32, %arg2: i32) -> (i32, i32, i32) {
    %c0_i32 = arith.constant 0 : i32
    %c0_i32_0 = arith.constant 0 : i32
    return %arg0, %c0_i32, %arg2 : i32, i32, i32
  }
  func.func @transform_2(%arg0: i32, %arg1: i32, %arg2: i32) -> (i32, i32, i32) {
    %c0_i32 = arith.constant 0 : i32
    return %arg0, %arg1, %arg2 : i32, i32, i32
  }
  func.func @transform_3(%arg0: i32, %arg1: i32, %arg2: i32) -> (i32, i32, i32, i32) {
    %c0_i32 = arith.constant 0 : i32
    %c0_i32_0 = arith.constant 0 : i32
    return %arg0, %arg1, %c0_i32, %arg2 : i32, i32, i32, i32
  }
}

module attributes {stable_mosaic.version = 11 : i64} {
  func.func @_mm_kernel(%arg0: i32, %arg1: i32, %arg2: i32, %arg3: memref<1x16x256xbf16, #tpu.memory_space<vmem>>, %arg4: memref<1x256x128xbf16, #tpu.memory_space<vmem>>, %arg5: memref<1x256xf32, #tpu.memory_space<vmem>>, %arg6: memref<1x256xf32, #tpu.memory_space<vmem>>, %arg7: memref<1x16x128xbf16, #tpu.memory_space<vmem>>, %arg8: memref<1x1x2x128xf32, #tpu.memory_space<vmem>>) attributes {dimension_semantics = [#tpu.dimension_semantics<parallel>, #tpu.dimension_semantics<parallel>, #tpu.dimension_semantics<parallel>], iteration_bounds = array<i64: 1, 2, 1>, scalar_prefetch = 0 : i64, scratch_operands = 0 : i64, tpu.core_type = #tpu.core_type<tc>, window_params = [{transform_indices = @transform_0, window_bounds = array<i64: 1, 16, 256>}, {transform_indices = @transform_1, window_bounds = array<i64: 1, 256, 128>}, {pipeline_mode = #tpu.pipeline_mode<synchronous>, transform_indices = @transform_2, window_bounds = array<i64: 1, 256>}, {pipeline_mode = #tpu.pipeline_mode<synchronous>, transform_indices = @transform_3, window_bounds = array<i64: 1, 256>}, {transform_indices = @transform_4, window_bounds = array<i64: 1, 16, 128>}, {transform_indices = @transform_5, window_bounds = array<i64: 1, 1, 2, 128>}]} {
    %c0 = arith.constant 0 : index
    %c0_0 = arith.constant 0 : index
    %c0_1 = arith.constant 0 : index
    %0 = vector.load %arg3[%c0, %c0_0, %c0_1] : memref<1x16x256xbf16, #tpu.memory_space<vmem>>, vector<1x16x256xbf16>
    %1 = vector.shape_cast %0 : vector<1x16x256xbf16> to vector<16x256xbf16>
    %2 = arith.extf %1 : vector<16x256xbf16> to vector<16x256xf32>
    %c0_2 = arith.constant 0 : index
    %c0_3 = arith.constant 0 : index
    %3 = vector.load %arg5[%c0_2, %c0_3] : memref<1x256xf32, #tpu.memory_space<vmem>>, vector<1x256xf32>
    %4 = vector.broadcast %3 : vector<1x256xf32> to vector<16x256xf32>
    %5 = arith.mulf %2, %4 : vector<16x256xf32>
    %c0_4 = arith.constant 0 : index
    %c0_5 = arith.constant 0 : index
    %6 = vector.load %arg6[%c0_4, %c0_5] : memref<1x256xf32, #tpu.memory_space<vmem>>, vector<1x256xf32>
    %7 = vector.broadcast %6 : vector<1x256xf32> to vector<16x256xf32>
    %8 = arith.addf %5, %7 : vector<16x256xf32>
    %cst = arith.constant 0.000000e+00 : f32
    %9 = vector.broadcast %cst : f32 to vector<16x256xf32>
    %10 = arith.cmpf oge, %8, %9 : vector<16x256xf32>
    %cst_6 = arith.constant 2.000000e-01 : f32
    %11 = vector.broadcast %cst_6 : f32 to vector<16x256xf32>
    %12 = arith.mulf %11, %8 : vector<16x256xf32>
    %13 = arith.select %10, %8, %12 : vector<16x256xi1>, vector<16x256xf32>
    %14 = arith.truncf %13 : vector<16x256xf32> to vector<16x256xbf16>
    %c0_7 = arith.constant 0 : index
    %c0_8 = arith.constant 0 : index
    %c0_9 = arith.constant 0 : index
    %15 = vector.load %arg4[%c0_7, %c0_8, %c0_9] : memref<1x256x128xbf16, #tpu.memory_space<vmem>>, vector<1x256x128xbf16>
    %16 = vector.shape_cast %15 : vector<1x256x128xbf16> to vector<256x128xbf16>
    %cst_10 = arith.constant dense<0.000000e+00> : vector<16x128xf32>
    %17 = tpu.matmul %14, %16, %cst_10 {dimension_numbers = #tpu.dot_dimension_numbers<[1], [0], [0], [1], [0, 0, 1, 1], [], []>} : vector<16x256xbf16>, vector<256x128xbf16>, vector<16x128xf32> -> vector<16x128xf32>
    %18 = arith.truncf %17 : vector<16x128xf32> to vector<16x128xbf16>
    %c0_11 = arith.constant 0 : index
    %c0_12 = arith.constant 0 : index
    %c0_13 = arith.constant 0 : index
    %19 = vector.load %arg7[%c0_11, %c0_12, %c0_13] : memref<1x16x128xbf16, #tpu.memory_space<vmem>>, vector<1x16x128xbf16>
    %20 = vector.shape_cast %19 : vector<1x16x128xbf16> to vector<16x128xbf16>
    %21 = vector.shape_cast %18 : vector<16x128xbf16> to vector<1x16x128xbf16>
    tpu.vector_store %arg7[%c0_11, %c0_12, %c0_13], %21 {strides = array<i32>} : memref<1x16x128xbf16, #tpu.memory_space<vmem>>, vector<1x16x128xbf16>,
    %22 = tpu.iota {dimensions = array<i32: 0>} : vector<16x128xi32>
    %c16_i32 = arith.constant 16 : i32
    %23 = arith.muli %arg1, %c16_i32 : i32
    %24 = vector.broadcast %23 : i32 to vector<16x128xi32>
    %25 = arith.addi %22, %24 : vector<16x128xi32>
    %c32_i32 = arith.constant 32 : i32
    %26 = vector.broadcast %c32_i32 : i32 to vector<16x128xi32>
    %27 = arith.cmpi slt, %25, %26 : vector<16x128xi32>
    %cst_14 = arith.constant 0.000000e+00 : f32
    %28 = vector.broadcast %cst_14 : f32 to vector<16x128xf32>
    %29 = arith.select %27, %17, %28 : vector<16x128xi1>, vector<16x128xf32>
    %cst_15 = arith.constant dense<0.000000e+00> : vector<128xf32>
    %30 = vector.multi_reduction <add>, %29, %cst_15 [0] : vector<16x128xf32> to vector<128xf32>
    %31 = vector.shape_cast %30 : vector<128xf32> to vector<1x128xf32>
    %32 = arith.mulf %29, %29 : vector<16x128xf32>
    %cst_16 = arith.constant dense<0.000000e+00> : vector<128xf32>
    %33 = vector.multi_reduction <add>, %32, %cst_16 [0] : vector<16x128xf32> to vector<128xf32>
    %34 = vector.shape_cast %33 : vector<128xf32> to vector<1x128xf32>
    %35 = tpu.concatenate %31, %34 in 0 : vector<1x128xf32>, vector<1x128xf32> -> vector<2x128xf32>
    %c0_17 = arith.constant 0 : index
    %c0_18 = arith.constant 0 : index
    %c0_19 = arith.constant 0 : index
    %c0_20 = arith.constant 0 : index
    %36 = vector.load %arg8[%c0_17, %c0_18, %c0_19, %c0_20] : memref<1x1x2x128xf32, #tpu.memory_space<vmem>>, vector<1x1x2x128xf32>
    %37 = vector.shape_cast %36 : vector<1x1x2x128xf32> to vector<2x128xf32>
    %38 = vector.shape_cast %35 : vector<2x128xf32> to vector<1x1x2x128xf32>
    tpu.vector_store %arg8[%c0_17, %c0_18, %c0_19, %c0_20], %38 {strides = array<i32>} : memref<1x1x2x128xf32, #tpu.memory_space<vmem>>, vector<1x1x2x128xf32>,
    return
  }
  func.func @transform_0(%arg0: i32, %arg1: i32, %arg2: i32) -> (i32, i32, i32) {
    %c0_i32 = arith.constant 0 : i32
    %c0_i32_0 = arith.constant 0 : i32
    return %arg0, %arg1, %c0_i32 : i32, i32, i32
  }
  func.func @transform_1(%arg0: i32, %arg1: i32, %arg2: i32) -> (i32, i32, i32) {
    %c0_i32 = arith.constant 0 : i32
    %c0_i32_0 = arith.constant 0 : i32
    return %arg0, %c0_i32, %arg2 : i32, i32, i32
  }
  func.func @transform_2(%arg0: i32, %arg1: i32, %arg2: i32) -> (i32, i32) {
    %c0_i32 = arith.constant 0 : i32
    %c0_i32_0 = arith.constant 0 : i32
    %c0_i32_1 = arith.constant 0 : i32
    return %c0_i32, %c0_i32_0 : i32, i32
  }
  func.func @transform_3(%arg0: i32, %arg1: i32, %arg2: i32) -> (i32, i32) {
    %c0_i32 = arith.constant 0 : i32
    %c0_i32_0 = arith.constant 0 : i32
    %c0_i32_1 = arith.constant 0 : i32
    return %c0_i32, %c0_i32_0 : i32, i32
  }
  func.func @transform_4(%arg0: i32, %arg1: i32, %arg2: i32) -> (i32, i32, i32) {
    %c0_i32 = arith.constant 0 : i32
    return %arg0, %arg1, %arg2 : i32, i32, i32
  }
  func.func @transform_5(%arg0: i32, %arg1: i32, %arg2: i32) -> (i32, i32, i32, i32) {
    %c0_i32 = arith.constant 0 : i32
    %c0_i32_0 = arith.constant 0 : i32
    return %arg0, %arg1, %c0_i32, %arg2 : i32, i32, i32, i32
  }
}

module attributes {stable_mosaic.version = 11 : i64} {
  func.func @_mm_kernel(%arg0: i32, %arg1: i32, %arg2: i32, %arg3: memref<1x16x512xbf16, #tpu.memory_space<vmem>>, %arg4: memref<1x512x128xbf16, #tpu.memory_space<vmem>>, %arg5: memref<1x512xf32, #tpu.memory_space<vmem>>, %arg6: memref<1x512xf32, #tpu.memory_space<vmem>>, %arg7: memref<1x16x128xbf16, #tpu.memory_space<vmem>>, %arg8: memref<1x1x2x128xf32, #tpu.memory_space<vmem>>) attributes {dimension_semantics = [#tpu.dimension_semantics<parallel>, #tpu.dimension_semantics<parallel>, #tpu.dimension_semantics<parallel>], iteration_bounds = array<i64: 1, 1, 1>, scalar_prefetch = 0 : i64, scratch_operands = 0 : i64, tpu.core_type = #tpu.core_type<tc>, window_params = [{transform_indices = @transform_0, window_bounds = array<i64: 1, 16, 512>}, {transform_indices = @transform_1, window_bounds = array<i64: 1, 512, 128>}, {pipeline_mode = #tpu.pipeline_mode<synchronous>, transform_indices = @transform_2, window_bounds = array<i64: 1, 512>}, {pipeline_mode = #tpu.pipeline_mode<synchronous>, transform_indices = @transform_3, window_bounds = array<i64: 1, 512>}, {transform_indices = @transform_4, window_bounds = array<i64: 1, 16, 128>}, {transform_indices = @transform_5, window_bounds = array<i64: 1, 1, 2, 128>}]} {
    %c0 = arith.constant 0 : index
    %c0_0 = arith.constant 0 : index
    %c0_1 = arith.constant 0 : index
    %0 = vector.load %arg3[%c0, %c0_0, %c0_1] : memref<1x16x512xbf16, #tpu.memory_space<vmem>>, vector<1x16x512xbf16>
    %1 = vector.shape_cast %0 : vector<1x16x512xbf16> to vector<16x512xbf16>
    %2 = arith.extf %1 : vector<16x512xbf16> to vector<16x512xf32>
    %c0_2 = arith.constant 0 : index
    %c0_3 = arith.constant 0 : index
    %3 = vector.load %arg5[%c0_2, %c0_3] : memref<1x512xf32, #tpu.memory_space<vmem>>, vector<1x512xf32>
    %4 = vector.broadcast %3 : vector<1x512xf32> to vector<16x512xf32>
    %5 = arith.mulf %2, %4 : vector<16x512xf32>
    %c0_4 = arith.constant 0 : index
    %c0_5 = arith.constant 0 : index
    %6 = vector.load %arg6[%c0_4, %c0_5] : memref<1x512xf32, #tpu.memory_space<vmem>>, vector<1x512xf32>
    %7 = vector.broadcast %6 : vector<1x512xf32> to vector<16x512xf32>
    %8 = arith.addf %5, %7 : vector<16x512xf32>
    %cst = arith.constant 0.000000e+00 : f32
    %9 = vector.broadcast %cst : f32 to vector<16x512xf32>
    %10 = arith.cmpf oge, %8, %9 : vector<16x512xf32>
    %cst_6 = arith.constant 2.000000e-01 : f32
    %11 = vector.broadcast %cst_6 : f32 to vector<16x512xf32>
    %12 = arith.mulf %11, %8 : vector<16x512xf32>
    %13 = arith.select %10, %8, %12 : vector<16x512xi1>, vector<16x512xf32>
    %14 = arith.truncf %13 : vector<16x512xf32> to vector<16x512xbf16>
    %c0_7 = arith.constant 0 : index
    %c0_8 = arith.constant 0 : index
    %c0_9 = arith.constant 0 : index
    %15 = vector.load %arg4[%c0_7, %c0_8, %c0_9] : memref<1x512x128xbf16, #tpu.memory_space<vmem>>, vector<1x512x128xbf16>
    %16 = vector.shape_cast %15 : vector<1x512x128xbf16> to vector<512x128xbf16>
    %cst_10 = arith.constant dense<0.000000e+00> : vector<16x128xf32>
    %17 = tpu.matmul %14, %16, %cst_10 {dimension_numbers = #tpu.dot_dimension_numbers<[1], [0], [0], [1], [0, 0, 1, 1], [], []>} : vector<16x512xbf16>, vector<512x128xbf16>, vector<16x128xf32> -> vector<16x128xf32>
    %18 = arith.truncf %17 : vector<16x128xf32> to vector<16x128xbf16>
    %c0_11 = arith.constant 0 : index
    %c0_12 = arith.constant 0 : index
    %c0_13 = arith.constant 0 : index
    %19 = vector.load %arg7[%c0_11, %c0_12, %c0_13] : memref<1x16x128xbf16, #tpu.memory_space<vmem>>, vector<1x16x128xbf16>
    %20 = vector.shape_cast %19 : vector<1x16x128xbf16> to vector<16x128xbf16>
    %21 = vector.shape_cast %18 : vector<16x128xbf16> to vector<1x16x128xbf16>
    tpu.vector_store %arg7[%c0_11, %c0_12, %c0_13], %21 {strides = array<i32>} : memref<1x16x128xbf16, #tpu.memory_space<vmem>>, vector<1x16x128xbf16>,
    %22 = tpu.iota {dimensions = array<i32: 0>} : vector<16x128xi32>
    %c16_i32 = arith.constant 16 : i32
    %23 = arith.muli %arg1, %c16_i32 : i32
    %24 = vector.broadcast %23 : i32 to vector<16x128xi32>
    %25 = arith.addi %22, %24 : vector<16x128xi32>
    %c8_i32 = arith.constant 8 : i32
    %26 = vector.broadcast %c8_i32 : i32 to vector<16x128xi32>
    %27 = arith.cmpi slt, %25, %26 : vector<16x128xi32>
    %cst_14 = arith.constant 0.000000e+00 : f32
    %28 = vector.broadcast %cst_14 : f32 to vector<16x128xf32>
    %29 = arith.select %27, %17, %28 : vector<16x128xi1>, vector<16x128xf32>
    %cst_15 = arith.constant dense<0.000000e+00> : vector<128xf32>
    %30 = vector.multi_reduction <add>, %29, %cst_15 [0] : vector<16x128xf32> to vector<128xf32>
    %31 = vector.shape_cast %30 : vector<128xf32> to vector<1x128xf32>
    %32 = arith.mulf %29, %29 : vector<16x128xf32>
    %cst_16 = arith.constant dense<0.000000e+00> : vector<128xf32>
    %33 = vector.multi_reduction <add>, %32, %cst_16 [0] : vector<16x128xf32> to vector<128xf32>
    %34 = vector.shape_cast %33 : vector<128xf32> to vector<1x128xf32>
    %35 = tpu.concatenate %31, %34 in 0 : vector<1x128xf32>, vector<1x128xf32> -> vector<2x128xf32>
    %c0_17 = arith.constant 0 : index
    %c0_18 = arith.constant 0 : index
    %c0_19 = arith.constant 0 : index
    %c0_20 = arith.constant 0 : index
    %36 = vector.load %arg8[%c0_17, %c0_18, %c0_19, %c0_20] : memref<1x1x2x128xf32, #tpu.memory_space<vmem>>, vector<1x1x2x128xf32>
    %37 = vector.shape_cast %36 : vector<1x1x2x128xf32> to vector<2x128xf32>
    %38 = vector.shape_cast %35 : vector<2x128xf32> to vector<1x1x2x128xf32>
    tpu.vector_store %arg8[%c0_17, %c0_18, %c0_19, %c0_20], %38 {strides = array<i32>} : memref<1x1x2x128xf32, #tpu.memory_space<vmem>>, vector<1x1x2x128xf32>,
    return
  }
  func.func @transform_0(%arg0: i32, %arg1: i32, %arg2: i32) -> (i32, i32, i32) {
    %c0_i32 = arith.constant 0 : i32
    %c0_i32_0 = arith.constant 0 : i32
    return %arg0, %arg1, %c0_i32 : i32, i32, i32
  }
  func.func @transform_1(%arg0: i32, %arg1: i32, %arg2: i32) -> (i32, i32, i32) {
    %c0_i32 = arith.constant 0 : i32
    %c0_i32_0 = arith.constant 0 : i32
    return %arg0, %c0_i32, %arg2 : i32, i32, i32
  }
  func.func @transform_2(%arg0: i32, %arg1: i32, %arg2: i32) -> (i32, i32) {
    %c0_i32 = arith.constant 0 : i32
    %c0_i32_0 = arith.constant 0 : i32
    %c0_i32_1 = arith.constant 0 : i32
    return %c0_i32, %c0_i32_0 : i32, i32
  }
  func.func @transform_3(%arg0: i32, %arg1: i32, %arg2: i32) -> (i32, i32) {
    %c0_i32 = arith.constant 0 : i32
    %c0_i32_0 = arith.constant 0 : i32
    %c0_i32_1 = arith.constant 0 : i32
    return %c0_i32, %c0_i32_0 : i32, i32
  }
  func.func @transform_4(%arg0: i32, %arg1: i32, %arg2: i32) -> (i32, i32, i32) {
    %c0_i32 = arith.constant 0 : i32
    return %arg0, %arg1, %arg2 : i32, i32, i32
  }
  func.func @transform_5(%arg0: i32, %arg1: i32, %arg2: i32) -> (i32, i32, i32, i32) {
    %c0_i32 = arith.constant 0 : i32
    %c0_i32_0 = arith.constant 0 : i32
    return %arg0, %arg1, %c0_i32, %arg2 : i32, i32, i32, i32
  }
}

module attributes {stable_mosaic.version = 11 : i64} {
  func.func @_mm_kernel(%arg0: i32, %arg1: i32, %arg2: i32, %arg3: memref<1x16x1024xbf16, #tpu.memory_space<vmem>>, %arg4: memref<1x1024x128xbf16, #tpu.memory_space<vmem>>, %arg5: memref<1x1024xf32, #tpu.memory_space<vmem>>, %arg6: memref<1x1024xf32, #tpu.memory_space<vmem>>, %arg7: memref<1x16x128xbf16, #tpu.memory_space<vmem>>) attributes {dimension_semantics = [#tpu.dimension_semantics<parallel>, #tpu.dimension_semantics<parallel>, #tpu.dimension_semantics<parallel>], iteration_bounds = array<i64: 1, 1, 1>, scalar_prefetch = 0 : i64, scratch_operands = 0 : i64, tpu.core_type = #tpu.core_type<tc>, window_params = [{transform_indices = @transform_0, window_bounds = array<i64: 1, 16, 1024>}, {transform_indices = @transform_1, window_bounds = array<i64: 1, 1024, 128>}, {pipeline_mode = #tpu.pipeline_mode<synchronous>, transform_indices = @transform_2, window_bounds = array<i64: 1, 1024>}, {pipeline_mode = #tpu.pipeline_mode<synchronous>, transform_indices = @transform_3, window_bounds = array<i64: 1, 1024>}, {transform_indices = @transform_4, window_bounds = array<i64: 1, 16, 128>}]} {
    %c0 = arith.constant 0 : index
    %c0_0 = arith.constant 0 : index
    %c0_1 = arith.constant 0 : index
    %0 = vector.load %arg3[%c0, %c0_0, %c0_1] : memref<1x16x1024xbf16, #tpu.memory_space<vmem>>, vector<1x16x1024xbf16>
    %1 = vector.shape_cast %0 : vector<1x16x1024xbf16> to vector<16x1024xbf16>
    %2 = arith.extf %1 : vector<16x1024xbf16> to vector<16x1024xf32>
    %c0_2 = arith.constant 0 : index
    %c0_3 = arith.constant 0 : index
    %3 = vector.load %arg5[%c0_2, %c0_3] : memref<1x1024xf32, #tpu.memory_space<vmem>>, vector<1x1024xf32>
    %4 = vector.broadcast %3 : vector<1x1024xf32> to vector<16x1024xf32>
    %5 = arith.mulf %2, %4 : vector<16x1024xf32>
    %c0_4 = arith.constant 0 : index
    %c0_5 = arith.constant 0 : index
    %6 = vector.load %arg6[%c0_4, %c0_5] : memref<1x1024xf32, #tpu.memory_space<vmem>>, vector<1x1024xf32>
    %7 = vector.broadcast %6 : vector<1x1024xf32> to vector<16x1024xf32>
    %8 = arith.addf %5, %7 : vector<16x1024xf32>
    %cst = arith.constant 0.000000e+00 : f32
    %9 = vector.broadcast %cst : f32 to vector<16x1024xf32>
    %10 = arith.cmpf oge, %8, %9 : vector<16x1024xf32>
    %cst_6 = arith.constant 2.000000e-01 : f32
    %11 = vector.broadcast %cst_6 : f32 to vector<16x1024xf32>
    %12 = arith.mulf %11, %8 : vector<16x1024xf32>
    %13 = arith.select %10, %8, %12 : vector<16x1024xi1>, vector<16x1024xf32>
    %14 = arith.truncf %13 : vector<16x1024xf32> to vector<16x1024xbf16>
    %c0_7 = arith.constant 0 : index
    %c0_8 = arith.constant 0 : index
    %c0_9 = arith.constant 0 : index
    %15 = vector.load %arg4[%c0_7, %c0_8, %c0_9] : memref<1x1024x128xbf16, #tpu.memory_space<vmem>>, vector<1x1024x128xbf16>
    %16 = vector.shape_cast %15 : vector<1x1024x128xbf16> to vector<1024x128xbf16>
    %cst_10 = arith.constant dense<0.000000e+00> : vector<16x128xf32>
    %17 = tpu.matmul %14, %16, %cst_10 {dimension_numbers = #tpu.dot_dimension_numbers<[1], [0], [0], [1], [0, 0, 1, 1], [], []>} : vector<16x1024xbf16>, vector<1024x128xbf16>, vector<16x128xf32> -> vector<16x128xf32>
    %18 = arith.truncf %17 : vector<16x128xf32> to vector<16x128xbf16>
    %c0_11 = arith.constant 0 : index
    %c0_12 = arith.constant 0 : index
    %c0_13 = arith.constant 0 : index
    %19 = vector.load %arg7[%c0_11, %c0_12, %c0_13] : memref<1x16x128xbf16, #tpu.memory_space<vmem>>, vector<1x16x128xbf16>
    %20 = vector.shape_cast %19 : vector<1x16x128xbf16> to vector<16x128xbf16>
    %21 = vector.shape_cast %18 : vector<16x128xbf16> to vector<1x16x128xbf16>
    tpu.vector_store %arg7[%c0_11, %c0_12, %c0_13], %21 {strides = array<i32>} : memref<1x16x128xbf16, #tpu.memory_space<vmem>>, vector<1x16x128xbf16>,
    return
  }
  func.func @transform_0(%arg0: i32, %arg1: i32, %arg2: i32) -> (i32, i32, i32) {
    %c0_i32 = arith.constant 0 : i32
    %c0_i32_0 = arith.constant 0 : i32
    return %arg0, %arg1, %c0_i32 : i32, i32, i32
  }
  func.func @transform_1(%arg0: i32, %arg1: i32, %arg2: i32) -> (i32, i32, i32) {
    %c0_i32 = arith.constant 0 : i32
    %c0_i32_0 = arith.constant 0 : i32
    return %arg0, %c0_i32, %arg2 : i32, i32, i32
  }
  func.func @transform_2(%arg0: i32, %arg1: i32, %arg2: i32) -> (i32, i32) {
    %c0_i32 = arith.constant 0 : i32
    %c0_i32_0 = arith.constant 0 : i32
    %c0_i32_1 = arith.constant 0 : i32
    return %c0_i32, %c0_i32_0 : i32, i32
  }
  func.func @transform_3(%arg0: i32, %arg1: i32, %arg2: i32) -> (i32, i32) {
    %c0_i32 = arith.constant 0 : i32
    %c0_i32_0 = arith.constant 0 : i32
    %c0_i32_1 = arith.constant 0 : i32
    return %c0_i32, %c0_i32_0 : i32, i32
  }
  func.func @transform_4(%arg0: i32, %arg1: i32, %arg2: i32) -> (i32, i32, i32) {
    %c0_i32 = arith.constant 0 : i32
    return %arg0, %arg1, %arg2 : i32, i32, i32
  }
}

module attributes {stable_mosaic.version = 11 : i64} {
  func.func @_mm_kernel(%arg0: i32, %arg1: i32, %arg2: i32, %arg3: memref<1x16x256xbf16, #tpu.memory_space<vmem>>, %arg4: memref<1x256x128xbf16, #tpu.memory_space<vmem>>, %arg5: memref<1x16x128xbf16, #tpu.memory_space<vmem>>, %arg6: memref<1x1x2x128xf32, #tpu.memory_space<vmem>>) attributes {dimension_semantics = [#tpu.dimension_semantics<parallel>, #tpu.dimension_semantics<parallel>, #tpu.dimension_semantics<parallel>], iteration_bounds = array<i64: 4, 1, 1>, scalar_prefetch = 0 : i64, scratch_operands = 0 : i64, tpu.core_type = #tpu.core_type<tc>, window_params = [{transform_indices = @transform_0, window_bounds = array<i64: 1, 16, 256>}, {transform_indices = @transform_1, window_bounds = array<i64: 1, 256, 128>}, {transform_indices = @transform_2, window_bounds = array<i64: 1, 16, 128>}, {transform_indices = @transform_3, window_bounds = array<i64: 1, 1, 2, 128>}]} {
    %c0 = arith.constant 0 : index
    %c0_0 = arith.constant 0 : index
    %c0_1 = arith.constant 0 : index
    %0 = vector.load %arg3[%c0, %c0_0, %c0_1] : memref<1x16x256xbf16, #tpu.memory_space<vmem>>, vector<1x16x256xbf16>
    %1 = vector.shape_cast %0 : vector<1x16x256xbf16> to vector<16x256xbf16>
    %cst = arith.constant 0.000000e+00 : bf16
    %2 = vector.broadcast %cst : bf16 to vector<16x256xbf16>
    %3 = arith.maximumf %1, %2 : vector<16x256xbf16>
    %c0_2 = arith.constant 0 : index
    %c0_3 = arith.constant 0 : index
    %c0_4 = arith.constant 0 : index
    %4 = vector.load %arg4[%c0_2, %c0_3, %c0_4] : memref<1x256x128xbf16, #tpu.memory_space<vmem>>, vector<1x256x128xbf16>
    %5 = vector.shape_cast %4 : vector<1x256x128xbf16> to vector<256x128xbf16>
    %cst_5 = arith.constant dense<0.000000e+00> : vector<16x128xf32>
    %6 = tpu.matmul %3, %5, %cst_5 {dimension_numbers = #tpu.dot_dimension_numbers<[1], [0], [0], [1], [0, 0, 1, 1], [], []>} : vector<16x256xbf16>, vector<256x128xbf16>, vector<16x128xf32> -> vector<16x128xf32>
    %7 = arith.truncf %6 : vector<16x128xf32> to vector<16x128xbf16>
    %c0_6 = arith.constant 0 : index
    %c0_7 = arith.constant 0 : index
    %c0_8 = arith.constant 0 : index
    %8 = vector.load %arg5[%c0_6, %c0_7, %c0_8] : memref<1x16x128xbf16, #tpu.memory_space<vmem>>, vector<1x16x128xbf16>
    %9 = vector.shape_cast %8 : vector<1x16x128xbf16> to vector<16x128xbf16>
    %10 = vector.shape_cast %7 : vector<16x128xbf16> to vector<1x16x128xbf16>
    tpu.vector_store %arg5[%c0_6, %c0_7, %c0_8], %10 {strides = array<i32>} : memref<1x16x128xbf16, #tpu.memory_space<vmem>>, vector<1x16x128xbf16>,
    %11 = tpu.iota {dimensions = array<i32: 0>} : vector<16x128xi32>
    %c16_i32 = arith.constant 16 : i32
    %12 = arith.muli %arg1, %c16_i32 : i32
    %13 = vector.broadcast %12 : i32 to vector<16x128xi32>
    %14 = arith.addi %11, %13 : vector<16x128xi32>
    %c2_i32 = arith.constant 2 : i32
    %15 = vector.broadcast %c2_i32 : i32 to vector<16x128xi32>
    %16 = arith.cmpi slt, %14, %15 : vector<16x128xi32>
    %cst_9 = arith.constant 0.000000e+00 : f32
    %17 = vector.broadcast %cst_9 : f32 to vector<16x128xf32>
    %18 = arith.select %16, %6, %17 : vector<16x128xi1>, vector<16x128xf32>
    %cst_10 = arith.constant dense<0.000000e+00> : vector<128xf32>
    %19 = vector.multi_reduction <add>, %18, %cst_10 [0] : vector<16x128xf32> to vector<128xf32>
    %20 = vector.shape_cast %19 : vector<128xf32> to vector<1x128xf32>
    %21 = arith.mulf %18, %18 : vector<16x128xf32>
    %cst_11 = arith.constant dense<0.000000e+00> : vector<128xf32>
    %22 = vector.multi_reduction <add>, %21, %cst_11 [0] : vector<16x128xf32> to vector<128xf32>
    %23 = vector.shape_cast %22 : vector<128xf32> to vector<1x128xf32>
    %24 = tpu.concatenate %20, %23 in 0 : vector<1x128xf32>, vector<1x128xf32> -> vector<2x128xf32>
    %c0_12 = arith.constant 0 : index
    %c0_13 = arith.constant 0 : index
    %c0_14 = arith.constant 0 : index
    %c0_15 = arith.constant 0 : index
    %25 = vector.load %arg6[%c0_12, %c0_13, %c0_14, %c0_15] : memref<1x1x2x128xf32, #tpu.memory_space<vmem>>, vector<1x1x2x128xf32>
    %26 = vector.shape_cast %25 : vector<1x1x2x128xf32> to vector<2x128xf32>
    %27 = vector.shape_cast %24 : vector<2x128xf32> to vector<1x1x2x128xf32>
    tpu.vector_store %arg6[%c0_12, %c0_13, %c0_14, %c0_15], %27 {strides = array<i32>} : memref<1x1x2x128xf32, #tpu.memory_space<vmem>>, vector<1x1x2x128xf32>,
    return
  }
  func.func @transform_0(%arg0: i32, %arg1: i32, %arg2: i32) -> (i32, i32, i32) {
    %c0_i32 = arith.constant 0 : i32
    %c0_i32_0 = arith.constant 0 : i32
    return %arg0, %arg1, %c0_i32 : i32, i32, i32
  }
  func.func @transform_1(%arg0: i32, %arg1: i32, %arg2: i32) -> (i32, i32, i32) {
    %c0_i32 = arith.constant 0 : i32
    %c0_i32_0 = arith.constant 0 : i32
    return %arg0, %c0_i32, %arg2 : i32, i32, i32
  }
  func.func @transform_2(%arg0: i32, %arg1: i32, %arg2: i32) -> (i32, i32, i32) {
    %c0_i32 = arith.constant 0 : i32
    return %arg0, %arg1, %arg2 : i32, i32, i32
  }
  func.func @transform_3(%arg0: i32, %arg1: i32, %arg2: i32) -> (i32, i32, i32, i32) {
    %c0_i32 = arith.constant 0 : i32
    %c0_i32_0 = arith.constant 0 : i32
    return %arg0, %arg1, %c0_i32, %arg2 : i32, i32, i32, i32
  }
}

module attributes {stable_mosaic.version = 11 : i64} {
  func.func @_mm_kernel(%arg0: i32, %arg1: i32, %arg2: i32, %arg3: memref<1x16x512xbf16, #tpu.memory_space<vmem>>, %arg4: memref<1x512x128xbf16, #tpu.memory_space<vmem>>, %arg5: memref<1x512xf32, #tpu.memory_space<vmem>>, %arg6: memref<1x512xf32, #tpu.memory_space<vmem>>, %arg7: memref<1x16x128xbf16, #tpu.memory_space<vmem>>, %arg8: memref<1x1x2x128xf32, #tpu.memory_space<vmem>>) attributes {dimension_semantics = [#tpu.dimension_semantics<parallel>, #tpu.dimension_semantics<parallel>, #tpu.dimension_semantics<parallel>], iteration_bounds = array<i64: 4, 1, 1>, scalar_prefetch = 0 : i64, scratch_operands = 0 : i64, tpu.core_type = #tpu.core_type<tc>, window_params = [{transform_indices = @transform_0, window_bounds = array<i64: 1, 16, 512>}, {transform_indices = @transform_1, window_bounds = array<i64: 1, 512, 128>}, {pipeline_mode = #tpu.pipeline_mode<synchronous>, transform_indices = @transform_2, window_bounds = array<i64: 1, 512>}, {pipeline_mode = #tpu.pipeline_mode<synchronous>, transform_indices = @transform_3, window_bounds = array<i64: 1, 512>}, {transform_indices = @transform_4, window_bounds = array<i64: 1, 16, 128>}, {transform_indices = @transform_5, window_bounds = array<i64: 1, 1, 2, 128>}]} {
    %c0 = arith.constant 0 : index
    %c0_0 = arith.constant 0 : index
    %c0_1 = arith.constant 0 : index
    %0 = vector.load %arg3[%c0, %c0_0, %c0_1] : memref<1x16x512xbf16, #tpu.memory_space<vmem>>, vector<1x16x512xbf16>
    %1 = vector.shape_cast %0 : vector<1x16x512xbf16> to vector<16x512xbf16>
    %2 = arith.extf %1 : vector<16x512xbf16> to vector<16x512xf32>
    %c0_2 = arith.constant 0 : index
    %c0_3 = arith.constant 0 : index
    %3 = vector.load %arg5[%c0_2, %c0_3] : memref<1x512xf32, #tpu.memory_space<vmem>>, vector<1x512xf32>
    %4 = vector.broadcast %3 : vector<1x512xf32> to vector<16x512xf32>
    %5 = arith.mulf %2, %4 : vector<16x512xf32>
    %c0_4 = arith.constant 0 : index
    %c0_5 = arith.constant 0 : index
    %6 = vector.load %arg6[%c0_4, %c0_5] : memref<1x512xf32, #tpu.memory_space<vmem>>, vector<1x512xf32>
    %7 = vector.broadcast %6 : vector<1x512xf32> to vector<16x512xf32>
    %8 = arith.addf %5, %7 : vector<16x512xf32>
    %cst = arith.constant 0.000000e+00 : f32
    %9 = vector.broadcast %cst : f32 to vector<16x512xf32>
    %10 = arith.maximumf %8, %9 : vector<16x512xf32>
    %11 = arith.truncf %10 : vector<16x512xf32> to vector<16x512xbf16>
    %c0_6 = arith.constant 0 : index
    %c0_7 = arith.constant 0 : index
    %c0_8 = arith.constant 0 : index
    %12 = vector.load %arg4[%c0_6, %c0_7, %c0_8] : memref<1x512x128xbf16, #tpu.memory_space<vmem>>, vector<1x512x128xbf16>
    %13 = vector.shape_cast %12 : vector<1x512x128xbf16> to vector<512x128xbf16>
    %cst_9 = arith.constant dense<0.000000e+00> : vector<16x128xf32>
    %14 = tpu.matmul %11, %13, %cst_9 {dimension_numbers = #tpu.dot_dimension_numbers<[1], [0], [0], [1], [0, 0, 1, 1], [], []>} : vector<16x512xbf16>, vector<512x128xbf16>, vector<16x128xf32> -> vector<16x128xf32>
    %15 = arith.truncf %14 : vector<16x128xf32> to vector<16x128xbf16>
    %c0_10 = arith.constant 0 : index
    %c0_11 = arith.constant 0 : index
    %c0_12 = arith.constant 0 : index
    %16 = vector.load %arg7[%c0_10, %c0_11, %c0_12] : memref<1x16x128xbf16, #tpu.memory_space<vmem>>, vector<1x16x128xbf16>
    %17 = vector.shape_cast %16 : vector<1x16x128xbf16> to vector<16x128xbf16>
    %18 = vector.shape_cast %15 : vector<16x128xbf16> to vector<1x16x128xbf16>
    tpu.vector_store %arg7[%c0_10, %c0_11, %c0_12], %18 {strides = array<i32>} : memref<1x16x128xbf16, #tpu.memory_space<vmem>>, vector<1x16x128xbf16>,
    %19 = tpu.iota {dimensions = array<i32: 0>} : vector<16x128xi32>
    %c16_i32 = arith.constant 16 : i32
    %20 = arith.muli %arg1, %c16_i32 : i32
    %21 = vector.broadcast %20 : i32 to vector<16x128xi32>
    %22 = arith.addi %19, %21 : vector<16x128xi32>
    %c8_i32 = arith.constant 8 : i32
    %23 = vector.broadcast %c8_i32 : i32 to vector<16x128xi32>
    %24 = arith.cmpi slt, %22, %23 : vector<16x128xi32>
    %cst_13 = arith.constant 0.000000e+00 : f32
    %25 = vector.broadcast %cst_13 : f32 to vector<16x128xf32>
    %26 = arith.select %24, %14, %25 : vector<16x128xi1>, vector<16x128xf32>
    %cst_14 = arith.constant dense<0.000000e+00> : vector<128xf32>
    %27 = vector.multi_reduction <add>, %26, %cst_14 [0] : vector<16x128xf32> to vector<128xf32>
    %28 = vector.shape_cast %27 : vector<128xf32> to vector<1x128xf32>
    %29 = arith.mulf %26, %26 : vector<16x128xf32>
    %cst_15 = arith.constant dense<0.000000e+00> : vector<128xf32>
    %30 = vector.multi_reduction <add>, %29, %cst_15 [0] : vector<16x128xf32> to vector<128xf32>
    %31 = vector.shape_cast %30 : vector<128xf32> to vector<1x128xf32>
    %32 = tpu.concatenate %28, %31 in 0 : vector<1x128xf32>, vector<1x128xf32> -> vector<2x128xf32>
    %c0_16 = arith.constant 0 : index
    %c0_17 = arith.constant 0 : index
    %c0_18 = arith.constant 0 : index
    %c0_19 = arith.constant 0 : index
    %33 = vector.load %arg8[%c0_16, %c0_17, %c0_18, %c0_19] : memref<1x1x2x128xf32, #tpu.memory_space<vmem>>, vector<1x1x2x128xf32>
    %34 = vector.shape_cast %33 : vector<1x1x2x128xf32> to vector<2x128xf32>
    %35 = vector.shape_cast %32 : vector<2x128xf32> to vector<1x1x2x128xf32>
    tpu.vector_store %arg8[%c0_16, %c0_17, %c0_18, %c0_19], %35 {strides = array<i32>} : memref<1x1x2x128xf32, #tpu.memory_space<vmem>>, vector<1x1x2x128xf32>,
    return
  }
  func.func @transform_0(%arg0: i32, %arg1: i32, %arg2: i32) -> (i32, i32, i32) {
    %c0_i32 = arith.constant 0 : i32
    %c0_i32_0 = arith.constant 0 : i32
    return %arg0, %arg1, %c0_i32 : i32, i32, i32
  }
  func.func @transform_1(%arg0: i32, %arg1: i32, %arg2: i32) -> (i32, i32, i32) {
    %c0_i32 = arith.constant 0 : i32
    %c0_i32_0 = arith.constant 0 : i32
    return %arg0, %c0_i32, %arg2 : i32, i32, i32
  }
  func.func @transform_2(%arg0: i32, %arg1: i32, %arg2: i32) -> (i32, i32) {
    %c0_i32 = arith.constant 0 : i32
    %c0_i32_0 = arith.constant 0 : i32
    %c0_i32_1 = arith.constant 0 : i32
    return %c0_i32, %c0_i32_0 : i32, i32
  }
  func.func @transform_3(%arg0: i32, %arg1: i32, %arg2: i32) -> (i32, i32) {
    %c0_i32 = arith.constant 0 : i32
    %c0_i32_0 = arith.constant 0 : i32
    %c0_i32_1 = arith.constant 0 : i32
    return %c0_i32, %c0_i32_0 : i32, i32
  }
  func.func @transform_4(%arg0: i32, %arg1: i32, %arg2: i32) -> (i32, i32, i32) {
    %c0_i32 = arith.constant 0 : i32
    return %arg0, %arg1, %arg2 : i32, i32, i32
  }
  func.func @transform_5(%arg0: i32, %arg1: i32, %arg2: i32) -> (i32, i32, i32, i32) {
    %c0_i32 = arith.constant 0 : i32
    %c0_i32_0 = arith.constant 0 : i32
    return %arg0, %arg1, %c0_i32, %arg2 : i32, i32, i32, i32
  }
}

module attributes {stable_mosaic.version = 11 : i64} {
  func.func @_mm_kernel(%arg0: i32, %arg1: i32, %arg2: i32, %arg3: memref<1x32x256xbf16, #tpu.memory_space<vmem>>, %arg4: memref<1x256x128xbf16, #tpu.memory_space<vmem>>, %arg5: memref<1x256xf32, #tpu.memory_space<vmem>>, %arg6: memref<1x256xf32, #tpu.memory_space<vmem>>, %arg7: memref<1x32x128xbf16, #tpu.memory_space<vmem>>, %arg8: memref<1x1x2x128xf32, #tpu.memory_space<vmem>>) attributes {dimension_semantics = [#tpu.dimension_semantics<parallel>, #tpu.dimension_semantics<parallel>, #tpu.dimension_semantics<parallel>], iteration_bounds = array<i64: 4, 1, 1>, scalar_prefetch = 0 : i64, scratch_operands = 0 : i64, tpu.core_type = #tpu.core_type<tc>, window_params = [{transform_indices = @transform_0, window_bounds = array<i64: 1, 32, 256>}, {transform_indices = @transform_1, window_bounds = array<i64: 1, 256, 128>}, {pipeline_mode = #tpu.pipeline_mode<synchronous>, transform_indices = @transform_2, window_bounds = array<i64: 1, 256>}, {pipeline_mode = #tpu.pipeline_mode<synchronous>, transform_indices = @transform_3, window_bounds = array<i64: 1, 256>}, {transform_indices = @transform_4, window_bounds = array<i64: 1, 32, 128>}, {transform_indices = @transform_5, window_bounds = array<i64: 1, 1, 2, 128>}]} {
    %c0 = arith.constant 0 : index
    %c0_0 = arith.constant 0 : index
    %c0_1 = arith.constant 0 : index
    %0 = vector.load %arg3[%c0, %c0_0, %c0_1] : memref<1x32x256xbf16, #tpu.memory_space<vmem>>, vector<1x32x256xbf16>
    %1 = vector.shape_cast %0 : vector<1x32x256xbf16> to vector<32x256xbf16>
    %2 = arith.extf %1 : vector<32x256xbf16> to vector<32x256xf32>
    %c0_2 = arith.constant 0 : index
    %c0_3 = arith.constant 0 : index
    %3 = vector.load %arg5[%c0_2, %c0_3] : memref<1x256xf32, #tpu.memory_space<vmem>>, vector<1x256xf32>
    %4 = vector.broadcast %3 : vector<1x256xf32> to vector<32x256xf32>
    %5 = arith.mulf %2, %4 : vector<32x256xf32>
    %c0_4 = arith.constant 0 : index
    %c0_5 = arith.constant 0 : index
    %6 = vector.load %arg6[%c0_4, %c0_5] : memref<1x256xf32, #tpu.memory_space<vmem>>, vector<1x256xf32>
    %7 = vector.broadcast %6 : vector<1x256xf32> to vector<32x256xf32>
    %8 = arith.addf %5, %7 : vector<32x256xf32>
    %cst = arith.constant 0.000000e+00 : f32
    %9 = vector.broadcast %cst : f32 to vector<32x256xf32>
    %10 = arith.maximumf %8, %9 : vector<32x256xf32>
    %11 = arith.truncf %10 : vector<32x256xf32> to vector<32x256xbf16>
    %c0_6 = arith.constant 0 : index
    %c0_7 = arith.constant 0 : index
    %c0_8 = arith.constant 0 : index
    %12 = vector.load %arg4[%c0_6, %c0_7, %c0_8] : memref<1x256x128xbf16, #tpu.memory_space<vmem>>, vector<1x256x128xbf16>
    %13 = vector.shape_cast %12 : vector<1x256x128xbf16> to vector<256x128xbf16>
    %cst_9 = arith.constant dense<0.000000e+00> : vector<32x128xf32>
    %14 = tpu.matmul %11, %13, %cst_9 {dimension_numbers = #tpu.dot_dimension_numbers<[1], [0], [0], [1], [0, 0, 1, 1], [], []>} : vector<32x256xbf16>, vector<256x128xbf16>, vector<32x128xf32> -> vector<32x128xf32>
    %15 = arith.truncf %14 : vector<32x128xf32> to vector<32x128xbf16>
    %c0_10 = arith.constant 0 : index
    %c0_11 = arith.constant 0 : index
    %c0_12 = arith.constant 0 : index
    %16 = vector.load %arg7[%c0_10, %c0_11, %c0_12] : memref<1x32x128xbf16, #tpu.memory_space<vmem>>, vector<1x32x128xbf16>
    %17 = vector.shape_cast %16 : vector<1x32x128xbf16> to vector<32x128xbf16>
    %18 = vector.shape_cast %15 : vector<32x128xbf16> to vector<1x32x128xbf16>
    tpu.vector_store %arg7[%c0_10, %c0_11, %c0_12], %18 {strides = array<i32>} : memref<1x32x128xbf16, #tpu.memory_space<vmem>>, vector<1x32x128xbf16>,
    %19 = tpu.iota {dimensions = array<i32: 0>} : vector<32x128xi32>
    %c32_i32 = arith.constant 32 : i32
    %20 = arith.muli %arg1, %c32_i32 : i32
    %21 = vector.broadcast %20 : i32 to vector<32x128xi32>
    %22 = arith.addi %19, %21 : vector<32x128xi32>
    %c32_i32_13 = arith.constant 32 : i32
    %23 = vector.broadcast %c32_i32_13 : i32 to vector<32x128xi32>
    %24 = arith.cmpi slt, %22, %23 : vector<32x128xi32>
    %cst_14 = arith.constant 0.000000e+00 : f32
    %25 = vector.broadcast %cst_14 : f32 to vector<32x128xf32>
    %26 = arith.select %24, %14, %25 : vector<32x128xi1>, vector<32x128xf32>
    %cst_15 = arith.constant dense<0.000000e+00> : vector<128xf32>
    %27 = vector.multi_reduction <add>, %26, %cst_15 [0] : vector<32x128xf32> to vector<128xf32>
    %28 = vector.shape_cast %27 : vector<128xf32> to vector<1x128xf32>
    %29 = arith.mulf %26, %26 : vector<32x128xf32>
    %cst_16 = arith.constant dense<0.000000e+00> : vector<128xf32>
    %30 = vector.multi_reduction <add>, %29, %cst_16 [0] : vector<32x128xf32> to vector<128xf32>
    %31 = vector.shape_cast %30 : vector<128xf32> to vector<1x128xf32>
    %32 = tpu.concatenate %28, %31 in 0 : vector<1x128xf32>, vector<1x128xf32> -> vector<2x128xf32>
    %c0_17 = arith.constant 0 : index
    %c0_18 = arith.constant 0 : index
    %c0_19 = arith.constant 0 : index
    %c0_20 = arith.constant 0 : index
    %33 = vector.load %arg8[%c0_17, %c0_18, %c0_19, %c0_20] : memref<1x1x2x128xf32, #tpu.memory_space<vmem>>, vector<1x1x2x128xf32>
    %34 = vector.shape_cast %33 : vector<1x1x2x128xf32> to vector<2x128xf32>
    %35 = vector.shape_cast %32 : vector<2x128xf32> to vector<1x1x2x128xf32>
    tpu.vector_store %arg8[%c0_17, %c0_18, %c0_19, %c0_20], %35 {strides = array<i32>} : memref<1x1x2x128xf32, #tpu.memory_space<vmem>>, vector<1x1x2x128xf32>,
    return
  }
  func.func @transform_0(%arg0: i32, %arg1: i32, %arg2: i32) -> (i32, i32, i32) {
    %c0_i32 = arith.constant 0 : i32
    %c0_i32_0 = arith.constant 0 : i32
    return %arg0, %arg1, %c0_i32 : i32, i32, i32
  }
  func.func @transform_1(%arg0: i32, %arg1: i32, %arg2: i32) -> (i32, i32, i32) {
    %c0_i32 = arith.constant 0 : i32
    %c0_i32_0 = arith.constant 0 : i32
    return %arg0, %c0_i32, %arg2 : i32, i32, i32
  }
  func.func @transform_2(%arg0: i32, %arg1: i32, %arg2: i32) -> (i32, i32) {
    %c0_i32 = arith.constant 0 : i32
    %c0_i32_0 = arith.constant 0 : i32
    %c0_i32_1 = arith.constant 0 : i32
    return %c0_i32, %c0_i32_0 : i32, i32
  }
  func.func @transform_3(%arg0: i32, %arg1: i32, %arg2: i32) -> (i32, i32) {
    %c0_i32 = arith.constant 0 : i32
    %c0_i32_0 = arith.constant 0 : i32
    %c0_i32_1 = arith.constant 0 : i32
    return %c0_i32, %c0_i32_0 : i32, i32
  }
  func.func @transform_4(%arg0: i32, %arg1: i32, %arg2: i32) -> (i32, i32, i32) {
    %c0_i32 = arith.constant 0 : i32
    return %arg0, %arg1, %arg2 : i32, i32, i32
  }
  func.func @transform_5(%arg0: i32, %arg1: i32, %arg2: i32) -> (i32, i32, i32, i32) {
    %c0_i32 = arith.constant 0 : i32
    %c0_i32_0 = arith.constant 0 : i32
    return %arg0, %arg1, %c0_i32, %arg2 : i32, i32, i32, i32
  }
}

module attributes {stable_mosaic.version = 11 : i64} {
  func.func @_mm_kernel(%arg0: i32, %arg1: i32, %arg2: i32, %arg3: memref<1x128x128xbf16, #tpu.memory_space<vmem>>, %arg4: memref<1x128x128xbf16, #tpu.memory_space<vmem>>, %arg5: memref<1x128xf32, #tpu.memory_space<vmem>>, %arg6: memref<1x128xf32, #tpu.memory_space<vmem>>, %arg7: memref<1x128x128xbf16, #tpu.memory_space<vmem>>, %arg8: memref<1x1x2x128xf32, #tpu.memory_space<vmem>>) attributes {dimension_semantics = [#tpu.dimension_semantics<parallel>, #tpu.dimension_semantics<parallel>, #tpu.dimension_semantics<parallel>], iteration_bounds = array<i64: 4, 1, 1>, scalar_prefetch = 0 : i64, scratch_operands = 0 : i64, tpu.core_type = #tpu.core_type<tc>, window_params = [{transform_indices = @transform_0, window_bounds = array<i64: 1, 128, 128>}, {transform_indices = @transform_1, window_bounds = array<i64: 1, 128, 128>}, {pipeline_mode = #tpu.pipeline_mode<synchronous>, transform_indices = @transform_2, window_bounds = array<i64: 1, 128>}, {pipeline_mode = #tpu.pipeline_mode<synchronous>, transform_indices = @transform_3, window_bounds = array<i64: 1, 128>}, {transform_indices = @transform_4, window_bounds = array<i64: 1, 128, 128>}, {transform_indices = @transform_5, window_bounds = array<i64: 1, 1, 2, 128>}]} {
    %c0 = arith.constant 0 : index
    %c0_0 = arith.constant 0 : index
    %c0_1 = arith.constant 0 : index
    %0 = vector.load %arg3[%c0, %c0_0, %c0_1] : memref<1x128x128xbf16, #tpu.memory_space<vmem>>, vector<1x128x128xbf16>
    %1 = vector.shape_cast %0 : vector<1x128x128xbf16> to vector<128x128xbf16>
    %2 = arith.extf %1 : vector<128x128xbf16> to vector<128x128xf32>
    %c0_2 = arith.constant 0 : index
    %c0_3 = arith.constant 0 : index
    %3 = vector.load %arg5[%c0_2, %c0_3] : memref<1x128xf32, #tpu.memory_space<vmem>>, vector<1x128xf32>
    %4 = vector.broadcast %3 : vector<1x128xf32> to vector<128x128xf32>
    %5 = arith.mulf %2, %4 : vector<128x128xf32>
    %c0_4 = arith.constant 0 : index
    %c0_5 = arith.constant 0 : index
    %6 = vector.load %arg6[%c0_4, %c0_5] : memref<1x128xf32, #tpu.memory_space<vmem>>, vector<1x128xf32>
    %7 = vector.broadcast %6 : vector<1x128xf32> to vector<128x128xf32>
    %8 = arith.addf %5, %7 : vector<128x128xf32>
    %cst = arith.constant 0.000000e+00 : f32
    %9 = vector.broadcast %cst : f32 to vector<128x128xf32>
    %10 = arith.maximumf %8, %9 : vector<128x128xf32>
    %11 = arith.truncf %10 : vector<128x128xf32> to vector<128x128xbf16>
    %c0_6 = arith.constant 0 : index
    %c0_7 = arith.constant 0 : index
    %c0_8 = arith.constant 0 : index
    %12 = vector.load %arg4[%c0_6, %c0_7, %c0_8] : memref<1x128x128xbf16, #tpu.memory_space<vmem>>, vector<1x128x128xbf16>
    %13 = vector.shape_cast %12 : vector<1x128x128xbf16> to vector<128x128xbf16>
    %cst_9 = arith.constant dense<0.000000e+00> : vector<128x128xf32>
    %14 = tpu.matmul %11, %13, %cst_9 {dimension_numbers = #tpu.dot_dimension_numbers<[1], [0], [0], [1], [0, 0, 1, 1], [], []>} : vector<128x128xbf16>, vector<128x128xbf16>, vector<128x128xf32> -> vector<128x128xf32>
    %15 = arith.truncf %14 : vector<128x128xf32> to vector<128x128xbf16>
    %c0_10 = arith.constant 0 : index
    %c0_11 = arith.constant 0 : index
    %c0_12 = arith.constant 0 : index
    %16 = vector.load %arg7[%c0_10, %c0_11, %c0_12] : memref<1x128x128xbf16, #tpu.memory_space<vmem>>, vector<1x128x128xbf16>
    %17 = vector.shape_cast %16 : vector<1x128x128xbf16> to vector<128x128xbf16>
    %18 = vector.shape_cast %15 : vector<128x128xbf16> to vector<1x128x128xbf16>
    tpu.vector_store %arg7[%c0_10, %c0_11, %c0_12], %18 {strides = array<i32>} : memref<1x128x128xbf16, #tpu.memory_space<vmem>>, vector<1x128x128xbf16>,
    %19 = tpu.iota {dimensions = array<i32: 0>} : vector<128x128xi32>
    %c128_i32 = arith.constant 128 : i32
    %20 = arith.muli %arg1, %c128_i32 : i32
    %21 = vector.broadcast %20 : i32 to vector<128x128xi32>
    %22 = arith.addi %19, %21 : vector<128x128xi32>
    %c128_i32_13 = arith.constant 128 : i32
    %23 = vector.broadcast %c128_i32_13 : i32 to vector<128x128xi32>
    %24 = arith.cmpi slt, %22, %23 : vector<128x128xi32>
    %cst_14 = arith.constant 0.000000e+00 : f32
    %25 = vector.broadcast %cst_14 : f32 to vector<128x128xf32>
    %26 = arith.select %24, %14, %25 : vector<128x128xi1>, vector<128x128xf32>
    %cst_15 = arith.constant dense<0.000000e+00> : vector<128xf32>
    %27 = vector.multi_reduction <add>, %26, %cst_15 [0] : vector<128x128xf32> to vector<128xf32>
    %28 = vector.shape_cast %27 : vector<128xf32> to vector<1x128xf32>
    %29 = arith.mulf %26, %26 : vector<128x128xf32>
    %cst_16 = arith.constant dense<0.000000e+00> : vector<128xf32>
    %30 = vector.multi_reduction <add>, %29, %cst_16 [0] : vector<128x128xf32> to vector<128xf32>
    %31 = vector.shape_cast %30 : vector<128xf32> to vector<1x128xf32>
    %32 = tpu.concatenate %28, %31 in 0 : vector<1x128xf32>, vector<1x128xf32> -> vector<2x128xf32>
    %c0_17 = arith.constant 0 : index
    %c0_18 = arith.constant 0 : index
    %c0_19 = arith.constant 0 : index
    %c0_20 = arith.constant 0 : index
    %33 = vector.load %arg8[%c0_17, %c0_18, %c0_19, %c0_20] : memref<1x1x2x128xf32, #tpu.memory_space<vmem>>, vector<1x1x2x128xf32>
    %34 = vector.shape_cast %33 : vector<1x1x2x128xf32> to vector<2x128xf32>
    %35 = vector.shape_cast %32 : vector<2x128xf32> to vector<1x1x2x128xf32>
    tpu.vector_store %arg8[%c0_17, %c0_18, %c0_19, %c0_20], %35 {strides = array<i32>} : memref<1x1x2x128xf32, #tpu.memory_space<vmem>>, vector<1x1x2x128xf32>,
    return
  }
  func.func @transform_0(%arg0: i32, %arg1: i32, %arg2: i32) -> (i32, i32, i32) {
    %c0_i32 = arith.constant 0 : i32
    %c0_i32_0 = arith.constant 0 : i32
    return %arg0, %arg1, %c0_i32 : i32, i32, i32
  }
  func.func @transform_1(%arg0: i32, %arg1: i32, %arg2: i32) -> (i32, i32, i32) {
    %c0_i32 = arith.constant 0 : i32
    %c0_i32_0 = arith.constant 0 : i32
    return %arg0, %c0_i32, %arg2 : i32, i32, i32
  }
  func.func @transform_2(%arg0: i32, %arg1: i32, %arg2: i32) -> (i32, i32) {
    %c0_i32 = arith.constant 0 : i32
    %c0_i32_0 = arith.constant 0 : i32
    %c0_i32_1 = arith.constant 0 : i32
    return %c0_i32, %c0_i32_0 : i32, i32
  }
  func.func @transform_3(%arg0: i32, %arg1: i32, %arg2: i32) -> (i32, i32) {
    %c0_i32 = arith.constant 0 : i32
    %c0_i32_0 = arith.constant 0 : i32
    %c0_i32_1 = arith.constant 0 : i32
    return %c0_i32, %c0_i32_0 : i32, i32
  }
  func.func @transform_4(%arg0: i32, %arg1: i32, %arg2: i32) -> (i32, i32, i32) {
    %c0_i32 = arith.constant 0 : i32
    return %arg0, %arg1, %arg2 : i32, i32, i32
  }
  func.func @transform_5(%arg0: i32, %arg1: i32, %arg2: i32) -> (i32, i32, i32, i32) {
    %c0_i32 = arith.constant 0 : i32
    %c0_i32_0 = arith.constant 0 : i32
    return %arg0, %arg1, %c0_i32, %arg2 : i32, i32, i32, i32
  }
}

module attributes {stable_mosaic.version = 11 : i64} {
  func.func @_mm_kernel(%arg0: i32, %arg1: i32, %arg2: i32, %arg3: memref<1x512x64xbf16, #tpu.memory_space<vmem>>, %arg4: memref<1x64x128xbf16, #tpu.memory_space<vmem>>, %arg5: memref<1x128xf32, #tpu.memory_space<vmem>>, %arg6: memref<1x64xf32, #tpu.memory_space<vmem>>, %arg7: memref<1x64xf32, #tpu.memory_space<vmem>>, %arg8: memref<1x512x128xbf16, #tpu.memory_space<vmem>>) attributes {dimension_semantics = [#tpu.dimension_semantics<parallel>, #tpu.dimension_semantics<parallel>, #tpu.dimension_semantics<parallel>], iteration_bounds = array<i64: 4, 1, 1>, scalar_prefetch = 0 : i64, scratch_operands = 0 : i64, tpu.core_type = #tpu.core_type<tc>, window_params = [{transform_indices = @transform_0, window_bounds = array<i64: 1, 512, 64>}, {transform_indices = @transform_1, window_bounds = array<i64: 1, 64, 128>}, {transform_indices = @transform_2, window_bounds = array<i64: 1, 128>}, {pipeline_mode = #tpu.pipeline_mode<synchronous>, transform_indices = @transform_3, window_bounds = array<i64: 1, 64>}, {pipeline_mode = #tpu.pipeline_mode<synchronous>, transform_indices = @transform_4, window_bounds = array<i64: 1, 64>}, {transform_indices = @transform_5, window_bounds = array<i64: 1, 512, 128>}]} {
    %c0 = arith.constant 0 : index
    %c0_0 = arith.constant 0 : index
    %c0_1 = arith.constant 0 : index
    %0 = vector.load %arg3[%c0, %c0_0, %c0_1] : memref<1x512x64xbf16, #tpu.memory_space<vmem>>, vector<1x512x64xbf16>
    %1 = vector.shape_cast %0 : vector<1x512x64xbf16> to vector<512x64xbf16>
    %2 = arith.extf %1 : vector<512x64xbf16> to vector<512x64xf32>
    %c0_2 = arith.constant 0 : index
    %c0_3 = arith.constant 0 : index
    %3 = vector.load %arg6[%c0_2, %c0_3] : memref<1x64xf32, #tpu.memory_space<vmem>>, vector<1x64xf32>
    %4 = vector.broadcast %3 : vector<1x64xf32> to vector<512x64xf32>
    %5 = arith.mulf %2, %4 : vector<512x64xf32>
    %c0_4 = arith.constant 0 : index
    %c0_5 = arith.constant 0 : index
    %6 = vector.load %arg7[%c0_4, %c0_5] : memref<1x64xf32, #tpu.memory_space<vmem>>, vector<1x64xf32>
    %7 = vector.broadcast %6 : vector<1x64xf32> to vector<512x64xf32>
    %8 = arith.addf %5, %7 : vector<512x64xf32>
    %cst = arith.constant 0.000000e+00 : f32
    %9 = vector.broadcast %cst : f32 to vector<512x64xf32>
    %10 = arith.maximumf %8, %9 : vector<512x64xf32>
    %11 = arith.truncf %10 : vector<512x64xf32> to vector<512x64xbf16>
    %c0_6 = arith.constant 0 : index
    %c0_7 = arith.constant 0 : index
    %c0_8 = arith.constant 0 : index
    %12 = vector.load %arg4[%c0_6, %c0_7, %c0_8] : memref<1x64x128xbf16, #tpu.memory_space<vmem>>, vector<1x64x128xbf16>
    %13 = vector.shape_cast %12 : vector<1x64x128xbf16> to vector<64x128xbf16>
    %cst_9 = arith.constant dense<0.000000e+00> : vector<512x128xf32>
    %14 = tpu.matmul %11, %13, %cst_9 {dimension_numbers = #tpu.dot_dimension_numbers<[1], [0], [0], [1], [0, 0, 1, 1], [], []>} : vector<512x64xbf16>, vector<64x128xbf16>, vector<512x128xf32> -> vector<512x128xf32>
    %c0_10 = arith.constant 0 : index
    %c0_11 = arith.constant 0 : index
    %15 = vector.load %arg5[%c0_10, %c0_11] : memref<1x128xf32, #tpu.memory_space<vmem>>, vector<1x128xf32>
    %16 = vector.broadcast %15 : vector<1x128xf32> to vector<512x128xf32>
    %17 = arith.addf %14, %16 : vector<512x128xf32>
    %18 = math.tanh %17 : vector<512x128xf32>
    %19 = arith.truncf %18 : vector<512x128xf32> to vector<512x128xbf16>
    %c0_12 = arith.constant 0 : index
    %c0_13 = arith.constant 0 : index
    %c0_14 = arith.constant 0 : index
    %20 = vector.load %arg8[%c0_12, %c0_13, %c0_14] : memref<1x512x128xbf16, #tpu.memory_space<vmem>>, vector<1x512x128xbf16>
    %21 = vector.shape_cast %20 : vector<1x512x128xbf16> to vector<512x128xbf16>
    %22 = vector.shape_cast %19 : vector<512x128xbf16> to vector<1x512x128xbf16>
    tpu.vector_store %arg8[%c0_12, %c0_13, %c0_14], %22 {strides = array<i32>} : memref<1x512x128xbf16, #tpu.memory_space<vmem>>, vector<1x512x128xbf16>,
    return
  }
  func.func @transform_0(%arg0: i32, %arg1: i32, %arg2: i32) -> (i32, i32, i32) {
    %c0_i32 = arith.constant 0 : i32
    %c0_i32_0 = arith.constant 0 : i32
    return %arg0, %arg1, %c0_i32 : i32, i32, i32
  }
  func.func @transform_1(%arg0: i32, %arg1: i32, %arg2: i32) -> (i32, i32, i32) {
    %c0_i32 = arith.constant 0 : i32
    %c0_i32_0 = arith.constant 0 : i32
    return %arg0, %c0_i32, %arg2 : i32, i32, i32
  }
  func.func @transform_2(%arg0: i32, %arg1: i32, %arg2: i32) -> (i32, i32) {
    %c0_i32 = arith.constant 0 : i32
    %c0_i32_0 = arith.constant 0 : i32
    return %c0_i32, %arg2 : i32, i32
  }
  func.func @transform_3(%arg0: i32, %arg1: i32, %arg2: i32) -> (i32, i32) {
    %c0_i32 = arith.constant 0 : i32
    %c0_i32_0 = arith.constant 0 : i32
    %c0_i32_1 = arith.constant 0 : i32
    return %c0_i32, %c0_i32_0 : i32, i32
  }
  func.func @transform_4(%arg0: i32, %arg1: i32, %arg2: i32) -> (i32, i32) {
    %c0_i32 = arith.constant 0 : i32
    %c0_i32_0 = arith.constant 0 : i32
    %c0_i32_1 = arith.constant 0 : i32
    return %c0_i32, %c0_i32_0 : i32, i32
  }
  func.func @transform_5(%arg0: i32, %arg1: i32, %arg2: i32) -> (i32, i32, i32) {
    %c0_i32 = arith.constant 0 : i32
    return %arg0, %arg1, %arg2 : i32, i32, i32
  }
}

</mosaic_0001>

<llo_original>
// kernel: _lambda_.10
$region0: #{_lambda_.10}
  #allocation0 [shape = 'u32[]', space=smem, size = 0x4, offset = 0x4, fixed_abs, tag = 'smem constant byte address 0x4 - core index']
  #allocation1 [shape = 'u32[144,128]{1,0:T(1,128)}', space=vmem, size = 0x12000, scoped, tag = 'internal scratch']
  %s0 = inlined_call_operand.vmem [shape: bf16[1,512,48], index: 0, kind: input, shape index: {}]
  %s1 = inlined_call_operand.vmem [shape: bf16[1,48,128], index: 1, kind: input, shape index: {}]
  %s2 = inlined_call_operand.vmem [shape: bf16[1,512,128], index: 2, kind: output, shape index: {}]
  %s3 = sld [smem:[#allocation0]]
  $region41: #{_lambda_.10} parent=0
    _
  %s5 = ssub.s32 1, %s3
  %s6 = scalar_select 0, %s5, %s3
  loop: start=0, step=1, limit=4
  $region2: #{_lambda_.10} parent=0 // loop_pre_header
    _
  $region3: #{_lambda_.10} parent=0 // loop_header
    %s8 = sphi 0, %s12
    %p9 = scmp.ge.s32.totalorder %s8, 4
    %s15 = sphi 0, %s34
    %s16 = sphi 0, %s30
    %s17 = sphi 0, %s26
    %s18 = sphi 0, %s15
    %s19 = sphi 0, %s16
    %s20 = sphi 0, %s17
    %s21 = sphi 0, %s18
    %s22 = sphi 0, %s19
    %s23 = sphi 0, %s20
    %s39 = sphi 0, %s41
    %s42 = sphi 0, %s39
    %s43 = sphi 0, %s42
    %s59 = sphi 0, %s43
    %s67 = sphi 0, %s69
    %s70 = sphi 0, %s67
    %s71 = sphi 0, %s70
    %s87 = sphi 0, %s71
    %s97 = sphi 0, %s99
    %s100 = sphi 0, %s97
    %s101 = sphi 0, %s100
    %s117 = sphi 0, %s101
  $region4: #{_lambda_.10} parent=0 // loop_header_branch
    %11 = sbr.rel (%p9) target = $region8
  $region5: #{_lambda_.10} parent=0 // loop_body
    %s13 = ssub.s32 %s8, 1
    %s14 = ssub.s32 %s8, 2
    %s24 = sadd.s32 1, %s17
    %p25 = scmp.ge.s32.totalorder %s24, 1
    %s26 = scalar_select %p25, 0, %s24
    %s27 = sadd.s32 1, %s16
    %s28 = scalar_select %p25, %s27, %s16
    %p29 = scmp.ge.s32.totalorder %s28, 2
    %s30 = scalar_select %p29, 0, %s28
    %s31 = sadd.s32 1, %s15
    %s32 = scalar_select %p29, %s31, %s15
    %p33 = scmp.ge.s32.totalorder %s32, 1
    %s34 = scalar_select %p33, 0, %s32
    %s35 = ssub.s32 %s15, %s34
    %s36 = ssub.s32 %s16, %s30
    %s37 = sor.u32 %s35, %s36
    %p38 = scmp.eq.s32.totalorder %s37, 0
    %s40 = sadd.s32 %s39, 1
    %s41 = scalar_select %p38, %s39, %s40
    %p44 = pneg %p38
    %p45 = scmp.eq.s32.totalorder %s8, 1
    %p46 = por %p44, %p45
    %p47 = scmp.ne.s32.totalorder %s39, %s42
    %p48 = scmp.eq.s32.totalorder %s8, 0
    %p49 = por %p47, %p48
    %p50 = scmp.ne.s32.totalorder %s39, %s42
    %p51 = scmp.eq.s32.totalorder %s13, 1
    %p52 = por %p50, %p51
    %p53 = scmp.ne.s32.totalorder %s42, %s43
    %p54 = scmp.eq.s32.totalorder %s13, 0
    %p55 = por %p53, %p54
    %p56 = scmp.ne.s32.totalorder %s42, %s43
    %p57 = scmp.eq.s32.totalorder %s14, 1
    %p58 = por %p56, %p57
    %p60 = scmp.ne.s32.totalorder %s43, %s59
    %p61 = scmp.eq.s32.totalorder %s14, 0
    %p62 = por %p60, %p61
    %s63 = ssub.s32 %s15, %s34
    %s64 = ssub.s32 %s17, %s26
    %s65 = sor.u32 %s63, %s64
    %p66 = scmp.eq.s32.totalorder %s65, 0
    %s68 = sadd.s32 %s67, 1
    %s69 = scalar_select %p66, %s67, %s68
    %p72 = pneg %p66
    %p73 = scmp.eq.s32.totalorder %s8, 1
    %p74 = por %p72, %p73
    %p75 = scmp.ne.s32.totalorder %s67, %s70
    %p76 = scmp.eq.s32.totalorder %s8, 0
    %p77 = por %p75, %p76
    %p78 = scmp.ne.s32.totalorder %s67, %s70
    %p79 = scmp.eq.s32.totalorder %s13, 1
    %p80 = por %p78, %p79
    %p81 = scmp.ne.s32.totalorder %s70, %s71
    %p82 = scmp.eq.s32.totalorder %s13, 0
    %p83 = por %p81, %p82
    %p84 = scmp.ne.s32.totalorder %s70, %s71
    %p85 = scmp.eq.s32.totalorder %s14, 1
    %p86 = por %p84, %p85
    %p88 = scmp.ne.s32.totalorder %s71, %s87
    %p89 = scmp.eq.s32.totalorder %s14, 0
    %p90 = por %p88, %p89
    %s91 = ssub.s32 %s15, %s34
    %s92 = ssub.s32 %s16, %s30
    %s93 = sor.u32 %s91, %s92
    %s94 = ssub.s32 %s17, %s26
    %s95 = sor.u32 %s93, %s94
    %p96 = scmp.eq.s32.totalorder %s95, 0
    %s98 = sadd.s32 %s97, 1
    %s99 = scalar_select %p96, %s97, %s98
    %p102 = pneg %p96
    %p103 = scmp.eq.s32.totalorder %s8, 1
    %p104 = por %p102, %p103
    %p105 = scmp.ne.s32.totalorder %s97, %s100
    %p106 = scmp.eq.s32.totalorder %s8, 0
    %p107 = por %p105, %p106
    %p108 = scmp.ne.s32.totalorder %s97, %s100
    %p109 = scmp.eq.s32.totalorder %s13, 1
    %p110 = por %p108, %p109
    %p111 = scmp.ne.s32.totalorder %s100, %s101
    %p112 = scmp.eq.s32.totalorder %s13, 0
    %p113 = por %p111, %p112
    %p114 = scmp.ne.s32.totalorder %s100, %s101
    %p115 = scmp.eq.s32.totalorder %s14, 1
    %p116 = por %p114, %p115
    %p118 = scmp.ne.s32.totalorder %s101, %s117
    %p119 = scmp.eq.s32.totalorder %s14, 0
    %p120 = por %p118, %p119
    %p121 = scmp.le.s32.totalorder 1, %s8
    %p122 = scmp.lt.s32.totalorder %s8, 3
    %p123 = pnand %p121, %p122
    %p124 = pneg %p123
    // Predicated region
    $region9: #{_lambda_.10} parent=5 // pred_check
      _
    $region10: #{_lambda_.10} parent=5 // pred_check_branch
      %126 = sbr.rel (%p123) target = $region12
    $region11: #{_lambda_.10} parent=5 // pred_region
      %s127 = ssub.s32 %s8, 1
      // Predicated region
      $region13: #{_lambda_.10} parent=11 // pred_check
        %p128 = pneg %p83
      $region14: #{_lambda_.10} parent=11 // pred_check_branch
        %130 = sbr.rel (%p128) target = $region16
      $region15: #{_lambda_.10} parent=11 // pred_region
        %p131 = scmp.lt.s32.totalorder %s18, 0
        %s132 = scalar_select %p131, %s18, 0
        %p133 = scmp.lt.s32.totalorder %s20, 0
        %s134 = scalar_select %p133, %s20, 0
        %s135 = smul.addr %s132, 6
        %s136 = sadd.s32 %s134, %s135
        %s137 = smul.addr %s136, 4
        %s138 = scalar_lea.vmem %s1, %s137
      $region16: #{_lambda_.10} parent=11 // pred_fallthru
        _
    $region12: #{_lambda_.10} parent=5 // pred_fallthru
      _
    %p139 = scmp.lt.s32.totalorder %s8, 2
    // Predicated region
    $region17: #{_lambda_.10} parent=5 // pred_check
      %p140 = pneg %p139
    $region18: #{_lambda_.10} parent=5 // pred_check_branch
      %142 = sbr.rel (%p140) target = $region20
    $region19: #{_lambda_.10} parent=5 // pred_region
      // Predicated region
      $region21: #{_lambda_.10} parent=19 // pred_check
        %p143 = pneg %p49
      $region22: #{_lambda_.10} parent=19 // pred_check_branch
        %145 = sbr.rel (%p143) target = $region24
      $region23: #{_lambda_.10} parent=19 // pred_region
        %s146 = smul.u32 32, %s16
        %p147 = scmp.lt.s32.totalorder %s15, 0
        %s148 = scalar_select %p147, %s15, 0
        %p149 = scmp.lt.s32.totalorder %s146, 63
        %s150 = scalar_select %p149, %s146, 63
        %s151 = smul.addr %s148, 64
        %s152 = sadd.s32 %s150, %s151
        %s153 = smul.addr %s152, 4
        %s154 = scalar_lea.vmem %s0, %s153
        %s155 = smul.u32 32, %s16
      $region24: #{_lambda_.10} parent=19 // pred_fallthru
        _
    $region20: #{_lambda_.10} parent=5 // pred_fallthru
      _
    %p156 = scmp.le.s32.totalorder 1, %s8
    %p157 = scmp.lt.s32.totalorder %s8, 3
    %p158 = pnand %p156, %p157
    %p159 = pneg %p158
    // Predicated region
    $region25: #{_lambda_.10} parent=5 // pred_check
      _
    $region26: #{_lambda_.10} parent=5 // pred_check_branch
      %161 = sbr.rel (%p158) target = $region28
    $region27: #{_lambda_.10} parent=5 // pred_region
      %s162 = ssub.s32 %s8, 1
      %s163 = smul.u32 32, %s19
      %p164 = scmp.lt.s32.totalorder %s18, 0
      %s165 = scalar_select %p164, %s18, 0
      %p166 = scmp.lt.s32.totalorder %s163, 63
      %s167 = scalar_select %p166, %s163, 63
      %s168 = smul.addr %s165, 64
      %s169 = sadd.s32 %s167, %s168
      %s170 = smul.addr %s169, 4
      %s171 = scalar_lea.vmem %s0, %s170
      %p172 = pneg %p55
      %p173 = pneg %p52
      %p174 = scmp.lt.s32.totalorder %s18, 0
      %s175 = scalar_select %p174, %s18, 0
      %p176 = scmp.lt.s32.totalorder %s20, 0
      %s177 = scalar_select %p176, %s20, 0
      %s178 = smul.addr %s175, 6
      %s179 = sadd.s32 %s177, %s178
      %s180 = smul.addr %s179, 4
      %s181 = scalar_lea.vmem %s1, %s180
      %p182 = pneg %p83
      %p183 = pneg %p80
      %p184 = pneg %p113
      %p185 = pneg %p110
      %s186 = smul.u32 32, %s19
      %p187 = scmp.lt.s32.totalorder %s18, 0
      %s188 = scalar_select %p187, %s18, 0
      %p189 = scmp.lt.s32.totalorder %s186, 63
      %s190 = scalar_select %p189, %s186, 63
      %p191 = scmp.lt.s32.totalorder %s20, 0
      %s192 = scalar_select %p191, %s20, 0
      %s193 = sadd.s32 %s192, %s190
      %s194 = smul.addr %s188, 64
      %s195 = sadd.s32 %s193, %s194
      %s196 = smul.addr %s195, 4
      %s197 = scalar_lea.vmem %s2, %s196
      %s198 = smul.u32 32, %s19
      %p199 = scmp.lt.s32.totalorder %s18, 0
      %s200 = scalar_select %p199, %s18, 0
      %p201 = scmp.lt.s32.totalorder %s198, 63
      %s202 = scalar_select %p201, %s198, 63
      %s203 = smul.addr %s200, 64
      %s204 = sadd.s32 %s202, %s203
      %s205 = smul.addr %s204, 4
      %s206 = scalar_lea.vmem %s0, %s205
      %s207 = smul.u32 32, %s19
      %p208 = scmp.lt.s32.totalorder %s18, 0
      %s209 = scalar_select %p208, %s18, 0
      %p210 = scmp.lt.s32.totalorder %s20, 0
      %s211 = scalar_select %p210, %s20, 0
      %s212 = smul.addr %s209, 6
      %s213 = sadd.s32 %s211, %s212
      %s214 = smul.addr %s213, 4
      %s215 = scalar_lea.vmem %s1, %s214
      %s216 = smul.u32 32, %s19
      %p217 = scmp.lt.s32.totalorder %s18, 0
      %s218 = scalar_select %p217, %s18, 0
      %p219 = scmp.lt.s32.totalorder %s216, 63
      %s220 = scalar_select %p219, %s216, 63
      %p221 = scmp.lt.s32.totalorder %s20, 0
      %s222 = scalar_select %p221, %s20, 0
      %s223 = sadd.s32 %s222, %s220
      %s224 = smul.addr %s218, 64
      %s225 = sadd.s32 %s223, %s224
      %s226 = smul.addr %s225, 4
      %s227 = scalar_lea.vmem %s2, %s226
      %s228 = smul.u32 32, %s19
      %v230 = vld [vmem:[%s206] sm:$0xf]
      %v231 = vld [vmem:[%s206 + $0x4] sm:$0xf]
      %v232 = vld [vmem:[%s206 + $0x8] sm:$0xf]
      %v233 = vld [vmem:[%s206 + $0xc] sm:$0xf]
      %v234 = vld [vmem:[%s206 + $0x10] sm:$0xf]
      %v235 = vld [vmem:[%s206 + $0x14] sm:$0xf]
      %v236 = vld [vmem:[%s206 + $0x18] sm:$0xf]
      %v237 = vld [vmem:[%s206 + $0x1c] sm:$0xf]
      %v238 = vld [vmem:[%s206 + $0x20] sm:$0xf]
      %v239 = vld [vmem:[%s206 + $0x24] sm:$0xf]
      %v240 = vld [vmem:[%s206 + $0x28] sm:$0xf]
      %v241 = vld [vmem:[%s206 + $0x2c] sm:$0xf]
      %v242 = vld [vmem:[%s206 + $0x30] sm:$0xf]
      %v243 = vld [vmem:[%s206 + $0x34] sm:$0xf]
      %v244 = vld [vmem:[%s206 + $0x38] sm:$0xf]
      %v245 = vld [vmem:[%s206 + $0x3c] sm:$0xf]
      %v246 = vld [vmem:[%s206 + $0x40] sm:$0xf]
      %v247 = vld [vmem:[%s206 + $0x44] sm:$0xf]
      %v248 = vld [vmem:[%s206 + $0x48] sm:$0xf]
      %v249 = vld [vmem:[%s206 + $0x4c] sm:$0xf]
      %v250 = vld [vmem:[%s206 + $0x50] sm:$0xf]
      %v251 = vld [vmem:[%s206 + $0x54] sm:$0xf]
      %v252 = vld [vmem:[%s206 + $0x58] sm:$0xf]
      %v253 = vld [vmem:[%s206 + $0x5c] sm:$0xf]
      %v254 = vld [vmem:[%s206 + $0x60] sm:$0xf]
      %v255 = vld [vmem:[%s206 + $0x64] sm:$0xf]
      %v256 = vld [vmem:[%s206 + $0x68] sm:$0xf]
      %v257 = vld [vmem:[%s206 + $0x6c] sm:$0xf]
      %v258 = vld [vmem:[%s206 + $0x70] sm:$0xf]
      %v259 = vld [vmem:[%s206 + $0x74] sm:$0xf]
      %v260 = vld [vmem:[%s206 + $0x78] sm:$0xf]
      %v261 = vld [vmem:[%s206 + $0x7c] sm:$0xf]
      %v262 = vld [vmem:[%s215] sm:$0xf]
      %v263 = vld [vmem:[%s215 + $0x4] sm:$0xf]
      %v264 = vld [vmem:[%s215 + $0x8] sm:$0xf]
      %v265 = vld [vmem:[%s215 + $0xc] sm:$0xf]
      %v266 = vld [vmem:[%s215 + $0x10] sm:$0xf]
      %v267 = vld [vmem:[%s215 + $0x14] sm:$0xf]
      %v300 = vunpack.c.l.b16 %v230
      %v301 = vunpack.c.l.b16 %v231
      %v302 = vunpack.c.l.b16 %v232
      %v303 = vunpack.c.l.b16 %v233
      %v304 = vunpack.c.l.b16 %v234
      %v305 = vunpack.c.l.b16 %v235
      %v306 = vunpack.c.l.b16 %v236
      %v307 = vunpack.c.l.b16 %v237
      %v308 = vunpack.c.l.b16 %v238
      %v309 = vunpack.c.l.b16 %v239
      %v310 = vunpack.c.l.b16 %v240
      %v311 = vunpack.c.l.b16 %v241
      %v312 = vunpack.c.l.b16 %v242
      %v313 = vunpack.c.l.b16 %v243
      %v314 = vunpack.c.l.b16 %v244
      %v315 = vunpack.c.l.b16 %v245
      %v316 = vunpack.c.l.b16 %v246
      %v317 = vunpack.c.l.b16 %v247
      %v318 = vunpack.c.l.b16 %v248
      %v319 = vunpack.c.l.b16 %v249
      %v320 = vunpack.c.l.b16 %v250
      %v321 = vunpack.c.l.b16 %v251
      %v322 = vunpack.c.l.b16 %v252
      %v323 = vunpack.c.l.b16 %v253
      %v324 = vunpack.c.l.b16 %v254
      %v325 = vunpack.c.l.b16 %v255
      %v326 = vunpack.c.l.b16 %v256
      %v327 = vunpack.c.l.b16 %v257
      %v328 = vunpack.c.l.b16 %v258
      %v329 = vunpack.c.l.b16 %v259
      %v330 = vunpack.c.l.b16 %v260
      %v331 = vunpack.c.l.b16 %v261
      %v332 = vpack.c.b16 %v301, %v300
      %v333 = vpack.c.b16 %v303, %v302
      %v334 = vpack.c.b16 %v305, %v304
      %v335 = vpack.c.b16 %v307, %v306
      %v336 = vpack.c.b16 %v309, %v308
      %v337 = vpack.c.b16 %v311, %v310
      %v338 = vpack.c.b16 %v313, %v312
      %v339 = vpack.c.b16 %v315, %v314
      %v340 = vpack.c.b16 %v317, %v316
      %v341 = vpack.c.b16 %v319, %v318
      %v342 = vpack.c.b16 %v321, %v320
      %v343 = vpack.c.b16 %v323, %v322
      %v344 = vpack.c.b16 %v325, %v324
      %v345 = vpack.c.b16 %v327, %v326
      %v346 = vpack.c.b16 %v329, %v328
      %v347 = vpack.c.b16 %v331, %v330
      %v354 = vunpack.c.l.b16 %v262
      %v355 = vunpack.c.l.b16 %v263
      %v356 = vunpack.c.l.b16 %v264
      %v357 = vunpack.c.l.b16 %v265
      %v358 = vunpack.c.l.b16 %v266
      %v359 = vunpack.c.l.b16 %v267
      %v360 = vpack.c.b16 %v355, %v354
      %v361 = vpack.c.b16 %v357, %v356
      %v362 = vpack.c.b16 %v359, %v358
      %vm366 = vcmask 392192
      %v368 = vsel %vm366, %v332, 0
      %v371 = vsel %vm366, %v333, 0
      %v374 = vsel %vm366, %v334, 0
      %v377 = vsel %vm366, %v335, 0
      %v380 = vsel %vm366, %v336, 0
      %v383 = vsel %vm366, %v337, 0
      %v386 = vsel %vm366, %v338, 0
      %v389 = vsel %vm366, %v339, 0
      %v392 = vsel %vm366, %v340, 0
      %v395 = vsel %vm366, %v341, 0
      %v398 = vsel %vm366, %v342, 0
      %v401 = vsel %vm366, %v343, 0
      %v404 = vsel %vm366, %v344, 0
      %v407 = vsel %vm366, %v345, 0
      %v410 = vsel %vm366, %v346, 0
      %v413 = vsel %vm366, %v347, 0
      %415 = vmatprep.subr.bf16.mxu0 0
      %416 = vmatpush1.bf16.msra.mxu0 0
      %417 = vmatprep.subr.bf16.mxu0 0
      %418 = vmatpush1.bf16.msra.mxu0 0
      %419 = vmatprep.subr.bf16.mxu0 0
      %420 = vmatpush1.bf16.msra.mxu0 0
      %421 = vmatprep.subr.bf16.mxu0 0
      %422 = vmatpush1.bf16.msra.mxu0 0
      %423 = vmatprep.subr.bf16.mxu0 0
      %424 = vmatpush1.bf16.msra.mxu0 0
      %425 = vmatprep.subr.bf16.mxu0 0
      %426 = vmatpush1.bf16.msra.mxu0 %v362
      %427 = vmatprep.subr.bf16.mxu0 0
      %428 = vmatpush1.bf16.msra.mxu0 %v361
      %429 = vmatprep.subr.bf16.mxu0 0
      %430 = vmatpush1.bf16.msra.mxu0 %v360
      %431 = vmatprep.subr.bf16.mxu0 0
      %432 = vmatpush2.bf16.msra.mxu0 0
      %433 = vmatprep.subr.bf16.mxu0 0
      %434 = vmatpush2.bf16.msra.mxu0 0
      %435 = vmatprep.subr.bf16.mxu0 0
      %436 = vmatpush2.bf16.msra.mxu0 0
      %437 = vmatprep.subr.bf16.mxu0 0
      %438 = vmatpush2.bf16.msra.mxu0 0
      %439 = vmatprep.subr.bf16.mxu0 0
      %440 = vmatpush2.bf16.msra.mxu0 0
      %441 = vmatprep.subr.bf16.mxu0 0
      %442 = vmatpush2.bf16.msra.mxu0 0
      %443 = vmatprep.subr.bf16.mxu0 0
      %444 = vmatpush2.bf16.msra.mxu0 0
      %445 = vmatprep.subr.bf16.mxu0 0
      %446 = vmatpush2.bf16.msra.mxu0 0
      %447 = vmatprep.mubr.bf16.mxu0 0
      %448 = vmatmul.mubr.bf16.gmra.mxu0 %v368
      %v449 = vpop.f32.mrf.mxu0
      %v450 = vadd.f32 0.0, %v449
      %v451 = vpop.f32.mrf.mxu0
      %v452 = vpop.f32.mrf.mxu0
      %v453 = vadd.f32 0.0, %v452
      %v454 = vpop.f32.mrf.mxu0
      %455 = vmatprep.mubr.bf16.mxu0 0
      %456 = vmatmul.mubr.bf16.gmra.mxu0 %v371
      %v457 = vpop.f32.mrf.mxu0
      %v458 = vadd.f32 0.0, %v457
      %v459 = vpop.f32.mrf.mxu0
      %v460 = vpop.f32.mrf.mxu0
      %v461 = vadd.f32 0.0, %v460
      %v462 = vpop.f32.mrf.mxu0
      %463 = vmatprep.mubr.bf16.mxu0 0
      %464 = vmatmul.mubr.bf16.gmra.mxu0 %v374
      %v465 = vpop.f32.mrf.mxu0
      %v466 = vadd.f32 0.0, %v465
      %v467 = vpop.f32.mrf.mxu0
      %v468 = vpop.f32.mrf.mxu0
      %v469 = vadd.f32 0.0, %v468
      %v470 = vpop.f32.mrf.mxu0
      %471 = vmatprep.mubr.bf16.mxu0 0
      %472 = vmatmul.mubr.bf16.gmra.mxu0 %v377
      %v473 = vpop.f32.mrf.mxu0
      %v474 = vadd.f32 0.0, %v473
      %v475 = vpop.f32.mrf.mxu0
      %v476 = vpop.f32.mrf.mxu0
      %v477 = vadd.f32 0.0, %v476
      %v478 = vpop.f32.mrf.mxu0
      %479 = vmatprep.mubr.bf16.mxu0 0
      %480 = vmatmul.mubr.bf16.gmra.mxu0 %v380
      %v481 = vpop.f32.mrf.mxu0
      %v482 = vadd.f32 0.0, %v481
      %v483 = vpop.f32.mrf.mxu0
      %v484 = vpop.f32.mrf.mxu0
      %v485 = vadd.f32 0.0, %v484
      %v486 = vpop.f32.mrf.mxu0
      %487 = vmatprep.mubr.bf16.mxu0 0
      %488 = vmatmul.mubr.bf16.gmra.mxu0 %v383
      %v489 = vpop.f32.mrf.mxu0
      %v490 = vadd.f32 0.0, %v489
      %v491 = vpop.f32.mrf.mxu0
      %v492 = vpop.f32.mrf.mxu0
      %v493 = vadd.f32 0.0, %v492
      %v494 = vpop.f32.mrf.mxu0
      %495 = vmatprep.mubr.bf16.mxu0 0
      %496 = vmatmul.mubr.bf16.gmra.mxu0 %v386
      %v497 = vpop.f32.mrf.mxu0
      %v498 = vadd.f32 0.0, %v497
      %v499 = vpop.f32.mrf.mxu0
      %v500 = vpop.f32.mrf.mxu0
      %v501 = vadd.f32 0.0, %v500
      %v502 = vpop.f32.mrf.mxu0
      %503 = vmatprep.mubr.bf16.mxu0 0
      %504 = vmatmul.mubr.bf16.gmra.mxu0 %v389
      %v505 = vpop.f32.mrf.mxu0
      %v506 = vadd.f32 0.0, %v505
      %v507 = vpop.f32.mrf.mxu0
      %v508 = vpop.f32.mrf.mxu0
      %v509 = vadd.f32 0.0, %v508
      %v510 = vpop.f32.mrf.mxu0
      %511 = vmatprep.mubr.bf16.mxu0 0
      %512 = vmatmul.mubr.bf16.gmra.mxu0 %v392
      %v513 = vpop.f32.mrf.mxu0
      %v514 = vadd.f32 0.0, %v513
      %v515 = vpop.f32.mrf.mxu0
      %v516 = vpop.f32.mrf.mxu0
      %v517 = vadd.f32 0.0, %v516
      %v518 = vpop.f32.mrf.mxu0
      %519 = vmatprep.mubr.bf16.mxu0 0
      %520 = vmatmul.mubr.bf16.gmra.mxu0 %v395
      %v521 = vpop.f32.mrf.mxu0
      %v522 = vadd.f32 0.0, %v521
      %v523 = vpop.f32.mrf.mxu0
      %v524 = vpop.f32.mrf.mxu0
      %v525 = vadd.f32 0.0, %v524
      %v526 = vpop.f32.mrf.mxu0
      %527 = vmatprep.mubr.bf16.mxu0 0
      %528 = vmatmul.mubr.bf16.gmra.mxu0 %v398
      %v529 = vpop.f32.mrf.mxu0
      %v530 = vadd.f32 0.0, %v529
      %v531 = vpop.f32.mrf.mxu0
      %v532 = vpop.f32.mrf.mxu0
      %v533 = vadd.f32 0.0, %v532
      %v534 = vpop.f32.mrf.mxu0
      %535 = vmatprep.mubr.bf16.mxu0 0
      %536 = vmatmul.mubr.bf16.gmra.mxu0 %v401
      %v537 = vpop.f32.mrf.mxu0
      %v538 = vadd.f32 0.0, %v537
      %v539 = vpop.f32.mrf.mxu0
      %v540 = vpop.f32.mrf.mxu0
      %v541 = vadd.f32 0.0, %v540
      %v542 = vpop.f32.mrf.mxu0
      %543 = vmatprep.mubr.bf16.mxu0 0
      %544 = vmatmul.mubr.bf16.gmra.mxu0 %v404
      %v545 = vpop.f32.mrf.mxu0
      %v546 = vadd.f32 0.0, %v545
      %v547 = vpop.f32.mrf.mxu0
      %v548 = vpop.f32.mrf.mxu0
      %v549 = vadd.f32 0.0, %v548
      %v550 = vpop.f32.mrf.mxu0
      %551 = vmatprep.mubr.bf16.mxu0 0
      %552 = vmatmul.mubr.bf16.gmra.mxu0 %v407
      %v553 = vpop.f32.mrf.mxu0
      %v554 = vadd.f32 0.0, %v553
      %v555 = vpop.f32.mrf.mxu0
      %v556 = vpop.f32.mrf.mxu0
      %v557 = vadd.f32 0.0, %v556
      %v558 = vpop.f32.mrf.mxu0
      %559 = vmatprep.mubr.bf16.mxu0 0
      %560 = vmatmul.mubr.bf16.gmra.mxu0 %v410
      %v561 = vpop.f32.mrf.mxu0
      %v562 = vadd.f32 0.0, %v561
      %v563 = vpop.f32.mrf.mxu0
      %v564 = vpop.f32.mrf.mxu0
      %v565 = vadd.f32 0.0, %v564
      %v566 = vpop.f32.mrf.mxu0
      %567 = vmatprep.mubr.bf16.mxu0 0
      %568 = vmatmul.mubr.bf16.gmra.mxu0 %v413
      %v569 = vpop.f32.mrf.mxu0
      %v570 = vadd.f32 0.0, %v569
      %v571 = vpop.f32.mrf.mxu0
      %v572 = vpop.f32.mrf.mxu0
      %v573 = vadd.f32 0.0, %v572
      %v574 = vpop.f32.mrf.mxu0
      %575 = vdwg.mxu0
      %v576 = vpack.c.bf16 %v453, %v450
      %v577 = vpack.c.bf16 %v461, %v458
      %v578 = vpack.c.bf16 %v469, %v466
      %v579 = vpack.c.bf16 %v477, %v474
      %v580 = vpack.c.bf16 %v485, %v482
      %v581 = vpack.c.bf16 %v493, %v490
      %v582 = vpack.c.bf16 %v501, %v498
      %v583 = vpack.c.bf16 %v509, %v506
      %v584 = vpack.c.bf16 %v517, %v514
      %v585 = vpack.c.bf16 %v525, %v522
      %v586 = vpack.c.bf16 %v533, %v530
      %v587 = vpack.c.bf16 %v541, %v538
      %v588 = vpack.c.bf16 %v549, %v546
      %v589 = vpack.c.bf16 %v557, %v554
      %v590 = vpack.c.bf16 %v565, %v562
      %v591 = vpack.c.bf16 %v573, %v570
      %v608 = vunpack.c.l.b16 %v576
      %v609 = vunpack.c.h.b16 %v576
      %v610 = vunpack.c.l.b16 %v577
      %v611 = vunpack.c.h.b16 %v577
      %v612 = vunpack.c.l.b16 %v578
      %v613 = vunpack.c.h.b16 %v578
      %v614 = vunpack.c.l.b16 %v579
      %v615 = vunpack.c.h.b16 %v579
      %v616 = vunpack.c.l.b16 %v580
      %v617 = vunpack.c.h.b16 %v580
      %v618 = vunpack.c.l.b16 %v581
      %v619 = vunpack.c.h.b16 %v581
      %v620 = vunpack.c.l.b16 %v582
      %v621 = vunpack.c.h.b16 %v582
      %v622 = vunpack.c.l.b16 %v583
      %v623 = vunpack.c.h.b16 %v583
      %v624 = vunpack.c.l.b16 %v584
      %v625 = vunpack.c.h.b16 %v584
      %v626 = vunpack.c.l.b16 %v585
      %v627 = vunpack.c.h.b16 %v585
      %v628 = vunpack.c.l.b16 %v586
      %v629 = vunpack.c.h.b16 %v586
      %v630 = vunpack.c.l.b16 %v587
      %v631 = vunpack.c.h.b16 %v587
      %v632 = vunpack.c.l.b16 %v588
      %v633 = vunpack.c.h.b16 %v588
      %v634 = vunpack.c.l.b16 %v589
      %v635 = vunpack.c.h.b16 %v589
      %v636 = vunpack.c.l.b16 %v590
      %v637 = vunpack.c.h.b16 %v590
      %v638 = vunpack.c.l.b16 %v591
      %v639 = vunpack.c.h.b16 %v591
      %v640 = vpack.c.b16 %v608, %v608
      %v641 = vpack.c.b16 %v609, %v609
      %v642 = vpack.c.b16 %v610, %v610
      %v643 = vpack.c.b16 %v611, %v611
      %v644 = vpack.c.b16 %v612, %v612
      %v645 = vpack.c.b16 %v613, %v613
      %v646 = vpack.c.b16 %v614, %v614
      %v647 = vpack.c.b16 %v615, %v615
      %v648 = vpack.c.b16 %v616, %v616
      %v649 = vpack.c.b16 %v617, %v617
      %v650 = vpack.c.b16 %v618, %v618
      %v651 = vpack.c.b16 %v619, %v619
      %v652 = vpack.c.b16 %v620, %v620
      %v653 = vpack.c.b16 %v621, %v621
      %v654 = vpack.c.b16 %v622, %v622
      %v655 = vpack.c.b16 %v623, %v623
      %v656 = vpack.c.b16 %v624, %v624
      %v657 = vpack.c.b16 %v625, %v625
      %v658 = vpack.c.b16 %v626, %v626
      %v659 = vpack.c.b16 %v627, %v627
      %v660 = vpack.c.b16 %v628, %v628
      %v661 = vpack.c.b16 %v629, %v629
      %v662 = vpack.c.b16 %v630, %v630
      %v663 = vpack.c.b16 %v631, %v631
      %v664 = vpack.c.b16 %v632, %v632
      %v665 = vpack.c.b16 %v633, %v633
      %v666 = vpack.c.b16 %v634, %v634
      %v667 = vpack.c.b16 %v635, %v635
      %v668 = vpack.c.b16 %v636, %v636
      %v669 = vpack.c.b16 %v637, %v637
      %v670 = vpack.c.b16 %v638, %v638
      %v671 = vpack.c.b16 %v639, %v639
      %704 = vst [vmem:[%s227] sm:$0xf] %v640
      %705 = vst [vmem:[%s227 + $0x4] sm:$0xf] %v641
      %706 = vst [vmem:[%s227 + $0x8] sm:$0xf] %v642
      %707 = vst [vmem:[%s227 + $0xc] sm:$0xf] %v643
      %708 = vst [vmem:[%s227 + $0x10] sm:$0xf] %v644
      %709 = vst [vmem:[%s227 + $0x14] sm:$0xf] %v645
      %710 = vst [vmem:[%s227 + $0x18] sm:$0xf] %v646
      %711 = vst [vmem:[%s227 + $0x1c] sm:$0xf] %v647
      %712 = vst [vmem:[%s227 + $0x20] sm:$0xf] %v648
      %713 = vst [vmem:[%s227 + $0x24] sm:$0xf] %v649
      %714 = vst [vmem:[%s227 + $0x28] sm:$0xf] %v650
      %715 = vst [vmem:[%s227 + $0x2c] sm:$0xf] %v651
      %716 = vst [vmem:[%s227 + $0x30] sm:$0xf] %v652
      %717 = vst [vmem:[%s227 + $0x34] sm:$0xf] %v653
      %718 = vst [vmem:[%s227 + $0x38] sm:$0xf] %v654
      %719 = vst [vmem:[%s227 + $0x3c] sm:$0xf] %v655
      %720 = vst [vmem:[%s227 + $0x40] sm:$0xf] %v656
      %721 = vst [vmem:[%s227 + $0x44] sm:$0xf] %v657
      %722 = vst [vmem:[%s227 + $0x48] sm:$0xf] %v658
      %723 = vst [vmem:[%s227 + $0x4c] sm:$0xf] %v659
      %724 = vst [vmem:[%s227 + $0x50] sm:$0xf] %v660
      %725 = vst [vmem:[%s227 + $0x54] sm:$0xf] %v661
      %726 = vst [vmem:[%s227 + $0x58] sm:$0xf] %v662
      %727 = vst [vmem:[%s227 + $0x5c] sm:$0xf] %v663
      %728 = vst [vmem:[%s227 + $0x60] sm:$0xf] %v664
      %729 = vst [vmem:[%s227 + $0x64] sm:$0xf] %v665
      %730 = vst [vmem:[%s227 + $0x68] sm:$0xf] %v666
      %731 = vst [vmem:[%s227 + $0x6c] sm:$0xf] %v667
      %732 = vst [vmem:[%s227 + $0x70] sm:$0xf] %v668
      %733 = vst [vmem:[%s227 + $0x74] sm:$0xf] %v669
      %734 = vst [vmem:[%s227 + $0x78] sm:$0xf] %v670
      %735 = vst [vmem:[%s227 + $0x7c] sm:$0xf] %v671
      %s736 = smul.u32 32, %s19
      %p737 = scmp.lt.s32.totalorder %s18, 0
      %s738 = scalar_select %p737, %s18, 0
      %p739 = scmp.lt.s32.totalorder %s736, 63
      %s740 = scalar_select %p739, %s736, 63
      %p741 = scmp.lt.s32.totalorder %s20, 0
      %s742 = scalar_select %p741, %s20, 0
      %s743 = sadd.s32 %s742, %s740
      %s744 = smul.addr %s738, 64
      %s745 = sadd.s32 %s743, %s744
      %s746 = smul.addr %s745, 4
      %s747 = scalar_lea.vmem %s2, %s746
      // Predicated region
      $region29: #{_lambda_.10} parent=27 // pred_check
        %p748 = pneg %p110
      $region30: #{_lambda_.10} parent=27 // pred_check_branch
        %750 = sbr.rel (%p748) target = $region32
      $region31: #{_lambda_.10} parent=27 // pred_region
        %s751 = smul.u32 32, %s19
      $region32: #{_lambda_.10} parent=27 // pred_fallthru
        _
    $region28: #{_lambda_.10} parent=5 // pred_fallthru
      _
    %p752 = scmp.le.s32.totalorder 2, %s8
    // Predicated region
    $region33: #{_lambda_.10} parent=5 // pred_check
      %p753 = pneg %p752
    $region34: #{_lambda_.10} parent=5 // pred_check_branch
      %755 = sbr.rel (%p753) target = $region36
    $region35: #{_lambda_.10} parent=5 // pred_region
      %s756 = ssub.s32 %s8, 2
      // Predicated region
      $region37: #{_lambda_.10} parent=35 // pred_check
        %p757 = pneg %p116
      $region38: #{_lambda_.10} parent=35 // pred_check_branch
        %759 = sbr.rel (%p757) target = $region40
      $region39: #{_lambda_.10} parent=35 // pred_region
        %s760 = smul.u32 32, %s22
        %p761 = scmp.lt.s32.totalorder %s21, 0
        %s762 = scalar_select %p761, %s21, 0
        %p763 = scmp.lt.s32.totalorder %s760, 63
        %s764 = scalar_select %p763, %s760, 63
        %p765 = scmp.lt.s32.totalorder %s23, 0
        %s766 = scalar_select %p765, %s23, 0
        %s767 = sadd.s32 %s766, %s764
        %s768 = smul.addr %s762, 64
        %s769 = sadd.s32 %s767, %s768
        %s770 = smul.addr %s769, 4
        %s771 = scalar_lea.vmem %s2, %s770
      $region40: #{_lambda_.10} parent=35 // pred_fallthru
        _
    $region36: #{_lambda_.10} parent=5 // pred_fallthru
      _
  $region6: #{_lambda_.10} parent=0 // loop_footer
    %s12 = sadd.s32 1, %s8
  $region7: #{_lambda_.10} parent=0 // loop_footer_branch
    %7 = sbr.rel target = $region3
  $region8: #{_lambda_.10} parent=0 // loop_exit
    _

// kernel: _lambda_.11
$region0: #{_lambda_.11}
  #allocation0 [shape = 'u32[]', space=smem, size = 0x4, offset = 0x4, fixed_abs, tag = 'smem constant byte address 0x4 - core index']
  #allocation1 [shape = 'u32[144,128]{1,0:T(1,128)}', space=vmem, size = 0x12000, scoped, tag = 'internal scratch']
  %s0 = inlined_call_operand.vmem [shape: bf16[1,128,128], index: 0, kind: input, shape index: {}]
  %s1 = inlined_call_operand.vmem [shape: bf16[1,128,128], index: 1, kind: input, shape index: {}]
  %s2 = inlined_call_operand.vmem [shape: bf16[1,128,128], index: 2, kind: output, shape index: {0}]
  %s3 = inlined_call_operand.vmem [shape: f32[1,2,2,128], index: 3, kind: output, shape index: {1}]
  %4 = xla_tuple %s2, %s3
  %s5 = sld [smem:[#allocation0]]
  $region49: #{_lambda_.11} parent=0
    _
  %s7 = ssub.s32 1, %s5
  %s8 = scalar_select 0, %s7, %s5
  loop: start=0, step=1, limit=4
  $region2: #{_lambda_.11} parent=0 // loop_pre_header
    _
  $region3: #{_lambda_.11} parent=0 // loop_header
    %s10 = sphi 0, %s14
    %p11 = scmp.ge.s32.totalorder %s10, 4
    %s17 = sphi 0, %s36
    %s18 = sphi 0, %s32
    %s19 = sphi 0, %s28
    %s20 = sphi 0, %s17
    %s21 = sphi 0, %s18
    %s22 = sphi 0, %s19
    %s23 = sphi 0, %s20
    %s24 = sphi 0, %s21
    %s25 = sphi 0, %s22
    %s41 = sphi 0, %s43
    %s44 = sphi 0, %s41
    %s45 = sphi 0, %s44
    %s61 = sphi 0, %s45
    %s69 = sphi 0, %s71
    %s72 = sphi 0, %s69
    %s73 = sphi 0, %s72
    %s89 = sphi 0, %s73
    %s99 = sphi 0, %s101
    %s102 = sphi 0, %s99
    %s103 = sphi 0, %s102
    %s119 = sphi 0, %s103
    %s129 = sphi 0, %s131
    %s132 = sphi 0, %s129
    %s133 = sphi 0, %s132
    %s149 = sphi 0, %s133
  $region4: #{_lambda_.11} parent=0 // loop_header_branch
    %13 = sbr.rel (%p11) target = $region8
  $region5: #{_lambda_.11} parent=0 // loop_body
    %s15 = ssub.s32 %s10, 1
    %s16 = ssub.s32 %s10, 2
    %s26 = sadd.s32 1, %s19
    %p27 = scmp.ge.s32.totalorder %s26, 1
    %s28 = scalar_select %p27, 0, %s26
    %s29 = sadd.s32 1, %s18
    %s30 = scalar_select %p27, %s29, %s18
    %p31 = scmp.ge.s32.totalorder %s30, 2
    %s32 = scalar_select %p31, 0, %s30
    %s33 = sadd.s32 1, %s17
    %s34 = scalar_select %p31, %s33, %s17
    %p35 = scmp.ge.s32.totalorder %s34, 1
    %s36 = scalar_select %p35, 0, %s34
    %s37 = ssub.s32 %s17, %s36
    %s38 = ssub.s32 %s18, %s32
    %s39 = sor.u32 %s37, %s38
    %p40 = scmp.eq.s32.totalorder %s39, 0
    %s42 = sadd.s32 %s41, 1
    %s43 = scalar_select %p40, %s41, %s42
    %p46 = pneg %p40
    %p47 = scmp.eq.s32.totalorder %s10, 1
    %p48 = por %p46, %p47
    %p49 = scmp.ne.s32.totalorder %s41, %s44
    %p50 = scmp.eq.s32.totalorder %s10, 0
    %p51 = por %p49, %p50
    %p52 = scmp.ne.s32.totalorder %s41, %s44
    %p53 = scmp.eq.s32.totalorder %s15, 1
    %p54 = por %p52, %p53
    %p55 = scmp.ne.s32.totalorder %s44, %s45
    %p56 = scmp.eq.s32.totalorder %s15, 0
    %p57 = por %p55, %p56
    %p58 = scmp.ne.s32.totalorder %s44, %s45
    %p59 = scmp.eq.s32.totalorder %s16, 1
    %p60 = por %p58, %p59
    %p62 = scmp.ne.s32.totalorder %s45, %s61
    %p63 = scmp.eq.s32.totalorder %s16, 0
    %p64 = por %p62, %p63
    %s65 = ssub.s32 %s17, %s36
    %s66 = ssub.s32 %s19, %s28
    %s67 = sor.u32 %s65, %s66
    %p68 = scmp.eq.s32.totalorder %s67, 0
    %s70 = sadd.s32 %s69, 1
    %s71 = scalar_select %p68, %s69, %s70
    %p74 = pneg %p68
    %p75 = scmp.eq.s32.totalorder %s10, 1
    %p76 = por %p74, %p75
    %p77 = scmp.ne.s32.totalorder %s69, %s72
    %p78 = scmp.eq.s32.totalorder %s10, 0
    %p79 = por %p77, %p78
    %p80 = scmp.ne.s32.totalorder %s69, %s72
    %p81 = scmp.eq.s32.totalorder %s15, 1
    %p82 = por %p80, %p81
    %p83 = scmp.ne.s32.totalorder %s72, %s73
    %p84 = scmp.eq.s32.totalorder %s15, 0
    %p85 = por %p83, %p84
    %p86 = scmp.ne.s32.totalorder %s72, %s73
    %p87 = scmp.eq.s32.totalorder %s16, 1
    %p88 = por %p86, %p87
    %p90 = scmp.ne.s32.totalorder %s73, %s89
    %p91 = scmp.eq.s32.totalorder %s16, 0
    %p92 = por %p90, %p91
    %s93 = ssub.s32 %s17, %s36
    %s94 = ssub.s32 %s18, %s32
    %s95 = sor.u32 %s93, %s94
    %s96 = ssub.s32 %s19, %s28
    %s97 = sor.u32 %s95, %s96
    %p98 = scmp.eq.s32.totalorder %s97, 0
    %s100 = sadd.s32 %s99, 1
    %s101 = scalar_select %p98, %s99, %s100
    %p104 = pneg %p98
    %p105 = scmp.eq.s32.totalorder %s10, 1
    %p106 = por %p104, %p105
    %p107 = scmp.ne.s32.totalorder %s99, %s102
    %p108 = scmp.eq.s32.totalorder %s10, 0
    %p109 = por %p107, %p108
    %p110 = scmp.ne.s32.totalorder %s99, %s102
    %p111 = scmp.eq.s32.totalorder %s15, 1
    %p112 = por %p110, %p111
    %p113 = scmp.ne.s32.totalorder %s102, %s103
    %p114 = scmp.eq.s32.totalorder %s15, 0
    %p115 = por %p113, %p114
    %p116 = scmp.ne.s32.totalorder %s102, %s103
    %p117 = scmp.eq.s32.totalorder %s16, 1
    %p118 = por %p116, %p117
    %p120 = scmp.ne.s32.totalorder %s103, %s119
    %p121 = scmp.eq.s32.totalorder %s16, 0
    %p122 = por %p120, %p121
    %s123 = ssub.s32 %s17, %s36
    %s124 = ssub.s32 %s18, %s32
    %s125 = sor.u32 %s123, %s124
    %s126 = ssub.s32 %s19, %s28
    %s127 = sor.u32 %s125, %s126
    %p128 = scmp.eq.s32.totalorder %s127, 0
    %s130 = sadd.s32 %s129, 1
    %s131 = scalar_select %p128, %s129, %s130
    %p134 = pneg %p128
    %p135 = scmp.eq.s32.totalorder %s10, 1
    %p136 = por %p134, %p135
    %p137 = scmp.ne.s32.totalorder %s129, %s132
    %p138 = scmp.eq.s32.totalorder %s10, 0
    %p139 = por %p137, %p138
    %p140 = scmp.ne.s32.totalorder %s129, %s132
    %p141 = scmp.eq.s32.totalorder %s15, 1
    %p142 = por %p140, %p141
    %p143 = scmp.ne.s32.totalorder %s132, %s133
    %p144 = scmp.eq.s32.totalorder %s15, 0
    %p145 = por %p143, %p144
    %p146 = scmp.ne.s32.totalorder %s132, %s133
    %p147 = scmp.eq.s32.totalorder %s16, 1
    %p148 = por %p146, %p147
    %p150 = scmp.ne.s32.totalorder %s133, %s149
    %p151 = scmp.eq.s32.totalorder %s16, 0
    %p152 = por %p150, %p151
    %p153 = scmp.le.s32.totalorder 1, %s10
    %p154 = scmp.lt.s32.totalorder %s10, 3
    %p155 = pnand %p153, %p154
    %p156 = pneg %p155
    // Predicated region
    $region9: #{_lambda_.11} parent=5 // pred_check
      _
    $region10: #{_lambda_.11} parent=5 // pred_check_branch
      %158 = sbr.rel (%p155) target = $region12
    $region11: #{_lambda_.11} parent=5 // pred_region
      %s159 = ssub.s32 %s10, 1
      // Predicated region
      $region13: #{_lambda_.11} parent=11 // pred_check
        %p160 = pneg %p85
      $region14: #{_lambda_.11} parent=11 // pred_check_branch
        %162 = sbr.rel (%p160) target = $region16
      $region15: #{_lambda_.11} parent=11 // pred_region
        %p163 = scmp.lt.s32.totalorder %s20, 0
        %s164 = scalar_select %p163, %s20, 0
        %p165 = scmp.lt.s32.totalorder %s22, 0
        %s166 = scalar_select %p165, %s22, 0
        %s167 = smul.addr %s164, 16
        %s168 = sadd.s32 %s166, %s167
        %s169 = smul.addr %s168, 4
        %s170 = scalar_lea.vmem %s1, %s169
      $region16: #{_lambda_.11} parent=11 // pred_fallthru
        _
    $region12: #{_lambda_.11} parent=5 // pred_fallthru
      _
    %p171 = scmp.lt.s32.totalorder %s10, 2
    // Predicated region
    $region17: #{_lambda_.11} parent=5 // pred_check
      %p172 = pneg %p171
    $region18: #{_lambda_.11} parent=5 // pred_check_branch
      %174 = sbr.rel (%p172) target = $region20
    $region19: #{_lambda_.11} parent=5 // pred_region
      // Predicated region
      $region21: #{_lambda_.11} parent=19 // pred_check
        %p175 = pneg %p51
      $region22: #{_lambda_.11} parent=19 // pred_check_branch
        %177 = sbr.rel (%p175) target = $region24
      $region23: #{_lambda_.11} parent=19 // pred_region
        %s178 = smul.u32 8, %s18
        %p179 = scmp.lt.s32.totalorder %s17, 0
        %s180 = scalar_select %p179, %s17, 0
        %p181 = scmp.lt.s32.totalorder %s178, 15
        %s182 = scalar_select %p181, %s178, 15
        %s183 = smul.addr %s180, 16
        %s184 = sadd.s32 %s182, %s183
        %s185 = smul.addr %s184, 4
        %s186 = scalar_lea.vmem %s0, %s185
        %s187 = smul.u32 8, %s18
      $region24: #{_lambda_.11} parent=19 // pred_fallthru
        _
    $region20: #{_lambda_.11} parent=5 // pred_fallthru
      _
    %p188 = scmp.le.s32.totalorder 1, %s10
    %p189 = scmp.lt.s32.totalorder %s10, 3
    %p190 = pnand %p188, %p189
    %p191 = pneg %p190
    // Predicated region
    $region25: #{_lambda_.11} parent=5 // pred_check
      _
    $region26: #{_lambda_.11} parent=5 // pred_check_branch
      %193 = sbr.rel (%p190) target = $region28
    $region27: #{_lambda_.11} parent=5 // pred_region
      %s194 = ssub.s32 %s10, 1
      %s195 = smul.u32 8, %s21
      %p196 = scmp.lt.s32.totalorder %s20, 0
      %s197 = scalar_select %p196, %s20, 0
      %p198 = scmp.lt.s32.totalorder %s195, 15
      %s199 = scalar_select %p198, %s195, 15
      %s200 = smul.addr %s197, 16
      %s201 = sadd.s32 %s199, %s200
      %s202 = smul.addr %s201, 4
      %s203 = scalar_lea.vmem %s0, %s202
      %p204 = pneg %p57
      %p205 = pneg %p54
      %p206 = scmp.lt.s32.totalorder %s20, 0
      %s207 = scalar_select %p206, %s20, 0
      %p208 = scmp.lt.s32.totalorder %s22, 0
      %s209 = scalar_select %p208, %s22, 0
      %s210 = smul.addr %s207, 16
      %s211 = sadd.s32 %s209, %s210
      %s212 = smul.addr %s211, 4
      %s213 = scalar_lea.vmem %s1, %s212
      %p214 = pneg %p85
      %p215 = pneg %p82
      %p216 = pneg %p115
      %p217 = pneg %p112
      %s218 = smul.u32 8, %s21
      %p219 = scmp.lt.s32.totalorder %s20, 0
      %s220 = scalar_select %p219, %s20, 0
      %p221 = scmp.lt.s32.totalorder %s218, 15
      %s222 = scalar_select %p221, %s218, 15
      %p223 = scmp.lt.s32.totalorder %s22, 0
      %s224 = scalar_select %p223, %s22, 0
      %s225 = sadd.s32 %s224, %s222
      %s226 = smul.addr %s220, 16
      %s227 = sadd.s32 %s225, %s226
      %s228 = smul.addr %s227, 4
      %s229 = scalar_lea.vmem %s2, %s228
      %p230 = pneg %p145
      %p231 = pneg %p142
      %p232 = scmp.lt.s32.totalorder %s20, 0
      %s233 = scalar_select %p232, %s20, 0
      %p234 = scmp.lt.s32.totalorder %s21, 1
      %s235 = scalar_select %p234, %s21, 1
      %p236 = scmp.lt.s32.totalorder %s22, 0
      %s237 = scalar_select %p236, %s22, 0
      %s238 = sadd.s32 %s237, %s235
      %s239 = smul.addr %s233, 2
      %s240 = sadd.s32 %s238, %s239
      %s241 = smul.addr %s240, 2
      %s242 = scalar_lea.vmem %s3, %s241
      %s243 = smul.u32 8, %s21
      %p244 = scmp.lt.s32.totalorder %s20, 0
      %s245 = scalar_select %p244, %s20, 0
      %p246 = scmp.lt.s32.totalorder %s243, 15
      %s247 = scalar_select %p246, %s243, 15
      %s248 = smul.addr %s245, 16
      %s249 = sadd.s32 %s247, %s248
      %s250 = smul.addr %s249, 4
      %s251 = scalar_lea.vmem %s0, %s250
      %s252 = smul.u32 8, %s21
      %p253 = scmp.lt.s32.totalorder %s20, 0
      %s254 = scalar_select %p253, %s20, 0
      %p255 = scmp.lt.s32.totalorder %s22, 0
      %s256 = scalar_select %p255, %s22, 0
      %s257 = smul.addr %s254, 16
      %s258 = sadd.s32 %s256, %s257
      %s259 = smul.addr %s258, 4
      %s260 = scalar_lea.vmem %s1, %s259
      %s261 = smul.u32 8, %s21
      %p262 = scmp.lt.s32.totalorder %s20, 0
      %s263 = scalar_select %p262, %s20, 0
      %p264 = scmp.lt.s32.totalorder %s261, 15
      %s265 = scalar_select %p264, %s261, 15
      %p266 = scmp.lt.s32.totalorder %s22, 0
      %s267 = scalar_select %p266, %s22, 0
      %s268 = sadd.s32 %s267, %s265
      %s269 = smul.addr %s263, 16
      %s270 = sadd.s32 %s268, %s269
      %s271 = smul.addr %s270, 4
      %s272 = scalar_lea.vmem %s2, %s271
      %s273 = smul.u32 8, %s21
      %p274 = scmp.lt.s32.totalorder %s20, 0
      %s275 = scalar_select %p274, %s20, 0
      %p276 = scmp.lt.s32.totalorder %s21, 1
      %s277 = scalar_select %p276, %s21, 1
      %p278 = scmp.lt.s32.totalorder %s22, 0
      %s279 = scalar_select %p278, %s22, 0
      %s280 = sadd.s32 %s279, %s277
      %s281 = smul.addr %s275, 2
      %s282 = sadd.s32 %s280, %s281
      %s283 = smul.addr %s282, 2
      %s284 = scalar_lea.vmem %s3, %s283
      %v287 = vld [vmem:[%s251] sm:$0xf]
      %v288 = vld [vmem:[%s251 + $0x4] sm:$0xf]
      %v289 = vld [vmem:[%s251 + $0x8] sm:$0xf]
      %v290 = vld [vmem:[%s251 + $0xc] sm:$0xf]
      %v291 = vld [vmem:[%s251 + $0x10] sm:$0xf]
      %v292 = vld [vmem:[%s251 + $0x14] sm:$0xf]
      %v293 = vld [vmem:[%s251 + $0x18] sm:$0xf]
      %v294 = vld [vmem:[%s251 + $0x1c] sm:$0xf]
      %vm295 = vcmp.ge.bf16.partialorder %v287, 0
      %vm296 = vcmp.ge.bf16.partialorder %v288, 0
      %vm297 = vcmp.ge.bf16.partialorder %v289, 0
      %vm298 = vcmp.ge.bf16.partialorder %v290, 0
      %vm299 = vcmp.ge.bf16.partialorder %v291, 0
      %vm300 = vcmp.ge.bf16.partialorder %v292, 0
      %vm301 = vcmp.ge.bf16.partialorder %v293, 0
      %vm302 = vcmp.ge.bf16.partialorder %v294, 0
      %v303 = vmul.bf16 %v287, 1045249613
      %v304 = vmul.bf16 %v288, 1045249613
      %v305 = vmul.bf16 %v289, 1045249613
      %v306 = vmul.bf16 %v290, 1045249613
      %v307 = vmul.bf16 %v291, 1045249613
      %v308 = vmul.bf16 %v292, 1045249613
      %v309 = vmul.bf16 %v293, 1045249613
      %v310 = vmul.bf16 %v294, 1045249613
      %v311 = vsel %vm295, %v287, %v303
      %v312 = vsel %vm296, %v288, %v304
      %v313 = vsel %vm297, %v289, %v305
      %v314 = vsel %vm298, %v290, %v306
      %v315 = vsel %vm299, %v291, %v307
      %v316 = vsel %vm300, %v292, %v308
      %v317 = vsel %vm301, %v293, %v309
      %v318 = vsel %vm302, %v294, %v310
      %v319 = vld [vmem:[%s260] sm:$0xf]
      %v320 = vld [vmem:[%s260 + $0x4] sm:$0xf]
      %v321 = vld [vmem:[%s260 + $0x8] sm:$0xf]
      %v322 = vld [vmem:[%s260 + $0xc] sm:$0xf]
      %v323 = vld [vmem:[%s260 + $0x10] sm:$0xf]
      %v324 = vld [vmem:[%s260 + $0x14] sm:$0xf]
      %v325 = vld [vmem:[%s260 + $0x18] sm:$0xf]
      %v326 = vld [vmem:[%s260 + $0x1c] sm:$0xf]
      %v327 = vld [vmem:[%s260 + $0x20] sm:$0xf]
      %v328 = vld [vmem:[%s260 + $0x24] sm:$0xf]
      %v329 = vld [vmem:[%s260 + $0x28] sm:$0xf]
      %v330 = vld [vmem:[%s260 + $0x2c] sm:$0xf]
      %v331 = vld [vmem:[%s260 + $0x30] sm:$0xf]
      %v332 = vld [vmem:[%s260 + $0x34] sm:$0xf]
      %v333 = vld [vmem:[%s260 + $0x38] sm:$0xf]
      %v334 = vld [vmem:[%s260 + $0x3c] sm:$0xf]
      %v343 = vunpack.c.l.b16 %v311
      %v344 = vunpack.c.l.b16 %v312
      %v345 = vunpack.c.l.b16 %v313
      %v346 = vunpack.c.l.b16 %v314
      %v347 = vunpack.c.l.b16 %v315
      %v348 = vunpack.c.l.b16 %v316
      %v349 = vunpack.c.l.b16 %v317
      %v350 = vunpack.c.l.b16 %v318
      %v351 = vpack.c.b16 %v344, %v343
      %v352 = vpack.c.b16 %v346, %v345
      %v353 = vpack.c.b16 %v348, %v347
      %v354 = vpack.c.b16 %v350, %v349
      %v375 = vunpack.c.l.b16 %v319
      %v376 = vunpack.c.l.b16 %v320
      %v377 = vunpack.c.l.b16 %v321
      %v378 = vunpack.c.l.b16 %v322
      %v379 = vunpack.c.l.b16 %v323
      %v380 = vunpack.c.l.b16 %v324
      %v381 = vunpack.c.l.b16 %v325
      %v382 = vunpack.c.l.b16 %v326
      %v383 = vunpack.c.l.b16 %v327
      %v384 = vunpack.c.l.b16 %v328
      %v385 = vunpack.c.l.b16 %v329
      %v386 = vunpack.c.l.b16 %v330
      %v387 = vunpack.c.l.b16 %v331
      %v388 = vunpack.c.l.b16 %v332
      %v389 = vunpack.c.l.b16 %v333
      %v390 = vunpack.c.l.b16 %v334
      %v391 = vpack.c.b16 %v376, %v375
      %v392 = vpack.c.b16 %v378, %v377
      %v393 = vpack.c.b16 %v380, %v379
      %v394 = vpack.c.b16 %v382, %v381
      %v395 = vpack.c.b16 %v384, %v383
      %v396 = vpack.c.b16 %v386, %v385
      %v397 = vpack.c.b16 %v388, %v387
      %v398 = vpack.c.b16 %v390, %v389
      %407 = vmatprep.subr.bf16.mxu0 0
      %408 = vmatpush1.bf16.msra.mxu0 %v398
      %409 = vmatprep.subr.bf16.mxu0 0
      %410 = vmatpush1.bf16.msra.mxu0 %v397
      %411 = vmatprep.subr.bf16.mxu0 0
      %412 = vmatpush1.bf16.msra.mxu0 %v396
      %413 = vmatprep.subr.bf16.mxu0 0
      %414 = vmatpush1.bf16.msra.mxu0 %v395
      %415 = vmatprep.subr.bf16.mxu0 0
      %416 = vmatpush1.bf16.msra.mxu0 %v394
      %417 = vmatprep.subr.bf16.mxu0 0
      %418 = vmatpush1.bf16.msra.mxu0 %v393
      %419 = vmatprep.subr.bf16.mxu0 0
      %420 = vmatpush1.bf16.msra.mxu0 %v392
      %421 = vmatprep.subr.bf16.mxu0 0
      %422 = vmatpush1.bf16.msra.mxu0 %v391
      %423 = vmatprep.subr.bf16.mxu0 0
      %424 = vmatpush2.bf16.msra.mxu0 0
      %425 = vmatprep.subr.bf16.mxu0 0
      %426 = vmatpush2.bf16.msra.mxu0 0
      %427 = vmatprep.subr.bf16.mxu0 0
      %428 = vmatpush2.bf16.msra.mxu0 0
      %429 = vmatprep.subr.bf16.mxu0 0
      %430 = vmatpush2.bf16.msra.mxu0 0
      %431 = vmatprep.subr.bf16.mxu0 0
      %432 = vmatpush2.bf16.msra.mxu0 0
      %433 = vmatprep.subr.bf16.mxu0 0
      %434 = vmatpush2.bf16.msra.mxu0 0
      %435 = vmatprep.subr.bf16.mxu0 0
      %436 = vmatpush2.bf16.msra.mxu0 0
      %437 = vmatprep.subr.bf16.mxu0 0
      %438 = vmatpush2.bf16.msra.mxu0 0
      %439 = vmatprep.mubr.bf16.mxu0 0
      %440 = vmatmul.mubr.bf16.gmra.mxu0 %v351
      %v441 = vpop.f32.mrf.mxu0
      %v442 = vadd.f32 0.0, %v441
      %v443 = vpop.f32.mrf.mxu0
      %v444 = vpop.f32.mrf.mxu0
      %v445 = vadd.f32 0.0, %v444
      %v446 = vpop.f32.mrf.mxu0
      %447 = vmatprep.mubr.bf16.mxu0 0
      %448 = vmatmul.mubr.bf16.gmra.mxu0 %v352
      %v449 = vpop.f32.mrf.mxu0
      %v450 = vadd.f32 0.0, %v449
      %v451 = vpop.f32.mrf.mxu0
      %v452 = vpop.f32.mrf.mxu0
      %v453 = vadd.f32 0.0, %v452
      %v454 = vpop.f32.mrf.mxu0
      %455 = vmatprep.mubr.bf16.mxu0 0
      %456 = vmatmul.mubr.bf16.gmra.mxu0 %v353
      %v457 = vpop.f32.mrf.mxu0
      %v458 = vadd.f32 0.0, %v457
      %v459 = vpop.f32.mrf.mxu0
      %v460 = vpop.f32.mrf.mxu0
      %v461 = vadd.f32 0.0, %v460
      %v462 = vpop.f32.mrf.mxu0
      %463 = vmatprep.mubr.bf16.mxu0 0
      %464 = vmatmul.mubr.bf16.gmra.mxu0 %v354
      %v465 = vpop.f32.mrf.mxu0
      %v466 = vadd.f32 0.0, %v465
      %v467 = vpop.f32.mrf.mxu0
      %v468 = vpop.f32.mrf.mxu0
      %v469 = vadd.f32 0.0, %v468
      %v470 = vpop.f32.mrf.mxu0
      %471 = vdwg.mxu0
      %v472 = vpack.c.bf16 %v445, %v442
      %v473 = vpack.c.bf16 %v453, %v450
      %v474 = vpack.c.bf16 %v461, %v458
      %v475 = vpack.c.bf16 %v469, %v466
      %v480 = vunpack.c.l.b16 %v472
      %v481 = vunpack.c.h.b16 %v472
      %v482 = vunpack.c.l.b16 %v473
      %v483 = vunpack.c.h.b16 %v473
      %v484 = vunpack.c.l.b16 %v474
      %v485 = vunpack.c.h.b16 %v474
      %v486 = vunpack.c.l.b16 %v475
      %v487 = vunpack.c.h.b16 %v475
      %v488 = vpack.c.b16 %v480, %v480
      %v489 = vpack.c.b16 %v481, %v481
      %v490 = vpack.c.b16 %v482, %v482
      %v491 = vpack.c.b16 %v483, %v483
      %v492 = vpack.c.b16 %v484, %v484
      %v493 = vpack.c.b16 %v485, %v485
      %v494 = vpack.c.b16 %v486, %v486
      %v495 = vpack.c.b16 %v487, %v487
      %504 = vst [vmem:[%s272] sm:$0xf] %v488
      %505 = vst [vmem:[%s272 + $0x4] sm:$0xf] %v489
      %506 = vst [vmem:[%s272 + $0x8] sm:$0xf] %v490
      %507 = vst [vmem:[%s272 + $0xc] sm:$0xf] %v491
      %508 = vst [vmem:[%s272 + $0x10] sm:$0xf] %v492
      %509 = vst [vmem:[%s272 + $0x14] sm:$0xf] %v493
      %510 = vst [vmem:[%s272 + $0x18] sm:$0xf] %v494
      %511 = vst [vmem:[%s272 + $0x1c] sm:$0xf] %v495
      %v512 = vlaneseq
      %v513 = vshrl.u32 %v512, 7
      %v514 = vadd.s32 %v513, 8
      %v515 = vadd.s32 %v513, 16
      %v516 = vadd.s32 %v513, 24
      %v517 = vadd.s32 %v513, 32
      %v518 = vadd.s32 %v513, 40
      %v519 = vadd.s32 %v513, 48
      %v520 = vadd.s32 %v513, 56
      %s521 = smul.u32 %s21, 64
      %v522 = vstv %s521
      %v523 = vadd.s32 %v513, %v522
      %v524 = vadd.s32 %v514, %v522
      %v525 = vadd.s32 %v515, %v522
      %v526 = vadd.s32 %v516, %v522
      %v527 = vadd.s32 %v517, %v522
      %v528 = vadd.s32 %v518, %v522
      %v529 = vadd.s32 %v519, %v522
      %v530 = vadd.s32 %v520, %v522
      %vm531 = vcmp.lt.s32.totalorder %v523, 128
      %vm532 = vcmp.lt.s32.totalorder %v524, 128
      %vm533 = vcmp.lt.s32.totalorder %v525, 128
      %vm534 = vcmp.lt.s32.totalorder %v526, 128
      %vm535 = vcmp.lt.s32.totalorder %v527, 128
      %vm536 = vcmp.lt.s32.totalorder %v528, 128
      %vm537 = vcmp.lt.s32.totalorder %v529, 128
      %vm538 = vcmp.lt.s32.totalorder %v530, 128
      %v539 = vsel %vm531, %v442, 0.0
      %v540 = vsel %vm532, %v445, 0.0
      %v541 = vsel %vm533, %v450, 0.0
      %v542 = vsel %vm534, %v453, 0.0
      %v543 = vsel %vm535, %v458, 0.0
      %v544 = vsel %vm536, %v461, 0.0
      %v545 = vsel %vm537, %v466, 0.0
      %v546 = vsel %vm538, %v469, 0.0
      %v547 = vadd.f32 %v539, %v540
      %v548 = vadd.f32 %v547, %v541
      %v549 = vadd.f32 %v548, %v542
      %v550 = vadd.f32 %v549, %v543
      %v551 = vadd.f32 %v550, %v544
      %v552 = vadd.f32 %v551, %v545
      %v553 = vadd.f32 %v552, %v546
      %v554 = vrot.slane %v553, 4
      %v555 = vadd.f32 %v553, %v554
      %v556 = vrot.slane %v555, 2
      %v557 = vadd.f32 %v555, %v556
      %v558 = vrot.slane %v557, 1
      %v559 = vadd.f32 %v557, %v558
      %v560 = vmul.f32 %v539, %v539
      %v561 = vmul.f32 %v540, %v540
      %v562 = vmul.f32 %v541, %v541
      %v563 = vmul.f32 %v542, %v542
      %v564 = vmul.f32 %v543, %v543
      %v565 = vmul.f32 %v544, %v544
      %v566 = vmul.f32 %v545, %v545
      %v567 = vmul.f32 %v546, %v546
      %v568 = vadd.f32 %v560, %v561
      %v569 = vadd.f32 %v568, %v562
      %v570 = vadd.f32 %v569, %v563
      %v571 = vadd.f32 %v570, %v564
      %v572 = vadd.f32 %v571, %v565
      %v573 = vadd.f32 %v572, %v566
      %v574 = vadd.f32 %v573, %v567
      %v575 = vrot.slane %v574, 4
      %v576 = vadd.f32 %v574, %v575
      %v577 = vrot.slane %v576, 2
      %v578 = vadd.f32 %v576, %v577
      %v579 = vrot.slane %v578, 1
      %v580 = vadd.f32 %v578, %v579
      %vm581 = vcmask 1040384
      %v582 = vsel %vm581, %v559, %v580
      %583 = vst [vmem:[%s284] sm:$0x3] %v582
      %s584 = smul.u32 8, %s21
      %p585 = scmp.lt.s32.totalorder %s20, 0
      %s586 = scalar_select %p585, %s20, 0
      %p587 = scmp.lt.s32.totalorder %s584, 15
      %s588 = scalar_select %p587, %s584, 15
      %p589 = scmp.lt.s32.totalorder %s22, 0
      %s590 = scalar_select %p589, %s22, 0
      %s591 = sadd.s32 %s590, %s588
      %s592 = smul.addr %s586, 16
      %s593 = sadd.s32 %s591, %s592
      %s594 = smul.addr %s593, 4
      %s595 = scalar_lea.vmem %s2, %s594
      %p596 = scmp.lt.s32.totalorder %s20, 0
      %s597 = scalar_select %p596, %s20, 0
      %p598 = scmp.lt.s32.totalorder %s21, 1
      %s599 = scalar_select %p598, %s21, 1
      %p600 = scmp.lt.s32.totalorder %s22, 0
      %s601 = scalar_select %p600, %s22, 0
      %s602 = sadd.s32 %s601, %s599
      %s603 = smul.addr %s597, 2
      %s604 = sadd.s32 %s602, %s603
      %s605 = smul.addr %s604, 2
      %s606 = scalar_lea.vmem %s3, %s605
      // Predicated region
      $region29: #{_lambda_.11} parent=27 // pred_check
        %p607 = pneg %p112
      $region30: #{_lambda_.11} parent=27 // pred_check_branch
        %609 = sbr.rel (%p607) target = $region32
      $region31: #{_lambda_.11} parent=27 // pred_region
        %s610 = smul.u32 8, %s21
      $region32: #{_lambda_.11} parent=27 // pred_fallthru
        _
      // Predicated region
      $region33: #{_lambda_.11} parent=27 // pred_check
        %p611 = pneg %p142
      $region34: #{_lambda_.11} parent=27 // pred_check_branch
        %613 = sbr.rel (%p611) target = $region36
      $region35: #{_lambda_.11} parent=27 // pred_region
        _
      $region36: #{_lambda_.11} parent=27 // pred_fallthru
        _
    $region28: #{_lambda_.11} parent=5 // pred_fallthru
      _
    %p614 = scmp.le.s32.totalorder 2, %s10
    // Predicated region
    $region37: #{_lambda_.11} parent=5 // pred_check
      %p615 = pneg %p614
    $region38: #{_lambda_.11} parent=5 // pred_check_branch
      %617 = sbr.rel (%p615) target = $region40
    $region39: #{_lambda_.11} parent=5 // pred_region
      %s618 = ssub.s32 %s10, 2
      // Predicated region
      $region41: #{_lambda_.11} parent=39 // pred_check
        %p619 = pneg %p118
      $region42: #{_lambda_.11} parent=39 // pred_check_branch
        %621 = sbr.rel (%p619) target = $region44
      $region43: #{_lambda_.11} parent=39 // pred_region
        %s622 = smul.u32 8, %s24
        %p623 = scmp.lt.s32.totalorder %s23, 0
        %s624 = scalar_select %p623, %s23, 0
        %p625 = scmp.lt.s32.totalorder %s622, 15
        %s626 = scalar_select %p625, %s622, 15
        %p627 = scmp.lt.s32.totalorder %s25, 0
        %s628 = scalar_select %p627, %s25, 0
        %s629 = sadd.s32 %s628, %s626
        %s630 = smul.addr %s624, 16
        %s631 = sadd.s32 %s629, %s630
        %s632 = smul.addr %s631, 4
        %s633 = scalar_lea.vmem %s2, %s632
      $region44: #{_lambda_.11} parent=39 // pred_fallthru
        _
      // Predicated region
      $region45: #{_lambda_.11} parent=39 // pred_check
        %p634 = pneg %p148
      $region46: #{_lambda_.11} parent=39 // pred_check_branch
        %636 = sbr.rel (%p634) target = $region48
      $region47: #{_lambda_.11} parent=39 // pred_region
        %p637 = scmp.lt.s32.totalorder %s23, 0
        %s638 = scalar_select %p637, %s23, 0
        %p639 = scmp.lt.s32.totalorder %s24, 1
        %s640 = scalar_select %p639, %s24, 1
        %p641 = scmp.lt.s32.totalorder %s25, 0
        %s642 = scalar_select %p641, %s25, 0
        %s643 = sadd.s32 %s642, %s640
        %s644 = smul.addr %s638, 2
        %s645 = sadd.s32 %s643, %s644
        %s646 = smul.addr %s645, 2
        %s647 = scalar_lea.vmem %s3, %s646
      $region48: #{_lambda_.11} parent=39 // pred_fallthru
        _
    $region40: #{_lambda_.11} parent=5 // pred_fallthru
      _
  $region6: #{_lambda_.11} parent=0 // loop_footer
    %s14 = sadd.s32 1, %s10
  $region7: #{_lambda_.11} parent=0 // loop_footer_branch
    %9 = sbr.rel target = $region3
  $region8: #{_lambda_.11} parent=0 // loop_exit
    _

// kernel: tile.77
$region0: #{tile.77}
  #allocation0 [shape = 's32[1]{0}', space=sflag, size = 0x4, scoped, tag = 'scoped memory for tile.77']
  %s0 = inlined_call_operand.vmem [shape: f32[16], index: 0, kind: input, shape index: {}]
  %s1 = inlined_call_operand.vmem [shape: f32[16,16], index: 1, kind: output, shape index: {}]
  // Predicated region
  $region2: #{tile.77} parent=0 // pred_check
    _
  $region3: #{tile.77} parent=0 // pred_check_branch
    %3 = sbr.rel (0) target = $region5
  $region4: #{tile.77} parent=0 // pred_region
    _
  $region5: #{tile.77} parent=0 // pred_fallthru
    _
  %v4 = vld [vmem:[%s0] ss:$0 sm:$0xff]
  %5 = vst [vmem:[%s1] sm:$0xff] %v4
  %s6 = scalar_lea.vmem %s1, 8
  %7 = vst [vmem:[%s6] sm:$0xff] %v4

// kernel: tile.79
$region0: #{tile.79}
  %s0 = inlined_call_operand.vmem [shape: f32[16,16], index: 0, kind: input, shape index: {}]
  %s1 = inlined_call_operand.vmem [shape: f32[1,256], index: 1, kind: output, shape index: {}]
  $region1: #{tile.79} parent=0
    #allocation0 [shape = 'u8[8192]{0}', space=vmem, size = 0x2000, scoped, tag = 'scoped mem for output reshape']
    %s2 = smov 3
    %v3 = vld [vmem:[%s0] ss:$8 sm:%s2]
    %vm4 = vcmask 130048
    %5 = vst.msk [vmem:[#allocation0] ss:$8 sm:$0x3] %vm4, %v3
    %s6 = scalar_lea.vmem %s0, 7
    %s7 = smov 3
    %v8 = vld [vmem:[%s6] ss:$8 sm:%s7]
    %9 = vrot.lane.b32.xlu0 %v8, 112
    %v10 = vpop.permute.xlu0 %9
    %vm11 = vcmask 1048448
    %12 = vst.msk [vmem:[#allocation0] ss:$8 sm:$0x3] %vm11, %v10
    %s13 = scalar_lea.vmem %s0, 6
    %s14 = smov 3
    %v15 = vld [vmem:[%s13] ss:$8 sm:%s14]
    %16 = vrot.lane.b32.xlu0 %v15, 96
    %v17 = vpop.permute.xlu0 %16
    %vm18 = vcmask 917248
    %19 = vst.msk [vmem:[#allocation0] ss:$8 sm:$0x3] %vm18, %v17
    %s20 = scalar_lea.vmem %s0, 5
    %s21 = smov 3
    %v22 = vld [vmem:[%s20] ss:$8 sm:%s21]
    %23 = vrot.lane.b32.xlu0 %v22, 80
    %v24 = vpop.permute.xlu0 %23
    %vm25 = vcmask 786048
    %26 = vst.msk [vmem:[#allocation0] ss:$8 sm:$0x3] %vm25, %v24
    %s27 = scalar_lea.vmem %s0, 4
    %s28 = smov 3
    %v29 = vld [vmem:[%s27] ss:$8 sm:%s28]
    %30 = vrot.lane.b32.xlu0 %v29, 64
    %v31 = vpop.permute.xlu0 %30
    %vm32 = vcmask 654848
    %33 = vst.msk [vmem:[#allocation0] ss:$8 sm:$0x3] %vm32, %v31
    %s34 = scalar_lea.vmem %s0, 3
    %s35 = smov 3
    %v36 = vld [vmem:[%s34] ss:$8 sm:%s35]
    %37 = vrot.lane.b32.xlu0 %v36, 48
    %v38 = vpop.permute.xlu0 %37
    %vm39 = vcmask 523648
    %40 = vst.msk [vmem:[#allocation0] ss:$8 sm:$0x3] %vm39, %v38
    %s41 = scalar_lea.vmem %s0, 2
    %s42 = smov 3
    %v43 = vld [vmem:[%s41] ss:$8 sm:%s42]
    %44 = vrot.lane.b32.xlu0 %v43, 32
    %v45 = vpop.permute.xlu0 %44
    %vm46 = vcmask 392448
    %47 = vst.msk [vmem:[#allocation0] ss:$8 sm:$0x3] %vm46, %v45
    %s48 = scalar_lea.vmem %s0, 1
    %s49 = smov 3
    %v50 = vld [vmem:[%s48] ss:$8 sm:%s49]
    %51 = vrot.lane.b32.xlu0 %v50, 16
    %v52 = vpop.permute.xlu0 %51
    %vm53 = vcmask 261248
    %54 = vst.msk [vmem:[#allocation0] ss:$8 sm:$0x3] %vm53, %v52
    %s56 = sshll.u32 1, 1
    %s57 = ssub.s32 %s56, 1
    %v59 = vld [vmem:[#allocation0] sm:%s57]
    %s60 = sshll.u32 1, 1
    %s61 = ssub.s32 %s60, 1
    %62 = vst [vmem:[%s1] sm:%s61] %v59
    %s63 = scalar_lea.vmem [#allocation0], 8
    %v64 = vld [vmem:[%s63] sm:%s57]
    %s65 = sshll.u32 1, 1
    %s66 = ssub.s32 %s65, 1
    %s67 = scalar_lea.vmem %s1, 1
    %68 = vst [vmem:[%s67] sm:%s66] %v64

// kernel: tile.87
$region0: #{tile.87}
  #allocation0 [shape = 's32[1]{0}', space=sflag, size = 0x4, scoped, tag = 'scoped memory for tile.87']
  %s0 = inlined_call_operand.vmem [shape: f32[32], index: 0, kind: input, shape index: {}]
  %s1 = inlined_call_operand.vmem [shape: f32[16,32], index: 1, kind: output, shape index: {}]
  // Predicated region
  $region2: #{tile.87} parent=0 // pred_check
    _
  $region3: #{tile.87} parent=0 // pred_check_branch
    %3 = sbr.rel (0) target = $region5
  $region4: #{tile.87} parent=0 // pred_region
    _
  $region5: #{tile.87} parent=0 // pred_fallthru
    _
  %v4 = vld [vmem:[%s0] ss:$0 sm:$0xff]
  %5 = vst [vmem:[%s1] sm:$0xff] %v4
  %s6 = scalar_lea.vmem %s1, 8
  %7 = vst [vmem:[%s6] sm:$0xff] %v4

// kernel: tile.89
$region0: #{tile.89}
  %s0 = inlined_call_operand.vmem [shape: f32[16,32], index: 0, kind: input, shape index: {}]
  %s1 = inlined_call_operand.vmem [shape: f32[1,512], index: 1, kind: output, shape index: {}]
  $region1: #{tile.89} parent=0
    #allocation0 [shape = 'u8[16384]{0}', space=vmem, size = 0x4000, scoped, tag = 'scoped mem for output reshape']
    %v2 = vld [vmem:[%s0] ss:$4 sm:$0xf]
    %vm3 = vcmask 261120
    %4 = vst.msk [vmem:[#allocation0] ss:$8 sm:$0xf] %vm3, %v2
    %s5 = scalar_lea.vmem %s0, 3
    %v6 = vld [vmem:[%s5] ss:$4 sm:$0xf]
    %7 = vrot.lane.b32.xlu0 %v6, 96
    %v8 = vpop.permute.xlu0 %7
    %vm9 = vcmask 1048320
    %10 = vst.msk [vmem:[#allocation0] ss:$8 sm:$0xf] %vm9, %v8
    %s11 = scalar_lea.vmem %s0, 2
    %v12 = vld [vmem:[%s11] ss:$4 sm:$0xf]
    %13 = vrot.lane.b32.xlu0 %v12, 64
    %v14 = vpop.permute.xlu0 %13
    %vm15 = vcmask 785920
    %16 = vst.msk [vmem:[#allocation0] ss:$8 sm:$0xf] %vm15, %v14
    %s17 = scalar_lea.vmem %s0, 1
    %v18 = vld [vmem:[%s17] ss:$4 sm:$0xf]
    %19 = vrot.lane.b32.xlu0 %v18, 32
    %v20 = vpop.permute.xlu0 %19
    %vm21 = vcmask 523520
    %22 = vst.msk [vmem:[#allocation0] ss:$8 sm:$0xf] %vm21, %v20
    %s24 = sshll.u32 1, 1
    %s25 = ssub.s32 %s24, 1
    %v27 = vld [vmem:[#allocation0] sm:%s25]
    %s28 = sshll.u32 1, 1
    %s29 = ssub.s32 %s28, 1
    %30 = vst [vmem:[%s1] sm:%s29] %v27
    %s31 = scalar_lea.vmem [#allocation0], 8
    %v32 = vld [vmem:[%s31] sm:%s25]
    %s33 = sshll.u32 1, 1
    %s34 = ssub.s32 %s33, 1
    %s35 = scalar_lea.vmem %s1, 1
    %36 = vst [vmem:[%s35] sm:%s34] %v32
    %s37 = scalar_lea.vmem [#allocation0], 16
    %v38 = vld [vmem:[%s37] sm:%s25]
    %s39 = sshll.u32 1, 1
    %s40 = ssub.s32 %s39, 1
    %s41 = smul.addr 1, 2
    %s42 = scalar_lea.vmem %s1, %s41
    %43 = vst [vmem:[%s42] sm:%s40] %v38
    %s44 = scalar_lea.vmem [#allocation0], 24
    %v45 = vld [vmem:[%s44] sm:%s25]
    %s46 = sshll.u32 1, 1
    %s47 = ssub.s32 %s46, 1
    %s48 = smul.addr 1, 3
    %s49 = scalar_lea.vmem %s1, %s48
    %50 = vst [vmem:[%s49] sm:%s47] %v45

// kernel: _lambda_.12
$region0: #{_lambda_.12}
  #allocation0 [shape = 'u32[]', space=smem, size = 0x4, offset = 0x4, fixed_abs, tag = 'smem constant byte address 0x4 - core index']
  #allocation1 [shape = 'u32[144,128]{1,0:T(1,128)}', space=vmem, size = 0x12000, scoped, tag = 'internal scratch']
  %s0 = inlined_call_operand.vmem [shape: bf16[1,32,256], index: 0, kind: input, shape index: {}]
  %s1 = inlined_call_operand.vmem [shape: bf16[1,256,128], index: 1, kind: input, shape index: {}]
  %s2 = inlined_call_operand.vmem [shape: f32[1,256], index: 2, kind: input, shape index: {}]
  %s3 = inlined_call_operand.vmem [shape: f32[1,256], index: 3, kind: input, shape index: {}]
  %s4 = inlined_call_operand.vmem [shape: bf16[1,32,128], index: 4, kind: output, shape index: {0}]
  %s5 = inlined_call_operand.vmem [shape: f32[1,2,2,128], index: 5, kind: output, shape index: {1}]
  %6 = xla_tuple %s4, %s5
  %s7 = sld [smem:[#allocation0]]
  $region57: #{_lambda_.12} parent=0
    _
  %s9 = ssub.s32 1, %s7
  %s10 = scalar_select 0, %s9, %s7
  loop: start=0, step=1, limit=4
  $region2: #{_lambda_.12} parent=0 // loop_pre_header
    _
  $region3: #{_lambda_.12} parent=0 // loop_header
    %s12 = sphi 0, %s16
    %p13 = scmp.ge.s32.totalorder %s12, 4
    %s19 = sphi 0, %s38
    %s20 = sphi 0, %s34
    %s21 = sphi 0, %s30
    %s22 = sphi 0, %s19
    %s23 = sphi 0, %s20
    %s24 = sphi 0, %s21
    %s25 = sphi 0, %s22
    %s26 = sphi 0, %s23
    %s27 = sphi 0, %s24
    %s43 = sphi 0, %s45
    %s46 = sphi 0, %s43
    %s47 = sphi 0, %s46
    %s63 = sphi 0, %s47
    %s71 = sphi 0, %s73
    %s74 = sphi 0, %s71
    %s75 = sphi 0, %s74
    %s91 = sphi 0, %s75
    %s95 = sphi 0, %s95
    %s97 = sphi 0, %s95
    %s98 = sphi 0, %s97
    %s112 = sphi 0, %s98
    %s116 = sphi 0, %s116
    %s118 = sphi 0, %s116
    %s119 = sphi 0, %s118
    %s133 = sphi 0, %s119
    %s143 = sphi 0, %s145
    %s146 = sphi 0, %s143
    %s147 = sphi 0, %s146
    %s163 = sphi 0, %s147
    %s173 = sphi 0, %s175
    %s176 = sphi 0, %s173
    %s177 = sphi 0, %s176
    %s193 = sphi 0, %s177
  $region4: #{_lambda_.12} parent=0 // loop_header_branch
    %15 = sbr.rel (%p13) target = $region8
  $region5: #{_lambda_.12} parent=0 // loop_body
    %s17 = ssub.s32 %s12, 1
    %s18 = ssub.s32 %s12, 2
    %s28 = sadd.s32 1, %s21
    %p29 = scmp.ge.s32.totalorder %s28, 1
    %s30 = scalar_select %p29, 0, %s28
    %s31 = sadd.s32 1, %s20
    %s32 = scalar_select %p29, %s31, %s20
    %p33 = scmp.ge.s32.totalorder %s32, 2
    %s34 = scalar_select %p33, 0, %s32
    %s35 = sadd.s32 1, %s19
    %s36 = scalar_select %p33, %s35, %s19
    %p37 = scmp.ge.s32.totalorder %s36, 1
    %s38 = scalar_select %p37, 0, %s36
    %s39 = ssub.s32 %s19, %s38
    %s40 = ssub.s32 %s20, %s34
    %s41 = sor.u32 %s39, %s40
    %p42 = scmp.eq.s32.totalorder %s41, 0
    %s44 = sadd.s32 %s43, 1
    %s45 = scalar_select %p42, %s43, %s44
    %p48 = pneg %p42
    %p49 = scmp.eq.s32.totalorder %s12, 1
    %p50 = por %p48, %p49
    %p51 = scmp.ne.s32.totalorder %s43, %s46
    %p52 = scmp.eq.s32.totalorder %s12, 0
    %p53 = por %p51, %p52
    %p54 = scmp.ne.s32.totalorder %s43, %s46
    %p55 = scmp.eq.s32.totalorder %s17, 1
    %p56 = por %p54, %p55
    %p57 = scmp.ne.s32.totalorder %s46, %s47
    %p58 = scmp.eq.s32.totalorder %s17, 0
    %p59 = por %p57, %p58
    %p60 = scmp.ne.s32.totalorder %s46, %s47
    %p61 = scmp.eq.s32.totalorder %s18, 1
    %p62 = por %p60, %p61
    %p64 = scmp.ne.s32.totalorder %s47, %s63
    %p65 = scmp.eq.s32.totalorder %s18, 0
    %p66 = por %p64, %p65
    %s67 = ssub.s32 %s19, %s38
    %s68 = ssub.s32 %s21, %s30
    %s69 = sor.u32 %s67, %s68
    %p70 = scmp.eq.s32.totalorder %s69, 0
    %s72 = sadd.s32 %s71, 1
    %s73 = scalar_select %p70, %s71, %s72
    %p76 = pneg %p70
    %p77 = scmp.eq.s32.totalorder %s12, 1
    %p78 = por %p76, %p77
    %p79 = scmp.ne.s32.totalorder %s71, %s74
    %p80 = scmp.eq.s32.totalorder %s12, 0
    %p81 = por %p79, %p80
    %p82 = scmp.ne.s32.totalorder %s71, %s74
    %p83 = scmp.eq.s32.totalorder %s17, 1
    %p84 = por %p82, %p83
    %p85 = scmp.ne.s32.totalorder %s74, %s75
    %p86 = scmp.eq.s32.totalorder %s17, 0
    %p87 = por %p85, %p86
    %p88 = scmp.ne.s32.totalorder %s74, %s75
    %p89 = scmp.eq.s32.totalorder %s18, 1
    %p90 = por %p88, %p89
    %p92 = scmp.ne.s32.totalorder %s75, %s91
    %p93 = scmp.eq.s32.totalorder %s18, 0
    %p94 = por %p92, %p93
    %s96 = sadd.s32 %s95, 1
    %p99 = scmp.eq.s32.totalorder %s12, 1
    %p100 = scmp.ne.s32.totalorder %s95, %s97
    %p101 = scmp.eq.s32.totalorder %s12, 0
    %p102 = por %p100, %p101
    %p103 = scmp.ne.s32.totalorder %s95, %s97
    %p104 = scmp.eq.s32.totalorder %s17, 1
    %p105 = por %p103, %p104
    %p106 = scmp.ne.s32.totalorder %s97, %s98
    %p107 = scmp.eq.s32.totalorder %s17, 0
    %p108 = por %p106, %p107
    %p109 = scmp.ne.s32.totalorder %s97, %s98
    %p110 = scmp.eq.s32.totalorder %s18, 1
    %p111 = por %p109, %p110
    %p113 = scmp.ne.s32.totalorder %s98, %s112
    %p114 = scmp.eq.s32.totalorder %s18, 0
    %p115 = por %p113, %p114
    %s117 = sadd.s32 %s116, 1
    %p120 = scmp.eq.s32.totalorder %s12, 1
    %p121 = scmp.ne.s32.totalorder %s116, %s118
    %p122 = scmp.eq.s32.totalorder %s12, 0
    %p123 = por %p121, %p122
    %p124 = scmp.ne.s32.totalorder %s116, %s118
    %p125 = scmp.eq.s32.totalorder %s17, 1
    %p126 = por %p124, %p125
    %p127 = scmp.ne.s32.totalorder %s118, %s119
    %p128 = scmp.eq.s32.totalorder %s17, 0
    %p129 = por %p127, %p128
    %p130 = scmp.ne.s32.totalorder %s118, %s119
    %p131 = scmp.eq.s32.totalorder %s18, 1
    %p132 = por %p130, %p131
    %p134 = scmp.ne.s32.totalorder %s119, %s133
    %p135 = scmp.eq.s32.totalorder %s18, 0
    %p136 = por %p134, %p135
    %s137 = ssub.s32 %s19, %s38
    %s138 = ssub.s32 %s20, %s34
    %s139 = sor.u32 %s137, %s138
    %s140 = ssub.s32 %s21, %s30
    %s141 = sor.u32 %s139, %s140
    %p142 = scmp.eq.s32.totalorder %s141, 0
    %s144 = sadd.s32 %s143, 1
    %s145 = scalar_select %p142, %s143, %s144
    %p148 = pneg %p142
    %p149 = scmp.eq.s32.totalorder %s12, 1
    %p150 = por %p148, %p149
    %p151 = scmp.ne.s32.totalorder %s143, %s146
    %p152 = scmp.eq.s32.totalorder %s12, 0
    %p153 = por %p151, %p152
    %p154 = scmp.ne.s32.totalorder %s143, %s146
    %p155 = scmp.eq.s32.totalorder %s17, 1
    %p156 = por %p154, %p155
    %p157 = scmp.ne.s32.totalorder %s146, %s147
    %p158 = scmp.eq.s32.totalorder %s17, 0
    %p159 = por %p157, %p158
    %p160 = scmp.ne.s32.totalorder %s146, %s147
    %p161 = scmp.eq.s32.totalorder %s18, 1
    %p162 = por %p160, %p161
    %p164 = scmp.ne.s32.totalorder %s147, %s163
    %p165 = scmp.eq.s32.totalorder %s18, 0
    %p166 = por %p164, %p165
    %s167 = ssub.s32 %s19, %s38
    %s168 = ssub.s32 %s20, %s34
    %s169 = sor.u32 %s167, %s168
    %s170 = ssub.s32 %s21, %s30
    %s171 = sor.u32 %s169, %s170
    %p172 = scmp.eq.s32.totalorder %s171, 0
    %s174 = sadd.s32 %s173, 1
    %s175 = scalar_select %p172, %s173, %s174
    %p178 = pneg %p172
    %p179 = scmp.eq.s32.totalorder %s12, 1
    %p180 = por %p178, %p179
    %p181 = scmp.ne.s32.totalorder %s173, %s176
    %p182 = scmp.eq.s32.totalorder %s12, 0
    %p183 = por %p181, %p182
    %p184 = scmp.ne.s32.totalorder %s173, %s176
    %p185 = scmp.eq.s32.totalorder %s17, 1
    %p186 = por %p184, %p185
    %p187 = scmp.ne.s32.totalorder %s176, %s177
    %p188 = scmp.eq.s32.totalorder %s17, 0
    %p189 = por %p187, %p188
    %p190 = scmp.ne.s32.totalorder %s176, %s177
    %p191 = scmp.eq.s32.totalorder %s18, 1
    %p192 = por %p190, %p191
    %p194 = scmp.ne.s32.totalorder %s177, %s193
    %p195 = scmp.eq.s32.totalorder %s18, 0
    %p196 = por %p194, %p195
    %p197 = scmp.le.s32.totalorder 1, %s12
    %p198 = scmp.lt.s32.totalorder %s12, 3
    %p199 = pnand %p197, %p198
    %p200 = pneg %p199
    // Predicated region
    $region9: #{_lambda_.12} parent=5 // pred_check
      _
    $region10: #{_lambda_.12} parent=5 // pred_check_branch
      %202 = sbr.rel (%p199) target = $region12
    $region11: #{_lambda_.12} parent=5 // pred_region
      %s203 = ssub.s32 %s12, 1
      // Predicated region
      $region13: #{_lambda_.12} parent=11 // pred_check
        %p204 = pneg %p87
      $region14: #{_lambda_.12} parent=11 // pred_check_branch
        %206 = sbr.rel (%p204) target = $region16
      $region15: #{_lambda_.12} parent=11 // pred_region
        %p207 = scmp.lt.s32.totalorder %s22, 0
        %s208 = scalar_select %p207, %s22, 0
        %p209 = scmp.lt.s32.totalorder %s24, 0
        %s210 = scalar_select %p209, %s24, 0
        %s211 = smul.addr %s208, 32
        %s212 = sadd.s32 %s210, %s211
        %s213 = smul.addr %s212, 4
        %s214 = scalar_lea.vmem %s1, %s213
      $region16: #{_lambda_.12} parent=11 // pred_fallthru
        _
      // Predicated region
      $region17: #{_lambda_.12} parent=11 // pred_check
        %p215 = pneg %p108
      $region18: #{_lambda_.12} parent=11 // pred_check_branch
        %217 = sbr.rel (%p215) target = $region20
      $region19: #{_lambda_.12} parent=11 // pred_region
        _
      $region20: #{_lambda_.12} parent=11 // pred_fallthru
        _
      // Predicated region
      $region21: #{_lambda_.12} parent=11 // pred_check
        %p218 = pneg %p129
      $region22: #{_lambda_.12} parent=11 // pred_check_branch
        %220 = sbr.rel (%p218) target = $region24
      $region23: #{_lambda_.12} parent=11 // pred_region
        _
      $region24: #{_lambda_.12} parent=11 // pred_fallthru
        _
    $region12: #{_lambda_.12} parent=5 // pred_fallthru
      _
    %p221 = scmp.lt.s32.totalorder %s12, 2
    // Predicated region
    $region25: #{_lambda_.12} parent=5 // pred_check
      %p222 = pneg %p221
    $region26: #{_lambda_.12} parent=5 // pred_check_branch
      %224 = sbr.rel (%p222) target = $region28
    $region27: #{_lambda_.12} parent=5 // pred_region
      // Predicated region
      $region29: #{_lambda_.12} parent=27 // pred_check
        %p225 = pneg %p53
      $region30: #{_lambda_.12} parent=27 // pred_check_branch
        %227 = sbr.rel (%p225) target = $region32
      $region31: #{_lambda_.12} parent=27 // pred_region
        %s228 = smul.u32 2, %s20
        %p229 = scmp.lt.s32.totalorder %s19, 0
        %s230 = scalar_select %p229, %s19, 0
        %p231 = scmp.lt.s32.totalorder %s228, 3
        %s232 = scalar_select %p231, %s228, 3
        %s233 = smul.addr %s232, 2
        %s234 = smul.addr %s230, 8
        %s235 = sadd.s32 %s233, %s234
        %s236 = smul.addr %s235, 4
        %s237 = scalar_lea.vmem %s0, %s236
        %s238 = smul.u32 2, %s20
      $region32: #{_lambda_.12} parent=27 // pred_fallthru
        _
    $region28: #{_lambda_.12} parent=5 // pred_fallthru
      _
    %p239 = scmp.le.s32.totalorder 1, %s12
    %p240 = scmp.lt.s32.totalorder %s12, 3
    %p241 = pnand %p239, %p240
    %p242 = pneg %p241
    // Predicated region
    $region33: #{_lambda_.12} parent=5 // pred_check
      _
    $region34: #{_lambda_.12} parent=5 // pred_check_branch
      %244 = sbr.rel (%p241) target = $region36
    $region35: #{_lambda_.12} parent=5 // pred_region
      %s245 = ssub.s32 %s12, 1
      %s246 = smul.u32 2, %s23
      %p247 = scmp.lt.s32.totalorder %s22, 0
      %s248 = scalar_select %p247, %s22, 0
      %p249 = scmp.lt.s32.totalorder %s246, 3
      %s250 = scalar_select %p249, %s246, 3
      %s251 = smul.addr %s250, 2
      %s252 = smul.addr %s248, 8
      %s253 = sadd.s32 %s251, %s252
      %s254 = smul.addr %s253, 4
      %s255 = scalar_lea.vmem %s0, %s254
      %p256 = pneg %p59
      %p257 = pneg %p56
      %p258 = scmp.lt.s32.totalorder %s22, 0
      %s259 = scalar_select %p258, %s22, 0
      %p260 = scmp.lt.s32.totalorder %s24, 0
      %s261 = scalar_select %p260, %s24, 0
      %s262 = smul.addr %s259, 32
      %s263 = sadd.s32 %s261, %s262
      %s264 = smul.addr %s263, 4
      %s265 = scalar_lea.vmem %s1, %s264
      %p266 = pneg %p87
      %p267 = pneg %p84
      %p268 = pneg %p108
      %p269 = pneg %p105
      %p270 = pneg %p129
      %p271 = pneg %p126
      %p272 = pneg %p159
      %p273 = pneg %p156
      %s274 = smul.u32 2, %s23
      %p275 = scmp.lt.s32.totalorder %s22, 0
      %s276 = scalar_select %p275, %s22, 0
      %p277 = scmp.lt.s32.totalorder %s274, 3
      %s278 = scalar_select %p277, %s274, 3
      %p279 = scmp.lt.s32.totalorder %s24, 0
      %s280 = scalar_select %p279, %s24, 0
      %s281 = sadd.s32 %s280, %s278
      %s282 = smul.addr %s276, 4
      %s283 = sadd.s32 %s281, %s282
      %s284 = smul.addr %s283, 4
      %s285 = scalar_lea.vmem %s4, %s284
      %p286 = pneg %p189
      %p287 = pneg %p186
      %p288 = scmp.lt.s32.totalorder %s22, 0
      %s289 = scalar_select %p288, %s22, 0
      %p290 = scmp.lt.s32.totalorder %s23, 1
      %s291 = scalar_select %p290, %s23, 1
      %p292 = scmp.lt.s32.totalorder %s24, 0
      %s293 = scalar_select %p292, %s24, 0
      %s294 = sadd.s32 %s293, %s291
      %s295 = smul.addr %s289, 2
      %s296 = sadd.s32 %s294, %s295
      %s297 = smul.addr %s296, 2
      %s298 = scalar_lea.vmem %s5, %s297
      %s299 = smul.u32 2, %s23
      %p300 = scmp.lt.s32.totalorder %s22, 0
      %s301 = scalar_select %p300, %s22, 0
      %p302 = scmp.lt.s32.totalorder %s299, 3
      %s303 = scalar_select %p302, %s299, 3
      %s304 = smul.addr %s303, 2
      %s305 = smul.addr %s301, 8
      %s306 = sadd.s32 %s304, %s305
      %s307 = smul.addr %s306, 4
      %s308 = scalar_lea.vmem %s0, %s307
      %s309 = smul.u32 2, %s23
      %p310 = scmp.lt.s32.totalorder %s22, 0
      %s311 = scalar_select %p310, %s22, 0
      %p312 = scmp.lt.s32.totalorder %s24, 0
      %s313 = scalar_select %p312, %s24, 0
      %s314 = smul.addr %s311, 32
      %s315 = sadd.s32 %s313, %s314
      %s316 = smul.addr %s315, 4
      %s317 = scalar_lea.vmem %s1, %s316
      %s318 = smul.u32 2, %s23
      %p319 = scmp.lt.s32.totalorder %s22, 0
      %s320 = scalar_select %p319, %s22, 0
      %p321 = scmp.lt.s32.totalorder %s318, 3
      %s322 = scalar_select %p321, %s318, 3
      %p323 = scmp.lt.s32.totalorder %s24, 0
      %s324 = scalar_select %p323, %s24, 0
      %s325 = sadd.s32 %s324, %s322
      %s326 = smul.addr %s320, 4
      %s327 = sadd.s32 %s325, %s326
      %s328 = smul.addr %s327, 4
      %s329 = scalar_lea.vmem %s4, %s328
      %s330 = smul.u32 2, %s23
      %p331 = scmp.lt.s32.totalorder %s22, 0
      %s332 = scalar_select %p331, %s22, 0
      %p333 = scmp.lt.s32.totalorder %s23, 1
      %s334 = scalar_select %p333, %s23, 1
      %p335 = scmp.lt.s32.totalorder %s24, 0
      %s336 = scalar_select %p335, %s24, 0
      %s337 = sadd.s32 %s336, %s334
      %s338 = smul.addr %s332, 2
      %s339 = sadd.s32 %s337, %s338
      %s340 = smul.addr %s339, 2
      %s341 = scalar_lea.vmem %s5, %s340
      %v343 = vld [vmem:[%s308] sm:$0xff]
      %v344 = vld [vmem:[%s308 + $0x8] sm:$0xff]
      %v345 = vunpack.c.l.bf16 %v343
      %v346 = vunpack.c.h.bf16 %v343
      %v347 = vunpack.c.l.bf16 %v344
      %v348 = vunpack.c.h.bf16 %v344
      %v349 = vld [vmem:[%s2] sm:$0x3]
      %v351 = vlaneseq
      %v352 = vshrl.u32 %v351, 7
      %v353 = vsub.s32 0, %v352
      %v354 = vrot.slane %v349, %v353
      %v355 = vlaneseq
      %v356 = vshrl.u32 %v355, 7
      %v357 = vsub.s32 1, %v356
      %v358 = vrot.slane %v349, %v357
      %v361 = vmul.f32 %v345, %v354
      %v362 = vmul.f32 %v346, %v358
      %v363 = vmul.f32 %v347, %v354
      %v364 = vmul.f32 %v348, %v358
      %v365 = vld [vmem:[%s3] sm:$0x3]
      %v367 = vlaneseq
      %v368 = vshrl.u32 %v367, 7
      %v369 = vsub.s32 0, %v368
      %v370 = vrot.slane %v365, %v369
      %v371 = vlaneseq
      %v372 = vshrl.u32 %v371, 7
      %v373 = vsub.s32 1, %v372
      %v374 = vrot.slane %v365, %v373
      %v377 = vadd.f32 %v361, %v370
      %v378 = vadd.f32 %v362, %v374
      %v379 = vadd.f32 %v363, %v370
      %v380 = vadd.f32 %v364, %v374
      %vm381 = vcmp.ge.f32.partialorder %v377, 0.0
      %vm382 = vcmp.ge.f32.partialorder %v378, 0.0
      %vm383 = vcmp.ge.f32.partialorder %v379, 0.0
      %vm384 = vcmp.ge.f32.partialorder %v380, 0.0
      %v385 = vmul.f32 %v377, 0.2
      %v386 = vmul.f32 %v378, 0.2
      %v387 = vmul.f32 %v379, 0.2
      %v388 = vmul.f32 %v380, 0.2
      %v389 = vsel %vm381, %v377, %v385
      %v390 = vsel %vm382, %v378, %v386
      %v391 = vsel %vm383, %v379, %v387
      %v392 = vsel %vm384, %v380, %v388
      %v393 = vpack.c.bf16 %v391, %v389
      %v394 = vpack.c.bf16 %v392, %v390
      %v395 = vld [vmem:[%s317] sm:$0xf]
      %v396 = vld [vmem:[%s317 + $0x4] sm:$0xf]
      %v397 = vld [vmem:[%s317 + $0x8] sm:$0xf]
      %v398 = vld [vmem:[%s317 + $0xc] sm:$0xf]
      %v399 = vld [vmem:[%s317 + $0x10] sm:$0xf]
      %v400 = vld [vmem:[%s317 + $0x14] sm:$0xf]
      %v401 = vld [vmem:[%s317 + $0x18] sm:$0xf]
      %v402 = vld [vmem:[%s317 + $0x1c] sm:$0xf]
      %v403 = vld [vmem:[%s317 + $0x20] sm:$0xf]
      %v404 = vld [vmem:[%s317 + $0x24] sm:$0xf]
      %v405 = vld [vmem:[%s317 + $0x28] sm:$0xf]
      %v406 = vld [vmem:[%s317 + $0x2c] sm:$0xf]
      %v407 = vld [vmem:[%s317 + $0x30] sm:$0xf]
      %v408 = vld [vmem:[%s317 + $0x34] sm:$0xf]
      %v409 = vld [vmem:[%s317 + $0x38] sm:$0xf]
      %v410 = vld [vmem:[%s317 + $0x3c] sm:$0xf]
      %v411 = vld [vmem:[%s317 + $0x40] sm:$0xf]
      %v412 = vld [vmem:[%s317 + $0x44] sm:$0xf]
      %v413 = vld [vmem:[%s317 + $0x48] sm:$0xf]
      %v414 = vld [vmem:[%s317 + $0x4c] sm:$0xf]
      %v415 = vld [vmem:[%s317 + $0x50] sm:$0xf]
      %v416 = vld [vmem:[%s317 + $0x54] sm:$0xf]
      %v417 = vld [vmem:[%s317 + $0x58] sm:$0xf]
      %v418 = vld [vmem:[%s317 + $0x5c] sm:$0xf]
      %v419 = vld [vmem:[%s317 + $0x60] sm:$0xf]
      %v420 = vld [vmem:[%s317 + $0x64] sm:$0xf]
      %v421 = vld [vmem:[%s317 + $0x68] sm:$0xf]
      %v422 = vld [vmem:[%s317 + $0x6c] sm:$0xf]
      %v423 = vld [vmem:[%s317 + $0x70] sm:$0xf]
      %v424 = vld [vmem:[%s317 + $0x74] sm:$0xf]
      %v425 = vld [vmem:[%s317 + $0x78] sm:$0xf]
      %v426 = vld [vmem:[%s317 + $0x7c] sm:$0xf]
      %v459 = vunpack.c.l.b16 %v395
      %v460 = vunpack.c.l.b16 %v396
      %v461 = vunpack.c.l.b16 %v397
      %v462 = vunpack.c.l.b16 %v398
      %v463 = vunpack.c.l.b16 %v399
      %v464 = vunpack.c.l.b16 %v400
      %v465 = vunpack.c.l.b16 %v401
      %v466 = vunpack.c.l.b16 %v402
      %v467 = vunpack.c.l.b16 %v403
      %v468 = vunpack.c.l.b16 %v404
      %v469 = vunpack.c.l.b16 %v405
      %v470 = vunpack.c.l.b16 %v406
      %v471 = vunpack.c.l.b16 %v407
      %v472 = vunpack.c.l.b16 %v408
      %v473 = vunpack.c.l.b16 %v409
      %v474 = vunpack.c.l.b16 %v410
      %v475 = vunpack.c.l.b16 %v411
      %v476 = vunpack.c.l.b16 %v412
      %v477 = vunpack.c.l.b16 %v413
      %v478 = vunpack.c.l.b16 %v414
      %v479 = vunpack.c.l.b16 %v415
      %v480 = vunpack.c.l.b16 %v416
      %v481 = vunpack.c.l.b16 %v417
      %v482 = vunpack.c.l.b16 %v418
      %v483 = vunpack.c.l.b16 %v419
      %v484 = vunpack.c.l.b16 %v420
      %v485 = vunpack.c.l.b16 %v421
      %v486 = vunpack.c.l.b16 %v422
      %v487 = vunpack.c.l.b16 %v423
      %v488 = vunpack.c.l.b16 %v424
      %v489 = vunpack.c.l.b16 %v425
      %v490 = vunpack.c.l.b16 %v426
      %v491 = vpack.c.b16 %v460, %v459
      %v492 = vpack.c.b16 %v462, %v461
      %v493 = vpack.c.b16 %v464, %v463
      %v494 = vpack.c.b16 %v466, %v465
      %v495 = vpack.c.b16 %v468, %v467
      %v496 = vpack.c.b16 %v470, %v469
      %v497 = vpack.c.b16 %v472, %v471
      %v498 = vpack.c.b16 %v474, %v473
      %v499 = vpack.c.b16 %v476, %v475
      %v500 = vpack.c.b16 %v478, %v477
      %v501 = vpack.c.b16 %v480, %v479
      %v502 = vpack.c.b16 %v482, %v481
      %v503 = vpack.c.b16 %v484, %v483
      %v504 = vpack.c.b16 %v486, %v485
      %v505 = vpack.c.b16 %v488, %v487
      %v506 = vpack.c.b16 %v490, %v489
      %523 = vmatprep.subr.bf16.mxu0 0
      %524 = vmatpush1.bf16.msra.mxu0 %v498
      %525 = vmatprep.subr.bf16.mxu0 0
      %526 = vmatpush1.bf16.msra.mxu0 %v497
      %527 = vmatprep.subr.bf16.mxu0 0
      %528 = vmatpush1.bf16.msra.mxu0 %v496
      %529 = vmatprep.subr.bf16.mxu0 0
      %530 = vmatpush1.bf16.msra.mxu0 %v495
      %531 = vmatprep.subr.bf16.mxu0 0
      %532 = vmatpush1.bf16.msra.mxu0 %v494
      %533 = vmatprep.subr.bf16.mxu0 0
      %534 = vmatpush1.bf16.msra.mxu0 %v493
      %535 = vmatprep.subr.bf16.mxu0 0
      %536 = vmatpush1.bf16.msra.mxu0 %v492
      %537 = vmatprep.subr.bf16.mxu0 0
      %538 = vmatpush1.bf16.msra.mxu0 %v491
      %539 = vmatprep.subr.bf16.mxu0 0
      %540 = vmatpush2.bf16.msra.mxu0 %v506
      %541 = vmatprep.subr.bf16.mxu0 0
      %542 = vmatpush2.bf16.msra.mxu0 %v505
      %543 = vmatprep.subr.bf16.mxu0 0
      %544 = vmatpush2.bf16.msra.mxu0 %v504
      %545 = vmatprep.subr.bf16.mxu0 0
      %546 = vmatpush2.bf16.msra.mxu0 %v503
      %547 = vmatprep.subr.bf16.mxu0 0
      %548 = vmatpush2.bf16.msra.mxu0 %v502
      %549 = vmatprep.subr.bf16.mxu0 0
      %550 = vmatpush2.bf16.msra.mxu0 %v501
      %551 = vmatprep.subr.bf16.mxu0 0
      %552 = vmatpush2.bf16.msra.mxu0 %v500
      %553 = vmatprep.subr.bf16.mxu0 0
      %554 = vmatpush2.bf16.msra.mxu0 %v499
      %555 = vmatprep.mubr.bf16.mxu0 %v394
      %556 = vmatmul.mubr.bf16.gmra.mxu0 %v393
      %v557 = vpop.f32.mrf.mxu0
      %v558 = vadd.f32 0.0, %v557
      %v559 = vpop.f32.mrf.mxu0
      %v560 = vpop.f32.mrf.mxu0
      %v561 = vadd.f32 0.0, %v560
      %v562 = vpop.f32.mrf.mxu0
      %563 = vdwg.mxu0
      %v564 = vpack.c.bf16 %v561, %v558
      %v566 = vunpack.c.l.b16 %v564
      %v567 = vunpack.c.h.b16 %v564
      %v568 = vpack.c.b16 %v566, %v566
      %v569 = vpack.c.b16 %v567, %v567
      %572 = vst [vmem:[%s329] sm:$0xf] %v568
      %573 = vst [vmem:[%s329 + $0x4] sm:$0xf] %v569
      %v574 = vlaneseq
      %v575 = vshrl.u32 %v574, 7
      %v576 = vadd.s32 %v575, 8
      %s577 = smul.u32 %s23, 16
      %v578 = vstv %s577
      %v579 = vadd.s32 %v575, %v578
      %v580 = vadd.s32 %v576, %v578
      %vm581 = vcmp.lt.s32.totalorder %v579, 32
      %vm582 = vcmp.lt.s32.totalorder %v580, 32
      %v583 = vsel %vm581, %v558, 0.0
      %v584 = vsel %vm582, %v561, 0.0
      %v585 = vadd.f32 %v583, %v584
      %v586 = vrot.slane %v585, 4
      %v587 = vadd.f32 %v585, %v586
      %v588 = vrot.slane %v587, 2
      %v589 = vadd.f32 %v587, %v588
      %v590 = vrot.slane %v589, 1
      %v591 = vadd.f32 %v589, %v590
      %v592 = vmul.f32 %v583, %v583
      %v593 = vmul.f32 %v584, %v584
      %v594 = vadd.f32 %v592, %v593
      %v595 = vrot.slane %v594, 4
      %v596 = vadd.f32 %v594, %v595
      %v597 = vrot.slane %v596, 2
      %v598 = vadd.f32 %v596, %v597
      %v599 = vrot.slane %v598, 1
      %v600 = vadd.f32 %v598, %v599
      %vm601 = vcmask 1040384
      %v602 = vsel %vm601, %v591, %v600
      %603 = vst [vmem:[%s341] sm:$0x3] %v602
      %s604 = smul.u32 2, %s23
      %p605 = scmp.lt.s32.totalorder %s22, 0
      %s606 = scalar_select %p605, %s22, 0
      %p607 = scmp.lt.s32.totalorder %s604, 3
      %s608 = scalar_select %p607, %s604, 3
      %p609 = scmp.lt.s32.totalorder %s24, 0
      %s610 = scalar_select %p609, %s24, 0
      %s611 = sadd.s32 %s610, %s608
      %s612 = smul.addr %s606, 4
      %s613 = sadd.s32 %s611, %s612
      %s614 = smul.addr %s613, 4
      %s615 = scalar_lea.vmem %s4, %s614
      %p616 = scmp.lt.s32.totalorder %s22, 0
      %s617 = scalar_select %p616, %s22, 0
      %p618 = scmp.lt.s32.totalorder %s23, 1
      %s619 = scalar_select %p618, %s23, 1
      %p620 = scmp.lt.s32.totalorder %s24, 0
      %s621 = scalar_select %p620, %s24, 0
      %s622 = sadd.s32 %s621, %s619
      %s623 = smul.addr %s617, 2
      %s624 = sadd.s32 %s622, %s623
      %s625 = smul.addr %s624, 2
      %s626 = scalar_lea.vmem %s5, %s625
      // Predicated region
      $region37: #{_lambda_.12} parent=35 // pred_check
        %p627 = pneg %p156
      $region38: #{_lambda_.12} parent=35 // pred_check_branch
        %629 = sbr.rel (%p627) target = $region40
      $region39: #{_lambda_.12} parent=35 // pred_region
        %s630 = smul.u32 2, %s23
      $region40: #{_lambda_.12} parent=35 // pred_fallthru
        _
      // Predicated region
      $region41: #{_lambda_.12} parent=35 // pred_check
        %p631 = pneg %p186
      $region42: #{_lambda_.12} parent=35 // pred_check_branch
        %633 = sbr.rel (%p631) target = $region44
      $region43: #{_lambda_.12} parent=35 // pred_region
        _
      $region44: #{_lambda_.12} parent=35 // pred_fallthru
        _
    $region36: #{_lambda_.12} parent=5 // pred_fallthru
      _
    %p634 = scmp.le.s32.totalorder 2, %s12
    // Predicated region
    $region45: #{_lambda_.12} parent=5 // pred_check
      %p635 = pneg %p634
    $region46: #{_lambda_.12} parent=5 // pred_check_branch
      %637 = sbr.rel (%p635) target = $region48
    $region47: #{_lambda_.12} parent=5 // pred_region
      %s638 = ssub.s32 %s12, 2
      // Predicated region
      $region49: #{_lambda_.12} parent=47 // pred_check
        %p639 = pneg %p162
      $region50: #{_lambda_.12} parent=47 // pred_check_branch
        %641 = sbr.rel (%p639) target = $region52
      $region51: #{_lambda_.12} parent=47 // pred_region
        %s642 = smul.u32 2, %s26
        %p643 = scmp.lt.s32.totalorder %s25, 0
        %s644 = scalar_select %p643, %s25, 0
        %p645 = scmp.lt.s32.totalorder %s642, 3
        %s646 = scalar_select %p645, %s642, 3
        %p647 = scmp.lt.s32.totalorder %s27, 0
        %s648 = scalar_select %p647, %s27, 0
        %s649 = sadd.s32 %s648, %s646
        %s650 = smul.addr %s644, 4
        %s651 = sadd.s32 %s649, %s650
        %s652 = smul.addr %s651, 4
        %s653 = scalar_lea.vmem %s4, %s652
      $region52: #{_lambda_.12} parent=47 // pred_fallthru
        _
      // Predicated region
      $region53: #{_lambda_.12} parent=47 // pred_check
        %p654 = pneg %p192
      $region54: #{_lambda_.12} parent=47 // pred_check_branch
        %656 = sbr.rel (%p654) target = $region56
      $region55: #{_lambda_.12} parent=47 // pred_region
        %p657 = scmp.lt.s32.totalorder %s25, 0
        %s658 = scalar_select %p657, %s25, 0
        %p659 = scmp.lt.s32.totalorder %s26, 1
        %s660 = scalar_select %p659, %s26, 1
        %p661 = scmp.lt.s32.totalorder %s27, 0
        %s662 = scalar_select %p661, %s27, 0
        %s663 = sadd.s32 %s662, %s660
        %s664 = smul.addr %s658, 2
        %s665 = sadd.s32 %s663, %s664
        %s666 = smul.addr %s665, 2
        %s667 = scalar_lea.vmem %s5, %s666
      $region56: #{_lambda_.12} parent=47 // pred_fallthru
        _
    $region48: #{_lambda_.12} parent=5 // pred_fallthru
      _
  $region6: #{_lambda_.12} parent=0 // loop_footer
    %s16 = sadd.s32 1, %s12
  $region7: #{_lambda_.12} parent=0 // loop_footer_branch
    %11 = sbr.rel target = $region3
  $region8: #{_lambda_.12} parent=0 // loop_exit
    _

// kernel: tile.97
$region0: #{tile.97}
  #allocation0 [shape = 's32[1]{0}', space=sflag, size = 0x4, scoped, tag = 'scoped memory for tile.97']
  %s0 = inlined_call_operand.vmem [shape: f32[64], index: 0, kind: input, shape index: {}]
  %s1 = inlined_call_operand.vmem [shape: f32[16,64], index: 1, kind: output, shape index: {}]
  // Predicated region
  $region2: #{tile.97} parent=0 // pred_check
    _
  $region3: #{tile.97} parent=0 // pred_check_branch
    %3 = sbr.rel (0) target = $region5
  $region4: #{tile.97} parent=0 // pred_region
    _
  $region5: #{tile.97} parent=0 // pred_fallthru
    _
  %v4 = vld [vmem:[%s0] ss:$0 sm:$0xff]
  %5 = vst [vmem:[%s1] sm:$0xff] %v4
  %s6 = scalar_lea.vmem %s1, 8
  %7 = vst [vmem:[%s6] sm:$0xff] %v4

// kernel: tile.99
$region0: #{tile.99}
  %s0 = inlined_call_operand.vmem [shape: f32[16,64], index: 0, kind: input, shape index: {}]
  %s1 = inlined_call_operand.vmem [shape: f32[1,1024], index: 1, kind: output, shape index: {}]
  $region1: #{tile.99} parent=0
    #allocation0 [shape = 'u8[32768]{0}', space=vmem, size = 0x8000, scoped, tag = 'scoped mem for output reshape']
    %v2 = vld [vmem:[%s0] ss:$2 sm:$0xff]
    %vm3 = vcmask 523264
    %4 = vst.msk [vmem:[#allocation0] ss:$8 sm:$0xf] %vm3, %v2
    %5 = vst.msk [vmem:[#allocation0] ss:$8 sm:$0xf0] %vm3, %v2
    %s6 = scalar_lea.vmem %s0, 1
    %v7 = vld [vmem:[%s6] ss:$2 sm:$0xff]
    %8 = vrot.lane.b32.xlu0 %v7, 64
    %v9 = vpop.permute.xlu0 %8
    %vm10 = vcmask 1048064
    %11 = vst.msk [vmem:[#allocation0] ss:$8 sm:$0xf] %vm10, %v9
    %12 = vst.msk [vmem:[#allocation0] ss:$8 sm:$0xf0] %vm10, %v9
    %s14 = sshll.u32 1, 1
    %s15 = ssub.s32 %s14, 1
    %v17 = vld [vmem:[#allocation0] sm:%s15]
    %s18 = sshll.u32 1, 1
    %s19 = ssub.s32 %s18, 1
    %20 = vst [vmem:[%s1] sm:%s19] %v17
    %s21 = scalar_lea.vmem [#allocation0], 8
    %v22 = vld [vmem:[%s21] sm:%s15]
    %s23 = sshll.u32 1, 1
    %s24 = ssub.s32 %s23, 1
    %s25 = scalar_lea.vmem %s1, 1
    %26 = vst [vmem:[%s25] sm:%s24] %v22
    %s27 = scalar_lea.vmem [#allocation0], 16
    %v28 = vld [vmem:[%s27] sm:%s15]
    %s29 = sshll.u32 1, 1
    %s30 = ssub.s32 %s29, 1
    %s31 = smul.addr 1, 2
    %s32 = scalar_lea.vmem %s1, %s31
    %33 = vst [vmem:[%s32] sm:%s30] %v28
    %s34 = scalar_lea.vmem [#allocation0], 24
    %v35 = vld [vmem:[%s34] sm:%s15]
    %s36 = sshll.u32 1, 1
    %s37 = ssub.s32 %s36, 1
    %s38 = smul.addr 1, 3
    %s39 = scalar_lea.vmem %s1, %s38
    %40 = vst [vmem:[%s39] sm:%s37] %v35
    %s41 = scalar_lea.vmem [#allocation0], 32
    %v42 = vld [vmem:[%s41] sm:%s15]
    %s43 = sshll.u32 1, 1
    %s44 = ssub.s32 %s43, 1
    %s45 = smul.addr 1, 4
    %s46 = scalar_lea.vmem %s1, %s45
    %47 = vst [vmem:[%s46] sm:%s44] %v42
    %s48 = scalar_lea.vmem [#allocation0], 40
    %v49 = vld [vmem:[%s48] sm:%s15]
    %s50 = sshll.u32 1, 1
    %s51 = ssub.s32 %s50, 1
    %s52 = smul.addr 1, 5
    %s53 = scalar_lea.vmem %s1, %s52
    %54 = vst [vmem:[%s53] sm:%s51] %v49
    %s55 = scalar_lea.vmem [#allocation0], 48
    %v56 = vld [vmem:[%s55] sm:%s15]
    %s57 = sshll.u32 1, 1
    %s58 = ssub.s32 %s57, 1
    %s59 = smul.addr 1, 6
    %s60 = scalar_lea.vmem %s1, %s59
    %61 = vst [vmem:[%s60] sm:%s58] %v56
    %s62 = scalar_lea.vmem [#allocation0], 56
    %v63 = vld [vmem:[%s62] sm:%s15]
    %s64 = sshll.u32 1, 1
    %s65 = ssub.s32 %s64, 1
    %s66 = smul.addr 1, 7
    %s67 = scalar_lea.vmem %s1, %s66
    %68 = vst [vmem:[%s67] sm:%s65] %v63

// kernel: _lambda_.13
$region0: #{_lambda_.13}
  #allocation0 [shape = 'u32[]', space=smem, size = 0x4, offset = 0x4, fixed_abs, tag = 'smem constant byte address 0x4 - core index']
  #allocation1 [shape = 'u32[144,128]{1,0:T(1,128)}', space=vmem, size = 0x12000, scoped, tag = 'internal scratch']
  %s0 = inlined_call_operand.vmem [shape: bf16[1,16,512], index: 0, kind: input, shape index: {}]
  %s1 = inlined_call_operand.vmem [shape: bf16[1,512,128], index: 1, kind: input, shape index: {}]
  %s2 = inlined_call_operand.vmem [shape: f32[1,512], index: 2, kind: input, shape index: {}]
  %s3 = inlined_call_operand.vmem [shape: f32[1,512], index: 3, kind: input, shape index: {}]
  %s4 = inlined_call_operand.vmem [shape: bf16[1,16,128], index: 4, kind: output, shape index: {0}]
  %s5 = inlined_call_operand.vmem [shape: f32[1,1,2,128], index: 5, kind: output, shape index: {1}]
  %6 = xla_tuple %s4, %s5
  %s7 = sld [smem:[#allocation0]]
  $region34: #{_lambda_.13} parent=0
    _
  %s9 = ssub.s32 1, %s7
  %s10 = scalar_select 0, %s9, %s7
  // Predicated region
  $region2: #{_lambda_.13} parent=0 // pred_check
    _
  $region3: #{_lambda_.13} parent=0 // pred_check_branch
    %12 = sbr.rel (0) target = $region5
  $region4: #{_lambda_.13} parent=0 // pred_region
    _
  $region5: #{_lambda_.13} parent=0 // pred_fallthru
    _
  // Predicated region
  $region6: #{_lambda_.13} parent=0 // pred_check
    _
  $region7: #{_lambda_.13} parent=0 // pred_check_branch
    %14 = sbr.rel (0) target = $region9
  $region8: #{_lambda_.13} parent=0 // pred_region
    _
  $region9: #{_lambda_.13} parent=0 // pred_fallthru
    _
  // Predicated region
  $region10: #{_lambda_.13} parent=0 // pred_check
    _
  $region11: #{_lambda_.13} parent=0 // pred_check_branch
    %16 = sbr.rel (0) target = $region13
  $region12: #{_lambda_.13} parent=0 // pred_region
    _
  $region13: #{_lambda_.13} parent=0 // pred_fallthru
    _
  // Predicated region
  $region14: #{_lambda_.13} parent=0 // pred_check
    _
  $region15: #{_lambda_.13} parent=0 // pred_check_branch
    %18 = sbr.rel (0) target = $region17
  $region16: #{_lambda_.13} parent=0 // pred_region
    _
  $region17: #{_lambda_.13} parent=0 // pred_fallthru
    _
  %v20 = vld [vmem:[%s0] sm:$0xff]
  %v21 = vld [vmem:[%s0 + $0x8] sm:$0xff]
  %v22 = vld [vmem:[%s0 + $0x10] sm:$0xff]
  %v23 = vld [vmem:[%s0 + $0x18] sm:$0xff]
  %v24 = vunpack.c.l.bf16 %v20
  %v25 = vunpack.c.h.bf16 %v20
  %v26 = vunpack.c.l.bf16 %v21
  %v27 = vunpack.c.h.bf16 %v21
  %v28 = vunpack.c.l.bf16 %v22
  %v29 = vunpack.c.h.bf16 %v22
  %v30 = vunpack.c.l.bf16 %v23
  %v31 = vunpack.c.h.bf16 %v23
  %v32 = vld [vmem:[%s2] sm:$0xf]
  %v34 = vlaneseq
  %v35 = vshrl.u32 %v34, 7
  %v36 = vsub.s32 0, %v35
  %v37 = vrot.slane %v32, %v36
  %v38 = vlaneseq
  %v39 = vshrl.u32 %v38, 7
  %v40 = vsub.s32 1, %v39
  %v41 = vrot.slane %v32, %v40
  %v42 = vlaneseq
  %v43 = vshrl.u32 %v42, 7
  %v44 = vsub.s32 2, %v43
  %v45 = vrot.slane %v32, %v44
  %v46 = vlaneseq
  %v47 = vshrl.u32 %v46, 7
  %v48 = vsub.s32 3, %v47
  %v49 = vrot.slane %v32, %v48
  %v54 = vmul.f32 %v24, %v37
  %v55 = vmul.f32 %v25, %v41
  %v56 = vmul.f32 %v26, %v45
  %v57 = vmul.f32 %v27, %v49
  %v58 = vmul.f32 %v28, %v37
  %v59 = vmul.f32 %v29, %v41
  %v60 = vmul.f32 %v30, %v45
  %v61 = vmul.f32 %v31, %v49
  %v62 = vld [vmem:[%s3] sm:$0xf]
  %v64 = vlaneseq
  %v65 = vshrl.u32 %v64, 7
  %v66 = vsub.s32 0, %v65
  %v67 = vrot.slane %v62, %v66
  %v68 = vlaneseq
  %v69 = vshrl.u32 %v68, 7
  %v70 = vsub.s32 1, %v69
  %v71 = vrot.slane %v62, %v70
  %v72 = vlaneseq
  %v73 = vshrl.u32 %v72, 7
  %v74 = vsub.s32 2, %v73
  %v75 = vrot.slane %v62, %v74
  %v76 = vlaneseq
  %v77 = vshrl.u32 %v76, 7
  %v78 = vsub.s32 3, %v77
  %v79 = vrot.slane %v62, %v78
  %v84 = vadd.f32 %v54, %v67
  %v85 = vadd.f32 %v55, %v71
  %v86 = vadd.f32 %v56, %v75
  %v87 = vadd.f32 %v57, %v79
  %v88 = vadd.f32 %v58, %v67
  %v89 = vadd.f32 %v59, %v71
  %v90 = vadd.f32 %v60, %v75
  %v91 = vadd.f32 %v61, %v79
  %vm92 = vcmp.ge.f32.partialorder %v84, 0.0
  %vm93 = vcmp.ge.f32.partialorder %v85, 0.0
  %vm94 = vcmp.ge.f32.partialorder %v86, 0.0
  %vm95 = vcmp.ge.f32.partialorder %v87, 0.0
  %vm96 = vcmp.ge.f32.partialorder %v88, 0.0
  %vm97 = vcmp.ge.f32.partialorder %v89, 0.0
  %vm98 = vcmp.ge.f32.partialorder %v90, 0.0
  %vm99 = vcmp.ge.f32.partialorder %v91, 0.0
  %v100 = vmul.f32 %v84, 0.2
  %v101 = vmul.f32 %v85, 0.2
  %v102 = vmul.f32 %v86, 0.2
  %v103 = vmul.f32 %v87, 0.2
  %v104 = vmul.f32 %v88, 0.2
  %v105 = vmul.f32 %v89, 0.2
  %v106 = vmul.f32 %v90, 0.2
  %v107 = vmul.f32 %v91, 0.2
  %v108 = vsel %vm92, %v84, %v100
  %v109 = vsel %vm93, %v85, %v101
  %v110 = vsel %vm94, %v86, %v102
  %v111 = vsel %vm95, %v87, %v103
  %v112 = vsel %vm96, %v88, %v104
  %v113 = vsel %vm97, %v89, %v105
  %v114 = vsel %vm98, %v90, %v106
  %v115 = vsel %vm99, %v91, %v107
  %v116 = vpack.c.bf16 %v112, %v108
  %v117 = vpack.c.bf16 %v113, %v109
  %v118 = vpack.c.bf16 %v114, %v110
  %v119 = vpack.c.bf16 %v115, %v111
  %v120 = vld [vmem:[%s1] sm:$0xf]
  %v121 = vld [vmem:[%s1 + $0x4] sm:$0xf]
  %v122 = vld [vmem:[%s1 + $0x8] sm:$0xf]
  %v123 = vld [vmem:[%s1 + $0xc] sm:$0xf]
  %v124 = vld [vmem:[%s1 + $0x10] sm:$0xf]
  %v125 = vld [vmem:[%s1 + $0x14] sm:$0xf]
  %v126 = vld [vmem:[%s1 + $0x18] sm:$0xf]
  %v127 = vld [vmem:[%s1 + $0x1c] sm:$0xf]
  %v128 = vld [vmem:[%s1 + $0x20] sm:$0xf]
  %v129 = vld [vmem:[%s1 + $0x24] sm:$0xf]
  %v130 = vld [vmem:[%s1 + $0x28] sm:$0xf]
  %v131 = vld [vmem:[%s1 + $0x2c] sm:$0xf]
  %v132 = vld [vmem:[%s1 + $0x30] sm:$0xf]
  %v133 = vld [vmem:[%s1 + $0x34] sm:$0xf]
  %v134 = vld [vmem:[%s1 + $0x38] sm:$0xf]
  %v135 = vld [vmem:[%s1 + $0x3c] sm:$0xf]
  %v136 = vld [vmem:[%s1 + $0x40] sm:$0xf]
  %v137 = vld [vmem:[%s1 + $0x44] sm:$0xf]
  %v138 = vld [vmem:[%s1 + $0x48] sm:$0xf]
  %v139 = vld [vmem:[%s1 + $0x4c] sm:$0xf]
  %v140 = vld [vmem:[%s1 + $0x50] sm:$0xf]
  %v141 = vld [vmem:[%s1 + $0x54] sm:$0xf]
  %v142 = vld [vmem:[%s1 + $0x58] sm:$0xf]
  %v143 = vld [vmem:[%s1 + $0x5c] sm:$0xf]
  %v144 = vld [vmem:[%s1 + $0x60] sm:$0xf]
  %v145 = vld [vmem:[%s1 + $0x64] sm:$0xf]
  %v146 = vld [vmem:[%s1 + $0x68] sm:$0xf]
  %v147 = vld [vmem:[%s1 + $0x6c] sm:$0xf]
  %v148 = vld [vmem:[%s1 + $0x70] sm:$0xf]
  %v149 = vld [vmem:[%s1 + $0x74] sm:$0xf]
  %v150 = vld [vmem:[%s1 + $0x78] sm:$0xf]
  %v151 = vld [vmem:[%s1 + $0x7c] sm:$0xf]
  %v152 = vld [vmem:[%s1 + $0x80] sm:$0xf]
  %v153 = vld [vmem:[%s1 + $0x84] sm:$0xf]
  %v154 = vld [vmem:[%s1 + $0x88] sm:$0xf]
  %v155 = vld [vmem:[%s1 + $0x8c] sm:$0xf]
  %v156 = vld [vmem:[%s1 + $0x90] sm:$0xf]
  %v157 = vld [vmem:[%s1 + $0x94] sm:$0xf]
  %v158 = vld [vmem:[%s1 + $0x98] sm:$0xf]
  %v159 = vld [vmem:[%s1 + $0x9c] sm:$0xf]
  %v160 = vld [vmem:[%s1 + $0xa0] sm:$0xf]
  %v161 = vld [vmem:[%s1 + $0xa4] sm:$0xf]
  %v162 = vld [vmem:[%s1 + $0xa8] sm:$0xf]
  %v163 = vld [vmem:[%s1 + $0xac] sm:$0xf]
  %v164 = vld [vmem:[%s1 + $0xb0] sm:$0xf]
  %v165 = vld [vmem:[%s1 + $0xb4] sm:$0xf]
  %v166 = vld [vmem:[%s1 + $0xb8] sm:$0xf]
  %v167 = vld [vmem:[%s1 + $0xbc] sm:$0xf]
  %v168 = vld [vmem:[%s1 + $0xc0] sm:$0xf]
  %v169 = vld [vmem:[%s1 + $0xc4] sm:$0xf]
  %v170 = vld [vmem:[%s1 + $0xc8] sm:$0xf]
  %v171 = vld [vmem:[%s1 + $0xcc] sm:$0xf]
  %v172 = vld [vmem:[%s1 + $0xd0] sm:$0xf]
  %v173 = vld [vmem:[%s1 + $0xd4] sm:$0xf]
  %v174 = vld [vmem:[%s1 + $0xd8] sm:$0xf]
  %v175 = vld [vmem:[%s1 + $0xdc] sm:$0xf]
  %v176 = vld [vmem:[%s1 + $0xe0] sm:$0xf]
  %v177 = vld [vmem:[%s1 + $0xe4] sm:$0xf]
  %v178 = vld [vmem:[%s1 + $0xe8] sm:$0xf]
  %v179 = vld [vmem:[%s1 + $0xec] sm:$0xf]
  %v180 = vld [vmem:[%s1 + $0xf0] sm:$0xf]
  %v181 = vld [vmem:[%s1 + $0xf4] sm:$0xf]
  %v182 = vld [vmem:[%s1 + $0xf8] sm:$0xf]
  %v183 = vld [vmem:[%s1 + $0xfc] sm:$0xf]
  %v248 = vunpack.c.l.b16 %v120
  %v249 = vunpack.c.l.b16 %v121
  %v250 = vunpack.c.l.b16 %v122
  %v251 = vunpack.c.l.b16 %v123
  %v252 = vunpack.c.l.b16 %v124
  %v253 = vunpack.c.l.b16 %v125
  %v254 = vunpack.c.l.b16 %v126
  %v255 = vunpack.c.l.b16 %v127
  %v256 = vunpack.c.l.b16 %v128
  %v257 = vunpack.c.l.b16 %v129
  %v258 = vunpack.c.l.b16 %v130
  %v259 = vunpack.c.l.b16 %v131
  %v260 = vunpack.c.l.b16 %v132
  %v261 = vunpack.c.l.b16 %v133
  %v262 = vunpack.c.l.b16 %v134
  %v263 = vunpack.c.l.b16 %v135
  %v264 = vunpack.c.l.b16 %v136
  %v265 = vunpack.c.l.b16 %v137
  %v266 = vunpack.c.l.b16 %v138
  %v267 = vunpack.c.l.b16 %v139
  %v268 = vunpack.c.l.b16 %v140
  %v269 = vunpack.c.l.b16 %v141
  %v270 = vunpack.c.l.b16 %v142
  %v271 = vunpack.c.l.b16 %v143
  %v272 = vunpack.c.l.b16 %v144
  %v273 = vunpack.c.l.b16 %v145
  %v274 = vunpack.c.l.b16 %v146
  %v275 = vunpack.c.l.b16 %v147
  %v276 = vunpack.c.l.b16 %v148
  %v277 = vunpack.c.l.b16 %v149
  %v278 = vunpack.c.l.b16 %v150
  %v279 = vunpack.c.l.b16 %v151
  %v280 = vunpack.c.l.b16 %v152
  %v281 = vunpack.c.l.b16 %v153
  %v282 = vunpack.c.l.b16 %v154
  %v283 = vunpack.c.l.b16 %v155
  %v284 = vunpack.c.l.b16 %v156
  %v285 = vunpack.c.l.b16 %v157
  %v286 = vunpack.c.l.b16 %v158
  %v287 = vunpack.c.l.b16 %v159
  %v288 = vunpack.c.l.b16 %v160
  %v289 = vunpack.c.l.b16 %v161
  %v290 = vunpack.c.l.b16 %v162
  %v291 = vunpack.c.l.b16 %v163
  %v292 = vunpack.c.l.b16 %v164
  %v293 = vunpack.c.l.b16 %v165
  %v294 = vunpack.c.l.b16 %v166
  %v295 = vunpack.c.l.b16 %v167
  %v296 = vunpack.c.l.b16 %v168
  %v297 = vunpack.c.l.b16 %v169
  %v298 = vunpack.c.l.b16 %v170
  %v299 = vunpack.c.l.b16 %v171
  %v300 = vunpack.c.l.b16 %v172
  %v301 = vunpack.c.l.b16 %v173
  %v302 = vunpack.c.l.b16 %v174
  %v303 = vunpack.c.l.b16 %v175
  %v304 = vunpack.c.l.b16 %v176
  %v305 = vunpack.c.l.b16 %v177
  %v306 = vunpack.c.l.b16 %v178
  %v307 = vunpack.c.l.b16 %v179
  %v308 = vunpack.c.l.b16 %v180
  %v309 = vunpack.c.l.b16 %v181
  %v310 = vunpack.c.l.b16 %v182
  %v311 = vunpack.c.l.b16 %v183
  %v312 = vpack.c.b16 %v249, %v248
  %v313 = vpack.c.b16 %v251, %v250
  %v314 = vpack.c.b16 %v253, %v252
  %v315 = vpack.c.b16 %v255, %v254
  %v316 = vpack.c.b16 %v257, %v256
  %v317 = vpack.c.b16 %v259, %v258
  %v318 = vpack.c.b16 %v261, %v260
  %v319 = vpack.c.b16 %v263, %v262
  %v320 = vpack.c.b16 %v265, %v264
  %v321 = vpack.c.b16 %v267, %v266
  %v322 = vpack.c.b16 %v269, %v268
  %v323 = vpack.c.b16 %v271, %v270
  %v324 = vpack.c.b16 %v273, %v272
  %v325 = vpack.c.b16 %v275, %v274
  %v326 = vpack.c.b16 %v277, %v276
  %v327 = vpack.c.b16 %v279, %v278
  %v328 = vpack.c.b16 %v281, %v280
  %v329 = vpack.c.b16 %v283, %v282
  %v330 = vpack.c.b16 %v285, %v284
  %v331 = vpack.c.b16 %v287, %v286
  %v332 = vpack.c.b16 %v289, %v288
  %v333 = vpack.c.b16 %v291, %v290
  %v334 = vpack.c.b16 %v293, %v292
  %v335 = vpack.c.b16 %v295, %v294
  %v336 = vpack.c.b16 %v297, %v296
  %v337 = vpack.c.b16 %v299, %v298
  %v338 = vpack.c.b16 %v301, %v300
  %v339 = vpack.c.b16 %v303, %v302
  %v340 = vpack.c.b16 %v305, %v304
  %v341 = vpack.c.b16 %v307, %v306
  %v342 = vpack.c.b16 %v309, %v308
  %v343 = vpack.c.b16 %v311, %v310
  %376 = vmatprep.subr.bf16.mxu0 0
  %377 = vmatpush1.bf16.msra.mxu0 %v319
  %378 = vmatprep.subr.bf16.mxu0 0
  %379 = vmatpush1.bf16.msra.mxu0 %v318
  %380 = vmatprep.subr.bf16.mxu0 0
  %381 = vmatpush1.bf16.msra.mxu0 %v317
  %382 = vmatprep.subr.bf16.mxu0 0
  %383 = vmatpush1.bf16.msra.mxu0 %v316
  %384 = vmatprep.subr.bf16.mxu0 0
  %385 = vmatpush1.bf16.msra.mxu0 %v315
  %386 = vmatprep.subr.bf16.mxu0 0
  %387 = vmatpush1.bf16.msra.mxu0 %v314
  %388 = vmatprep.subr.bf16.mxu0 0
  %389 = vmatpush1.bf16.msra.mxu0 %v313
  %390 = vmatprep.subr.bf16.mxu0 0
  %391 = vmatpush1.bf16.msra.mxu0 %v312
  %392 = vmatprep.subr.bf16.mxu0 0
  %393 = vmatpush2.bf16.msra.mxu0 %v327
  %394 = vmatprep.subr.bf16.mxu0 0
  %395 = vmatpush2.bf16.msra.mxu0 %v326
  %396 = vmatprep.subr.bf16.mxu0 0
  %397 = vmatpush2.bf16.msra.mxu0 %v325
  %398 = vmatprep.subr.bf16.mxu0 0
  %399 = vmatpush2.bf16.msra.mxu0 %v324
  %400 = vmatprep.subr.bf16.mxu0 0
  %401 = vmatpush2.bf16.msra.mxu0 %v323
  %402 = vmatprep.subr.bf16.mxu0 0
  %403 = vmatpush2.bf16.msra.mxu0 %v322
  %404 = vmatprep.subr.bf16.mxu0 0
  %405 = vmatpush2.bf16.msra.mxu0 %v321
  %406 = vmatprep.subr.bf16.mxu0 0
  %407 = vmatpush2.bf16.msra.mxu0 %v320
  %408 = vmatprep.mubr.bf16.mxu0 %v117
  %409 = vmatmul.mubr.bf16.gmra.mxu0 %v116
  %v410 = vpop.f32.mrf.mxu0
  %v411 = vadd.f32 0.0, %v410
  %v412 = vpop.f32.mrf.mxu0
  %v413 = vpop.f32.mrf.mxu0
  %v414 = vadd.f32 0.0, %v413
  %v415 = vpop.f32.mrf.mxu0
  %416 = vdwg.mxu0
  %417 = vmatprep.subr.bf16.mxu0 0
  %418 = vmatpush1.bf16.msra.mxu0 %v335
  %419 = vmatprep.subr.bf16.mxu0 0
  %420 = vmatpush1.bf16.msra.mxu0 %v334
  %421 = vmatprep.subr.bf16.mxu0 0
  %422 = vmatpush1.bf16.msra.mxu0 %v333
  %423 = vmatprep.subr.bf16.mxu0 0
  %424 = vmatpush1.bf16.msra.mxu0 %v332
  %425 = vmatprep.subr.bf16.mxu0 0
  %426 = vmatpush1.bf16.msra.mxu0 %v331
  %427 = vmatprep.subr.bf16.mxu0 0
  %428 = vmatpush1.bf16.msra.mxu0 %v330
  %429 = vmatprep.subr.bf16.mxu0 0
  %430 = vmatpush1.bf16.msra.mxu0 %v329
  %431 = vmatprep.subr.bf16.mxu0 0
  %432 = vmatpush1.bf16.msra.mxu0 %v328
  %433 = vmatprep.subr.bf16.mxu0 0
  %434 = vmatpush2.bf16.msra.mxu0 %v343
  %435 = vmatprep.subr.bf16.mxu0 0
  %436 = vmatpush2.bf16.msra.mxu0 %v342
  %437 = vmatprep.subr.bf16.mxu0 0
  %438 = vmatpush2.bf16.msra.mxu0 %v341
  %439 = vmatprep.subr.bf16.mxu0 0
  %440 = vmatpush2.bf16.msra.mxu0 %v340
  %441 = vmatprep.subr.bf16.mxu0 0
  %442 = vmatpush2.bf16.msra.mxu0 %v339
  %443 = vmatprep.subr.bf16.mxu0 0
  %444 = vmatpush2.bf16.msra.mxu0 %v338
  %445 = vmatprep.subr.bf16.mxu0 0
  %446 = vmatpush2.bf16.msra.mxu0 %v337
  %447 = vmatprep.subr.bf16.mxu0 0
  %448 = vmatpush2.bf16.msra.mxu0 %v336
  %449 = vmatprep.mubr.bf16.mxu0 %v119
  %450 = vmatmul.mubr.bf16.gmra.mxu0 %v118
  %v451 = vpop.f32.mrf.mxu0
  %v452 = vadd.f32 %v411, %v451
  %v453 = vpop.f32.mrf.mxu0
  %v454 = vpop.f32.mrf.mxu0
  %v455 = vadd.f32 %v414, %v454
  %v456 = vpop.f32.mrf.mxu0
  %457 = vdwg.mxu0
  %v458 = vpack.c.bf16 %v455, %v452
  %v460 = vunpack.c.l.b16 %v458
  %v461 = vunpack.c.h.b16 %v458
  %v462 = vpack.c.b16 %v460, %v460
  %v463 = vpack.c.b16 %v461, %v461
  %466 = vst [vmem:[%s4] sm:$0xf] %v462
  %467 = vst [vmem:[%s4 + $0x4] sm:$0xf] %v463
  %v468 = vlaneseq
  %v469 = vshrl.u32 %v468, 7
  %v470 = vadd.s32 %v469, 8
  %s471 = smul.u32 0, 16
  %v472 = vstv %s471
  %v473 = vadd.s32 %v469, %v472
  %v474 = vadd.s32 %v470, %v472
  %vm475 = vcmp.lt.s32.totalorder %v473, 8
  %vm476 = vcmp.lt.s32.totalorder %v474, 8
  %v477 = vsel %vm475, %v452, 0.0
  %v478 = vsel %vm476, %v455, 0.0
  %v479 = vadd.f32 %v477, %v478
  %v480 = vrot.slane %v479, 4
  %v481 = vadd.f32 %v479, %v480
  %v482 = vrot.slane %v481, 2
  %v483 = vadd.f32 %v481, %v482
  %v484 = vrot.slane %v483, 1
  %v485 = vadd.f32 %v483, %v484
  %v486 = vmul.f32 %v477, %v477
  %v487 = vmul.f32 %v478, %v478
  %v488 = vadd.f32 %v486, %v487
  %v489 = vrot.slane %v488, 4
  %v490 = vadd.f32 %v488, %v489
  %v491 = vrot.slane %v490, 2
  %v492 = vadd.f32 %v490, %v491
  %v493 = vrot.slane %v492, 1
  %v494 = vadd.f32 %v492, %v493
  %vm495 = vcmask 1040384
  %v496 = vsel %vm495, %v485, %v494
  %497 = vst [vmem:[%s5] sm:$0x3] %v496
  // Predicated region
  $region18: #{_lambda_.13} parent=0 // pred_check
    _
  $region19: #{_lambda_.13} parent=0 // pred_check_branch
    %499 = sbr.rel (0) target = $region21
  $region20: #{_lambda_.13} parent=0 // pred_region
    _
  $region21: #{_lambda_.13} parent=0 // pred_fallthru
    _
  // Predicated region
  $region22: #{_lambda_.13} parent=0 // pred_check
    _
  $region23: #{_lambda_.13} parent=0 // pred_check_branch
    %501 = sbr.rel (0) target = $region25
  $region24: #{_lambda_.13} parent=0 // pred_region
    _
  $region25: #{_lambda_.13} parent=0 // pred_fallthru
    _
  // Predicated region
  $region26: #{_lambda_.13} parent=0 // pred_check
    _
  $region27: #{_lambda_.13} parent=0 // pred_check_branch
    %503 = sbr.rel (0) target = $region29
  $region28: #{_lambda_.13} parent=0 // pred_region
    _
  $region29: #{_lambda_.13} parent=0 // pred_fallthru
    _
  // Predicated region
  $region30: #{_lambda_.13} parent=0 // pred_check
    _
  $region31: #{_lambda_.13} parent=0 // pred_check_branch
    %505 = sbr.rel (0) target = $region33
  $region32: #{_lambda_.13} parent=0 // pred_region
    _
  $region33: #{_lambda_.13} parent=0 // pred_fallthru
    _

// kernel: tile.103
$region0: #{tile.103}
  #allocation0 [shape = 's32[1]{0}', space=sflag, size = 0x4, scoped, tag = 'scoped memory for tile.103']
  %s0 = inlined_call_operand.vmem [shape: f32[128], index: 0, kind: input, shape index: {}]
  %s1 = inlined_call_operand.vmem [shape: f32[4,128], index: 1, kind: output, shape index: {}]
  // Predicated region
  $region2: #{tile.103} parent=0 // pred_check
    _
  $region3: #{tile.103} parent=0 // pred_check_branch
    %3 = sbr.rel (0) target = $region5
  $region4: #{tile.103} parent=0 // pred_region
    _
  $region5: #{tile.103} parent=0 // pred_fallthru
    _
  %v4 = vld [vmem:[%s0] ss:$0 sm:$0xff]
  %5 = vst [vmem:[%s1] sm:$0xf] %v4

// kernel: _lambda_.15
$region0: #{_lambda_.15}
  #allocation0 [shape = 'u32[]', space=smem, size = 0x4, offset = 0x4, fixed_abs, tag = 'smem constant byte address 0x4 - core index']
  #allocation1 [shape = 'u32[144,128]{1,0:T(1,128)}', space=vmem, size = 0x12000, scoped, tag = 'internal scratch']
  %s0 = inlined_call_operand.vmem [shape: bf16[4,16,256], index: 0, kind: input, shape index: {}]
  %s1 = inlined_call_operand.vmem [shape: bf16[4,256,128], index: 1, kind: input, shape index: {}]
  %s2 = inlined_call_operand.vmem [shape: bf16[4,16,128], index: 2, kind: output, shape index: {0}]
  %s3 = inlined_call_operand.vmem [shape: f32[4,1,2,128], index: 3, kind: output, shape index: {1}]
  %4 = xla_tuple %s2, %s3
  %s5 = sld [smem:[#allocation0]]
  $region49: #{_lambda_.15} parent=0
    _
  %s7 = ssub.s32 1, %s5
  %s8 = scalar_select 0, %s7, %s5
  loop: start=0, step=1, limit=6
  $region2: #{_lambda_.15} parent=0 // loop_pre_header
    _
  $region3: #{_lambda_.15} parent=0 // loop_header
    %s10 = sphi 0, %s14
    %p11 = scmp.ge.s32.totalorder %s10, 6
    %s17 = sphi 0, %s36
    %s18 = sphi 0, %s32
    %s19 = sphi 0, %s28
    %s20 = sphi 0, %s17
    %s21 = sphi 0, %s18
    %s22 = sphi 0, %s19
    %s23 = sphi 0, %s20
    %s24 = sphi 0, %s21
    %s25 = sphi 0, %s22
    %s41 = sphi 0, %s43
    %s44 = sphi 0, %s41
    %s45 = sphi 0, %s44
    %s61 = sphi 0, %s45
    %s69 = sphi 0, %s71
    %s72 = sphi 0, %s69
    %s73 = sphi 0, %s72
    %s89 = sphi 0, %s73
    %s99 = sphi 0, %s101
    %s102 = sphi 0, %s99
    %s103 = sphi 0, %s102
    %s119 = sphi 0, %s103
    %s129 = sphi 0, %s131
    %s132 = sphi 0, %s129
    %s133 = sphi 0, %s132
    %s149 = sphi 0, %s133
  $region4: #{_lambda_.15} parent=0 // loop_header_branch
    %13 = sbr.rel (%p11) target = $region8
  $region5: #{_lambda_.15} parent=0 // loop_body
    %s15 = ssub.s32 %s10, 1
    %s16 = ssub.s32 %s10, 2
    %s26 = sadd.s32 1, %s19
    %p27 = scmp.ge.s32.totalorder %s26, 1
    %s28 = scalar_select %p27, 0, %s26
    %s29 = sadd.s32 1, %s18
    %s30 = scalar_select %p27, %s29, %s18
    %p31 = scmp.ge.s32.totalorder %s30, 1
    %s32 = scalar_select %p31, 0, %s30
    %s33 = sadd.s32 1, %s17
    %s34 = scalar_select %p31, %s33, %s17
    %p35 = scmp.ge.s32.totalorder %s34, 4
    %s36 = scalar_select %p35, 0, %s34
    %s37 = ssub.s32 %s17, %s36
    %s38 = ssub.s32 %s18, %s32
    %s39 = sor.u32 %s37, %s38
    %p40 = scmp.eq.s32.totalorder %s39, 0
    %s42 = sadd.s32 %s41, 1
    %s43 = scalar_select %p40, %s41, %s42
    %p46 = pneg %p40
    %p47 = scmp.eq.s32.totalorder %s10, 3
    %p48 = por %p46, %p47
    %p49 = scmp.ne.s32.totalorder %s41, %s44
    %p50 = scmp.eq.s32.totalorder %s10, 0
    %p51 = por %p49, %p50
    %p52 = scmp.ne.s32.totalorder %s41, %s44
    %p53 = scmp.eq.s32.totalorder %s15, 3
    %p54 = por %p52, %p53
    %p55 = scmp.ne.s32.totalorder %s44, %s45
    %p56 = scmp.eq.s32.totalorder %s15, 0
    %p57 = por %p55, %p56
    %p58 = scmp.ne.s32.totalorder %s44, %s45
    %p59 = scmp.eq.s32.totalorder %s16, 3
    %p60 = por %p58, %p59
    %p62 = scmp.ne.s32.totalorder %s45, %s61
    %p63 = scmp.eq.s32.totalorder %s16, 0
    %p64 = por %p62, %p63
    %s65 = ssub.s32 %s17, %s36
    %s66 = ssub.s32 %s19, %s28
    %s67 = sor.u32 %s65, %s66
    %p68 = scmp.eq.s32.totalorder %s67, 0
    %s70 = sadd.s32 %s69, 1
    %s71 = scalar_select %p68, %s69, %s70
    %p74 = pneg %p68
    %p75 = scmp.eq.s32.totalorder %s10, 3
    %p76 = por %p74, %p75
    %p77 = scmp.ne.s32.totalorder %s69, %s72
    %p78 = scmp.eq.s32.totalorder %s10, 0
    %p79 = por %p77, %p78
    %p80 = scmp.ne.s32.totalorder %s69, %s72
    %p81 = scmp.eq.s32.totalorder %s15, 3
    %p82 = por %p80, %p81
    %p83 = scmp.ne.s32.totalorder %s72, %s73
    %p84 = scmp.eq.s32.totalorder %s15, 0
    %p85 = por %p83, %p84
    %p86 = scmp.ne.s32.totalorder %s72, %s73
    %p87 = scmp.eq.s32.totalorder %s16, 3
    %p88 = por %p86, %p87
    %p90 = scmp.ne.s32.totalorder %s73, %s89
    %p91 = scmp.eq.s32.totalorder %s16, 0
    %p92 = por %p90, %p91
    %s93 = ssub.s32 %s17, %s36
    %s94 = ssub.s32 %s18, %s32
    %s95 = sor.u32 %s93, %s94
    %s96 = ssub.s32 %s19, %s28
    %s97 = sor.u32 %s95, %s96
    %p98 = scmp.eq.s32.totalorder %s97, 0
    %s100 = sadd.s32 %s99, 1
    %s101 = scalar_select %p98, %s99, %s100
    %p104 = pneg %p98
    %p105 = scmp.eq.s32.totalorder %s10, 3
    %p106 = por %p104, %p105
    %p107 = scmp.ne.s32.totalorder %s99, %s102
    %p108 = scmp.eq.s32.totalorder %s10, 0
    %p109 = por %p107, %p108
    %p110 = scmp.ne.s32.totalorder %s99, %s102
    %p111 = scmp.eq.s32.totalorder %s15, 3
    %p112 = por %p110, %p111
    %p113 = scmp.ne.s32.totalorder %s102, %s103
    %p114 = scmp.eq.s32.totalorder %s15, 0
    %p115 = por %p113, %p114
    %p116 = scmp.ne.s32.totalorder %s102, %s103
    %p117 = scmp.eq.s32.totalorder %s16, 3
    %p118 = por %p116, %p117
    %p120 = scmp.ne.s32.totalorder %s103, %s119
    %p121 = scmp.eq.s32.totalorder %s16, 0
    %p122 = por %p120, %p121
    %s123 = ssub.s32 %s17, %s36
    %s124 = ssub.s32 %s18, %s32
    %s125 = sor.u32 %s123, %s124
    %s126 = ssub.s32 %s19, %s28
    %s127 = sor.u32 %s125, %s126
    %p128 = scmp.eq.s32.totalorder %s127, 0
    %s130 = sadd.s32 %s129, 1
    %s131 = scalar_select %p128, %s129, %s130
    %p134 = pneg %p128
    %p135 = scmp.eq.s32.totalorder %s10, 3
    %p136 = por %p134, %p135
    %p137 = scmp.ne.s32.totalorder %s129, %s132
    %p138 = scmp.eq.s32.totalorder %s10, 0
    %p139 = por %p137, %p138
    %p140 = scmp.ne.s32.totalorder %s129, %s132
    %p141 = scmp.eq.s32.totalorder %s15, 3
    %p142 = por %p140, %p141
    %p143 = scmp.ne.s32.totalorder %s132, %s133
    %p144 = scmp.eq.s32.totalorder %s15, 0
    %p145 = por %p143, %p144
    %p146 = scmp.ne.s32.totalorder %s132, %s133
    %p147 = scmp.eq.s32.totalorder %s16, 3
    %p148 = por %p146, %p147
    %p150 = scmp.ne.s32.totalorder %s133, %s149
    %p151 = scmp.eq.s32.totalorder %s16, 0
    %p152 = por %p150, %p151
    %p153 = scmp.le.s32.totalorder 1, %s10
    %p154 = scmp.lt.s32.totalorder %s10, 5
    %p155 = pnand %p153, %p154
    %p156 = pneg %p155
    // Predicated region
    $region9: #{_lambda_.15} parent=5 // pred_check
      _
    $region10: #{_lambda_.15} parent=5 // pred_check_branch
      %158 = sbr.rel (%p155) target = $region12
    $region11: #{_lambda_.15} parent=5 // pred_region
      %s159 = ssub.s32 %s10, 1
    $region12: #{_lambda_.15} parent=5 // pred_fallthru
      _
    %p160 = scmp.lt.s32.totalorder %s10, 4
    // Predicated region
    $region13: #{_lambda_.15} parent=5 // pred_check
      %p161 = pneg %p160
    $region14: #{_lambda_.15} parent=5 // pred_check_branch
      %163 = sbr.rel (%p161) target = $region16
    $region15: #{_lambda_.15} parent=5 // pred_region
      // Predicated region
      $region17: #{_lambda_.15} parent=15 // pred_check
        %p164 = pneg %p51
      $region18: #{_lambda_.15} parent=15 // pred_check_branch
        %166 = sbr.rel (%p164) target = $region20
      $region19: #{_lambda_.15} parent=15 // pred_region
        %s167 = smul.u32 2, %s18
        %p168 = scmp.lt.s32.totalorder %s17, 3
        %s169 = scalar_select %p168, %s17, 3
        %p170 = scmp.lt.s32.totalorder %s167, 1
        %s171 = scalar_select %p170, %s167, 1
        %s172 = smul.addr %s171, 2
        %s173 = smul.addr %s169, 4
        %s174 = sadd.s32 %s172, %s173
        %s175 = smul.addr %s174, 4
        %s176 = scalar_lea.vmem %s0, %s175
        %s177 = smul.u32 2, %s18
      $region20: #{_lambda_.15} parent=15 // pred_fallthru
        _
      // Predicated region
      $region21: #{_lambda_.15} parent=15 // pred_check
        %p178 = pneg %p79
      $region22: #{_lambda_.15} parent=15 // pred_check_branch
        %180 = sbr.rel (%p178) target = $region24
      $region23: #{_lambda_.15} parent=15 // pred_region
        %p181 = scmp.lt.s32.totalorder %s17, 3
        %s182 = scalar_select %p181, %s17, 3
        %p183 = scmp.lt.s32.totalorder %s19, 0
        %s184 = scalar_select %p183, %s19, 0
        %s185 = smul.addr %s182, 32
        %s186 = sadd.s32 %s184, %s185
        %s187 = smul.addr %s186, 4
        %s188 = scalar_lea.vmem %s1, %s187
      $region24: #{_lambda_.15} parent=15 // pred_fallthru
        _
    $region16: #{_lambda_.15} parent=5 // pred_fallthru
      _
    %p189 = scmp.le.s32.totalorder 1, %s10
    %p190 = scmp.lt.s32.totalorder %s10, 5
    %p191 = pnand %p189, %p190
    %p192 = pneg %p191
    // Predicated region
    $region25: #{_lambda_.15} parent=5 // pred_check
      _
    $region26: #{_lambda_.15} parent=5 // pred_check_branch
      %194 = sbr.rel (%p191) target = $region28
    $region27: #{_lambda_.15} parent=5 // pred_region
      %s195 = ssub.s32 %s10, 1
      %s196 = smul.u32 2, %s21
      %p197 = scmp.lt.s32.totalorder %s20, 3
      %s198 = scalar_select %p197, %s20, 3
      %p199 = scmp.lt.s32.totalorder %s196, 1
      %s200 = scalar_select %p199, %s196, 1
      %s201 = smul.addr %s200, 2
      %s202 = smul.addr %s198, 4
      %s203 = sadd.s32 %s201, %s202
      %s204 = smul.addr %s203, 4
      %s205 = scalar_lea.vmem %s0, %s204
      %p206 = pneg %p57
      %p207 = pneg %p54
      %p208 = scmp.lt.s32.totalorder %s20, 3
      %s209 = scalar_select %p208, %s20, 3
      %p210 = scmp.lt.s32.totalorder %s22, 0
      %s211 = scalar_select %p210, %s22, 0
      %s212 = smul.addr %s209, 32
      %s213 = sadd.s32 %s211, %s212
      %s214 = smul.addr %s213, 4
      %s215 = scalar_lea.vmem %s1, %s214
      %p216 = pneg %p85
      %p217 = pneg %p82
      %p218 = pneg %p115
      %p219 = pneg %p112
      %s220 = smul.u32 2, %s21
      %p221 = scmp.lt.s32.totalorder %s20, 3
      %s222 = scalar_select %p221, %s20, 3
      %p223 = scmp.lt.s32.totalorder %s220, 1
      %s224 = scalar_select %p223, %s220, 1
      %p225 = scmp.lt.s32.totalorder %s22, 0
      %s226 = scalar_select %p225, %s22, 0
      %s227 = sadd.s32 %s226, %s224
      %s228 = smul.addr %s222, 2
      %s229 = sadd.s32 %s227, %s228
      %s230 = smul.addr %s229, 4
      %s231 = scalar_lea.vmem %s2, %s230
      %p232 = pneg %p145
      %p233 = pneg %p142
      %p234 = scmp.lt.s32.totalorder %s20, 3
      %s235 = scalar_select %p234, %s20, 3
      %p236 = scmp.lt.s32.totalorder %s21, 0
      %s237 = scalar_select %p236, %s21, 0
      %p238 = scmp.lt.s32.totalorder %s22, 0
      %s239 = scalar_select %p238, %s22, 0
      %s240 = sadd.s32 %s239, %s237
      %s241 = sadd.s32 %s240, %s235
      %s242 = smul.addr %s241, 2
      %s243 = scalar_lea.vmem %s3, %s242
      %s244 = smul.u32 2, %s21
      %p245 = scmp.lt.s32.totalorder %s20, 3
      %s246 = scalar_select %p245, %s20, 3
      %p247 = scmp.lt.s32.totalorder %s244, 1
      %s248 = scalar_select %p247, %s244, 1
      %s249 = smul.addr %s248, 2
      %s250 = smul.addr %s246, 4
      %s251 = sadd.s32 %s249, %s250
      %s252 = smul.addr %s251, 4
      %s253 = scalar_lea.vmem %s0, %s252
      %s254 = smul.u32 2, %s21
      %p255 = scmp.lt.s32.totalorder %s20, 3
      %s256 = scalar_select %p255, %s20, 3
      %p257 = scmp.lt.s32.totalorder %s22, 0
      %s258 = scalar_select %p257, %s22, 0
      %s259 = smul.addr %s256, 32
      %s260 = sadd.s32 %s258, %s259
      %s261 = smul.addr %s260, 4
      %s262 = scalar_lea.vmem %s1, %s261
      %s263 = smul.u32 2, %s21
      %p264 = scmp.lt.s32.totalorder %s20, 3
      %s265 = scalar_select %p264, %s20, 3
      %p266 = scmp.lt.s32.totalorder %s263, 1
      %s267 = scalar_select %p266, %s263, 1
      %p268 = scmp.lt.s32.totalorder %s22, 0
      %s269 = scalar_select %p268, %s22, 0
      %s270 = sadd.s32 %s269, %s267
      %s271 = smul.addr %s265, 2
      %s272 = sadd.s32 %s270, %s271
      %s273 = smul.addr %s272, 4
      %s274 = scalar_lea.vmem %s2, %s273
      %s275 = smul.u32 2, %s21
      %p276 = scmp.lt.s32.totalorder %s20, 3
      %s277 = scalar_select %p276, %s20, 3
      %p278 = scmp.lt.s32.totalorder %s21, 0
      %s279 = scalar_select %p278, %s21, 0
      %p280 = scmp.lt.s32.totalorder %s22, 0
      %s281 = scalar_select %p280, %s22, 0
      %s282 = sadd.s32 %s281, %s279
      %s283 = sadd.s32 %s282, %s277
      %s284 = smul.addr %s283, 2
      %s285 = scalar_lea.vmem %s3, %s284
      %v287 = vld [vmem:[%s253] sm:$0xff]
      %v288 = vld [vmem:[%s253 + $0x8] sm:$0xff]
      %v289 = vmax.bf16 %v287, 0
      %v290 = vmax.bf16 %v288, 0
      %v291 = vld [vmem:[%s262] sm:$0xf]
      %v292 = vld [vmem:[%s262 + $0x4] sm:$0xf]
      %v293 = vld [vmem:[%s262 + $0x8] sm:$0xf]
      %v294 = vld [vmem:[%s262 + $0xc] sm:$0xf]
      %v295 = vld [vmem:[%s262 + $0x10] sm:$0xf]
      %v296 = vld [vmem:[%s262 + $0x14] sm:$0xf]
      %v297 = vld [vmem:[%s262 + $0x18] sm:$0xf]
      %v298 = vld [vmem:[%s262 + $0x1c] sm:$0xf]
      %v299 = vld [vmem:[%s262 + $0x20] sm:$0xf]
      %v300 = vld [vmem:[%s262 + $0x24] sm:$0xf]
      %v301 = vld [vmem:[%s262 + $0x28] sm:$0xf]
      %v302 = vld [vmem:[%s262 + $0x2c] sm:$0xf]
      %v303 = vld [vmem:[%s262 + $0x30] sm:$0xf]
      %v304 = vld [vmem:[%s262 + $0x34] sm:$0xf]
      %v305 = vld [vmem:[%s262 + $0x38] sm:$0xf]
      %v306 = vld [vmem:[%s262 + $0x3c] sm:$0xf]
      %v307 = vld [vmem:[%s262 + $0x40] sm:$0xf]
      %v308 = vld [vmem:[%s262 + $0x44] sm:$0xf]
      %v309 = vld [vmem:[%s262 + $0x48] sm:$0xf]
      %v310 = vld [vmem:[%s262 + $0x4c] sm:$0xf]
      %v311 = vld [vmem:[%s262 + $0x50] sm:$0xf]
      %v312 = vld [vmem:[%s262 + $0x54] sm:$0xf]
      %v313 = vld [vmem:[%s262 + $0x58] sm:$0xf]
      %v314 = vld [vmem:[%s262 + $0x5c] sm:$0xf]
      %v315 = vld [vmem:[%s262 + $0x60] sm:$0xf]
      %v316 = vld [vmem:[%s262 + $0x64] sm:$0xf]
      %v317 = vld [vmem:[%s262 + $0x68] sm:$0xf]
      %v318 = vld [vmem:[%s262 + $0x6c] sm:$0xf]
      %v319 = vld [vmem:[%s262 + $0x70] sm:$0xf]
      %v320 = vld [vmem:[%s262 + $0x74] sm:$0xf]
      %v321 = vld [vmem:[%s262 + $0x78] sm:$0xf]
      %v322 = vld [vmem:[%s262 + $0x7c] sm:$0xf]
      %v325 = vunpack.c.l.b16 %v289
      %v326 = vunpack.c.h.b16 %v289
      %v327 = vunpack.c.l.b16 %v290
      %v328 = vunpack.c.h.b16 %v290
      %v329 = vpack.c.b16 %v327, %v325
      %v330 = vpack.c.b16 %v328, %v326
      %v365 = vunpack.c.l.b16 %v291
      %v366 = vunpack.c.l.b16 %v292
      %v367 = vunpack.c.l.b16 %v293
      %v368 = vunpack.c.l.b16 %v294
      %v369 = vunpack.c.l.b16 %v295
      %v370 = vunpack.c.l.b16 %v296
      %v371 = vunpack.c.l.b16 %v297
      %v372 = vunpack.c.l.b16 %v298
      %v373 = vunpack.c.l.b16 %v299
      %v374 = vunpack.c.l.b16 %v300
      %v375 = vunpack.c.l.b16 %v301
      %v376 = vunpack.c.l.b16 %v302
      %v377 = vunpack.c.l.b16 %v303
      %v378 = vunpack.c.l.b16 %v304
      %v379 = vunpack.c.l.b16 %v305
      %v380 = vunpack.c.l.b16 %v306
      %v381 = vunpack.c.l.b16 %v307
      %v382 = vunpack.c.l.b16 %v308
      %v383 = vunpack.c.l.b16 %v309
      %v384 = vunpack.c.l.b16 %v310
      %v385 = vunpack.c.l.b16 %v311
      %v386 = vunpack.c.l.b16 %v312
      %v387 = vunpack.c.l.b16 %v313
      %v388 = vunpack.c.l.b16 %v314
      %v389 = vunpack.c.l.b16 %v315
      %v390 = vunpack.c.l.b16 %v316
      %v391 = vunpack.c.l.b16 %v317
      %v392 = vunpack.c.l.b16 %v318
      %v393 = vunpack.c.l.b16 %v319
      %v394 = vunpack.c.l.b16 %v320
      %v395 = vunpack.c.l.b16 %v321
      %v396 = vunpack.c.l.b16 %v322
      %v397 = vpack.c.b16 %v366, %v365
      %v398 = vpack.c.b16 %v368, %v367
      %v399 = vpack.c.b16 %v370, %v369
      %v400 = vpack.c.b16 %v372, %v371
      %v401 = vpack.c.b16 %v374, %v373
      %v402 = vpack.c.b16 %v376, %v375
      %v403 = vpack.c.b16 %v378, %v377
      %v404 = vpack.c.b16 %v380, %v379
      %v405 = vpack.c.b16 %v382, %v381
      %v406 = vpack.c.b16 %v384, %v383
      %v407 = vpack.c.b16 %v386, %v385
      %v408 = vpack.c.b16 %v388, %v387
      %v409 = vpack.c.b16 %v390, %v389
      %v410 = vpack.c.b16 %v392, %v391
      %v411 = vpack.c.b16 %v394, %v393
      %v412 = vpack.c.b16 %v396, %v395
      %429 = vmatprep.subr.bf16.mxu0 0
      %430 = vmatpush1.bf16.msra.mxu0 %v404
      %431 = vmatprep.subr.bf16.mxu0 0
      %432 = vmatpush1.bf16.msra.mxu0 %v403
      %433 = vmatprep.subr.bf16.mxu0 0
      %434 = vmatpush1.bf16.msra.mxu0 %v402
      %435 = vmatprep.subr.bf16.mxu0 0
      %436 = vmatpush1.bf16.msra.mxu0 %v401
      %437 = vmatprep.subr.bf16.mxu0 0
      %438 = vmatpush1.bf16.msra.mxu0 %v400
      %439 = vmatprep.subr.bf16.mxu0 0
      %440 = vmatpush1.bf16.msra.mxu0 %v399
      %441 = vmatprep.subr.bf16.mxu0 0
      %442 = vmatpush1.bf16.msra.mxu0 %v398
      %443 = vmatprep.subr.bf16.mxu0 0
      %444 = vmatpush1.bf16.msra.mxu0 %v397
      %445 = vmatprep.subr.bf16.mxu0 0
      %446 = vmatpush2.bf16.msra.mxu0 %v412
      %447 = vmatprep.subr.bf16.mxu0 0
      %448 = vmatpush2.bf16.msra.mxu0 %v411
      %449 = vmatprep.subr.bf16.mxu0 0
      %450 = vmatpush2.bf16.msra.mxu0 %v410
      %451 = vmatprep.subr.bf16.mxu0 0
      %452 = vmatpush2.bf16.msra.mxu0 %v409
      %453 = vmatprep.subr.bf16.mxu0 0
      %454 = vmatpush2.bf16.msra.mxu0 %v408
      %455 = vmatprep.subr.bf16.mxu0 0
      %456 = vmatpush2.bf16.msra.mxu0 %v407
      %457 = vmatprep.subr.bf16.mxu0 0
      %458 = vmatpush2.bf16.msra.mxu0 %v406
      %459 = vmatprep.subr.bf16.mxu0 0
      %460 = vmatpush2.bf16.msra.mxu0 %v405
      %461 = vmatprep.mubr.bf16.mxu0 %v330
      %462 = vmatmul.mubr.bf16.gmra.mxu0 %v329
      %v463 = vpop.f32.mrf.mxu0
      %v464 = vadd.f32 0.0, %v463
      %v465 = vpop.f32.mrf.mxu0
      %v466 = vpop.f32.mrf.mxu0
      %v467 = vadd.f32 0.0, %v466
      %v468 = vpop.f32.mrf.mxu0
      %469 = vdwg.mxu0
      %v470 = vpack.c.bf16 %v467, %v464
      %v472 = vunpack.c.l.b16 %v470
      %v473 = vunpack.c.h.b16 %v470
      %v474 = vpack.c.b16 %v472, %v472
      %v475 = vpack.c.b16 %v473, %v473
      %478 = vst [vmem:[%s274] sm:$0xf] %v474
      %479 = vst [vmem:[%s274 + $0x4] sm:$0xf] %v475
      %v480 = vlaneseq
      %v481 = vshrl.u32 %v480, 7
      %v482 = vadd.s32 %v481, 8
      %s483 = smul.u32 %s21, 16
      %v484 = vstv %s483
      %v485 = vadd.s32 %v481, %v484
      %v486 = vadd.s32 %v482, %v484
      %vm487 = vcmp.lt.s32.totalorder %v485, 2
      %vm488 = vcmp.lt.s32.totalorder %v486, 2
      %v489 = vsel %vm487, %v464, 0.0
      %v490 = vsel %vm488, %v467, 0.0
      %v491 = vadd.f32 %v489, %v490
      %v492 = vrot.slane %v491, 4
      %v493 = vadd.f32 %v491, %v492
      %v494 = vrot.slane %v493, 2
      %v495 = vadd.f32 %v493, %v494
      %v496 = vrot.slane %v495, 1
      %v497 = vadd.f32 %v495, %v496
      %v498 = vmul.f32 %v489, %v489
      %v499 = vmul.f32 %v490, %v490
      %v500 = vadd.f32 %v498, %v499
      %v501 = vrot.slane %v500, 4
      %v502 = vadd.f32 %v500, %v501
      %v503 = vrot.slane %v502, 2
      %v504 = vadd.f32 %v502, %v503
      %v505 = vrot.slane %v504, 1
      %v506 = vadd.f32 %v504, %v505
      %vm507 = vcmask 1040384
      %v508 = vsel %vm507, %v497, %v506
      %509 = vst [vmem:[%s285] sm:$0x3] %v508
      %s510 = smul.u32 2, %s21
      %p511 = scmp.lt.s32.totalorder %s20, 3
      %s512 = scalar_select %p511, %s20, 3
      %p513 = scmp.lt.s32.totalorder %s510, 1
      %s514 = scalar_select %p513, %s510, 1
      %p515 = scmp.lt.s32.totalorder %s22, 0
      %s516 = scalar_select %p515, %s22, 0
      %s517 = sadd.s32 %s516, %s514
      %s518 = smul.addr %s512, 2
      %s519 = sadd.s32 %s517, %s518
      %s520 = smul.addr %s519, 4
      %s521 = scalar_lea.vmem %s2, %s520
      %p522 = scmp.lt.s32.totalorder %s20, 3
      %s523 = scalar_select %p522, %s20, 3
      %p524 = scmp.lt.s32.totalorder %s21, 0
      %s525 = scalar_select %p524, %s21, 0
      %p526 = scmp.lt.s32.totalorder %s22, 0
      %s527 = scalar_select %p526, %s22, 0
      %s528 = sadd.s32 %s527, %s525
      %s529 = sadd.s32 %s528, %s523
      %s530 = smul.addr %s529, 2
      %s531 = scalar_lea.vmem %s3, %s530
      // Predicated region
      $region29: #{_lambda_.15} parent=27 // pred_check
        %p532 = pneg %p112
      $region30: #{_lambda_.15} parent=27 // pred_check_branch
        %534 = sbr.rel (%p532) target = $region32
      $region31: #{_lambda_.15} parent=27 // pred_region
        %s535 = smul.u32 2, %s21
      $region32: #{_lambda_.15} parent=27 // pred_fallthru
        _
      // Predicated region
      $region33: #{_lambda_.15} parent=27 // pred_check
        %p536 = pneg %p142
      $region34: #{_lambda_.15} parent=27 // pred_check_branch
        %538 = sbr.rel (%p536) target = $region36
      $region35: #{_lambda_.15} parent=27 // pred_region
        _
      $region36: #{_lambda_.15} parent=27 // pred_fallthru
        _
    $region28: #{_lambda_.15} parent=5 // pred_fallthru
      _
    %p539 = scmp.le.s32.totalorder 2, %s10
    // Predicated region
    $region37: #{_lambda_.15} parent=5 // pred_check
      %p540 = pneg %p539
    $region38: #{_lambda_.15} parent=5 // pred_check_branch
      %542 = sbr.rel (%p540) target = $region40
    $region39: #{_lambda_.15} parent=5 // pred_region
      %s543 = ssub.s32 %s10, 2
      // Predicated region
      $region41: #{_lambda_.15} parent=39 // pred_check
        %p544 = pneg %p118
      $region42: #{_lambda_.15} parent=39 // pred_check_branch
        %546 = sbr.rel (%p544) target = $region44
      $region43: #{_lambda_.15} parent=39 // pred_region
        %s547 = smul.u32 2, %s24
        %p548 = scmp.lt.s32.totalorder %s23, 3
        %s549 = scalar_select %p548, %s23, 3
        %p550 = scmp.lt.s32.totalorder %s547, 1
        %s551 = scalar_select %p550, %s547, 1
        %p552 = scmp.lt.s32.totalorder %s25, 0
        %s553 = scalar_select %p552, %s25, 0
        %s554 = sadd.s32 %s553, %s551
        %s555 = smul.addr %s549, 2
        %s556 = sadd.s32 %s554, %s555
        %s557 = smul.addr %s556, 4
        %s558 = scalar_lea.vmem %s2, %s557
      $region44: #{_lambda_.15} parent=39 // pred_fallthru
        _
      // Predicated region
      $region45: #{_lambda_.15} parent=39 // pred_check
        %p559 = pneg %p148
      $region46: #{_lambda_.15} parent=39 // pred_check_branch
        %561 = sbr.rel (%p559) target = $region48
      $region47: #{_lambda_.15} parent=39 // pred_region
        %p562 = scmp.lt.s32.totalorder %s23, 3
        %s563 = scalar_select %p562, %s23, 3
        %p564 = scmp.lt.s32.totalorder %s24, 0
        %s565 = scalar_select %p564, %s24, 0
        %p566 = scmp.lt.s32.totalorder %s25, 0
        %s567 = scalar_select %p566, %s25, 0
        %s568 = sadd.s32 %s567, %s565
        %s569 = sadd.s32 %s568, %s563
        %s570 = smul.addr %s569, 2
        %s571 = scalar_lea.vmem %s3, %s570
      $region48: #{_lambda_.15} parent=39 // pred_fallthru
        _
    $region40: #{_lambda_.15} parent=5 // pred_fallthru
      _
  $region6: #{_lambda_.15} parent=0 // loop_footer
    %s14 = sadd.s32 1, %s10
  $region7: #{_lambda_.15} parent=0 // loop_footer_branch
    %9 = sbr.rel target = $region3
  $region8: #{_lambda_.15} parent=0 // loop_exit
    _

// kernel: tile.113
$region0: #{tile.113}
  #allocation0 [shape = 's32[1]{0}', space=sflag, size = 0x4, scoped, tag = 'scoped memory for tile.113']
  %s0 = inlined_call_operand.vmem [shape: f32[64], index: 0, kind: input, shape index: {}]
  %s1 = inlined_call_operand.vmem [shape: f32[4,64], index: 1, kind: output, shape index: {}]
  // Predicated region
  $region2: #{tile.113} parent=0 // pred_check
    _
  $region3: #{tile.113} parent=0 // pred_check_branch
    %3 = sbr.rel (0) target = $region5
  $region4: #{tile.113} parent=0 // pred_region
    _
  $region5: #{tile.113} parent=0 // pred_fallthru
    _
  %v4 = vld [vmem:[%s0] ss:$0 sm:$0xff]
  %5 = vst [vmem:[%s1] sm:$0xf] %v4

// kernel: _lambda_.14
$region0: #{_lambda_.14}
  #allocation0 [shape = 'u32[]', space=smem, size = 0x4, offset = 0x4, fixed_abs, tag = 'smem constant byte address 0x4 - core index']
  #allocation1 [shape = 'u32[144,128]{1,0:T(1,128)}', space=vmem, size = 0x12000, scoped, tag = 'internal scratch']
  %s0 = inlined_call_operand.vmem [shape: bf16[1,16,1024], index: 0, kind: input, shape index: {}]
  %s1 = inlined_call_operand.vmem [shape: bf16[1,1024,128], index: 1, kind: input, shape index: {}]
  %s2 = inlined_call_operand.vmem [shape: f32[1,1024], index: 2, kind: input, shape index: {}]
  %s3 = inlined_call_operand.vmem [shape: f32[1,1024], index: 3, kind: input, shape index: {}]
  %s4 = inlined_call_operand.vmem [shape: bf16[1,16,128], index: 4, kind: output, shape index: {}]
  %s5 = sld [smem:[#allocation0]]
  $region26: #{_lambda_.14} parent=0
    _
  %s7 = ssub.s32 1, %s5
  %s8 = scalar_select 0, %s7, %s5
  // Predicated region
  $region2: #{_lambda_.14} parent=0 // pred_check
    _
  $region3: #{_lambda_.14} parent=0 // pred_check_branch
    %10 = sbr.rel (0) target = $region5
  $region4: #{_lambda_.14} parent=0 // pred_region
    _
  $region5: #{_lambda_.14} parent=0 // pred_fallthru
    _
  // Predicated region
  $region6: #{_lambda_.14} parent=0 // pred_check
    _
  $region7: #{_lambda_.14} parent=0 // pred_check_branch
    %12 = sbr.rel (0) target = $region9
  $region8: #{_lambda_.14} parent=0 // pred_region
    _
  $region9: #{_lambda_.14} parent=0 // pred_fallthru
    _
  // Predicated region
  $region10: #{_lambda_.14} parent=0 // pred_check
    _
  $region11: #{_lambda_.14} parent=0 // pred_check_branch
    %14 = sbr.rel (0) target = $region13
  $region12: #{_lambda_.14} parent=0 // pred_region
    _
  $region13: #{_lambda_.14} parent=0 // pred_fallthru
    _
  // Predicated region
  $region14: #{_lambda_.14} parent=0 // pred_check
    _
  $region15: #{_lambda_.14} parent=0 // pred_check_branch
    %16 = sbr.rel (0) target = $region17
  $region16: #{_lambda_.14} parent=0 // pred_region
    _
  $region17: #{_lambda_.14} parent=0 // pred_fallthru
    _
  %v18 = vld [vmem:[%s0] sm:$0xff]
  %v19 = vld [vmem:[%s0 + $0x8] sm:$0xff]
  %v20 = vld [vmem:[%s0 + $0x10] sm:$0xff]
  %v21 = vld [vmem:[%s0 + $0x18] sm:$0xff]
  %v22 = vld [vmem:[%s0 + $0x20] sm:$0xff]
  %v23 = vld [vmem:[%s0 + $0x28] sm:$0xff]
  %v24 = vld [vmem:[%s0 + $0x30] sm:$0xff]
  %v25 = vld [vmem:[%s0 + $0x38] sm:$0xff]
  %v26 = vunpack.c.l.bf16 %v18
  %v27 = vunpack.c.h.bf16 %v18
  %v28 = vunpack.c.l.bf16 %v19
  %v29 = vunpack.c.h.bf16 %v19
  %v30 = vunpack.c.l.bf16 %v20
  %v31 = vunpack.c.h.bf16 %v20
  %v32 = vunpack.c.l.bf16 %v21
  %v33 = vunpack.c.h.bf16 %v21
  %v34 = vunpack.c.l.bf16 %v22
  %v35 = vunpack.c.h.bf16 %v22
  %v36 = vunpack.c.l.bf16 %v23
  %v37 = vunpack.c.h.bf16 %v23
  %v38 = vunpack.c.l.bf16 %v24
  %v39 = vunpack.c.h.bf16 %v24
  %v40 = vunpack.c.l.bf16 %v25
  %v41 = vunpack.c.h.bf16 %v25
  %v42 = vld [vmem:[%s2] sm:$0xff]
  %v44 = vlaneseq
  %v45 = vshrl.u32 %v44, 7
  %v46 = vsub.s32 0, %v45
  %v47 = vrot.slane %v42, %v46
  %v48 = vlaneseq
  %v49 = vshrl.u32 %v48, 7
  %v50 = vsub.s32 1, %v49
  %v51 = vrot.slane %v42, %v50
  %v52 = vlaneseq
  %v53 = vshrl.u32 %v52, 7
  %v54 = vsub.s32 2, %v53
  %v55 = vrot.slane %v42, %v54
  %v56 = vlaneseq
  %v57 = vshrl.u32 %v56, 7
  %v58 = vsub.s32 3, %v57
  %v59 = vrot.slane %v42, %v58
  %v60 = vlaneseq
  %v61 = vshrl.u32 %v60, 7
  %v62 = vsub.s32 4, %v61
  %v63 = vrot.slane %v42, %v62
  %v64 = vlaneseq
  %v65 = vshrl.u32 %v64, 7
  %v66 = vsub.s32 5, %v65
  %v67 = vrot.slane %v42, %v66
  %v68 = vlaneseq
  %v69 = vshrl.u32 %v68, 7
  %v70 = vsub.s32 6, %v69
  %v71 = vrot.slane %v42, %v70
  %v72 = vlaneseq
  %v73 = vshrl.u32 %v72, 7
  %v74 = vsub.s32 7, %v73
  %v75 = vrot.slane %v42, %v74
  %v84 = vmul.f32 %v26, %v47
  %v85 = vmul.f32 %v27, %v51
  %v86 = vmul.f32 %v28, %v55
  %v87 = vmul.f32 %v29, %v59
  %v88 = vmul.f32 %v30, %v63
  %v89 = vmul.f32 %v31, %v67
  %v90 = vmul.f32 %v32, %v71
  %v91 = vmul.f32 %v33, %v75
  %v92 = vmul.f32 %v34, %v47
  %v93 = vmul.f32 %v35, %v51
  %v94 = vmul.f32 %v36, %v55
  %v95 = vmul.f32 %v37, %v59
  %v96 = vmul.f32 %v38, %v63
  %v97 = vmul.f32 %v39, %v67
  %v98 = vmul.f32 %v40, %v71
  %v99 = vmul.f32 %v41, %v75
  %v100 = vld [vmem:[%s3] sm:$0xff]
  %v102 = vlaneseq
  %v103 = vshrl.u32 %v102, 7
  %v104 = vsub.s32 0, %v103
  %v105 = vrot.slane %v100, %v104
  %v106 = vlaneseq
  %v107 = vshrl.u32 %v106, 7
  %v108 = vsub.s32 1, %v107
  %v109 = vrot.slane %v100, %v108
  %v110 = vlaneseq
  %v111 = vshrl.u32 %v110, 7
  %v112 = vsub.s32 2, %v111
  %v113 = vrot.slane %v100, %v112
  %v114 = vlaneseq
  %v115 = vshrl.u32 %v114, 7
  %v116 = vsub.s32 3, %v115
  %v117 = vrot.slane %v100, %v116
  %v118 = vlaneseq
  %v119 = vshrl.u32 %v118, 7
  %v120 = vsub.s32 4, %v119
  %v121 = vrot.slane %v100, %v120
  %v122 = vlaneseq
  %v123 = vshrl.u32 %v122, 7
  %v124 = vsub.s32 5, %v123
  %v125 = vrot.slane %v100, %v124
  %v126 = vlaneseq
  %v127 = vshrl.u32 %v126, 7
  %v128 = vsub.s32 6, %v127
  %v129 = vrot.slane %v100, %v128
  %v130 = vlaneseq
  %v131 = vshrl.u32 %v130, 7
  %v132 = vsub.s32 7, %v131
  %v133 = vrot.slane %v100, %v132
  %v142 = vadd.f32 %v84, %v105
  %v143 = vadd.f32 %v85, %v109
  %v144 = vadd.f32 %v86, %v113
  %v145 = vadd.f32 %v87, %v117
  %v146 = vadd.f32 %v88, %v121
  %v147 = vadd.f32 %v89, %v125
  %v148 = vadd.f32 %v90, %v129
  %v149 = vadd.f32 %v91, %v133
  %v150 = vadd.f32 %v92, %v105
  %v151 = vadd.f32 %v93, %v109
  %v152 = vadd.f32 %v94, %v113
  %v153 = vadd.f32 %v95, %v117
  %v154 = vadd.f32 %v96, %v121
  %v155 = vadd.f32 %v97, %v125
  %v156 = vadd.f32 %v98, %v129
  %v157 = vadd.f32 %v99, %v133
  %vm158 = vcmp.ge.f32.partialorder %v142, 0.0
  %vm159 = vcmp.ge.f32.partialorder %v143, 0.0
  %vm160 = vcmp.ge.f32.partialorder %v144, 0.0
  %vm161 = vcmp.ge.f32.partialorder %v145, 0.0
  %vm162 = vcmp.ge.f32.partialorder %v146, 0.0
  %vm163 = vcmp.ge.f32.partialorder %v147, 0.0
  %vm164 = vcmp.ge.f32.partialorder %v148, 0.0
  %vm165 = vcmp.ge.f32.partialorder %v149, 0.0
  %vm166 = vcmp.ge.f32.partialorder %v150, 0.0
  %vm167 = vcmp.ge.f32.partialorder %v151, 0.0
  %vm168 = vcmp.ge.f32.partialorder %v152, 0.0
  %vm169 = vcmp.ge.f32.partialorder %v153, 0.0
  %vm170 = vcmp.ge.f32.partialorder %v154, 0.0
  %vm171 = vcmp.ge.f32.partialorder %v155, 0.0
  %vm172 = vcmp.ge.f32.partialorder %v156, 0.0
  %vm173 = vcmp.ge.f32.partialorder %v157, 0.0
  %v174 = vmul.f32 %v142, 0.2
  %v175 = vmul.f32 %v143, 0.2
  %v176 = vmul.f32 %v144, 0.2
  %v177 = vmul.f32 %v145, 0.2
  %v178 = vmul.f32 %v146, 0.2
  %v179 = vmul.f32 %v147, 0.2
  %v180 = vmul.f32 %v148, 0.2
  %v181 = vmul.f32 %v149, 0.2
  %v182 = vmul.f32 %v150, 0.2
  %v183 = vmul.f32 %v151, 0.2
  %v184 = vmul.f32 %v152, 0.2
  %v185 = vmul.f32 %v153, 0.2
  %v186 = vmul.f32 %v154, 0.2
  %v187 = vmul.f32 %v155, 0.2
  %v188 = vmul.f32 %v156, 0.2
  %v189 = vmul.f32 %v157, 0.2
  %v190 = vsel %vm158, %v142, %v174
  %v191 = vsel %vm159, %v143, %v175
  %v192 = vsel %vm160, %v144, %v176
  %v193 = vsel %vm161, %v145, %v177
  %v194 = vsel %vm162, %v146, %v178
  %v195 = vsel %vm163, %v147, %v179
  %v196 = vsel %vm164, %v148, %v180
  %v197 = vsel %vm165, %v149, %v181
  %v198 = vsel %vm166, %v150, %v182
  %v199 = vsel %vm167, %v151, %v183
  %v200 = vsel %vm168, %v152, %v184
  %v201 = vsel %vm169, %v153, %v185
  %v202 = vsel %vm170, %v154, %v186
  %v203 = vsel %vm171, %v155, %v187
  %v204 = vsel %vm172, %v156, %v188
  %v205 = vsel %vm173, %v157, %v189
  %v206 = vpack.c.bf16 %v198, %v190
  %v207 = vpack.c.bf16 %v199, %v191
  %v208 = vpack.c.bf16 %v200, %v192
  %v209 = vpack.c.bf16 %v201, %v193
  %v210 = vpack.c.bf16 %v202, %v194
  %v211 = vpack.c.bf16 %v203, %v195
  %v212 = vpack.c.bf16 %v204, %v196
  %v213 = vpack.c.bf16 %v205, %v197
  %v214 = vld [vmem:[%s1] sm:$0xf]
  %v215 = vld [vmem:[%s1 + $0x4] sm:$0xf]
  %v216 = vld [vmem:[%s1 + $0x8] sm:$0xf]
  %v217 = vld [vmem:[%s1 + $0xc] sm:$0xf]
  %v218 = vld [vmem:[%s1 + $0x10] sm:$0xf]
  %v219 = vld [vmem:[%s1 + $0x14] sm:$0xf]
  %v220 = vld [vmem:[%s1 + $0x18] sm:$0xf]
  %v221 = vld [vmem:[%s1 + $0x1c] sm:$0xf]
  %v222 = vld [vmem:[%s1 + $0x20] sm:$0xf]
  %v223 = vld [vmem:[%s1 + $0x24] sm:$0xf]
  %v224 = vld [vmem:[%s1 + $0x28] sm:$0xf]
  %v225 = vld [vmem:[%s1 + $0x2c] sm:$0xf]
  %v226 = vld [vmem:[%s1 + $0x30] sm:$0xf]
  %v227 = vld [vmem:[%s1 + $0x34] sm:$0xf]
  %v228 = vld [vmem:[%s1 + $0x38] sm:$0xf]
  %v229 = vld [vmem:[%s1 + $0x3c] sm:$0xf]
  %v230 = vld [vmem:[%s1 + $0x40] sm:$0xf]
  %v231 = vld [vmem:[%s1 + $0x44] sm:$0xf]
  %v232 = vld [vmem:[%s1 + $0x48] sm:$0xf]
  %v233 = vld [vmem:[%s1 + $0x4c] sm:$0xf]
  %v234 = vld [vmem:[%s1 + $0x50] sm:$0xf]
  %v235 = vld [vmem:[%s1 + $0x54] sm:$0xf]
  %v236 = vld [vmem:[%s1 + $0x58] sm:$0xf]
  %v237 = vld [vmem:[%s1 + $0x5c] sm:$0xf]
  %v238 = vld [vmem:[%s1 + $0x60] sm:$0xf]
  %v239 = vld [vmem:[%s1 + $0x64] sm:$0xf]
  %v240 = vld [vmem:[%s1 + $0x68] sm:$0xf]
  %v241 = vld [vmem:[%s1 + $0x6c] sm:$0xf]
  %v242 = vld [vmem:[%s1 + $0x70] sm:$0xf]
  %v243 = vld [vmem:[%s1 + $0x74] sm:$0xf]
  %v244 = vld [vmem:[%s1 + $0x78] sm:$0xf]
  %v245 = vld [vmem:[%s1 + $0x7c] sm:$0xf]
  %v246 = vld [vmem:[%s1 + $0x80] sm:$0xf]
  %v247 = vld [vmem:[%s1 + $0x84] sm:$0xf]
  %v248 = vld [vmem:[%s1 + $0x88] sm:$0xf]
  %v249 = vld [vmem:[%s1 + $0x8c] sm:$0xf]
  %v250 = vld [vmem:[%s1 + $0x90] sm:$0xf]
  %v251 = vld [vmem:[%s1 + $0x94] sm:$0xf]
  %v252 = vld [vmem:[%s1 + $0x98] sm:$0xf]
  %v253 = vld [vmem:[%s1 + $0x9c] sm:$0xf]
  %v254 = vld [vmem:[%s1 + $0xa0] sm:$0xf]
  %v255 = vld [vmem:[%s1 + $0xa4] sm:$0xf]
  %v256 = vld [vmem:[%s1 + $0xa8] sm:$0xf]
  %v257 = vld [vmem:[%s1 + $0xac] sm:$0xf]
  %v258 = vld [vmem:[%s1 + $0xb0] sm:$0xf]
  %v259 = vld [vmem:[%s1 + $0xb4] sm:$0xf]
  %v260 = vld [vmem:[%s1 + $0xb8] sm:$0xf]
  %v261 = vld [vmem:[%s1 + $0xbc] sm:$0xf]
  %v262 = vld [vmem:[%s1 + $0xc0] sm:$0xf]
  %v263 = vld [vmem:[%s1 + $0xc4] sm:$0xf]
  %v264 = vld [vmem:[%s1 + $0xc8] sm:$0xf]
  %v265 = vld [vmem:[%s1 + $0xcc] sm:$0xf]
  %v266 = vld [vmem:[%s1 + $0xd0] sm:$0xf]
  %v267 = vld [vmem:[%s1 + $0xd4] sm:$0xf]
  %v268 = vld [vmem:[%s1 + $0xd8] sm:$0xf]
  %v269 = vld [vmem:[%s1 + $0xdc] sm:$0xf]
  %v270 = vld [vmem:[%s1 + $0xe0] sm:$0xf]
  %v271 = vld [vmem:[%s1 + $0xe4] sm:$0xf]
  %v272 = vld [vmem:[%s1 + $0xe8] sm:$0xf]
  %v273 = vld [vmem:[%s1 + $0xec] sm:$0xf]
  %v274 = vld [vmem:[%s1 + $0xf0] sm:$0xf]
  %v275 = vld [vmem:[%s1 + $0xf4] sm:$0xf]
  %v276 = vld [vmem:[%s1 + $0xf8] sm:$0xf]
  %v277 = vld [vmem:[%s1 + $0xfc] sm:$0xf]
  %v278 = vld [vmem:[%s1 + $0x100] sm:$0xf]
  %v279 = vld [vmem:[%s1 + $0x104] sm:$0xf]
  %v280 = vld [vmem:[%s1 + $0x108] sm:$0xf]
  %v281 = vld [vmem:[%s1 + $0x10c] sm:$0xf]
  %v282 = vld [vmem:[%s1 + $0x110] sm:$0xf]
  %v283 = vld [vmem:[%s1 + $0x114] sm:$0xf]
  %v284 = vld [vmem:[%s1 + $0x118] sm:$0xf]
  %v285 = vld [vmem:[%s1 + $0x11c] sm:$0xf]
  %v286 = vld [vmem:[%s1 + $0x120] sm:$0xf]
  %v287 = vld [vmem:[%s1 + $0x124] sm:$0xf]
  %v288 = vld [vmem:[%s1 + $0x128] sm:$0xf]
  %v289 = vld [vmem:[%s1 + $0x12c] sm:$0xf]
  %v290 = vld [vmem:[%s1 + $0x130] sm:$0xf]
  %v291 = vld [vmem:[%s1 + $0x134] sm:$0xf]
  %v292 = vld [vmem:[%s1 + $0x138] sm:$0xf]
  %v293 = vld [vmem:[%s1 + $0x13c] sm:$0xf]
  %v294 = vld [vmem:[%s1 + $0x140] sm:$0xf]
  %v295 = vld [vmem:[%s1 + $0x144] sm:$0xf]
  %v296 = vld [vmem:[%s1 + $0x148] sm:$0xf]
  %v297 = vld [vmem:[%s1 + $0x14c] sm:$0xf]
  %v298 = vld [vmem:[%s1 + $0x150] sm:$0xf]
  %v299 = vld [vmem:[%s1 + $0x154] sm:$0xf]
  %v300 = vld [vmem:[%s1 + $0x158] sm:$0xf]
  %v301 = vld [vmem:[%s1 + $0x15c] sm:$0xf]
  %v302 = vld [vmem:[%s1 + $0x160] sm:$0xf]
  %v303 = vld [vmem:[%s1 + $0x164] sm:$0xf]
  %v304 = vld [vmem:[%s1 + $0x168] sm:$0xf]
  %v305 = vld [vmem:[%s1 + $0x16c] sm:$0xf]
  %v306 = vld [vmem:[%s1 + $0x170] sm:$0xf]
  %v307 = vld [vmem:[%s1 + $0x174] sm:$0xf]
  %v308 = vld [vmem:[%s1 + $0x178] sm:$0xf]
  %v309 = vld [vmem:[%s1 + $0x17c] sm:$0xf]
  %v310 = vld [vmem:[%s1 + $0x180] sm:$0xf]
  %v311 = vld [vmem:[%s1 + $0x184] sm:$0xf]
  %v312 = vld [vmem:[%s1 + $0x188] sm:$0xf]
  %v313 = vld [vmem:[%s1 + $0x18c] sm:$0xf]
  %v314 = vld [vmem:[%s1 + $0x190] sm:$0xf]
  %v315 = vld [vmem:[%s1 + $0x194] sm:$0xf]
  %v316 = vld [vmem:[%s1 + $0x198] sm:$0xf]
  %v317 = vld [vmem:[%s1 + $0x19c] sm:$0xf]
  %v318 = vld [vmem:[%s1 + $0x1a0] sm:$0xf]
  %v319 = vld [vmem:[%s1 + $0x1a4] sm:$0xf]
  %v320 = vld [vmem:[%s1 + $0x1a8] sm:$0xf]
  %v321 = vld [vmem:[%s1 + $0x1ac] sm:$0xf]
  %v322 = vld [vmem:[%s1 + $0x1b0] sm:$0xf]
  %v323 = vld [vmem:[%s1 + $0x1b4] sm:$0xf]
  %v324 = vld [vmem:[%s1 + $0x1b8] sm:$0xf]
  %v325 = vld [vmem:[%s1 + $0x1bc] sm:$0xf]
  %v326 = vld [vmem:[%s1 + $0x1c0] sm:$0xf]
  %v327 = vld [vmem:[%s1 + $0x1c4] sm:$0xf]
  %v328 = vld [vmem:[%s1 + $0x1c8] sm:$0xf]
  %v329 = vld [vmem:[%s1 + $0x1cc] sm:$0xf]
  %v330 = vld [vmem:[%s1 + $0x1d0] sm:$0xf]
  %v331 = vld [vmem:[%s1 + $0x1d4] sm:$0xf]
  %v332 = vld [vmem:[%s1 + $0x1d8] sm:$0xf]
  %v333 = vld [vmem:[%s1 + $0x1dc] sm:$0xf]
  %v334 = vld [vmem:[%s1 + $0x1e0] sm:$0xf]
  %v335 = vld [vmem:[%s1 + $0x1e4] sm:$0xf]
  %v336 = vld [vmem:[%s1 + $0x1e8] sm:$0xf]
  %v337 = vld [vmem:[%s1 + $0x1ec] sm:$0xf]
  %v338 = vld [vmem:[%s1 + $0x1f0] sm:$0xf]
  %v339 = vld [vmem:[%s1 + $0x1f4] sm:$0xf]
  %v340 = vld [vmem:[%s1 + $0x1f8] sm:$0xf]
  %v341 = vld [vmem:[%s1 + $0x1fc] sm:$0xf]
  %v470 = vunpack.c.l.b16 %v214
  %v471 = vunpack.c.l.b16 %v215
  %v472 = vunpack.c.l.b16 %v216
  %v473 = vunpack.c.l.b16 %v217
  %v474 = vunpack.c.l.b16 %v218
  %v475 = vunpack.c.l.b16 %v219
  %v476 = vunpack.c.l.b16 %v220
  %v477 = vunpack.c.l.b16 %v221
  %v478 = vunpack.c.l.b16 %v222
  %v479 = vunpack.c.l.b16 %v223
  %v480 = vunpack.c.l.b16 %v224
  %v481 = vunpack.c.l.b16 %v225
  %v482 = vunpack.c.l.b16 %v226
  %v483 = vunpack.c.l.b16 %v227
  %v484 = vunpack.c.l.b16 %v228
  %v485 = vunpack.c.l.b16 %v229
  %v486 = vunpack.c.l.b16 %v230
  %v487 = vunpack.c.l.b16 %v231
  %v488 = vunpack.c.l.b16 %v232
  %v489 = vunpack.c.l.b16 %v233
  %v490 = vunpack.c.l.b16 %v234
  %v491 = vunpack.c.l.b16 %v235
  %v492 = vunpack.c.l.b16 %v236
  %v493 = vunpack.c.l.b16 %v237
  %v494 = vunpack.c.l.b16 %v238
  %v495 = vunpack.c.l.b16 %v239
  %v496 = vunpack.c.l.b16 %v240
  %v497 = vunpack.c.l.b16 %v241
  %v498 = vunpack.c.l.b16 %v242
  %v499 = vunpack.c.l.b16 %v243
  %v500 = vunpack.c.l.b16 %v244
  %v501 = vunpack.c.l.b16 %v245
  %v502 = vunpack.c.l.b16 %v246
  %v503 = vunpack.c.l.b16 %v247
  %v504 = vunpack.c.l.b16 %v248
  %v505 = vunpack.c.l.b16 %v249
  %v506 = vunpack.c.l.b16 %v250
  %v507 = vunpack.c.l.b16 %v251
  %v508 = vunpack.c.l.b16 %v252
  %v509 = vunpack.c.l.b16 %v253
  %v510 = vunpack.c.l.b16 %v254
  %v511 = vunpack.c.l.b16 %v255
  %v512 = vunpack.c.l.b16 %v256
  %v513 = vunpack.c.l.b16 %v257
  %v514 = vunpack.c.l.b16 %v258
  %v515 = vunpack.c.l.b16 %v259
  %v516 = vunpack.c.l.b16 %v260
  %v517 = vunpack.c.l.b16 %v261
  %v518 = vunpack.c.l.b16 %v262
  %v519 = vunpack.c.l.b16 %v263
  %v520 = vunpack.c.l.b16 %v264
  %v521 = vunpack.c.l.b16 %v265
  %v522 = vunpack.c.l.b16 %v266
  %v523 = vunpack.c.l.b16 %v267
  %v524 = vunpack.c.l.b16 %v268
  %v525 = vunpack.c.l.b16 %v269
  %v526 = vunpack.c.l.b16 %v270
  %v527 = vunpack.c.l.b16 %v271
  %v528 = vunpack.c.l.b16 %v272
  %v529 = vunpack.c.l.b16 %v273
  %v530 = vunpack.c.l.b16 %v274
  %v531 = vunpack.c.l.b16 %v275
  %v532 = vunpack.c.l.b16 %v276
  %v533 = vunpack.c.l.b16 %v277
  %v534 = vunpack.c.l.b16 %v278
  %v535 = vunpack.c.l.b16 %v279
  %v536 = vunpack.c.l.b16 %v280
  %v537 = vunpack.c.l.b16 %v281
  %v538 = vunpack.c.l.b16 %v282
  %v539 = vunpack.c.l.b16 %v283
  %v540 = vunpack.c.l.b16 %v284
  %v541 = vunpack.c.l.b16 %v285
  %v542 = vunpack.c.l.b16 %v286
  %v543 = vunpack.c.l.b16 %v287
  %v544 = vunpack.c.l.b16 %v288
  %v545 = vunpack.c.l.b16 %v289
  %v546 = vunpack.c.l.b16 %v290
  %v547 = vunpack.c.l.b16 %v291
  %v548 = vunpack.c.l.b16 %v292
  %v549 = vunpack.c.l.b16 %v293
  %v550 = vunpack.c.l.b16 %v294
  %v551 = vunpack.c.l.b16 %v295
  %v552 = vunpack.c.l.b16 %v296
  %v553 = vunpack.c.l.b16 %v297
  %v554 = vunpack.c.l.b16 %v298
  %v555 = vunpack.c.l.b16 %v299
  %v556 = vunpack.c.l.b16 %v300
  %v557 = vunpack.c.l.b16 %v301
  %v558 = vunpack.c.l.b16 %v302
  %v559 = vunpack.c.l.b16 %v303
  %v560 = vunpack.c.l.b16 %v304
  %v561 = vunpack.c.l.b16 %v305
  %v562 = vunpack.c.l.b16 %v306
  %v563 = vunpack.c.l.b16 %v307
  %v564 = vunpack.c.l.b16 %v308
  %v565 = vunpack.c.l.b16 %v309
  %v566 = vunpack.c.l.b16 %v310
  %v567 = vunpack.c.l.b16 %v311
  %v568 = vunpack.c.l.b16 %v312
  %v569 = vunpack.c.l.b16 %v313
  %v570 = vunpack.c.l.b16 %v314
  %v571 = vunpack.c.l.b16 %v315
  %v572 = vunpack.c.l.b16 %v316
  %v573 = vunpack.c.l.b16 %v317
  %v574 = vunpack.c.l.b16 %v318
  %v575 = vunpack.c.l.b16 %v319
  %v576 = vunpack.c.l.b16 %v320
  %v577 = vunpack.c.l.b16 %v321
  %v578 = vunpack.c.l.b16 %v322
  %v579 = vunpack.c.l.b16 %v323
  %v580 = vunpack.c.l.b16 %v324
  %v581 = vunpack.c.l.b16 %v325
  %v582 = vunpack.c.l.b16 %v326
  %v583 = vunpack.c.l.b16 %v327
  %v584 = vunpack.c.l.b16 %v328
  %v585 = vunpack.c.l.b16 %v329
  %v586 = vunpack.c.l.b16 %v330
  %v587 = vunpack.c.l.b16 %v331
  %v588 = vunpack.c.l.b16 %v332
  %v589 = vunpack.c.l.b16 %v333
  %v590 = vunpack.c.l.b16 %v334
  %v591 = vunpack.c.l.b16 %v335
  %v592 = vunpack.c.l.b16 %v336
  %v593 = vunpack.c.l.b16 %v337
  %v594 = vunpack.c.l.b16 %v338
  %v595 = vunpack.c.l.b16 %v339
  %v596 = vunpack.c.l.b16 %v340
  %v597 = vunpack.c.l.b16 %v341
  %v598 = vpack.c.b16 %v471, %v470
  %v599 = vpack.c.b16 %v473, %v472
  %v600 = vpack.c.b16 %v475, %v474
  %v601 = vpack.c.b16 %v477, %v476
  %v602 = vpack.c.b16 %v479, %v478
  %v603 = vpack.c.b16 %v481, %v480
  %v604 = vpack.c.b16 %v483, %v482
  %v605 = vpack.c.b16 %v485, %v484
  %v606 = vpack.c.b16 %v487, %v486
  %v607 = vpack.c.b16 %v489, %v488
  %v608 = vpack.c.b16 %v491, %v490
  %v609 = vpack.c.b16 %v493, %v492
  %v610 = vpack.c.b16 %v495, %v494
  %v611 = vpack.c.b16 %v497, %v496
  %v612 = vpack.c.b16 %v499, %v498
  %v613 = vpack.c.b16 %v501, %v500
  %v614 = vpack.c.b16 %v503, %v502
  %v615 = vpack.c.b16 %v505, %v504
  %v616 = vpack.c.b16 %v507, %v506
  %v617 = vpack.c.b16 %v509, %v508
  %v618 = vpack.c.b16 %v511, %v510
  %v619 = vpack.c.b16 %v513, %v512
  %v620 = vpack.c.b16 %v515, %v514
  %v621 = vpack.c.b16 %v517, %v516
  %v622 = vpack.c.b16 %v519, %v518
  %v623 = vpack.c.b16 %v521, %v520
  %v624 = vpack.c.b16 %v523, %v522
  %v625 = vpack.c.b16 %v525, %v524
  %v626 = vpack.c.b16 %v527, %v526
  %v627 = vpack.c.b16 %v529, %v528
  %v628 = vpack.c.b16 %v531, %v530
  %v629 = vpack.c.b16 %v533, %v532
  %v630 = vpack.c.b16 %v535, %v534
  %v631 = vpack.c.b16 %v537, %v536
  %v632 = vpack.c.b16 %v539, %v538
  %v633 = vpack.c.b16 %v541, %v540
  %v634 = vpack.c.b16 %v543, %v542
  %v635 = vpack.c.b16 %v545, %v544
  %v636 = vpack.c.b16 %v547, %v546
  %v637 = vpack.c.b16 %v549, %v548
  %v638 = vpack.c.b16 %v551, %v550
  %v639 = vpack.c.b16 %v553, %v552
  %v640 = vpack.c.b16 %v555, %v554
  %v641 = vpack.c.b16 %v557, %v556
  %v642 = vpack.c.b16 %v559, %v558
  %v643 = vpack.c.b16 %v561, %v560
  %v644 = vpack.c.b16 %v563, %v562
  %v645 = vpack.c.b16 %v565, %v564
  %v646 = vpack.c.b16 %v567, %v566
  %v647 = vpack.c.b16 %v569, %v568
  %v648 = vpack.c.b16 %v571, %v570
  %v649 = vpack.c.b16 %v573, %v572
  %v650 = vpack.c.b16 %v575, %v574
  %v651 = vpack.c.b16 %v577, %v576
  %v652 = vpack.c.b16 %v579, %v578
  %v653 = vpack.c.b16 %v581, %v580
  %v654 = vpack.c.b16 %v583, %v582
  %v655 = vpack.c.b16 %v585, %v584
  %v656 = vpack.c.b16 %v587, %v586
  %v657 = vpack.c.b16 %v589, %v588
  %v658 = vpack.c.b16 %v591, %v590
  %v659 = vpack.c.b16 %v593, %v592
  %v660 = vpack.c.b16 %v595, %v594
  %v661 = vpack.c.b16 %v597, %v596
  %726 = vmatprep.subr.bf16.mxu0 0
  %727 = vmatpush1.bf16.msra.mxu0 %v605
  %728 = vmatprep.subr.bf16.mxu0 0
  %729 = vmatpush1.bf16.msra.mxu0 %v604
  %730 = vmatprep.subr.bf16.mxu0 0
  %731 = vmatpush1.bf16.msra.mxu0 %v603
  %732 = vmatprep.subr.bf16.mxu0 0
  %733 = vmatpush1.bf16.msra.mxu0 %v602
  %734 = vmatprep.subr.bf16.mxu0 0
  %735 = vmatpush1.bf16.msra.mxu0 %v601
  %736 = vmatprep.subr.bf16.mxu0 0
  %737 = vmatpush1.bf16.msra.mxu0 %v600
  %738 = vmatprep.subr.bf16.mxu0 0
  %739 = vmatpush1.bf16.msra.mxu0 %v599
  %740 = vmatprep.subr.bf16.mxu0 0
  %741 = vmatpush1.bf16.msra.mxu0 %v598
  %742 = vmatprep.subr.bf16.mxu0 0
  %743 = vmatpush2.bf16.msra.mxu0 %v613
  %744 = vmatprep.subr.bf16.mxu0 0
  %745 = vmatpush2.bf16.msra.mxu0 %v612
  %746 = vmatprep.subr.bf16.mxu0 0
  %747 = vmatpush2.bf16.msra.mxu0 %v611
  %748 = vmatprep.subr.bf16.mxu0 0
  %749 = vmatpush2.bf16.msra.mxu0 %v610
  %750 = vmatprep.subr.bf16.mxu0 0
  %751 = vmatpush2.bf16.msra.mxu0 %v609
  %752 = vmatprep.subr.bf16.mxu0 0
  %753 = vmatpush2.bf16.msra.mxu0 %v608
  %754 = vmatprep.subr.bf16.mxu0 0
  %755 = vmatpush2.bf16.msra.mxu0 %v607
  %756 = vmatprep.subr.bf16.mxu0 0
  %757 = vmatpush2.bf16.msra.mxu0 %v606
  %758 = vmatprep.mubr.bf16.mxu0 %v207
  %759 = vmatmul.mubr.bf16.gmra.mxu0 %v206
  %v760 = vpop.f32.mrf.mxu0
  %v761 = vadd.f32 0.0, %v760
  %v762 = vpop.f32.mrf.mxu0
  %v763 = vpop.f32.mrf.mxu0
  %v764 = vadd.f32 0.0, %v763
  %v765 = vpop.f32.mrf.mxu0
  %766 = vdwg.mxu0
  %767 = vmatprep.subr.bf16.mxu0 0
  %768 = vmatpush1.bf16.msra.mxu0 %v621
  %769 = vmatprep.subr.bf16.mxu0 0
  %770 = vmatpush1.bf16.msra.mxu0 %v620
  %771 = vmatprep.subr.bf16.mxu0 0
  %772 = vmatpush1.bf16.msra.mxu0 %v619
  %773 = vmatprep.subr.bf16.mxu0 0
  %774 = vmatpush1.bf16.msra.mxu0 %v618
  %775 = vmatprep.subr.bf16.mxu0 0
  %776 = vmatpush1.bf16.msra.mxu0 %v617
  %777 = vmatprep.subr.bf16.mxu0 0
  %778 = vmatpush1.bf16.msra.mxu0 %v616
  %779 = vmatprep.subr.bf16.mxu0 0
  %780 = vmatpush1.bf16.msra.mxu0 %v615
  %781 = vmatprep.subr.bf16.mxu0 0
  %782 = vmatpush1.bf16.msra.mxu0 %v614
  %783 = vmatprep.subr.bf16.mxu0 0
  %784 = vmatpush2.bf16.msra.mxu0 %v629
  %785 = vmatprep.subr.bf16.mxu0 0
  %786 = vmatpush2.bf16.msra.mxu0 %v628
  %787 = vmatprep.subr.bf16.mxu0 0
  %788 = vmatpush2.bf16.msra.mxu0 %v627
  %789 = vmatprep.subr.bf16.mxu0 0
  %790 = vmatpush2.bf16.msra.mxu0 %v626
  %791 = vmatprep.subr.bf16.mxu0 0
  %792 = vmatpush2.bf16.msra.mxu0 %v625
  %793 = vmatprep.subr.bf16.mxu0 0
  %794 = vmatpush2.bf16.msra.mxu0 %v624
  %795 = vmatprep.subr.bf16.mxu0 0
  %796 = vmatpush2.bf16.msra.mxu0 %v623
  %797 = vmatprep.subr.bf16.mxu0 0
  %798 = vmatpush2.bf16.msra.mxu0 %v622
  %799 = vmatprep.mubr.bf16.mxu0 %v209
  %800 = vmatmul.mubr.bf16.gmra.mxu0 %v208
  %v801 = vpop.f32.mrf.mxu0
  %v802 = vadd.f32 %v761, %v801
  %v803 = vpop.f32.mrf.mxu0
  %v804 = vpop.f32.mrf.mxu0
  %v805 = vadd.f32 %v764, %v804
  %v806 = vpop.f32.mrf.mxu0
  %807 = vdwg.mxu0
  %808 = vmatprep.subr.bf16.mxu0 0
  %809 = vmatpush1.bf16.msra.mxu0 %v637
  %810 = vmatprep.subr.bf16.mxu0 0
  %811 = vmatpush1.bf16.msra.mxu0 %v636
  %812 = vmatprep.subr.bf16.mxu0 0
  %813 = vmatpush1.bf16.msra.mxu0 %v635
  %814 = vmatprep.subr.bf16.mxu0 0
  %815 = vmatpush1.bf16.msra.mxu0 %v634
  %816 = vmatprep.subr.bf16.mxu0 0
  %817 = vmatpush1.bf16.msra.mxu0 %v633
  %818 = vmatprep.subr.bf16.mxu0 0
  %819 = vmatpush1.bf16.msra.mxu0 %v632
  %820 = vmatprep.subr.bf16.mxu0 0
  %821 = vmatpush1.bf16.msra.mxu0 %v631
  %822 = vmatprep.subr.bf16.mxu0 0
  %823 = vmatpush1.bf16.msra.mxu0 %v630
  %824 = vmatprep.subr.bf16.mxu0 0
  %825 = vmatpush2.bf16.msra.mxu0 %v645
  %826 = vmatprep.subr.bf16.mxu0 0
  %827 = vmatpush2.bf16.msra.mxu0 %v644
  %828 = vmatprep.subr.bf16.mxu0 0
  %829 = vmatpush2.bf16.msra.mxu0 %v643
  %830 = vmatprep.subr.bf16.mxu0 0
  %831 = vmatpush2.bf16.msra.mxu0 %v642
  %832 = vmatprep.subr.bf16.mxu0 0
  %833 = vmatpush2.bf16.msra.mxu0 %v641
  %834 = vmatprep.subr.bf16.mxu0 0
  %835 = vmatpush2.bf16.msra.mxu0 %v640
  %836 = vmatprep.subr.bf16.mxu0 0
  %837 = vmatpush2.bf16.msra.mxu0 %v639
  %838 = vmatprep.subr.bf16.mxu0 0
  %839 = vmatpush2.bf16.msra.mxu0 %v638
  %840 = vmatprep.mubr.bf16.mxu0 %v211
  %841 = vmatmul.mubr.bf16.gmra.mxu0 %v210
  %v842 = vpop.f32.mrf.mxu0
  %v843 = vadd.f32 %v802, %v842
  %v844 = vpop.f32.mrf.mxu0
  %v845 = vpop.f32.mrf.mxu0
  %v846 = vadd.f32 %v805, %v845
  %v847 = vpop.f32.mrf.mxu0
  %848 = vdwg.mxu0
  %849 = vmatprep.subr.bf16.mxu0 0
  %850 = vmatpush1.bf16.msra.mxu0 %v653
  %851 = vmatprep.subr.bf16.mxu0 0
  %852 = vmatpush1.bf16.msra.mxu0 %v652
  %853 = vmatprep.subr.bf16.mxu0 0
  %854 = vmatpush1.bf16.msra.mxu0 %v651
  %855 = vmatprep.subr.bf16.mxu0 0
  %856 = vmatpush1.bf16.msra.mxu0 %v650
  %857 = vmatprep.subr.bf16.mxu0 0
  %858 = vmatpush1.bf16.msra.mxu0 %v649
  %859 = vmatprep.subr.bf16.mxu0 0
  %860 = vmatpush1.bf16.msra.mxu0 %v648
  %861 = vmatprep.subr.bf16.mxu0 0
  %862 = vmatpush1.bf16.msra.mxu0 %v647
  %863 = vmatprep.subr.bf16.mxu0 0
  %864 = vmatpush1.bf16.msra.mxu0 %v646
  %865 = vmatprep.subr.bf16.mxu0 0
  %866 = vmatpush2.bf16.msra.mxu0 %v661
  %867 = vmatprep.subr.bf16.mxu0 0
  %868 = vmatpush2.bf16.msra.mxu0 %v660
  %869 = vmatprep.subr.bf16.mxu0 0
  %870 = vmatpush2.bf16.msra.mxu0 %v659
  %871 = vmatprep.subr.bf16.mxu0 0
  %872 = vmatpush2.bf16.msra.mxu0 %v658
  %873 = vmatprep.subr.bf16.mxu0 0
  %874 = vmatpush2.bf16.msra.mxu0 %v657
  %875 = vmatprep.subr.bf16.mxu0 0
  %876 = vmatpush2.bf16.msra.mxu0 %v656
  %877 = vmatprep.subr.bf16.mxu0 0
  %878 = vmatpush2.bf16.msra.mxu0 %v655
  %879 = vmatprep.subr.bf16.mxu0 0
  %880 = vmatpush2.bf16.msra.mxu0 %v654
  %881 = vmatprep.mubr.bf16.mxu0 %v213
  %882 = vmatmul.mubr.bf16.gmra.mxu0 %v212
  %v883 = vpop.f32.mrf.mxu0
  %v884 = vadd.f32 %v843, %v883
  %v885 = vpop.f32.mrf.mxu0
  %v886 = vpop.f32.mrf.mxu0
  %v887 = vadd.f32 %v846, %v886
  %v888 = vpop.f32.mrf.mxu0
  %889 = vdwg.mxu0
  %v890 = vpack.c.bf16 %v887, %v884
  %v892 = vunpack.c.l.b16 %v890
  %v893 = vunpack.c.h.b16 %v890
  %v894 = vpack.c.b16 %v892, %v892
  %v895 = vpack.c.b16 %v893, %v893
  %898 = vst [vmem:[%s4] sm:$0xf] %v894
  %899 = vst [vmem:[%s4 + $0x4] sm:$0xf] %v895
  // Predicated region
  $region18: #{_lambda_.14} parent=0 // pred_check
    _
  $region19: #{_lambda_.14} parent=0 // pred_check_branch
    %901 = sbr.rel (0) target = $region21
  $region20: #{_lambda_.14} parent=0 // pred_region
    _
  $region21: #{_lambda_.14} parent=0 // pred_fallthru
    _
  // Predicated region
  $region22: #{_lambda_.14} parent=0 // pred_check
    _
  $region23: #{_lambda_.14} parent=0 // pred_check_branch
    %903 = sbr.rel (0) target = $region25
  $region24: #{_lambda_.14} parent=0 // pred_region
    _
  $region25: #{_lambda_.14} parent=0 // pred_fallthru
    _

// kernel: tile.118
$region0: #{tile.118}
  %s0 = inlined_call_operand.vmem [shape: f32[4,64], index: 0, kind: input, shape index: {}]
  %s1 = inlined_call_operand.vmem [shape: f32[1,256], index: 1, kind: output, shape index: {}]
  $region1: #{tile.118} parent=0
    #allocation0 [shape = 'u8[8192]{0}', space=vmem, size = 0x2000, scoped, tag = 'scoped mem for output reshape']
    #allocation1 [shape = 'u8[4096]{0}', space=vmem, size = 0x1000, scoped, tag = 'scoped mem for input reshape']
    %s3 = sshll.u32 1, 4
    %s4 = ssub.s32 %s3, 1
    %v5 = vld [vmem:[%s0] sm:%s4]
    %6 = vst [vmem:[#allocation1] sm:%s4] %v5
    %s7 = smov 3
    %v8 = vld [vmem:[#allocation1] ss:$2 sm:%s7]
    %vm9 = vcmask 523264
    %10 = vst.msk [vmem:[#allocation0] ss:$8 sm:$0x3] %vm9, %v8
    %s11 = scalar_lea.vmem [#allocation1], 1
    %s12 = smov 3
    %v13 = vld [vmem:[%s11] ss:$2 sm:%s12]
    %14 = vrot.lane.b32.xlu0 %v13, 64
    %v15 = vpop.permute.xlu0 %14
    %vm16 = vcmask 1048064
    %17 = vst.msk [vmem:[#allocation0] ss:$8 sm:$0x3] %vm16, %v15
    %s19 = sshll.u32 1, 1
    %s20 = ssub.s32 %s19, 1
    %v22 = vld [vmem:[#allocation0] sm:%s20]
    %s23 = sshll.u32 1, 1
    %s24 = ssub.s32 %s23, 1
    %25 = vst [vmem:[%s1] sm:%s24] %v22
    %s26 = scalar_lea.vmem [#allocation0], 8
    %v27 = vld [vmem:[%s26] sm:%s20]
    %s28 = sshll.u32 1, 1
    %s29 = ssub.s32 %s28, 1
    %s30 = scalar_lea.vmem %s1, 1
    %31 = vst [vmem:[%s30] sm:%s29] %v27

// kernel: _lambda_.16
$region0: #{_lambda_.16}
  #allocation0 [shape = 'u32[]', space=smem, size = 0x4, offset = 0x4, fixed_abs, tag = 'smem constant byte address 0x4 - core index']
  #allocation1 [shape = 'u32[144,128]{1,0:T(1,128)}', space=vmem, size = 0x12000, scoped, tag = 'internal scratch']
  %s0 = inlined_call_operand.vmem [shape: bf16[4,16,512], index: 0, kind: input, shape index: {}]
  %s1 = inlined_call_operand.vmem [shape: bf16[4,512,128], index: 1, kind: input, shape index: {}]
  %s2 = inlined_call_operand.vmem [shape: f32[1,512], index: 2, kind: input, shape index: {}]
  %s3 = inlined_call_operand.vmem [shape: f32[1,512], index: 3, kind: input, shape index: {}]
  %s4 = inlined_call_operand.vmem [shape: bf16[4,16,128], index: 4, kind: output, shape index: {0}]
  %s5 = inlined_call_operand.vmem [shape: f32[4,1,2,128], index: 5, kind: output, shape index: {1}]
  %6 = xla_tuple %s4, %s5
  %s7 = sld [smem:[#allocation0]]
  $region57: #{_lambda_.16} parent=0
    _
  %s9 = ssub.s32 1, %s7
  %s10 = scalar_select 0, %s9, %s7
  loop: start=0, step=1, limit=6
  $region2: #{_lambda_.16} parent=0 // loop_pre_header
    _
  $region3: #{_lambda_.16} parent=0 // loop_header
    %s12 = sphi 0, %s16
    %p13 = scmp.ge.s32.totalorder %s12, 6
    %s19 = sphi 0, %s38
    %s20 = sphi 0, %s34
    %s21 = sphi 0, %s30
    %s22 = sphi 0, %s19
    %s23 = sphi 0, %s20
    %s24 = sphi 0, %s21
    %s25 = sphi 0, %s22
    %s26 = sphi 0, %s23
    %s27 = sphi 0, %s24
    %s43 = sphi 0, %s45
    %s46 = sphi 0, %s43
    %s47 = sphi 0, %s46
    %s63 = sphi 0, %s47
    %s71 = sphi 0, %s73
    %s74 = sphi 0, %s71
    %s75 = sphi 0, %s74
    %s91 = sphi 0, %s75
    %s95 = sphi 0, %s95
    %s97 = sphi 0, %s95
    %s98 = sphi 0, %s97
    %s112 = sphi 0, %s98
    %s116 = sphi 0, %s116
    %s118 = sphi 0, %s116
    %s119 = sphi 0, %s118
    %s133 = sphi 0, %s119
    %s143 = sphi 0, %s145
    %s146 = sphi 0, %s143
    %s147 = sphi 0, %s146
    %s163 = sphi 0, %s147
    %s173 = sphi 0, %s175
    %s176 = sphi 0, %s173
    %s177 = sphi 0, %s176
    %s193 = sphi 0, %s177
  $region4: #{_lambda_.16} parent=0 // loop_header_branch
    %15 = sbr.rel (%p13) target = $region8
  $region5: #{_lambda_.16} parent=0 // loop_body
    %s17 = ssub.s32 %s12, 1
    %s18 = ssub.s32 %s12, 2
    %s28 = sadd.s32 1, %s21
    %p29 = scmp.ge.s32.totalorder %s28, 1
    %s30 = scalar_select %p29, 0, %s28
    %s31 = sadd.s32 1, %s20
    %s32 = scalar_select %p29, %s31, %s20
    %p33 = scmp.ge.s32.totalorder %s32, 1
    %s34 = scalar_select %p33, 0, %s32
    %s35 = sadd.s32 1, %s19
    %s36 = scalar_select %p33, %s35, %s19
    %p37 = scmp.ge.s32.totalorder %s36, 4
    %s38 = scalar_select %p37, 0, %s36
    %s39 = ssub.s32 %s19, %s38
    %s40 = ssub.s32 %s20, %s34
    %s41 = sor.u32 %s39, %s40
    %p42 = scmp.eq.s32.totalorder %s41, 0
    %s44 = sadd.s32 %s43, 1
    %s45 = scalar_select %p42, %s43, %s44
    %p48 = pneg %p42
    %p49 = scmp.eq.s32.totalorder %s12, 3
    %p50 = por %p48, %p49
    %p51 = scmp.ne.s32.totalorder %s43, %s46
    %p52 = scmp.eq.s32.totalorder %s12, 0
    %p53 = por %p51, %p52
    %p54 = scmp.ne.s32.totalorder %s43, %s46
    %p55 = scmp.eq.s32.totalorder %s17, 3
    %p56 = por %p54, %p55
    %p57 = scmp.ne.s32.totalorder %s46, %s47
    %p58 = scmp.eq.s32.totalorder %s17, 0
    %p59 = por %p57, %p58
    %p60 = scmp.ne.s32.totalorder %s46, %s47
    %p61 = scmp.eq.s32.totalorder %s18, 3
    %p62 = por %p60, %p61
    %p64 = scmp.ne.s32.totalorder %s47, %s63
    %p65 = scmp.eq.s32.totalorder %s18, 0
    %p66 = por %p64, %p65
    %s67 = ssub.s32 %s19, %s38
    %s68 = ssub.s32 %s21, %s30
    %s69 = sor.u32 %s67, %s68
    %p70 = scmp.eq.s32.totalorder %s69, 0
    %s72 = sadd.s32 %s71, 1
    %s73 = scalar_select %p70, %s71, %s72
    %p76 = pneg %p70
    %p77 = scmp.eq.s32.totalorder %s12, 3
    %p78 = por %p76, %p77
    %p79 = scmp.ne.s32.totalorder %s71, %s74
    %p80 = scmp.eq.s32.totalorder %s12, 0
    %p81 = por %p79, %p80
    %p82 = scmp.ne.s32.totalorder %s71, %s74
    %p83 = scmp.eq.s32.totalorder %s17, 3
    %p84 = por %p82, %p83
    %p85 = scmp.ne.s32.totalorder %s74, %s75
    %p86 = scmp.eq.s32.totalorder %s17, 0
    %p87 = por %p85, %p86
    %p88 = scmp.ne.s32.totalorder %s74, %s75
    %p89 = scmp.eq.s32.totalorder %s18, 3
    %p90 = por %p88, %p89
    %p92 = scmp.ne.s32.totalorder %s75, %s91
    %p93 = scmp.eq.s32.totalorder %s18, 0
    %p94 = por %p92, %p93
    %s96 = sadd.s32 %s95, 1
    %p99 = scmp.eq.s32.totalorder %s12, 3
    %p100 = scmp.ne.s32.totalorder %s95, %s97
    %p101 = scmp.eq.s32.totalorder %s12, 0
    %p102 = por %p100, %p101
    %p103 = scmp.ne.s32.totalorder %s95, %s97
    %p104 = scmp.eq.s32.totalorder %s17, 3
    %p105 = por %p103, %p104
    %p106 = scmp.ne.s32.totalorder %s97, %s98
    %p107 = scmp.eq.s32.totalorder %s17, 0
    %p108 = por %p106, %p107
    %p109 = scmp.ne.s32.totalorder %s97, %s98
    %p110 = scmp.eq.s32.totalorder %s18, 3
    %p111 = por %p109, %p110
    %p113 = scmp.ne.s32.totalorder %s98, %s112
    %p114 = scmp.eq.s32.totalorder %s18, 0
    %p115 = por %p113, %p114
    %s117 = sadd.s32 %s116, 1
    %p120 = scmp.eq.s32.totalorder %s12, 3
    %p121 = scmp.ne.s32.totalorder %s116, %s118
    %p122 = scmp.eq.s32.totalorder %s12, 0
    %p123 = por %p121, %p122
    %p124 = scmp.ne.s32.totalorder %s116, %s118
    %p125 = scmp.eq.s32.totalorder %s17, 3
    %p126 = por %p124, %p125
    %p127 = scmp.ne.s32.totalorder %s118, %s119
    %p128 = scmp.eq.s32.totalorder %s17, 0
    %p129 = por %p127, %p128
    %p130 = scmp.ne.s32.totalorder %s118, %s119
    %p131 = scmp.eq.s32.totalorder %s18, 3
    %p132 = por %p130, %p131
    %p134 = scmp.ne.s32.totalorder %s119, %s133
    %p135 = scmp.eq.s32.totalorder %s18, 0
    %p136 = por %p134, %p135
    %s137 = ssub.s32 %s19, %s38
    %s138 = ssub.s32 %s20, %s34
    %s139 = sor.u32 %s137, %s138
    %s140 = ssub.s32 %s21, %s30
    %s141 = sor.u32 %s139, %s140
    %p142 = scmp.eq.s32.totalorder %s141, 0
    %s144 = sadd.s32 %s143, 1
    %s145 = scalar_select %p142, %s143, %s144
    %p148 = pneg %p142
    %p149 = scmp.eq.s32.totalorder %s12, 3
    %p150 = por %p148, %p149
    %p151 = scmp.ne.s32.totalorder %s143, %s146
    %p152 = scmp.eq.s32.totalorder %s12, 0
    %p153 = por %p151, %p152
    %p154 = scmp.ne.s32.totalorder %s143, %s146
    %p155 = scmp.eq.s32.totalorder %s17, 3
    %p156 = por %p154, %p155
    %p157 = scmp.ne.s32.totalorder %s146, %s147
    %p158 = scmp.eq.s32.totalorder %s17, 0
    %p159 = por %p157, %p158
    %p160 = scmp.ne.s32.totalorder %s146, %s147
    %p161 = scmp.eq.s32.totalorder %s18, 3
    %p162 = por %p160, %p161
    %p164 = scmp.ne.s32.totalorder %s147, %s163
    %p165 = scmp.eq.s32.totalorder %s18, 0
    %p166 = por %p164, %p165
    %s167 = ssub.s32 %s19, %s38
    %s168 = ssub.s32 %s20, %s34
    %s169 = sor.u32 %s167, %s168
    %s170 = ssub.s32 %s21, %s30
    %s171 = sor.u32 %s169, %s170
    %p172 = scmp.eq.s32.totalorder %s171, 0
    %s174 = sadd.s32 %s173, 1
    %s175 = scalar_select %p172, %s173, %s174
    %p178 = pneg %p172
    %p179 = scmp.eq.s32.totalorder %s12, 3
    %p180 = por %p178, %p179
    %p181 = scmp.ne.s32.totalorder %s173, %s176
    %p182 = scmp.eq.s32.totalorder %s12, 0
    %p183 = por %p181, %p182
    %p184 = scmp.ne.s32.totalorder %s173, %s176
    %p185 = scmp.eq.s32.totalorder %s17, 3
    %p186 = por %p184, %p185
    %p187 = scmp.ne.s32.totalorder %s176, %s177
    %p188 = scmp.eq.s32.totalorder %s17, 0
    %p189 = por %p187, %p188
    %p190 = scmp.ne.s32.totalorder %s176, %s177
    %p191 = scmp.eq.s32.totalorder %s18, 3
    %p192 = por %p190, %p191
    %p194 = scmp.ne.s32.totalorder %s177, %s193
    %p195 = scmp.eq.s32.totalorder %s18, 0
    %p196 = por %p194, %p195
    %p197 = scmp.le.s32.totalorder 1, %s12
    %p198 = scmp.lt.s32.totalorder %s12, 5
    %p199 = pnand %p197, %p198
    %p200 = pneg %p199
    // Predicated region
    $region9: #{_lambda_.16} parent=5 // pred_check
      _
    $region10: #{_lambda_.16} parent=5 // pred_check_branch
      %202 = sbr.rel (%p199) target = $region12
    $region11: #{_lambda_.16} parent=5 // pred_region
      %s203 = ssub.s32 %s12, 1
      // Predicated region
      $region13: #{_lambda_.16} parent=11 // pred_check
        %p204 = pneg %p108
      $region14: #{_lambda_.16} parent=11 // pred_check_branch
        %206 = sbr.rel (%p204) target = $region16
      $region15: #{_lambda_.16} parent=11 // pred_region
        _
      $region16: #{_lambda_.16} parent=11 // pred_fallthru
        _
      // Predicated region
      $region17: #{_lambda_.16} parent=11 // pred_check
        %p207 = pneg %p129
      $region18: #{_lambda_.16} parent=11 // pred_check_branch
        %209 = sbr.rel (%p207) target = $region20
      $region19: #{_lambda_.16} parent=11 // pred_region
        _
      $region20: #{_lambda_.16} parent=11 // pred_fallthru
        _
    $region12: #{_lambda_.16} parent=5 // pred_fallthru
      _
    %p210 = scmp.lt.s32.totalorder %s12, 4
    // Predicated region
    $region21: #{_lambda_.16} parent=5 // pred_check
      %p211 = pneg %p210
    $region22: #{_lambda_.16} parent=5 // pred_check_branch
      %213 = sbr.rel (%p211) target = $region24
    $region23: #{_lambda_.16} parent=5 // pred_region
      // Predicated region
      $region25: #{_lambda_.16} parent=23 // pred_check
        %p214 = pneg %p53
      $region26: #{_lambda_.16} parent=23 // pred_check_branch
        %216 = sbr.rel (%p214) target = $region28
      $region27: #{_lambda_.16} parent=23 // pred_region
        %s217 = smul.u32 2, %s20
        %p218 = scmp.lt.s32.totalorder %s19, 3
        %s219 = scalar_select %p218, %s19, 3
        %p220 = scmp.lt.s32.totalorder %s217, 1
        %s221 = scalar_select %p220, %s217, 1
        %s222 = smul.addr %s221, 4
        %s223 = smul.addr %s219, 8
        %s224 = sadd.s32 %s222, %s223
        %s225 = smul.addr %s224, 4
        %s226 = scalar_lea.vmem %s0, %s225
        %s227 = smul.u32 2, %s20
      $region28: #{_lambda_.16} parent=23 // pred_fallthru
        _
      // Predicated region
      $region29: #{_lambda_.16} parent=23 // pred_check
        %p228 = pneg %p81
      $region30: #{_lambda_.16} parent=23 // pred_check_branch
        %230 = sbr.rel (%p228) target = $region32
      $region31: #{_lambda_.16} parent=23 // pred_region
        %p231 = scmp.lt.s32.totalorder %s19, 3
        %s232 = scalar_select %p231, %s19, 3
        %p233 = scmp.lt.s32.totalorder %s21, 0
        %s234 = scalar_select %p233, %s21, 0
        %s235 = smul.addr %s232, 64
        %s236 = sadd.s32 %s234, %s235
        %s237 = smul.addr %s236, 4
        %s238 = scalar_lea.vmem %s1, %s237
      $region32: #{_lambda_.16} parent=23 // pred_fallthru
        _
    $region24: #{_lambda_.16} parent=5 // pred_fallthru
      _
    %p239 = scmp.le.s32.totalorder 1, %s12
    %p240 = scmp.lt.s32.totalorder %s12, 5
    %p241 = pnand %p239, %p240
    %p242 = pneg %p241
    // Predicated region
    $region33: #{_lambda_.16} parent=5 // pred_check
      _
    $region34: #{_lambda_.16} parent=5 // pred_check_branch
      %244 = sbr.rel (%p241) target = $region36
    $region35: #{_lambda_.16} parent=5 // pred_region
      %s245 = ssub.s32 %s12, 1
      %s246 = smul.u32 2, %s23
      %p247 = scmp.lt.s32.totalorder %s22, 3
      %s248 = scalar_select %p247, %s22, 3
      %p249 = scmp.lt.s32.totalorder %s246, 1
      %s250 = scalar_select %p249, %s246, 1
      %s251 = smul.addr %s250, 4
      %s252 = smul.addr %s248, 8
      %s253 = sadd.s32 %s251, %s252
      %s254 = smul.addr %s253, 4
      %s255 = scalar_lea.vmem %s0, %s254
      %p256 = pneg %p59
      %p257 = pneg %p56
      %p258 = scmp.lt.s32.totalorder %s22, 3
      %s259 = scalar_select %p258, %s22, 3
      %p260 = scmp.lt.s32.totalorder %s24, 0
      %s261 = scalar_select %p260, %s24, 0
      %s262 = smul.addr %s259, 64
      %s263 = sadd.s32 %s261, %s262
      %s264 = smul.addr %s263, 4
      %s265 = scalar_lea.vmem %s1, %s264
      %p266 = pneg %p87
      %p267 = pneg %p84
      %p268 = pneg %p108
      %p269 = pneg %p105
      %p270 = pneg %p129
      %p271 = pneg %p126
      %p272 = pneg %p159
      %p273 = pneg %p156
      %s274 = smul.u32 2, %s23
      %p275 = scmp.lt.s32.totalorder %s22, 3
      %s276 = scalar_select %p275, %s22, 3
      %p277 = scmp.lt.s32.totalorder %s274, 1
      %s278 = scalar_select %p277, %s274, 1
      %p279 = scmp.lt.s32.totalorder %s24, 0
      %s280 = scalar_select %p279, %s24, 0
      %s281 = sadd.s32 %s280, %s278
      %s282 = smul.addr %s276, 2
      %s283 = sadd.s32 %s281, %s282
      %s284 = smul.addr %s283, 4
      %s285 = scalar_lea.vmem %s4, %s284
      %p286 = pneg %p189
      %p287 = pneg %p186
      %p288 = scmp.lt.s32.totalorder %s22, 3
      %s289 = scalar_select %p288, %s22, 3
      %p290 = scmp.lt.s32.totalorder %s23, 0
      %s291 = scalar_select %p290, %s23, 0
      %p292 = scmp.lt.s32.totalorder %s24, 0
      %s293 = scalar_select %p292, %s24, 0
      %s294 = sadd.s32 %s293, %s291
      %s295 = sadd.s32 %s294, %s289
      %s296 = smul.addr %s295, 2
      %s297 = scalar_lea.vmem %s5, %s296
      %s298 = smul.u32 2, %s23
      %p299 = scmp.lt.s32.totalorder %s22, 3
      %s300 = scalar_select %p299, %s22, 3
      %p301 = scmp.lt.s32.totalorder %s298, 1
      %s302 = scalar_select %p301, %s298, 1
      %s303 = smul.addr %s302, 4
      %s304 = smul.addr %s300, 8
      %s305 = sadd.s32 %s303, %s304
      %s306 = smul.addr %s305, 4
      %s307 = scalar_lea.vmem %s0, %s306
      %s308 = smul.u32 2, %s23
      %p309 = scmp.lt.s32.totalorder %s22, 3
      %s310 = scalar_select %p309, %s22, 3
      %p311 = scmp.lt.s32.totalorder %s24, 0
      %s312 = scalar_select %p311, %s24, 0
      %s313 = smul.addr %s310, 64
      %s314 = sadd.s32 %s312, %s313
      %s315 = smul.addr %s314, 4
      %s316 = scalar_lea.vmem %s1, %s315
      %s317 = smul.u32 2, %s23
      %p318 = scmp.lt.s32.totalorder %s22, 3
      %s319 = scalar_select %p318, %s22, 3
      %p320 = scmp.lt.s32.totalorder %s317, 1
      %s321 = scalar_select %p320, %s317, 1
      %p322 = scmp.lt.s32.totalorder %s24, 0
      %s323 = scalar_select %p322, %s24, 0
      %s324 = sadd.s32 %s323, %s321
      %s325 = smul.addr %s319, 2
      %s326 = sadd.s32 %s324, %s325
      %s327 = smul.addr %s326, 4
      %s328 = scalar_lea.vmem %s4, %s327
      %s329 = smul.u32 2, %s23
      %p330 = scmp.lt.s32.totalorder %s22, 3
      %s331 = scalar_select %p330, %s22, 3
      %p332 = scmp.lt.s32.totalorder %s23, 0
      %s333 = scalar_select %p332, %s23, 0
      %p334 = scmp.lt.s32.totalorder %s24, 0
      %s335 = scalar_select %p334, %s24, 0
      %s336 = sadd.s32 %s335, %s333
      %s337 = sadd.s32 %s336, %s331
      %s338 = smul.addr %s337, 2
      %s339 = scalar_lea.vmem %s5, %s338
      %v341 = vld [vmem:[%s307] sm:$0xff]
      %v342 = vld [vmem:[%s307 + $0x8] sm:$0xff]
      %v343 = vld [vmem:[%s307 + $0x10] sm:$0xff]
      %v344 = vld [vmem:[%s307 + $0x18] sm:$0xff]
      %v345 = vunpack.c.l.bf16 %v341
      %v346 = vunpack.c.h.bf16 %v341
      %v347 = vunpack.c.l.bf16 %v342
      %v348 = vunpack.c.h.bf16 %v342
      %v349 = vunpack.c.l.bf16 %v343
      %v350 = vunpack.c.h.bf16 %v343
      %v351 = vunpack.c.l.bf16 %v344
      %v352 = vunpack.c.h.bf16 %v344
      %v353 = vld [vmem:[%s2] sm:$0xf]
      %v355 = vlaneseq
      %v356 = vshrl.u32 %v355, 7
      %v357 = vsub.s32 0, %v356
      %v358 = vrot.slane %v353, %v357
      %v359 = vlaneseq
      %v360 = vshrl.u32 %v359, 7
      %v361 = vsub.s32 1, %v360
      %v362 = vrot.slane %v353, %v361
      %v363 = vlaneseq
      %v364 = vshrl.u32 %v363, 7
      %v365 = vsub.s32 2, %v364
      %v366 = vrot.slane %v353, %v365
      %v367 = vlaneseq
      %v368 = vshrl.u32 %v367, 7
      %v369 = vsub.s32 3, %v368
      %v370 = vrot.slane %v353, %v369
      %v375 = vmul.f32 %v345, %v358
      %v376 = vmul.f32 %v346, %v362
      %v377 = vmul.f32 %v347, %v366
      %v378 = vmul.f32 %v348, %v370
      %v379 = vmul.f32 %v349, %v358
      %v380 = vmul.f32 %v350, %v362
      %v381 = vmul.f32 %v351, %v366
      %v382 = vmul.f32 %v352, %v370
      %v383 = vld [vmem:[%s3] sm:$0xf]
      %v385 = vlaneseq
      %v386 = vshrl.u32 %v385, 7
      %v387 = vsub.s32 0, %v386
      %v388 = vrot.slane %v383, %v387
      %v389 = vlaneseq
      %v390 = vshrl.u32 %v389, 7
      %v391 = vsub.s32 1, %v390
      %v392 = vrot.slane %v383, %v391
      %v393 = vlaneseq
      %v394 = vshrl.u32 %v393, 7
      %v395 = vsub.s32 2, %v394
      %v396 = vrot.slane %v383, %v395
      %v397 = vlaneseq
      %v398 = vshrl.u32 %v397, 7
      %v399 = vsub.s32 3, %v398
      %v400 = vrot.slane %v383, %v399
      %v405 = vadd.f32 %v375, %v388
      %v406 = vadd.f32 %v376, %v392
      %v407 = vadd.f32 %v377, %v396
      %v408 = vadd.f32 %v378, %v400
      %v409 = vadd.f32 %v379, %v388
      %v410 = vadd.f32 %v380, %v392
      %v411 = vadd.f32 %v381, %v396
      %v412 = vadd.f32 %v382, %v400
      %v413 = vmax.f32 %v405, 0.0
      %v414 = vmax.f32 %v406, 0.0
      %v415 = vmax.f32 %v407, 0.0
      %v416 = vmax.f32 %v408, 0.0
      %v417 = vmax.f32 %v409, 0.0
      %v418 = vmax.f32 %v410, 0.0
      %v419 = vmax.f32 %v411, 0.0
      %v420 = vmax.f32 %v412, 0.0
      %v421 = vpack.c.bf16 %v417, %v413
      %v422 = vpack.c.bf16 %v418, %v414
      %v423 = vpack.c.bf16 %v419, %v415
      %v424 = vpack.c.bf16 %v420, %v416
      %v425 = vld [vmem:[%s316] sm:$0xf]
      %v426 = vld [vmem:[%s316 + $0x4] sm:$0xf]
      %v427 = vld [vmem:[%s316 + $0x8] sm:$0xf]
      %v428 = vld [vmem:[%s316 + $0xc] sm:$0xf]
      %v429 = vld [vmem:[%s316 + $0x10] sm:$0xf]
      %v430 = vld [vmem:[%s316 + $0x14] sm:$0xf]
      %v431 = vld [vmem:[%s316 + $0x18] sm:$0xf]
      %v432 = vld [vmem:[%s316 + $0x1c] sm:$0xf]
      %v433 = vld [vmem:[%s316 + $0x20] sm:$0xf]
      %v434 = vld [vmem:[%s316 + $0x24] sm:$0xf]
      %v435 = vld [vmem:[%s316 + $0x28] sm:$0xf]
      %v436 = vld [vmem:[%s316 + $0x2c] sm:$0xf]
      %v437 = vld [vmem:[%s316 + $0x30] sm:$0xf]
      %v438 = vld [vmem:[%s316 + $0x34] sm:$0xf]
      %v439 = vld [vmem:[%s316 + $0x38] sm:$0xf]
      %v440 = vld [vmem:[%s316 + $0x3c] sm:$0xf]
      %v441 = vld [vmem:[%s316 + $0x40] sm:$0xf]
      %v442 = vld [vmem:[%s316 + $0x44] sm:$0xf]
      %v443 = vld [vmem:[%s316 + $0x48] sm:$0xf]
      %v444 = vld [vmem:[%s316 + $0x4c] sm:$0xf]
      %v445 = vld [vmem:[%s316 + $0x50] sm:$0xf]
      %v446 = vld [vmem:[%s316 + $0x54] sm:$0xf]
      %v447 = vld [vmem:[%s316 + $0x58] sm:$0xf]
      %v448 = vld [vmem:[%s316 + $0x5c] sm:$0xf]
      %v449 = vld [vmem:[%s316 + $0x60] sm:$0xf]
      %v450 = vld [vmem:[%s316 + $0x64] sm:$0xf]
      %v451 = vld [vmem:[%s316 + $0x68] sm:$0xf]
      %v452 = vld [vmem:[%s316 + $0x6c] sm:$0xf]
      %v453 = vld [vmem:[%s316 + $0x70] sm:$0xf]
      %v454 = vld [vmem:[%s316 + $0x74] sm:$0xf]
      %v455 = vld [vmem:[%s316 + $0x78] sm:$0xf]
      %v456 = vld [vmem:[%s316 + $0x7c] sm:$0xf]
      %v457 = vld [vmem:[%s316 + $0x80] sm:$0xf]
      %v458 = vld [vmem:[%s316 + $0x84] sm:$0xf]
      %v459 = vld [vmem:[%s316 + $0x88] sm:$0xf]
      %v460 = vld [vmem:[%s316 + $0x8c] sm:$0xf]
      %v461 = vld [vmem:[%s316 + $0x90] sm:$0xf]
      %v462 = vld [vmem:[%s316 + $0x94] sm:$0xf]
      %v463 = vld [vmem:[%s316 + $0x98] sm:$0xf]
      %v464 = vld [vmem:[%s316 + $0x9c] sm:$0xf]
      %v465 = vld [vmem:[%s316 + $0xa0] sm:$0xf]
      %v466 = vld [vmem:[%s316 + $0xa4] sm:$0xf]
      %v467 = vld [vmem:[%s316 + $0xa8] sm:$0xf]
      %v468 = vld [vmem:[%s316 + $0xac] sm:$0xf]
      %v469 = vld [vmem:[%s316 + $0xb0] sm:$0xf]
      %v470 = vld [vmem:[%s316 + $0xb4] sm:$0xf]
      %v471 = vld [vmem:[%s316 + $0xb8] sm:$0xf]
      %v472 = vld [vmem:[%s316 + $0xbc] sm:$0xf]
      %v473 = vld [vmem:[%s316 + $0xc0] sm:$0xf]
      %v474 = vld [vmem:[%s316 + $0xc4] sm:$0xf]
      %v475 = vld [vmem:[%s316 + $0xc8] sm:$0xf]
      %v476 = vld [vmem:[%s316 + $0xcc] sm:$0xf]
      %v477 = vld [vmem:[%s316 + $0xd0] sm:$0xf]
      %v478 = vld [vmem:[%s316 + $0xd4] sm:$0xf]
      %v479 = vld [vmem:[%s316 + $0xd8] sm:$0xf]
      %v480 = vld [vmem:[%s316 + $0xdc] sm:$0xf]
      %v481 = vld [vmem:[%s316 + $0xe0] sm:$0xf]
      %v482 = vld [vmem:[%s316 + $0xe4] sm:$0xf]
      %v483 = vld [vmem:[%s316 + $0xe8] sm:$0xf]
      %v484 = vld [vmem:[%s316 + $0xec] sm:$0xf]
      %v485 = vld [vmem:[%s316 + $0xf0] sm:$0xf]
      %v486 = vld [vmem:[%s316 + $0xf4] sm:$0xf]
      %v487 = vld [vmem:[%s316 + $0xf8] sm:$0xf]
      %v488 = vld [vmem:[%s316 + $0xfc] sm:$0xf]
      %v553 = vunpack.c.l.b16 %v425
      %v554 = vunpack.c.l.b16 %v426
      %v555 = vunpack.c.l.b16 %v427
      %v556 = vunpack.c.l.b16 %v428
      %v557 = vunpack.c.l.b16 %v429
      %v558 = vunpack.c.l.b16 %v430
      %v559 = vunpack.c.l.b16 %v431
      %v560 = vunpack.c.l.b16 %v432
      %v561 = vunpack.c.l.b16 %v433
      %v562 = vunpack.c.l.b16 %v434
      %v563 = vunpack.c.l.b16 %v435
      %v564 = vunpack.c.l.b16 %v436
      %v565 = vunpack.c.l.b16 %v437
      %v566 = vunpack.c.l.b16 %v438
      %v567 = vunpack.c.l.b16 %v439
      %v568 = vunpack.c.l.b16 %v440
      %v569 = vunpack.c.l.b16 %v441
      %v570 = vunpack.c.l.b16 %v442
      %v571 = vunpack.c.l.b16 %v443
      %v572 = vunpack.c.l.b16 %v444
      %v573 = vunpack.c.l.b16 %v445
      %v574 = vunpack.c.l.b16 %v446
      %v575 = vunpack.c.l.b16 %v447
      %v576 = vunpack.c.l.b16 %v448
      %v577 = vunpack.c.l.b16 %v449
      %v578 = vunpack.c.l.b16 %v450
      %v579 = vunpack.c.l.b16 %v451
      %v580 = vunpack.c.l.b16 %v452
      %v581 = vunpack.c.l.b16 %v453
      %v582 = vunpack.c.l.b16 %v454
      %v583 = vunpack.c.l.b16 %v455
      %v584 = vunpack.c.l.b16 %v456
      %v585 = vunpack.c.l.b16 %v457
      %v586 = vunpack.c.l.b16 %v458
      %v587 = vunpack.c.l.b16 %v459
      %v588 = vunpack.c.l.b16 %v460
      %v589 = vunpack.c.l.b16 %v461
      %v590 = vunpack.c.l.b16 %v462
      %v591 = vunpack.c.l.b16 %v463
      %v592 = vunpack.c.l.b16 %v464
      %v593 = vunpack.c.l.b16 %v465
      %v594 = vunpack.c.l.b16 %v466
      %v595 = vunpack.c.l.b16 %v467
      %v596 = vunpack.c.l.b16 %v468
      %v597 = vunpack.c.l.b16 %v469
      %v598 = vunpack.c.l.b16 %v470
      %v599 = vunpack.c.l.b16 %v471
      %v600 = vunpack.c.l.b16 %v472
      %v601 = vunpack.c.l.b16 %v473
      %v602 = vunpack.c.l.b16 %v474
      %v603 = vunpack.c.l.b16 %v475
      %v604 = vunpack.c.l.b16 %v476
      %v605 = vunpack.c.l.b16 %v477
      %v606 = vunpack.c.l.b16 %v478
      %v607 = vunpack.c.l.b16 %v479
      %v608 = vunpack.c.l.b16 %v480
      %v609 = vunpack.c.l.b16 %v481
      %v610 = vunpack.c.l.b16 %v482
      %v611 = vunpack.c.l.b16 %v483
      %v612 = vunpack.c.l.b16 %v484
      %v613 = vunpack.c.l.b16 %v485
      %v614 = vunpack.c.l.b16 %v486
      %v615 = vunpack.c.l.b16 %v487
      %v616 = vunpack.c.l.b16 %v488
      %v617 = vpack.c.b16 %v554, %v553
      %v618 = vpack.c.b16 %v556, %v555
      %v619 = vpack.c.b16 %v558, %v557
      %v620 = vpack.c.b16 %v560, %v559
      %v621 = vpack.c.b16 %v562, %v561
      %v622 = vpack.c.b16 %v564, %v563
      %v623 = vpack.c.b16 %v566, %v565
      %v624 = vpack.c.b16 %v568, %v567
      %v625 = vpack.c.b16 %v570, %v569
      %v626 = vpack.c.b16 %v572, %v571
      %v627 = vpack.c.b16 %v574, %v573
      %v628 = vpack.c.b16 %v576, %v575
      %v629 = vpack.c.b16 %v578, %v577
      %v630 = vpack.c.b16 %v580, %v579
      %v631 = vpack.c.b16 %v582, %v581
      %v632 = vpack.c.b16 %v584, %v583
      %v633 = vpack.c.b16 %v586, %v585
      %v634 = vpack.c.b16 %v588, %v587
      %v635 = vpack.c.b16 %v590, %v589
      %v636 = vpack.c.b16 %v592, %v591
      %v637 = vpack.c.b16 %v594, %v593
      %v638 = vpack.c.b16 %v596, %v595
      %v639 = vpack.c.b16 %v598, %v597
      %v640 = vpack.c.b16 %v600, %v599
      %v641 = vpack.c.b16 %v602, %v601
      %v642 = vpack.c.b16 %v604, %v603
      %v643 = vpack.c.b16 %v606, %v605
      %v644 = vpack.c.b16 %v608, %v607
      %v645 = vpack.c.b16 %v610, %v609
      %v646 = vpack.c.b16 %v612, %v611
      %v647 = vpack.c.b16 %v614, %v613
      %v648 = vpack.c.b16 %v616, %v615
      %681 = vmatprep.subr.bf16.mxu0 0
      %682 = vmatpush1.bf16.msra.mxu0 %v624
      %683 = vmatprep.subr.bf16.mxu0 0
      %684 = vmatpush1.bf16.msra.mxu0 %v623
      %685 = vmatprep.subr.bf16.mxu0 0
      %686 = vmatpush1.bf16.msra.mxu0 %v622
      %687 = vmatprep.subr.bf16.mxu0 0
      %688 = vmatpush1.bf16.msra.mxu0 %v621
      %689 = vmatprep.subr.bf16.mxu0 0
      %690 = vmatpush1.bf16.msra.mxu0 %v620
      %691 = vmatprep.subr.bf16.mxu0 0
      %692 = vmatpush1.bf16.msra.mxu0 %v619
      %693 = vmatprep.subr.bf16.mxu0 0
      %694 = vmatpush1.bf16.msra.mxu0 %v618
      %695 = vmatprep.subr.bf16.mxu0 0
      %696 = vmatpush1.bf16.msra.mxu0 %v617
      %697 = vmatprep.subr.bf16.mxu0 0
      %698 = vmatpush2.bf16.msra.mxu0 %v632
      %699 = vmatprep.subr.bf16.mxu0 0
      %700 = vmatpush2.bf16.msra.mxu0 %v631
      %701 = vmatprep.subr.bf16.mxu0 0
      %702 = vmatpush2.bf16.msra.mxu0 %v630
      %703 = vmatprep.subr.bf16.mxu0 0
      %704 = vmatpush2.bf16.msra.mxu0 %v629
      %705 = vmatprep.subr.bf16.mxu0 0
      %706 = vmatpush2.bf16.msra.mxu0 %v628
      %707 = vmatprep.subr.bf16.mxu0 0
      %708 = vmatpush2.bf16.msra.mxu0 %v627
      %709 = vmatprep.subr.bf16.mxu0 0
      %710 = vmatpush2.bf16.msra.mxu0 %v626
      %711 = vmatprep.subr.bf16.mxu0 0
      %712 = vmatpush2.bf16.msra.mxu0 %v625
      %713 = vmatprep.mubr.bf16.mxu0 %v422
      %714 = vmatmul.mubr.bf16.gmra.mxu0 %v421
      %v715 = vpop.f32.mrf.mxu0
      %v716 = vadd.f32 0.0, %v715
      %v717 = vpop.f32.mrf.mxu0
      %v718 = vpop.f32.mrf.mxu0
      %v719 = vadd.f32 0.0, %v718
      %v720 = vpop.f32.mrf.mxu0
      %721 = vdwg.mxu0
      %722 = vmatprep.subr.bf16.mxu0 0
      %723 = vmatpush1.bf16.msra.mxu0 %v640
      %724 = vmatprep.subr.bf16.mxu0 0
      %725 = vmatpush1.bf16.msra.mxu0 %v639
      %726 = vmatprep.subr.bf16.mxu0 0
      %727 = vmatpush1.bf16.msra.mxu0 %v638
      %728 = vmatprep.subr.bf16.mxu0 0
      %729 = vmatpush1.bf16.msra.mxu0 %v637
      %730 = vmatprep.subr.bf16.mxu0 0
      %731 = vmatpush1.bf16.msra.mxu0 %v636
      %732 = vmatprep.subr.bf16.mxu0 0
      %733 = vmatpush1.bf16.msra.mxu0 %v635
      %734 = vmatprep.subr.bf16.mxu0 0
      %735 = vmatpush1.bf16.msra.mxu0 %v634
      %736 = vmatprep.subr.bf16.mxu0 0
      %737 = vmatpush1.bf16.msra.mxu0 %v633
      %738 = vmatprep.subr.bf16.mxu0 0
      %739 = vmatpush2.bf16.msra.mxu0 %v648
      %740 = vmatprep.subr.bf16.mxu0 0
      %741 = vmatpush2.bf16.msra.mxu0 %v647
      %742 = vmatprep.subr.bf16.mxu0 0
      %743 = vmatpush2.bf16.msra.mxu0 %v646
      %744 = vmatprep.subr.bf16.mxu0 0
      %745 = vmatpush2.bf16.msra.mxu0 %v645
      %746 = vmatprep.subr.bf16.mxu0 0
      %747 = vmatpush2.bf16.msra.mxu0 %v644
      %748 = vmatprep.subr.bf16.mxu0 0
      %749 = vmatpush2.bf16.msra.mxu0 %v643
      %750 = vmatprep.subr.bf16.mxu0 0
      %751 = vmatpush2.bf16.msra.mxu0 %v642
      %752 = vmatprep.subr.bf16.mxu0 0
      %753 = vmatpush2.bf16.msra.mxu0 %v641
      %754 = vmatprep.mubr.bf16.mxu0 %v424
      %755 = vmatmul.mubr.bf16.gmra.mxu0 %v423
      %v756 = vpop.f32.mrf.mxu0
      %v757 = vadd.f32 %v716, %v756
      %v758 = vpop.f32.mrf.mxu0
      %v759 = vpop.f32.mrf.mxu0
      %v760 = vadd.f32 %v719, %v759
      %v761 = vpop.f32.mrf.mxu0
      %762 = vdwg.mxu0
      %v763 = vpack.c.bf16 %v760, %v757
      %v765 = vunpack.c.l.b16 %v763
      %v766 = vunpack.c.h.b16 %v763
      %v767 = vpack.c.b16 %v765, %v765
      %v768 = vpack.c.b16 %v766, %v766
      %771 = vst [vmem:[%s328] sm:$0xf] %v767
      %772 = vst [vmem:[%s328 + $0x4] sm:$0xf] %v768
      %v773 = vlaneseq
      %v774 = vshrl.u32 %v773, 7
      %v775 = vadd.s32 %v774, 8
      %s776 = smul.u32 %s23, 16
      %v777 = vstv %s776
      %v778 = vadd.s32 %v774, %v777
      %v779 = vadd.s32 %v775, %v777
      %vm780 = vcmp.lt.s32.totalorder %v778, 8
      %vm781 = vcmp.lt.s32.totalorder %v779, 8
      %v782 = vsel %vm780, %v757, 0.0
      %v783 = vsel %vm781, %v760, 0.0
      %v784 = vadd.f32 %v782, %v783
      %v785 = vrot.slane %v784, 4
      %v786 = vadd.f32 %v784, %v785
      %v787 = vrot.slane %v786, 2
      %v788 = vadd.f32 %v786, %v787
      %v789 = vrot.slane %v788, 1
      %v790 = vadd.f32 %v788, %v789
      %v791 = vmul.f32 %v782, %v782
      %v792 = vmul.f32 %v783, %v783
      %v793 = vadd.f32 %v791, %v792
      %v794 = vrot.slane %v793, 4
      %v795 = vadd.f32 %v793, %v794
      %v796 = vrot.slane %v795, 2
      %v797 = vadd.f32 %v795, %v796
      %v798 = vrot.slane %v797, 1
      %v799 = vadd.f32 %v797, %v798
      %vm800 = vcmask 1040384
      %v801 = vsel %vm800, %v790, %v799
      %802 = vst [vmem:[%s339] sm:$0x3] %v801
      %s803 = smul.u32 2, %s23
      %p804 = scmp.lt.s32.totalorder %s22, 3
      %s805 = scalar_select %p804, %s22, 3
      %p806 = scmp.lt.s32.totalorder %s803, 1
      %s807 = scalar_select %p806, %s803, 1
      %p808 = scmp.lt.s32.totalorder %s24, 0
      %s809 = scalar_select %p808, %s24, 0
      %s810 = sadd.s32 %s809, %s807
      %s811 = smul.addr %s805, 2
      %s812 = sadd.s32 %s810, %s811
      %s813 = smul.addr %s812, 4
      %s814 = scalar_lea.vmem %s4, %s813
      %p815 = scmp.lt.s32.totalorder %s22, 3
      %s816 = scalar_select %p815, %s22, 3
      %p817 = scmp.lt.s32.totalorder %s23, 0
      %s818 = scalar_select %p817, %s23, 0
      %p819 = scmp.lt.s32.totalorder %s24, 0
      %s820 = scalar_select %p819, %s24, 0
      %s821 = sadd.s32 %s820, %s818
      %s822 = sadd.s32 %s821, %s816
      %s823 = smul.addr %s822, 2
      %s824 = scalar_lea.vmem %s5, %s823
      // Predicated region
      $region37: #{_lambda_.16} parent=35 // pred_check
        %p825 = pneg %p156
      $region38: #{_lambda_.16} parent=35 // pred_check_branch
        %827 = sbr.rel (%p825) target = $region40
      $region39: #{_lambda_.16} parent=35 // pred_region
        %s828 = smul.u32 2, %s23
      $region40: #{_lambda_.16} parent=35 // pred_fallthru
        _
      // Predicated region
      $region41: #{_lambda_.16} parent=35 // pred_check
        %p829 = pneg %p186
      $region42: #{_lambda_.16} parent=35 // pred_check_branch
        %831 = sbr.rel (%p829) target = $region44
      $region43: #{_lambda_.16} parent=35 // pred_region
        _
      $region44: #{_lambda_.16} parent=35 // pred_fallthru
        _
    $region36: #{_lambda_.16} parent=5 // pred_fallthru
      _
    %p832 = scmp.le.s32.totalorder 2, %s12
    // Predicated region
    $region45: #{_lambda_.16} parent=5 // pred_check
      %p833 = pneg %p832
    $region46: #{_lambda_.16} parent=5 // pred_check_branch
      %835 = sbr.rel (%p833) target = $region48
    $region47: #{_lambda_.16} parent=5 // pred_region
      %s836 = ssub.s32 %s12, 2
      // Predicated region
      $region49: #{_lambda_.16} parent=47 // pred_check
        %p837 = pneg %p162
      $region50: #{_lambda_.16} parent=47 // pred_check_branch
        %839 = sbr.rel (%p837) target = $region52
      $region51: #{_lambda_.16} parent=47 // pred_region
        %s840 = smul.u32 2, %s26
        %p841 = scmp.lt.s32.totalorder %s25, 3
        %s842 = scalar_select %p841, %s25, 3
        %p843 = scmp.lt.s32.totalorder %s840, 1
        %s844 = scalar_select %p843, %s840, 1
        %p845 = scmp.lt.s32.totalorder %s27, 0
        %s846 = scalar_select %p845, %s27, 0
        %s847 = sadd.s32 %s846, %s844
        %s848 = smul.addr %s842, 2
        %s849 = sadd.s32 %s847, %s848
        %s850 = smul.addr %s849, 4
        %s851 = scalar_lea.vmem %s4, %s850
      $region52: #{_lambda_.16} parent=47 // pred_fallthru
        _
      // Predicated region
      $region53: #{_lambda_.16} parent=47 // pred_check
        %p852 = pneg %p192
      $region54: #{_lambda_.16} parent=47 // pred_check_branch
        %854 = sbr.rel (%p852) target = $region56
      $region55: #{_lambda_.16} parent=47 // pred_region
        %p855 = scmp.lt.s32.totalorder %s25, 3
        %s856 = scalar_select %p855, %s25, 3
        %p857 = scmp.lt.s32.totalorder %s26, 0
        %s858 = scalar_select %p857, %s26, 0
        %p859 = scmp.lt.s32.totalorder %s27, 0
        %s860 = scalar_select %p859, %s27, 0
        %s861 = sadd.s32 %s860, %s858
        %s862 = sadd.s32 %s861, %s856
        %s863 = smul.addr %s862, 2
        %s864 = scalar_lea.vmem %s5, %s863
      $region56: #{_lambda_.16} parent=47 // pred_fallthru
        _
    $region48: #{_lambda_.16} parent=5 // pred_fallthru
      _
  $region6: #{_lambda_.16} parent=0 // loop_footer
    %s16 = sadd.s32 1, %s12
  $region7: #{_lambda_.16} parent=0 // loop_footer_branch
    %11 = sbr.rel target = $region3
  $region8: #{_lambda_.16} parent=0 // loop_exit
    _

// kernel: tile.123
$region0: #{tile.123}
  #allocation0 [shape = 's32[1]{0}', space=sflag, size = 0x4, scoped, tag = 'scoped memory for tile.123']
  %s0 = inlined_call_operand.vmem [shape: f32[32], index: 0, kind: input, shape index: {}]
  %s1 = inlined_call_operand.vmem [shape: f32[4,32], index: 1, kind: output, shape index: {}]
  // Predicated region
  $region2: #{tile.123} parent=0 // pred_check
    _
  $region3: #{tile.123} parent=0 // pred_check_branch
    %3 = sbr.rel (0) target = $region5
  $region4: #{tile.123} parent=0 // pred_region
    _
  $region5: #{tile.123} parent=0 // pred_fallthru
    _
  %v4 = vld [vmem:[%s0] ss:$0 sm:$0xff]
  %5 = vst [vmem:[%s1] sm:$0xf] %v4

// kernel: tile.128
$region0: #{tile.128}
  %s0 = inlined_call_operand.vmem [shape: f32[4,32], index: 0, kind: input, shape index: {}]
  %s1 = inlined_call_operand.vmem [shape: f32[1,128], index: 1, kind: output, shape index: {}]
  $region1: #{tile.128} parent=0
    #allocation0 [shape = 'u8[4096]{0}', space=vmem, size = 0x1000, scoped, tag = 'scoped mem for output reshape']
    #allocation1 [shape = 'u8[4096]{0}', space=vmem, size = 0x1000, scoped, tag = 'scoped mem for input reshape']
    %s3 = sshll.u32 1, 4
    %s4 = ssub.s32 %s3, 1
    %v5 = vld [vmem:[%s0] sm:%s4]
    %6 = vst [vmem:[#allocation1] sm:%s4] %v5
    %v7 = vld [vmem:[#allocation1] sm:$0x1]
    %vm8 = vcmask 261120
    %9 = vst.msk [vmem:[#allocation0] sm:$0x1] %vm8, %v7
    %s10 = scalar_lea.vmem [#allocation1], 3
    %v11 = vld [vmem:[%s10] sm:$0x1]
    %12 = vrot.lane.b32.xlu0 %v11, 96
    %v13 = vpop.permute.xlu0 %12
    %vm14 = vcmask 1048320
    %15 = vst.msk [vmem:[#allocation0] sm:$0x1] %vm14, %v13
    %s16 = scalar_lea.vmem [#allocation1], 2
    %v17 = vld [vmem:[%s16] sm:$0x1]
    %18 = vrot.lane.b32.xlu0 %v17, 64
    %v19 = vpop.permute.xlu0 %18
    %vm20 = vcmask 785920
    %21 = vst.msk [vmem:[#allocation0] sm:$0x1] %vm20, %v19
    %s22 = scalar_lea.vmem [#allocation1], 1
    %v23 = vld [vmem:[%s22] sm:$0x1]
    %24 = vrot.lane.b32.xlu0 %v23, 32
    %v25 = vpop.permute.xlu0 %24
    %vm26 = vcmask 523520
    %27 = vst.msk [vmem:[#allocation0] sm:$0x1] %vm26, %v25
    %s29 = sshll.u32 1, 1
    %s30 = ssub.s32 %s29, 1
    %v32 = vld [vmem:[#allocation0] sm:%s30]
    %s33 = sshll.u32 1, 1
    %s34 = ssub.s32 %s33, 1
    %35 = vst [vmem:[%s1] sm:%s34] %v32

// kernel: _lambda_.17
$region0: #{_lambda_.17}
  #allocation0 [shape = 'u32[]', space=smem, size = 0x4, offset = 0x4, fixed_abs, tag = 'smem constant byte address 0x4 - core index']
  #allocation1 [shape = 'u32[144,128]{1,0:T(1,128)}', space=vmem, size = 0x12000, scoped, tag = 'internal scratch']
  %s0 = inlined_call_operand.vmem [shape: bf16[4,32,256], index: 0, kind: input, shape index: {}]
  %s1 = inlined_call_operand.vmem [shape: bf16[4,256,128], index: 1, kind: input, shape index: {}]
  %s2 = inlined_call_operand.vmem [shape: f32[1,256], index: 2, kind: input, shape index: {}]
  %s3 = inlined_call_operand.vmem [shape: f32[1,256], index: 3, kind: input, shape index: {}]
  %s4 = inlined_call_operand.vmem [shape: bf16[4,32,128], index: 4, kind: output, shape index: {0}]
  %s5 = inlined_call_operand.vmem [shape: f32[4,1,2,128], index: 5, kind: output, shape index: {1}]
  %6 = xla_tuple %s4, %s5
  %s7 = sld [smem:[#allocation0]]
  $region57: #{_lambda_.17} parent=0
    _
  %s9 = ssub.s32 1, %s7
  %s10 = scalar_select 0, %s9, %s7
  loop: start=0, step=1, limit=6
  $region2: #{_lambda_.17} parent=0 // loop_pre_header
    _
  $region3: #{_lambda_.17} parent=0 // loop_header
    %s12 = sphi 0, %s16
    %p13 = scmp.ge.s32.totalorder %s12, 6
    %s19 = sphi 0, %s38
    %s20 = sphi 0, %s34
    %s21 = sphi 0, %s30
    %s22 = sphi 0, %s19
    %s23 = sphi 0, %s20
    %s24 = sphi 0, %s21
    %s25 = sphi 0, %s22
    %s26 = sphi 0, %s23
    %s27 = sphi 0, %s24
    %s43 = sphi 0, %s45
    %s46 = sphi 0, %s43
    %s47 = sphi 0, %s46
    %s63 = sphi 0, %s47
    %s71 = sphi 0, %s73
    %s74 = sphi 0, %s71
    %s75 = sphi 0, %s74
    %s91 = sphi 0, %s75
    %s95 = sphi 0, %s95
    %s97 = sphi 0, %s95
    %s98 = sphi 0, %s97
    %s112 = sphi 0, %s98
    %s116 = sphi 0, %s116
    %s118 = sphi 0, %s116
    %s119 = sphi 0, %s118
    %s133 = sphi 0, %s119
    %s143 = sphi 0, %s145
    %s146 = sphi 0, %s143
    %s147 = sphi 0, %s146
    %s163 = sphi 0, %s147
    %s173 = sphi 0, %s175
    %s176 = sphi 0, %s173
    %s177 = sphi 0, %s176
    %s193 = sphi 0, %s177
  $region4: #{_lambda_.17} parent=0 // loop_header_branch
    %15 = sbr.rel (%p13) target = $region8
  $region5: #{_lambda_.17} parent=0 // loop_body
    %s17 = ssub.s32 %s12, 1
    %s18 = ssub.s32 %s12, 2
    %s28 = sadd.s32 1, %s21
    %p29 = scmp.ge.s32.totalorder %s28, 1
    %s30 = scalar_select %p29, 0, %s28
    %s31 = sadd.s32 1, %s20
    %s32 = scalar_select %p29, %s31, %s20
    %p33 = scmp.ge.s32.totalorder %s32, 1
    %s34 = scalar_select %p33, 0, %s32
    %s35 = sadd.s32 1, %s19
    %s36 = scalar_select %p33, %s35, %s19
    %p37 = scmp.ge.s32.totalorder %s36, 4
    %s38 = scalar_select %p37, 0, %s36
    %s39 = ssub.s32 %s19, %s38
    %s40 = ssub.s32 %s20, %s34
    %s41 = sor.u32 %s39, %s40
    %p42 = scmp.eq.s32.totalorder %s41, 0
    %s44 = sadd.s32 %s43, 1
    %s45 = scalar_select %p42, %s43, %s44
    %p48 = pneg %p42
    %p49 = scmp.eq.s32.totalorder %s12, 3
    %p50 = por %p48, %p49
    %p51 = scmp.ne.s32.totalorder %s43, %s46
    %p52 = scmp.eq.s32.totalorder %s12, 0
    %p53 = por %p51, %p52
    %p54 = scmp.ne.s32.totalorder %s43, %s46
    %p55 = scmp.eq.s32.totalorder %s17, 3
    %p56 = por %p54, %p55
    %p57 = scmp.ne.s32.totalorder %s46, %s47
    %p58 = scmp.eq.s32.totalorder %s17, 0
    %p59 = por %p57, %p58
    %p60 = scmp.ne.s32.totalorder %s46, %s47
    %p61 = scmp.eq.s32.totalorder %s18, 3
    %p62 = por %p60, %p61
    %p64 = scmp.ne.s32.totalorder %s47, %s63
    %p65 = scmp.eq.s32.totalorder %s18, 0
    %p66 = por %p64, %p65
    %s67 = ssub.s32 %s19, %s38
    %s68 = ssub.s32 %s21, %s30
    %s69 = sor.u32 %s67, %s68
    %p70 = scmp.eq.s32.totalorder %s69, 0
    %s72 = sadd.s32 %s71, 1
    %s73 = scalar_select %p70, %s71, %s72
    %p76 = pneg %p70
    %p77 = scmp.eq.s32.totalorder %s12, 3
    %p78 = por %p76, %p77
    %p79 = scmp.ne.s32.totalorder %s71, %s74
    %p80 = scmp.eq.s32.totalorder %s12, 0
    %p81 = por %p79, %p80
    %p82 = scmp.ne.s32.totalorder %s71, %s74
    %p83 = scmp.eq.s32.totalorder %s17, 3
    %p84 = por %p82, %p83
    %p85 = scmp.ne.s32.totalorder %s74, %s75
    %p86 = scmp.eq.s32.totalorder %s17, 0
    %p87 = por %p85, %p86
    %p88 = scmp.ne.s32.totalorder %s74, %s75
    %p89 = scmp.eq.s32.totalorder %s18, 3
    %p90 = por %p88, %p89
    %p92 = scmp.ne.s32.totalorder %s75, %s91
    %p93 = scmp.eq.s32.totalorder %s18, 0
    %p94 = por %p92, %p93
    %s96 = sadd.s32 %s95, 1
    %p99 = scmp.eq.s32.totalorder %s12, 3
    %p100 = scmp.ne.s32.totalorder %s95, %s97
    %p101 = scmp.eq.s32.totalorder %s12, 0
    %p102 = por %p100, %p101
    %p103 = scmp.ne.s32.totalorder %s95, %s97
    %p104 = scmp.eq.s32.totalorder %s17, 3
    %p105 = por %p103, %p104
    %p106 = scmp.ne.s32.totalorder %s97, %s98
    %p107 = scmp.eq.s32.totalorder %s17, 0
    %p108 = por %p106, %p107
    %p109 = scmp.ne.s32.totalorder %s97, %s98
    %p110 = scmp.eq.s32.totalorder %s18, 3
    %p111 = por %p109, %p110
    %p113 = scmp.ne.s32.totalorder %s98, %s112
    %p114 = scmp.eq.s32.totalorder %s18, 0
    %p115 = por %p113, %p114
    %s117 = sadd.s32 %s116, 1
    %p120 = scmp.eq.s32.totalorder %s12, 3
    %p121 = scmp.ne.s32.totalorder %s116, %s118
    %p122 = scmp.eq.s32.totalorder %s12, 0
    %p123 = por %p121, %p122
    %p124 = scmp.ne.s32.totalorder %s116, %s118
    %p125 = scmp.eq.s32.totalorder %s17, 3
    %p126 = por %p124, %p125
    %p127 = scmp.ne.s32.totalorder %s118, %s119
    %p128 = scmp.eq.s32.totalorder %s17, 0
    %p129 = por %p127, %p128
    %p130 = scmp.ne.s32.totalorder %s118, %s119
    %p131 = scmp.eq.s32.totalorder %s18, 3
    %p132 = por %p130, %p131
    %p134 = scmp.ne.s32.totalorder %s119, %s133
    %p135 = scmp.eq.s32.totalorder %s18, 0
    %p136 = por %p134, %p135
    %s137 = ssub.s32 %s19, %s38
    %s138 = ssub.s32 %s20, %s34
    %s139 = sor.u32 %s137, %s138
    %s140 = ssub.s32 %s21, %s30
    %s141 = sor.u32 %s139, %s140
    %p142 = scmp.eq.s32.totalorder %s141, 0
    %s144 = sadd.s32 %s143, 1
    %s145 = scalar_select %p142, %s143, %s144
    %p148 = pneg %p142
    %p149 = scmp.eq.s32.totalorder %s12, 3
    %p150 = por %p148, %p149
    %p151 = scmp.ne.s32.totalorder %s143, %s146
    %p152 = scmp.eq.s32.totalorder %s12, 0
    %p153 = por %p151, %p152
    %p154 = scmp.ne.s32.totalorder %s143, %s146
    %p155 = scmp.eq.s32.totalorder %s17, 3
    %p156 = por %p154, %p155
    %p157 = scmp.ne.s32.totalorder %s146, %s147
    %p158 = scmp.eq.s32.totalorder %s17, 0
    %p159 = por %p157, %p158
    %p160 = scmp.ne.s32.totalorder %s146, %s147
    %p161 = scmp.eq.s32.totalorder %s18, 3
    %p162 = por %p160, %p161
    %p164 = scmp.ne.s32.totalorder %s147, %s163
    %p165 = scmp.eq.s32.totalorder %s18, 0
    %p166 = por %p164, %p165
    %s167 = ssub.s32 %s19, %s38
    %s168 = ssub.s32 %s20, %s34
    %s169 = sor.u32 %s167, %s168
    %s170 = ssub.s32 %s21, %s30
    %s171 = sor.u32 %s169, %s170
    %p172 = scmp.eq.s32.totalorder %s171, 0
    %s174 = sadd.s32 %s173, 1
    %s175 = scalar_select %p172, %s173, %s174
    %p178 = pneg %p172
    %p179 = scmp.eq.s32.totalorder %s12, 3
    %p180 = por %p178, %p179
    %p181 = scmp.ne.s32.totalorder %s173, %s176
    %p182 = scmp.eq.s32.totalorder %s12, 0
    %p183 = por %p181, %p182
    %p184 = scmp.ne.s32.totalorder %s173, %s176
    %p185 = scmp.eq.s32.totalorder %s17, 3
    %p186 = por %p184, %p185
    %p187 = scmp.ne.s32.totalorder %s176, %s177
    %p188 = scmp.eq.s32.totalorder %s17, 0
    %p189 = por %p187, %p188
    %p190 = scmp.ne.s32.totalorder %s176, %s177
    %p191 = scmp.eq.s32.totalorder %s18, 3
    %p192 = por %p190, %p191
    %p194 = scmp.ne.s32.totalorder %s177, %s193
    %p195 = scmp.eq.s32.totalorder %s18, 0
    %p196 = por %p194, %p195
    %p197 = scmp.le.s32.totalorder 1, %s12
    %p198 = scmp.lt.s32.totalorder %s12, 5
    %p199 = pnand %p197, %p198
    %p200 = pneg %p199
    // Predicated region
    $region9: #{_lambda_.17} parent=5 // pred_check
      _
    $region10: #{_lambda_.17} parent=5 // pred_check_branch
      %202 = sbr.rel (%p199) target = $region12
    $region11: #{_lambda_.17} parent=5 // pred_region
      %s203 = ssub.s32 %s12, 1
      // Predicated region
      $region13: #{_lambda_.17} parent=11 // pred_check
        %p204 = pneg %p108
      $region14: #{_lambda_.17} parent=11 // pred_check_branch
        %206 = sbr.rel (%p204) target = $region16
      $region15: #{_lambda_.17} parent=11 // pred_region
        _
      $region16: #{_lambda_.17} parent=11 // pred_fallthru
        _
      // Predicated region
      $region17: #{_lambda_.17} parent=11 // pred_check
        %p207 = pneg %p129
      $region18: #{_lambda_.17} parent=11 // pred_check_branch
        %209 = sbr.rel (%p207) target = $region20
      $region19: #{_lambda_.17} parent=11 // pred_region
        _
      $region20: #{_lambda_.17} parent=11 // pred_fallthru
        _
    $region12: #{_lambda_.17} parent=5 // pred_fallthru
      _
    %p210 = scmp.lt.s32.totalorder %s12, 4
    // Predicated region
    $region21: #{_lambda_.17} parent=5 // pred_check
      %p211 = pneg %p210
    $region22: #{_lambda_.17} parent=5 // pred_check_branch
      %213 = sbr.rel (%p211) target = $region24
    $region23: #{_lambda_.17} parent=5 // pred_region
      // Predicated region
      $region25: #{_lambda_.17} parent=23 // pred_check
        %p214 = pneg %p53
      $region26: #{_lambda_.17} parent=23 // pred_check_branch
        %216 = sbr.rel (%p214) target = $region28
      $region27: #{_lambda_.17} parent=23 // pred_region
        %s217 = smul.u32 4, %s20
        %p218 = scmp.lt.s32.totalorder %s19, 3
        %s219 = scalar_select %p218, %s19, 3
        %p220 = scmp.lt.s32.totalorder %s217, 3
        %s221 = scalar_select %p220, %s217, 3
        %s222 = smul.addr %s221, 2
        %s223 = smul.addr %s219, 8
        %s224 = sadd.s32 %s222, %s223
        %s225 = smul.addr %s224, 4
        %s226 = scalar_lea.vmem %s0, %s225
        %s227 = smul.u32 4, %s20
      $region28: #{_lambda_.17} parent=23 // pred_fallthru
        _
      // Predicated region
      $region29: #{_lambda_.17} parent=23 // pred_check
        %p228 = pneg %p81
      $region30: #{_lambda_.17} parent=23 // pred_check_branch
        %230 = sbr.rel (%p228) target = $region32
      $region31: #{_lambda_.17} parent=23 // pred_region
        %p231 = scmp.lt.s32.totalorder %s19, 3
        %s232 = scalar_select %p231, %s19, 3
        %p233 = scmp.lt.s32.totalorder %s21, 0
        %s234 = scalar_select %p233, %s21, 0
        %s235 = smul.addr %s232, 32
        %s236 = sadd.s32 %s234, %s235
        %s237 = smul.addr %s236, 4
        %s238 = scalar_lea.vmem %s1, %s237
      $region32: #{_lambda_.17} parent=23 // pred_fallthru
        _
    $region24: #{_lambda_.17} parent=5 // pred_fallthru
      _
    %p239 = scmp.le.s32.totalorder 1, %s12
    %p240 = scmp.lt.s32.totalorder %s12, 5
    %p241 = pnand %p239, %p240
    %p242 = pneg %p241
    // Predicated region
    $region33: #{_lambda_.17} parent=5 // pred_check
      _
    $region34: #{_lambda_.17} parent=5 // pred_check_branch
      %244 = sbr.rel (%p241) target = $region36
    $region35: #{_lambda_.17} parent=5 // pred_region
      %s245 = ssub.s32 %s12, 1
      %s246 = smul.u32 4, %s23
      %p247 = scmp.lt.s32.totalorder %s22, 3
      %s248 = scalar_select %p247, %s22, 3
      %p249 = scmp.lt.s32.totalorder %s246, 3
      %s250 = scalar_select %p249, %s246, 3
      %s251 = smul.addr %s250, 2
      %s252 = smul.addr %s248, 8
      %s253 = sadd.s32 %s251, %s252
      %s254 = smul.addr %s253, 4
      %s255 = scalar_lea.vmem %s0, %s254
      %p256 = pneg %p59
      %p257 = pneg %p56
      %p258 = scmp.lt.s32.totalorder %s22, 3
      %s259 = scalar_select %p258, %s22, 3
      %p260 = scmp.lt.s32.totalorder %s24, 0
      %s261 = scalar_select %p260, %s24, 0
      %s262 = smul.addr %s259, 32
      %s263 = sadd.s32 %s261, %s262
      %s264 = smul.addr %s263, 4
      %s265 = scalar_lea.vmem %s1, %s264
      %p266 = pneg %p87
      %p267 = pneg %p84
      %p268 = pneg %p108
      %p269 = pneg %p105
      %p270 = pneg %p129
      %p271 = pneg %p126
      %p272 = pneg %p159
      %p273 = pneg %p156
      %s274 = smul.u32 4, %s23
      %p275 = scmp.lt.s32.totalorder %s22, 3
      %s276 = scalar_select %p275, %s22, 3
      %p277 = scmp.lt.s32.totalorder %s274, 3
      %s278 = scalar_select %p277, %s274, 3
      %p279 = scmp.lt.s32.totalorder %s24, 0
      %s280 = scalar_select %p279, %s24, 0
      %s281 = sadd.s32 %s280, %s278
      %s282 = smul.addr %s276, 4
      %s283 = sadd.s32 %s281, %s282
      %s284 = smul.addr %s283, 4
      %s285 = scalar_lea.vmem %s4, %s284
      %p286 = pneg %p189
      %p287 = pneg %p186
      %p288 = scmp.lt.s32.totalorder %s22, 3
      %s289 = scalar_select %p288, %s22, 3
      %p290 = scmp.lt.s32.totalorder %s23, 0
      %s291 = scalar_select %p290, %s23, 0
      %p292 = scmp.lt.s32.totalorder %s24, 0
      %s293 = scalar_select %p292, %s24, 0
      %s294 = sadd.s32 %s293, %s291
      %s295 = sadd.s32 %s294, %s289
      %s296 = smul.addr %s295, 2
      %s297 = scalar_lea.vmem %s5, %s296
      %s298 = smul.u32 4, %s23
      %p299 = scmp.lt.s32.totalorder %s22, 3
      %s300 = scalar_select %p299, %s22, 3
      %p301 = scmp.lt.s32.totalorder %s298, 3
      %s302 = scalar_select %p301, %s298, 3
      %s303 = smul.addr %s302, 2
      %s304 = smul.addr %s300, 8
      %s305 = sadd.s32 %s303, %s304
      %s306 = smul.addr %s305, 4
      %s307 = scalar_lea.vmem %s0, %s306
      %s308 = smul.u32 4, %s23
      %p309 = scmp.lt.s32.totalorder %s22, 3
      %s310 = scalar_select %p309, %s22, 3
      %p311 = scmp.lt.s32.totalorder %s24, 0
      %s312 = scalar_select %p311, %s24, 0
      %s313 = smul.addr %s310, 32
      %s314 = sadd.s32 %s312, %s313
      %s315 = smul.addr %s314, 4
      %s316 = scalar_lea.vmem %s1, %s315
      %s317 = smul.u32 4, %s23
      %p318 = scmp.lt.s32.totalorder %s22, 3
      %s319 = scalar_select %p318, %s22, 3
      %p320 = scmp.lt.s32.totalorder %s317, 3
      %s321 = scalar_select %p320, %s317, 3
      %p322 = scmp.lt.s32.totalorder %s24, 0
      %s323 = scalar_select %p322, %s24, 0
      %s324 = sadd.s32 %s323, %s321
      %s325 = smul.addr %s319, 4
      %s326 = sadd.s32 %s324, %s325
      %s327 = smul.addr %s326, 4
      %s328 = scalar_lea.vmem %s4, %s327
      %s329 = smul.u32 4, %s23
      %p330 = scmp.lt.s32.totalorder %s22, 3
      %s331 = scalar_select %p330, %s22, 3
      %p332 = scmp.lt.s32.totalorder %s23, 0
      %s333 = scalar_select %p332, %s23, 0
      %p334 = scmp.lt.s32.totalorder %s24, 0
      %s335 = scalar_select %p334, %s24, 0
      %s336 = sadd.s32 %s335, %s333
      %s337 = sadd.s32 %s336, %s331
      %s338 = smul.addr %s337, 2
      %s339 = scalar_lea.vmem %s5, %s338
      %v341 = vld [vmem:[%s307] sm:$0xff]
      %v342 = vld [vmem:[%s307 + $0x8] sm:$0xff]
      %v343 = vld [vmem:[%s307 + $0x10] sm:$0xff]
      %v344 = vld [vmem:[%s307 + $0x18] sm:$0xff]
      %v345 = vunpack.c.l.bf16 %v341
      %v346 = vunpack.c.h.bf16 %v341
      %v347 = vunpack.c.l.bf16 %v342
      %v348 = vunpack.c.h.bf16 %v342
      %v349 = vunpack.c.l.bf16 %v343
      %v350 = vunpack.c.h.bf16 %v343
      %v351 = vunpack.c.l.bf16 %v344
      %v352 = vunpack.c.h.bf16 %v344
      %v353 = vld [vmem:[%s2] sm:$0x3]
      %v355 = vlaneseq
      %v356 = vshrl.u32 %v355, 7
      %v357 = vsub.s32 0, %v356
      %v358 = vrot.slane %v353, %v357
      %v359 = vlaneseq
      %v360 = vshrl.u32 %v359, 7
      %v361 = vsub.s32 1, %v360
      %v362 = vrot.slane %v353, %v361
      %v365 = vmul.f32 %v345, %v358
      %v366 = vmul.f32 %v346, %v362
      %v367 = vmul.f32 %v347, %v358
      %v368 = vmul.f32 %v348, %v362
      %v369 = vmul.f32 %v349, %v358
      %v370 = vmul.f32 %v350, %v362
      %v371 = vmul.f32 %v351, %v358
      %v372 = vmul.f32 %v352, %v362
      %v373 = vld [vmem:[%s3] sm:$0x3]
      %v375 = vlaneseq
      %v376 = vshrl.u32 %v375, 7
      %v377 = vsub.s32 0, %v376
      %v378 = vrot.slane %v373, %v377
      %v379 = vlaneseq
      %v380 = vshrl.u32 %v379, 7
      %v381 = vsub.s32 1, %v380
      %v382 = vrot.slane %v373, %v381
      %v385 = vadd.f32 %v365, %v378
      %v386 = vadd.f32 %v366, %v382
      %v387 = vadd.f32 %v367, %v378
      %v388 = vadd.f32 %v368, %v382
      %v389 = vadd.f32 %v369, %v378
      %v390 = vadd.f32 %v370, %v382
      %v391 = vadd.f32 %v371, %v378
      %v392 = vadd.f32 %v372, %v382
      %v393 = vmax.f32 %v385, 0.0
      %v394 = vmax.f32 %v386, 0.0
      %v395 = vmax.f32 %v387, 0.0
      %v396 = vmax.f32 %v388, 0.0
      %v397 = vmax.f32 %v389, 0.0
      %v398 = vmax.f32 %v390, 0.0
      %v399 = vmax.f32 %v391, 0.0
      %v400 = vmax.f32 %v392, 0.0
      %v401 = vpack.c.bf16 %v395, %v393
      %v402 = vpack.c.bf16 %v396, %v394
      %v403 = vpack.c.bf16 %v399, %v397
      %v404 = vpack.c.bf16 %v400, %v398
      %v405 = vld [vmem:[%s316] sm:$0xf]
      %v406 = vld [vmem:[%s316 + $0x4] sm:$0xf]
      %v407 = vld [vmem:[%s316 + $0x8] sm:$0xf]
      %v408 = vld [vmem:[%s316 + $0xc] sm:$0xf]
      %v409 = vld [vmem:[%s316 + $0x10] sm:$0xf]
      %v410 = vld [vmem:[%s316 + $0x14] sm:$0xf]
      %v411 = vld [vmem:[%s316 + $0x18] sm:$0xf]
      %v412 = vld [vmem:[%s316 + $0x1c] sm:$0xf]
      %v413 = vld [vmem:[%s316 + $0x20] sm:$0xf]
      %v414 = vld [vmem:[%s316 + $0x24] sm:$0xf]
      %v415 = vld [vmem:[%s316 + $0x28] sm:$0xf]
      %v416 = vld [vmem:[%s316 + $0x2c] sm:$0xf]
      %v417 = vld [vmem:[%s316 + $0x30] sm:$0xf]
      %v418 = vld [vmem:[%s316 + $0x34] sm:$0xf]
      %v419 = vld [vmem:[%s316 + $0x38] sm:$0xf]
      %v420 = vld [vmem:[%s316 + $0x3c] sm:$0xf]
      %v421 = vld [vmem:[%s316 + $0x40] sm:$0xf]
      %v422 = vld [vmem:[%s316 + $0x44] sm:$0xf]
      %v423 = vld [vmem:[%s316 + $0x48] sm:$0xf]
      %v424 = vld [vmem:[%s316 + $0x4c] sm:$0xf]
      %v425 = vld [vmem:[%s316 + $0x50] sm:$0xf]
      %v426 = vld [vmem:[%s316 + $0x54] sm:$0xf]
      %v427 = vld [vmem:[%s316 + $0x58] sm:$0xf]
      %v428 = vld [vmem:[%s316 + $0x5c] sm:$0xf]
      %v429 = vld [vmem:[%s316 + $0x60] sm:$0xf]
      %v430 = vld [vmem:[%s316 + $0x64] sm:$0xf]
      %v431 = vld [vmem:[%s316 + $0x68] sm:$0xf]
      %v432 = vld [vmem:[%s316 + $0x6c] sm:$0xf]
      %v433 = vld [vmem:[%s316 + $0x70] sm:$0xf]
      %v434 = vld [vmem:[%s316 + $0x74] sm:$0xf]
      %v435 = vld [vmem:[%s316 + $0x78] sm:$0xf]
      %v436 = vld [vmem:[%s316 + $0x7c] sm:$0xf]
      %v469 = vunpack.c.l.b16 %v405
      %v470 = vunpack.c.l.b16 %v406
      %v471 = vunpack.c.l.b16 %v407
      %v472 = vunpack.c.l.b16 %v408
      %v473 = vunpack.c.l.b16 %v409
      %v474 = vunpack.c.l.b16 %v410
      %v475 = vunpack.c.l.b16 %v411
      %v476 = vunpack.c.l.b16 %v412
      %v477 = vunpack.c.l.b16 %v413
      %v478 = vunpack.c.l.b16 %v414
      %v479 = vunpack.c.l.b16 %v415
      %v480 = vunpack.c.l.b16 %v416
      %v481 = vunpack.c.l.b16 %v417
      %v482 = vunpack.c.l.b16 %v418
      %v483 = vunpack.c.l.b16 %v419
      %v484 = vunpack.c.l.b16 %v420
      %v485 = vunpack.c.l.b16 %v421
      %v486 = vunpack.c.l.b16 %v422
      %v487 = vunpack.c.l.b16 %v423
      %v488 = vunpack.c.l.b16 %v424
      %v489 = vunpack.c.l.b16 %v425
      %v490 = vunpack.c.l.b16 %v426
      %v491 = vunpack.c.l.b16 %v427
      %v492 = vunpack.c.l.b16 %v428
      %v493 = vunpack.c.l.b16 %v429
      %v494 = vunpack.c.l.b16 %v430
      %v495 = vunpack.c.l.b16 %v431
      %v496 = vunpack.c.l.b16 %v432
      %v497 = vunpack.c.l.b16 %v433
      %v498 = vunpack.c.l.b16 %v434
      %v499 = vunpack.c.l.b16 %v435
      %v500 = vunpack.c.l.b16 %v436
      %v501 = vpack.c.b16 %v470, %v469
      %v502 = vpack.c.b16 %v472, %v471
      %v503 = vpack.c.b16 %v474, %v473
      %v504 = vpack.c.b16 %v476, %v475
      %v505 = vpack.c.b16 %v478, %v477
      %v506 = vpack.c.b16 %v480, %v479
      %v507 = vpack.c.b16 %v482, %v481
      %v508 = vpack.c.b16 %v484, %v483
      %v509 = vpack.c.b16 %v486, %v485
      %v510 = vpack.c.b16 %v488, %v487
      %v511 = vpack.c.b16 %v490, %v489
      %v512 = vpack.c.b16 %v492, %v491
      %v513 = vpack.c.b16 %v494, %v493
      %v514 = vpack.c.b16 %v496, %v495
      %v515 = vpack.c.b16 %v498, %v497
      %v516 = vpack.c.b16 %v500, %v499
      %533 = vmatprep.subr.bf16.mxu0 0
      %534 = vmatpush1.bf16.msra.mxu0 %v508
      %535 = vmatprep.subr.bf16.mxu0 0
      %536 = vmatpush1.bf16.msra.mxu0 %v507
      %537 = vmatprep.subr.bf16.mxu0 0
      %538 = vmatpush1.bf16.msra.mxu0 %v506
      %539 = vmatprep.subr.bf16.mxu0 0
      %540 = vmatpush1.bf16.msra.mxu0 %v505
      %541 = vmatprep.subr.bf16.mxu0 0
      %542 = vmatpush1.bf16.msra.mxu0 %v504
      %543 = vmatprep.subr.bf16.mxu0 0
      %544 = vmatpush1.bf16.msra.mxu0 %v503
      %545 = vmatprep.subr.bf16.mxu0 0
      %546 = vmatpush1.bf16.msra.mxu0 %v502
      %547 = vmatprep.subr.bf16.mxu0 0
      %548 = vmatpush1.bf16.msra.mxu0 %v501
      %549 = vmatprep.subr.bf16.mxu0 0
      %550 = vmatpush2.bf16.msra.mxu0 %v516
      %551 = vmatprep.subr.bf16.mxu0 0
      %552 = vmatpush2.bf16.msra.mxu0 %v515
      %553 = vmatprep.subr.bf16.mxu0 0
      %554 = vmatpush2.bf16.msra.mxu0 %v514
      %555 = vmatprep.subr.bf16.mxu0 0
      %556 = vmatpush2.bf16.msra.mxu0 %v513
      %557 = vmatprep.subr.bf16.mxu0 0
      %558 = vmatpush2.bf16.msra.mxu0 %v512
      %559 = vmatprep.subr.bf16.mxu0 0
      %560 = vmatpush2.bf16.msra.mxu0 %v511
      %561 = vmatprep.subr.bf16.mxu0 0
      %562 = vmatpush2.bf16.msra.mxu0 %v510
      %563 = vmatprep.subr.bf16.mxu0 0
      %564 = vmatpush2.bf16.msra.mxu0 %v509
      %565 = vmatprep.mubr.bf16.mxu0 %v402
      %566 = vmatmul.mubr.bf16.gmra.mxu0 %v401
      %v567 = vpop.f32.mrf.mxu0
      %v568 = vadd.f32 0.0, %v567
      %v569 = vpop.f32.mrf.mxu0
      %v570 = vpop.f32.mrf.mxu0
      %v571 = vadd.f32 0.0, %v570
      %v572 = vpop.f32.mrf.mxu0
      %573 = vmatprep.mubr.bf16.mxu0 %v404
      %574 = vmatmul.mubr.bf16.gmra.mxu0 %v403
      %v575 = vpop.f32.mrf.mxu0
      %v576 = vadd.f32 0.0, %v575
      %v577 = vpop.f32.mrf.mxu0
      %v578 = vpop.f32.mrf.mxu0
      %v579 = vadd.f32 0.0, %v578
      %v580 = vpop.f32.mrf.mxu0
      %581 = vdwg.mxu0
      %v582 = vpack.c.bf16 %v571, %v568
      %v583 = vpack.c.bf16 %v579, %v576
      %v586 = vunpack.c.l.b16 %v582
      %v587 = vunpack.c.h.b16 %v582
      %v588 = vunpack.c.l.b16 %v583
      %v589 = vunpack.c.h.b16 %v583
      %v590 = vpack.c.b16 %v586, %v586
      %v591 = vpack.c.b16 %v587, %v587
      %v592 = vpack.c.b16 %v588, %v588
      %v593 = vpack.c.b16 %v589, %v589
      %598 = vst [vmem:[%s328] sm:$0xf] %v590
      %599 = vst [vmem:[%s328 + $0x4] sm:$0xf] %v591
      %600 = vst [vmem:[%s328 + $0x8] sm:$0xf] %v592
      %601 = vst [vmem:[%s328 + $0xc] sm:$0xf] %v593
      %v602 = vlaneseq
      %v603 = vshrl.u32 %v602, 7
      %v604 = vadd.s32 %v603, 8
      %v605 = vadd.s32 %v603, 16
      %v606 = vadd.s32 %v603, 24
      %s607 = smul.u32 %s23, 32
      %v608 = vstv %s607
      %v609 = vadd.s32 %v603, %v608
      %v610 = vadd.s32 %v604, %v608
      %v611 = vadd.s32 %v605, %v608
      %v612 = vadd.s32 %v606, %v608
      %vm613 = vcmp.lt.s32.totalorder %v609, 32
      %vm614 = vcmp.lt.s32.totalorder %v610, 32
      %vm615 = vcmp.lt.s32.totalorder %v611, 32
      %vm616 = vcmp.lt.s32.totalorder %v612, 32
      %v617 = vsel %vm613, %v568, 0.0
      %v618 = vsel %vm614, %v571, 0.0
      %v619 = vsel %vm615, %v576, 0.0
      %v620 = vsel %vm616, %v579, 0.0
      %v621 = vadd.f32 %v617, %v618
      %v622 = vadd.f32 %v621, %v619
      %v623 = vadd.f32 %v622, %v620
      %v624 = vrot.slane %v623, 4
      %v625 = vadd.f32 %v623, %v624
      %v626 = vrot.slane %v625, 2
      %v627 = vadd.f32 %v625, %v626
      %v628 = vrot.slane %v627, 1
      %v629 = vadd.f32 %v627, %v628
      %v630 = vmul.f32 %v617, %v617
      %v631 = vmul.f32 %v618, %v618
      %v632 = vmul.f32 %v619, %v619
      %v633 = vmul.f32 %v620, %v620
      %v634 = vadd.f32 %v630, %v631
      %v635 = vadd.f32 %v634, %v632
      %v636 = vadd.f32 %v635, %v633
      %v637 = vrot.slane %v636, 4
      %v638 = vadd.f32 %v636, %v637
      %v639 = vrot.slane %v638, 2
      %v640 = vadd.f32 %v638, %v639
      %v641 = vrot.slane %v640, 1
      %v642 = vadd.f32 %v640, %v641
      %vm643 = vcmask 1040384
      %v644 = vsel %vm643, %v629, %v642
      %645 = vst [vmem:[%s339] sm:$0x3] %v644
      %s646 = smul.u32 4, %s23
      %p647 = scmp.lt.s32.totalorder %s22, 3
      %s648 = scalar_select %p647, %s22, 3
      %p649 = scmp.lt.s32.totalorder %s646, 3
      %s650 = scalar_select %p649, %s646, 3
      %p651 = scmp.lt.s32.totalorder %s24, 0
      %s652 = scalar_select %p651, %s24, 0
      %s653 = sadd.s32 %s652, %s650
      %s654 = smul.addr %s648, 4
      %s655 = sadd.s32 %s653, %s654
      %s656 = smul.addr %s655, 4
      %s657 = scalar_lea.vmem %s4, %s656
      %p658 = scmp.lt.s32.totalorder %s22, 3
      %s659 = scalar_select %p658, %s22, 3
      %p660 = scmp.lt.s32.totalorder %s23, 0
      %s661 = scalar_select %p660, %s23, 0
      %p662 = scmp.lt.s32.totalorder %s24, 0
      %s663 = scalar_select %p662, %s24, 0
      %s664 = sadd.s32 %s663, %s661
      %s665 = sadd.s32 %s664, %s659
      %s666 = smul.addr %s665, 2
      %s667 = scalar_lea.vmem %s5, %s666
      // Predicated region
      $region37: #{_lambda_.17} parent=35 // pred_check
        %p668 = pneg %p156
      $region38: #{_lambda_.17} parent=35 // pred_check_branch
        %670 = sbr.rel (%p668) target = $region40
      $region39: #{_lambda_.17} parent=35 // pred_region
        %s671 = smul.u32 4, %s23
      $region40: #{_lambda_.17} parent=35 // pred_fallthru
        _
      // Predicated region
      $region41: #{_lambda_.17} parent=35 // pred_check
        %p672 = pneg %p186
      $region42: #{_lambda_.17} parent=35 // pred_check_branch
        %674 = sbr.rel (%p672) target = $region44
      $region43: #{_lambda_.17} parent=35 // pred_region
        _
      $region44: #{_lambda_.17} parent=35 // pred_fallthru
        _
    $region36: #{_lambda_.17} parent=5 // pred_fallthru
      _
    %p675 = scmp.le.s32.totalorder 2, %s12
    // Predicated region
    $region45: #{_lambda_.17} parent=5 // pred_check
      %p676 = pneg %p675
    $region46: #{_lambda_.17} parent=5 // pred_check_branch
      %678 = sbr.rel (%p676) target = $region48
    $region47: #{_lambda_.17} parent=5 // pred_region
      %s679 = ssub.s32 %s12, 2
      // Predicated region
      $region49: #{_lambda_.17} parent=47 // pred_check
        %p680 = pneg %p162
      $region50: #{_lambda_.17} parent=47 // pred_check_branch
        %682 = sbr.rel (%p680) target = $region52
      $region51: #{_lambda_.17} parent=47 // pred_region
        %s683 = smul.u32 4, %s26
        %p684 = scmp.lt.s32.totalorder %s25, 3
        %s685 = scalar_select %p684, %s25, 3
        %p686 = scmp.lt.s32.totalorder %s683, 3
        %s687 = scalar_select %p686, %s683, 3
        %p688 = scmp.lt.s32.totalorder %s27, 0
        %s689 = scalar_select %p688, %s27, 0
        %s690 = sadd.s32 %s689, %s687
        %s691 = smul.addr %s685, 4
        %s692 = sadd.s32 %s690, %s691
        %s693 = smul.addr %s692, 4
        %s694 = scalar_lea.vmem %s4, %s693
      $region52: #{_lambda_.17} parent=47 // pred_fallthru
        _
      // Predicated region
      $region53: #{_lambda_.17} parent=47 // pred_check
        %p695 = pneg %p192
      $region54: #{_lambda_.17} parent=47 // pred_check_branch
        %697 = sbr.rel (%p695) target = $region56
      $region55: #{_lambda_.17} parent=47 // pred_region
        %p698 = scmp.lt.s32.totalorder %s25, 3
        %s699 = scalar_select %p698, %s25, 3
        %p700 = scmp.lt.s32.totalorder %s26, 0
        %s701 = scalar_select %p700, %s26, 0
        %p702 = scmp.lt.s32.totalorder %s27, 0
        %s703 = scalar_select %p702, %s27, 0
        %s704 = sadd.s32 %s703, %s701
        %s705 = sadd.s32 %s704, %s699
        %s706 = smul.addr %s705, 2
        %s707 = scalar_lea.vmem %s5, %s706
      $region56: #{_lambda_.17} parent=47 // pred_fallthru
        _
    $region48: #{_lambda_.17} parent=5 // pred_fallthru
      _
  $region6: #{_lambda_.17} parent=0 // loop_footer
    %s16 = sadd.s32 1, %s12
  $region7: #{_lambda_.17} parent=0 // loop_footer_branch
    %11 = sbr.rel target = $region3
  $region8: #{_lambda_.17} parent=0 // loop_exit
    _

// kernel: tile.133
$region0: #{tile.133}
  #allocation0 [shape = 's32[1]{0}', space=sflag, size = 0x4, scoped, tag = 'scoped memory for tile.133']
  %s0 = inlined_call_operand.vmem [shape: f32[16], index: 0, kind: input, shape index: {}]
  %s1 = inlined_call_operand.vmem [shape: f32[4,16], index: 1, kind: output, shape index: {}]
  // Predicated region
  $region2: #{tile.133} parent=0 // pred_check
    _
  $region3: #{tile.133} parent=0 // pred_check_branch
    %3 = sbr.rel (0) target = $region5
  $region4: #{tile.133} parent=0 // pred_region
    _
  $region5: #{tile.133} parent=0 // pred_fallthru
    _
  %v4 = vld [vmem:[%s0] ss:$0 sm:$0xff]
  %5 = vst [vmem:[%s1] sm:$0xf] %v4

// kernel: tile.138
$region0: #{tile.138}
  %s0 = inlined_call_operand.vmem [shape: f32[4,16], index: 0, kind: input, shape index: {}]
  %s1 = inlined_call_operand.vmem [shape: f32[1,64], index: 1, kind: output, shape index: {}]
  $region1: #{tile.138} parent=0
    #allocation0 [shape = 'u8[4096]{0}', space=vmem, size = 0x1000, scoped, tag = 'scoped mem for output reshape']
    #allocation1 [shape = 'u8[4096]{0}', space=vmem, size = 0x1000, scoped, tag = 'scoped mem for input reshape']
    %s3 = sshll.u32 1, 4
    %s4 = ssub.s32 %s3, 1
    %v5 = vld [vmem:[%s0] sm:%s4]
    %6 = vst [vmem:[#allocation1] sm:%s4] %v5
    %v7 = vld [vmem:[#allocation1] sm:$0x1]
    %vm8 = vcmask 130048
    %9 = vst.msk [vmem:[#allocation0] sm:$0x1] %vm8, %v7
    %s10 = scalar_lea.vmem [#allocation1], 3
    %v11 = vld [vmem:[%s10] sm:$0x1]
    %12 = vrot.lane.b32.xlu0 %v11, 48
    %v13 = vpop.permute.xlu0 %12
    %vm14 = vcmask 523648
    %15 = vst.msk [vmem:[#allocation0] sm:$0x1] %vm14, %v13
    %s16 = scalar_lea.vmem [#allocation1], 2
    %v17 = vld [vmem:[%s16] sm:$0x1]
    %18 = vrot.lane.b32.xlu0 %v17, 32
    %v19 = vpop.permute.xlu0 %18
    %vm20 = vcmask 392448
    %21 = vst.msk [vmem:[#allocation0] sm:$0x1] %vm20, %v19
    %s22 = scalar_lea.vmem [#allocation1], 1
    %v23 = vld [vmem:[%s22] sm:$0x1]
    %24 = vrot.lane.b32.xlu0 %v23, 16
    %v25 = vpop.permute.xlu0 %24
    %vm26 = vcmask 261248
    %27 = vst.msk [vmem:[#allocation0] sm:$0x1] %vm26, %v25
    %s29 = sshll.u32 1, 1
    %s30 = ssub.s32 %s29, 1
    %v32 = vld [vmem:[#allocation0] sm:%s30]
    %s33 = sshll.u32 1, 1
    %s34 = ssub.s32 %s33, 1
    %35 = vst [vmem:[%s1] sm:%s34] %v32

// kernel: _lambda_.18
$region0: #{_lambda_.18}
  #allocation0 [shape = 'u32[]', space=smem, size = 0x4, offset = 0x4, fixed_abs, tag = 'smem constant byte address 0x4 - core index']
  #allocation1 [shape = 'u32[144,128]{1,0:T(1,128)}', space=vmem, size = 0x12000, scoped, tag = 'internal scratch']
  %s0 = inlined_call_operand.vmem [shape: bf16[4,128,128], index: 0, kind: input, shape index: {}]
  %s1 = inlined_call_operand.vmem [shape: bf16[4,128,128], index: 1, kind: input, shape index: {}]
  %s2 = inlined_call_operand.vmem [shape: f32[1,128], index: 2, kind: input, shape index: {}]
  %s3 = inlined_call_operand.vmem [shape: f32[1,128], index: 3, kind: input, shape index: {}]
  %s4 = inlined_call_operand.vmem [shape: bf16[4,128,128], index: 4, kind: output, shape index: {0}]
  %s5 = inlined_call_operand.vmem [shape: f32[4,1,2,128], index: 5, kind: output, shape index: {1}]
  %6 = xla_tuple %s4, %s5
  %s7 = sld [smem:[#allocation0]]
  $region57: #{_lambda_.18} parent=0
    _
  %s9 = ssub.s32 1, %s7
  %s10 = scalar_select 0, %s9, %s7
  loop: start=0, step=1, limit=6
  $region2: #{_lambda_.18} parent=0 // loop_pre_header
    _
  $region3: #{_lambda_.18} parent=0 // loop_header
    %s12 = sphi 0, %s16
    %p13 = scmp.ge.s32.totalorder %s12, 6
    %s19 = sphi 0, %s38
    %s20 = sphi 0, %s34
    %s21 = sphi 0, %s30
    %s22 = sphi 0, %s19
    %s23 = sphi 0, %s20
    %s24 = sphi 0, %s21
    %s25 = sphi 0, %s22
    %s26 = sphi 0, %s23
    %s27 = sphi 0, %s24
    %s43 = sphi 0, %s45
    %s46 = sphi 0, %s43
    %s47 = sphi 0, %s46
    %s63 = sphi 0, %s47
    %s71 = sphi 0, %s73
    %s74 = sphi 0, %s71
    %s75 = sphi 0, %s74
    %s91 = sphi 0, %s75
    %s95 = sphi 0, %s95
    %s97 = sphi 0, %s95
    %s98 = sphi 0, %s97
    %s112 = sphi 0, %s98
    %s116 = sphi 0, %s116
    %s118 = sphi 0, %s116
    %s119 = sphi 0, %s118
    %s133 = sphi 0, %s119
    %s143 = sphi 0, %s145
    %s146 = sphi 0, %s143
    %s147 = sphi 0, %s146
    %s163 = sphi 0, %s147
    %s173 = sphi 0, %s175
    %s176 = sphi 0, %s173
    %s177 = sphi 0, %s176
    %s193 = sphi 0, %s177
  $region4: #{_lambda_.18} parent=0 // loop_header_branch
    %15 = sbr.rel (%p13) target = $region8
  $region5: #{_lambda_.18} parent=0 // loop_body
    %s17 = ssub.s32 %s12, 1
    %s18 = ssub.s32 %s12, 2
    %s28 = sadd.s32 1, %s21
    %p29 = scmp.ge.s32.totalorder %s28, 1
    %s30 = scalar_select %p29, 0, %s28
    %s31 = sadd.s32 1, %s20
    %s32 = scalar_select %p29, %s31, %s20
    %p33 = scmp.ge.s32.totalorder %s32, 1
    %s34 = scalar_select %p33, 0, %s32
    %s35 = sadd.s32 1, %s19
    %s36 = scalar_select %p33, %s35, %s19
    %p37 = scmp.ge.s32.totalorder %s36, 4
    %s38 = scalar_select %p37, 0, %s36
    %s39 = ssub.s32 %s19, %s38
    %s40 = ssub.s32 %s20, %s34
    %s41 = sor.u32 %s39, %s40
    %p42 = scmp.eq.s32.totalorder %s41, 0
    %s44 = sadd.s32 %s43, 1
    %s45 = scalar_select %p42, %s43, %s44
    %p48 = pneg %p42
    %p49 = scmp.eq.s32.totalorder %s12, 3
    %p50 = por %p48, %p49
    %p51 = scmp.ne.s32.totalorder %s43, %s46
    %p52 = scmp.eq.s32.totalorder %s12, 0
    %p53 = por %p51, %p52
    %p54 = scmp.ne.s32.totalorder %s43, %s46
    %p55 = scmp.eq.s32.totalorder %s17, 3
    %p56 = por %p54, %p55
    %p57 = scmp.ne.s32.totalorder %s46, %s47
    %p58 = scmp.eq.s32.totalorder %s17, 0
    %p59 = por %p57, %p58
    %p60 = scmp.ne.s32.totalorder %s46, %s47
    %p61 = scmp.eq.s32.totalorder %s18, 3
    %p62 = por %p60, %p61
    %p64 = scmp.ne.s32.totalorder %s47, %s63
    %p65 = scmp.eq.s32.totalorder %s18, 0
    %p66 = por %p64, %p65
    %s67 = ssub.s32 %s19, %s38
    %s68 = ssub.s32 %s21, %s30
    %s69 = sor.u32 %s67, %s68
    %p70 = scmp.eq.s32.totalorder %s69, 0
    %s72 = sadd.s32 %s71, 1
    %s73 = scalar_select %p70, %s71, %s72
    %p76 = pneg %p70
    %p77 = scmp.eq.s32.totalorder %s12, 3
    %p78 = por %p76, %p77
    %p79 = scmp.ne.s32.totalorder %s71, %s74
    %p80 = scmp.eq.s32.totalorder %s12, 0
    %p81 = por %p79, %p80
    %p82 = scmp.ne.s32.totalorder %s71, %s74
    %p83 = scmp.eq.s32.totalorder %s17, 3
    %p84 = por %p82, %p83
    %p85 = scmp.ne.s32.totalorder %s74, %s75
    %p86 = scmp.eq.s32.totalorder %s17, 0
    %p87 = por %p85, %p86
    %p88 = scmp.ne.s32.totalorder %s74, %s75
    %p89 = scmp.eq.s32.totalorder %s18, 3
    %p90 = por %p88, %p89
    %p92 = scmp.ne.s32.totalorder %s75, %s91
    %p93 = scmp.eq.s32.totalorder %s18, 0
    %p94 = por %p92, %p93
    %s96 = sadd.s32 %s95, 1
    %p99 = scmp.eq.s32.totalorder %s12, 3
    %p100 = scmp.ne.s32.totalorder %s95, %s97
    %p101 = scmp.eq.s32.totalorder %s12, 0
    %p102 = por %p100, %p101
    %p103 = scmp.ne.s32.totalorder %s95, %s97
    %p104 = scmp.eq.s32.totalorder %s17, 3
    %p105 = por %p103, %p104
    %p106 = scmp.ne.s32.totalorder %s97, %s98
    %p107 = scmp.eq.s32.totalorder %s17, 0
    %p108 = por %p106, %p107
    %p109 = scmp.ne.s32.totalorder %s97, %s98
    %p110 = scmp.eq.s32.totalorder %s18, 3
    %p111 = por %p109, %p110
    %p113 = scmp.ne.s32.totalorder %s98, %s112
    %p114 = scmp.eq.s32.totalorder %s18, 0
    %p115 = por %p113, %p114
    %s117 = sadd.s32 %s116, 1
    %p120 = scmp.eq.s32.totalorder %s12, 3
    %p121 = scmp.ne.s32.totalorder %s116, %s118
    %p122 = scmp.eq.s32.totalorder %s12, 0
    %p123 = por %p121, %p122
    %p124 = scmp.ne.s32.totalorder %s116, %s118
    %p125 = scmp.eq.s32.totalorder %s17, 3
    %p126 = por %p124, %p125
    %p127 = scmp.ne.s32.totalorder %s118, %s119
    %p128 = scmp.eq.s32.totalorder %s17, 0
    %p129 = por %p127, %p128
    %p130 = scmp.ne.s32.totalorder %s118, %s119
    %p131 = scmp.eq.s32.totalorder %s18, 3
    %p132 = por %p130, %p131
    %p134 = scmp.ne.s32.totalorder %s119, %s133
    %p135 = scmp.eq.s32.totalorder %s18, 0
    %p136 = por %p134, %p135
    %s137 = ssub.s32 %s19, %s38
    %s138 = ssub.s32 %s20, %s34
    %s139 = sor.u32 %s137, %s138
    %s140 = ssub.s32 %s21, %s30
    %s141 = sor.u32 %s139, %s140
    %p142 = scmp.eq.s32.totalorder %s141, 0
    %s144 = sadd.s32 %s143, 1
    %s145 = scalar_select %p142, %s143, %s144
    %p148 = pneg %p142
    %p149 = scmp.eq.s32.totalorder %s12, 3
    %p150 = por %p148, %p149
    %p151 = scmp.ne.s32.totalorder %s143, %s146
    %p152 = scmp.eq.s32.totalorder %s12, 0
    %p153 = por %p151, %p152
    %p154 = scmp.ne.s32.totalorder %s143, %s146
    %p155 = scmp.eq.s32.totalorder %s17, 3
    %p156 = por %p154, %p155
    %p157 = scmp.ne.s32.totalorder %s146, %s147
    %p158 = scmp.eq.s32.totalorder %s17, 0
    %p159 = por %p157, %p158
    %p160 = scmp.ne.s32.totalorder %s146, %s147
    %p161 = scmp.eq.s32.totalorder %s18, 3
    %p162 = por %p160, %p161
    %p164 = scmp.ne.s32.totalorder %s147, %s163
    %p165 = scmp.eq.s32.totalorder %s18, 0
    %p166 = por %p164, %p165
    %s167 = ssub.s32 %s19, %s38
    %s168 = ssub.s32 %s20, %s34
    %s169 = sor.u32 %s167, %s168
    %s170 = ssub.s32 %s21, %s30
    %s171 = sor.u32 %s169, %s170
    %p172 = scmp.eq.s32.totalorder %s171, 0
    %s174 = sadd.s32 %s173, 1
    %s175 = scalar_select %p172, %s173, %s174
    %p178 = pneg %p172
    %p179 = scmp.eq.s32.totalorder %s12, 3
    %p180 = por %p178, %p179
    %p181 = scmp.ne.s32.totalorder %s173, %s176
    %p182 = scmp.eq.s32.totalorder %s12, 0
    %p183 = por %p181, %p182
    %p184 = scmp.ne.s32.totalorder %s173, %s176
    %p185 = scmp.eq.s32.totalorder %s17, 3
    %p186 = por %p184, %p185
    %p187 = scmp.ne.s32.totalorder %s176, %s177
    %p188 = scmp.eq.s32.totalorder %s17, 0
    %p189 = por %p187, %p188
    %p190 = scmp.ne.s32.totalorder %s176, %s177
    %p191 = scmp.eq.s32.totalorder %s18, 3
    %p192 = por %p190, %p191
    %p194 = scmp.ne.s32.totalorder %s177, %s193
    %p195 = scmp.eq.s32.totalorder %s18, 0
    %p196 = por %p194, %p195
    %p197 = scmp.le.s32.totalorder 1, %s12
    %p198 = scmp.lt.s32.totalorder %s12, 5
    %p199 = pnand %p197, %p198
    %p200 = pneg %p199
    // Predicated region
    $region9: #{_lambda_.18} parent=5 // pred_check
      _
    $region10: #{_lambda_.18} parent=5 // pred_check_branch
      %202 = sbr.rel (%p199) target = $region12
    $region11: #{_lambda_.18} parent=5 // pred_region
      %s203 = ssub.s32 %s12, 1
      // Predicated region
      $region13: #{_lambda_.18} parent=11 // pred_check
        %p204 = pneg %p108
      $region14: #{_lambda_.18} parent=11 // pred_check_branch
        %206 = sbr.rel (%p204) target = $region16
      $region15: #{_lambda_.18} parent=11 // pred_region
        _
      $region16: #{_lambda_.18} parent=11 // pred_fallthru
        _
      // Predicated region
      $region17: #{_lambda_.18} parent=11 // pred_check
        %p207 = pneg %p129
      $region18: #{_lambda_.18} parent=11 // pred_check_branch
        %209 = sbr.rel (%p207) target = $region20
      $region19: #{_lambda_.18} parent=11 // pred_region
        _
      $region20: #{_lambda_.18} parent=11 // pred_fallthru
        _
    $region12: #{_lambda_.18} parent=5 // pred_fallthru
      _
    %p210 = scmp.lt.s32.totalorder %s12, 4
    // Predicated region
    $region21: #{_lambda_.18} parent=5 // pred_check
      %p211 = pneg %p210
    $region22: #{_lambda_.18} parent=5 // pred_check_branch
      %213 = sbr.rel (%p211) target = $region24
    $region23: #{_lambda_.18} parent=5 // pred_region
      // Predicated region
      $region25: #{_lambda_.18} parent=23 // pred_check
        %p214 = pneg %p53
      $region26: #{_lambda_.18} parent=23 // pred_check_branch
        %216 = sbr.rel (%p214) target = $region28
      $region27: #{_lambda_.18} parent=23 // pred_region
        %s217 = smul.u32 16, %s20
        %p218 = scmp.lt.s32.totalorder %s19, 3
        %s219 = scalar_select %p218, %s19, 3
        %p220 = scmp.lt.s32.totalorder %s217, 15
        %s221 = scalar_select %p220, %s217, 15
        %s222 = smul.addr %s219, 16
        %s223 = sadd.s32 %s221, %s222
        %s224 = smul.addr %s223, 4
        %s225 = scalar_lea.vmem %s0, %s224
        %s226 = smul.u32 16, %s20
      $region28: #{_lambda_.18} parent=23 // pred_fallthru
        _
      // Predicated region
      $region29: #{_lambda_.18} parent=23 // pred_check
        %p227 = pneg %p81
      $region30: #{_lambda_.18} parent=23 // pred_check_branch
        %229 = sbr.rel (%p227) target = $region32
      $region31: #{_lambda_.18} parent=23 // pred_region
        %p230 = scmp.lt.s32.totalorder %s19, 3
        %s231 = scalar_select %p230, %s19, 3
        %p232 = scmp.lt.s32.totalorder %s21, 0
        %s233 = scalar_select %p232, %s21, 0
        %s234 = smul.addr %s231, 16
        %s235 = sadd.s32 %s233, %s234
        %s236 = smul.addr %s235, 4
        %s237 = scalar_lea.vmem %s1, %s236
      $region32: #{_lambda_.18} parent=23 // pred_fallthru
        _
    $region24: #{_lambda_.18} parent=5 // pred_fallthru
      _
    %p238 = scmp.le.s32.totalorder 1, %s12
    %p239 = scmp.lt.s32.totalorder %s12, 5
    %p240 = pnand %p238, %p239
    %p241 = pneg %p240
    // Predicated region
    $region33: #{_lambda_.18} parent=5 // pred_check
      _
    $region34: #{_lambda_.18} parent=5 // pred_check_branch
      %243 = sbr.rel (%p240) target = $region36
    $region35: #{_lambda_.18} parent=5 // pred_region
      %s244 = ssub.s32 %s12, 1
      %s245 = smul.u32 16, %s23
      %p246 = scmp.lt.s32.totalorder %s22, 3
      %s247 = scalar_select %p246, %s22, 3
      %p248 = scmp.lt.s32.totalorder %s245, 15
      %s249 = scalar_select %p248, %s245, 15
      %s250 = smul.addr %s247, 16
      %s251 = sadd.s32 %s249, %s250
      %s252 = smul.addr %s251, 4
      %s253 = scalar_lea.vmem %s0, %s252
      %p254 = pneg %p59
      %p255 = pneg %p56
      %p256 = scmp.lt.s32.totalorder %s22, 3
      %s257 = scalar_select %p256, %s22, 3
      %p258 = scmp.lt.s32.totalorder %s24, 0
      %s259 = scalar_select %p258, %s24, 0
      %s260 = smul.addr %s257, 16
      %s261 = sadd.s32 %s259, %s260
      %s262 = smul.addr %s261, 4
      %s263 = scalar_lea.vmem %s1, %s262
      %p264 = pneg %p87
      %p265 = pneg %p84
      %p266 = pneg %p108
      %p267 = pneg %p105
      %p268 = pneg %p129
      %p269 = pneg %p126
      %p270 = pneg %p159
      %p271 = pneg %p156
      %s272 = smul.u32 16, %s23
      %p273 = scmp.lt.s32.totalorder %s22, 3
      %s274 = scalar_select %p273, %s22, 3
      %p275 = scmp.lt.s32.totalorder %s272, 15
      %s276 = scalar_select %p275, %s272, 15
      %p277 = scmp.lt.s32.totalorder %s24, 0
      %s278 = scalar_select %p277, %s24, 0
      %s279 = sadd.s32 %s278, %s276
      %s280 = smul.addr %s274, 16
      %s281 = sadd.s32 %s279, %s280
      %s282 = smul.addr %s281, 4
      %s283 = scalar_lea.vmem %s4, %s282
      %p284 = pneg %p189
      %p285 = pneg %p186
      %p286 = scmp.lt.s32.totalorder %s22, 3
      %s287 = scalar_select %p286, %s22, 3
      %p288 = scmp.lt.s32.totalorder %s23, 0
      %s289 = scalar_select %p288, %s23, 0
      %p290 = scmp.lt.s32.totalorder %s24, 0
      %s291 = scalar_select %p290, %s24, 0
      %s292 = sadd.s32 %s291, %s289
      %s293 = sadd.s32 %s292, %s287
      %s294 = smul.addr %s293, 2
      %s295 = scalar_lea.vmem %s5, %s294
      %s296 = smul.u32 16, %s23
      %p297 = scmp.lt.s32.totalorder %s22, 3
      %s298 = scalar_select %p297, %s22, 3
      %p299 = scmp.lt.s32.totalorder %s296, 15
      %s300 = scalar_select %p299, %s296, 15
      %s301 = smul.addr %s298, 16
      %s302 = sadd.s32 %s300, %s301
      %s303 = smul.addr %s302, 4
      %s304 = scalar_lea.vmem %s0, %s303
      %s305 = smul.u32 16, %s23
      %p306 = scmp.lt.s32.totalorder %s22, 3
      %s307 = scalar_select %p306, %s22, 3
      %p308 = scmp.lt.s32.totalorder %s24, 0
      %s309 = scalar_select %p308, %s24, 0
      %s310 = smul.addr %s307, 16
      %s311 = sadd.s32 %s309, %s310
      %s312 = smul.addr %s311, 4
      %s313 = scalar_lea.vmem %s1, %s312
      %s314 = smul.u32 16, %s23
      %p315 = scmp.lt.s32.totalorder %s22, 3
      %s316 = scalar_select %p315, %s22, 3
      %p317 = scmp.lt.s32.totalorder %s314, 15
      %s318 = scalar_select %p317, %s314, 15
      %p319 = scmp.lt.s32.totalorder %s24, 0
      %s320 = scalar_select %p319, %s24, 0
      %s321 = sadd.s32 %s320, %s318
      %s322 = smul.addr %s316, 16
      %s323 = sadd.s32 %s321, %s322
      %s324 = smul.addr %s323, 4
      %s325 = scalar_lea.vmem %s4, %s324
      %s326 = smul.u32 16, %s23
      %p327 = scmp.lt.s32.totalorder %s22, 3
      %s328 = scalar_select %p327, %s22, 3
      %p329 = scmp.lt.s32.totalorder %s23, 0
      %s330 = scalar_select %p329, %s23, 0
      %p331 = scmp.lt.s32.totalorder %s24, 0
      %s332 = scalar_select %p331, %s24, 0
      %s333 = sadd.s32 %s332, %s330
      %s334 = sadd.s32 %s333, %s328
      %s335 = smul.addr %s334, 2
      %s336 = scalar_lea.vmem %s5, %s335
      %v338 = vld [vmem:[%s304] sm:$0xf]
      %v339 = vld [vmem:[%s304 + $0x4] sm:$0xf]
      %v340 = vld [vmem:[%s304 + $0x8] sm:$0xf]
      %v341 = vld [vmem:[%s304 + $0xc] sm:$0xf]
      %v342 = vld [vmem:[%s304 + $0x10] sm:$0xf]
      %v343 = vld [vmem:[%s304 + $0x14] sm:$0xf]
      %v344 = vld [vmem:[%s304 + $0x18] sm:$0xf]
      %v345 = vld [vmem:[%s304 + $0x1c] sm:$0xf]
      %v346 = vld [vmem:[%s304 + $0x20] sm:$0xf]
      %v347 = vld [vmem:[%s304 + $0x24] sm:$0xf]
      %v348 = vld [vmem:[%s304 + $0x28] sm:$0xf]
      %v349 = vld [vmem:[%s304 + $0x2c] sm:$0xf]
      %v350 = vld [vmem:[%s304 + $0x30] sm:$0xf]
      %v351 = vld [vmem:[%s304 + $0x34] sm:$0xf]
      %v352 = vld [vmem:[%s304 + $0x38] sm:$0xf]
      %v353 = vld [vmem:[%s304 + $0x3c] sm:$0xf]
      %v354 = vunpack.c.l.bf16 %v338
      %v355 = vunpack.c.l.bf16 %v339
      %v356 = vunpack.c.l.bf16 %v340
      %v357 = vunpack.c.l.bf16 %v341
      %v358 = vunpack.c.l.bf16 %v342
      %v359 = vunpack.c.l.bf16 %v343
      %v360 = vunpack.c.l.bf16 %v344
      %v361 = vunpack.c.l.bf16 %v345
      %v362 = vunpack.c.l.bf16 %v346
      %v363 = vunpack.c.l.bf16 %v347
      %v364 = vunpack.c.l.bf16 %v348
      %v365 = vunpack.c.l.bf16 %v349
      %v366 = vunpack.c.l.bf16 %v350
      %v367 = vunpack.c.l.bf16 %v351
      %v368 = vunpack.c.l.bf16 %v352
      %v369 = vunpack.c.l.bf16 %v353
      %v370 = vld [vmem:[%s2] sm:$0x1]
      %v372 = vlaneseq
      %v373 = vshrl.u32 %v372, 7
      %v374 = vsub.s32 0, %v373
      %v375 = vrot.slane %v370, %v374
      %v377 = vmul.f32 %v354, %v375
      %v378 = vmul.f32 %v355, %v375
      %v379 = vmul.f32 %v356, %v375
      %v380 = vmul.f32 %v357, %v375
      %v381 = vmul.f32 %v358, %v375
      %v382 = vmul.f32 %v359, %v375
      %v383 = vmul.f32 %v360, %v375
      %v384 = vmul.f32 %v361, %v375
      %v385 = vmul.f32 %v362, %v375
      %v386 = vmul.f32 %v363, %v375
      %v387 = vmul.f32 %v364, %v375
      %v388 = vmul.f32 %v365, %v375
      %v389 = vmul.f32 %v366, %v375
      %v390 = vmul.f32 %v367, %v375
      %v391 = vmul.f32 %v368, %v375
      %v392 = vmul.f32 %v369, %v375
      %v393 = vld [vmem:[%s3] sm:$0x1]
      %v395 = vlaneseq
      %v396 = vshrl.u32 %v395, 7
      %v397 = vsub.s32 0, %v396
      %v398 = vrot.slane %v393, %v397
      %v400 = vadd.f32 %v377, %v398
      %v401 = vadd.f32 %v378, %v398
      %v402 = vadd.f32 %v379, %v398
      %v403 = vadd.f32 %v380, %v398
      %v404 = vadd.f32 %v381, %v398
      %v405 = vadd.f32 %v382, %v398
      %v406 = vadd.f32 %v383, %v398
      %v407 = vadd.f32 %v384, %v398
      %v408 = vadd.f32 %v385, %v398
      %v409 = vadd.f32 %v386, %v398
      %v410 = vadd.f32 %v387, %v398
      %v411 = vadd.f32 %v388, %v398
      %v412 = vadd.f32 %v389, %v398
      %v413 = vadd.f32 %v390, %v398
      %v414 = vadd.f32 %v391, %v398
      %v415 = vadd.f32 %v392, %v398
      %v416 = vmax.f32 %v400, 0.0
      %v417 = vmax.f32 %v401, 0.0
      %v418 = vmax.f32 %v402, 0.0
      %v419 = vmax.f32 %v403, 0.0
      %v420 = vmax.f32 %v404, 0.0
      %v421 = vmax.f32 %v405, 0.0
      %v422 = vmax.f32 %v406, 0.0
      %v423 = vmax.f32 %v407, 0.0
      %v424 = vmax.f32 %v408, 0.0
      %v425 = vmax.f32 %v409, 0.0
      %v426 = vmax.f32 %v410, 0.0
      %v427 = vmax.f32 %v411, 0.0
      %v428 = vmax.f32 %v412, 0.0
      %v429 = vmax.f32 %v413, 0.0
      %v430 = vmax.f32 %v414, 0.0
      %v431 = vmax.f32 %v415, 0.0
      %v432 = vpack.c.bf16 %v417, %v416
      %v433 = vpack.c.bf16 %v419, %v418
      %v434 = vpack.c.bf16 %v421, %v420
      %v435 = vpack.c.bf16 %v423, %v422
      %v436 = vpack.c.bf16 %v425, %v424
      %v437 = vpack.c.bf16 %v427, %v426
      %v438 = vpack.c.bf16 %v429, %v428
      %v439 = vpack.c.bf16 %v431, %v430
      %v440 = vld [vmem:[%s313] sm:$0xf]
      %v441 = vld [vmem:[%s313 + $0x4] sm:$0xf]
      %v442 = vld [vmem:[%s313 + $0x8] sm:$0xf]
      %v443 = vld [vmem:[%s313 + $0xc] sm:$0xf]
      %v444 = vld [vmem:[%s313 + $0x10] sm:$0xf]
      %v445 = vld [vmem:[%s313 + $0x14] sm:$0xf]
      %v446 = vld [vmem:[%s313 + $0x18] sm:$0xf]
      %v447 = vld [vmem:[%s313 + $0x1c] sm:$0xf]
      %v448 = vld [vmem:[%s313 + $0x20] sm:$0xf]
      %v449 = vld [vmem:[%s313 + $0x24] sm:$0xf]
      %v450 = vld [vmem:[%s313 + $0x28] sm:$0xf]
      %v451 = vld [vmem:[%s313 + $0x2c] sm:$0xf]
      %v452 = vld [vmem:[%s313 + $0x30] sm:$0xf]
      %v453 = vld [vmem:[%s313 + $0x34] sm:$0xf]
      %v454 = vld [vmem:[%s313 + $0x38] sm:$0xf]
      %v455 = vld [vmem:[%s313 + $0x3c] sm:$0xf]
      %v472 = vunpack.c.l.b16 %v440
      %v473 = vunpack.c.l.b16 %v441
      %v474 = vunpack.c.l.b16 %v442
      %v475 = vunpack.c.l.b16 %v443
      %v476 = vunpack.c.l.b16 %v444
      %v477 = vunpack.c.l.b16 %v445
      %v478 = vunpack.c.l.b16 %v446
      %v479 = vunpack.c.l.b16 %v447
      %v480 = vunpack.c.l.b16 %v448
      %v481 = vunpack.c.l.b16 %v449
      %v482 = vunpack.c.l.b16 %v450
      %v483 = vunpack.c.l.b16 %v451
      %v484 = vunpack.c.l.b16 %v452
      %v485 = vunpack.c.l.b16 %v453
      %v486 = vunpack.c.l.b16 %v454
      %v487 = vunpack.c.l.b16 %v455
      %v488 = vpack.c.b16 %v473, %v472
      %v489 = vpack.c.b16 %v475, %v474
      %v490 = vpack.c.b16 %v477, %v476
      %v491 = vpack.c.b16 %v479, %v478
      %v492 = vpack.c.b16 %v481, %v480
      %v493 = vpack.c.b16 %v483, %v482
      %v494 = vpack.c.b16 %v485, %v484
      %v495 = vpack.c.b16 %v487, %v486
      %504 = vmatprep.subr.bf16.mxu0 0
      %505 = vmatpush1.bf16.msra.mxu0 %v495
      %506 = vmatprep.subr.bf16.mxu0 0
      %507 = vmatpush1.bf16.msra.mxu0 %v494
      %508 = vmatprep.subr.bf16.mxu0 0
      %509 = vmatpush1.bf16.msra.mxu0 %v493
      %510 = vmatprep.subr.bf16.mxu0 0
      %511 = vmatpush1.bf16.msra.mxu0 %v492
      %512 = vmatprep.subr.bf16.mxu0 0
      %513 = vmatpush1.bf16.msra.mxu0 %v491
      %514 = vmatprep.subr.bf16.mxu0 0
      %515 = vmatpush1.bf16.msra.mxu0 %v490
      %516 = vmatprep.subr.bf16.mxu0 0
      %517 = vmatpush1.bf16.msra.mxu0 %v489
      %518 = vmatprep.subr.bf16.mxu0 0
      %519 = vmatpush1.bf16.msra.mxu0 %v488
      %520 = vmatprep.subr.bf16.mxu0 0
      %521 = vmatpush2.bf16.msra.mxu0 0
      %522 = vmatprep.subr.bf16.mxu0 0
      %523 = vmatpush2.bf16.msra.mxu0 0
      %524 = vmatprep.subr.bf16.mxu0 0
      %525 = vmatpush2.bf16.msra.mxu0 0
      %526 = vmatprep.subr.bf16.mxu0 0
      %527 = vmatpush2.bf16.msra.mxu0 0
      %528 = vmatprep.subr.bf16.mxu0 0
      %529 = vmatpush2.bf16.msra.mxu0 0
      %530 = vmatprep.subr.bf16.mxu0 0
      %531 = vmatpush2.bf16.msra.mxu0 0
      %532 = vmatprep.subr.bf16.mxu0 0
      %533 = vmatpush2.bf16.msra.mxu0 0
      %534 = vmatprep.subr.bf16.mxu0 0
      %535 = vmatpush2.bf16.msra.mxu0 0
      %536 = vmatprep.mubr.bf16.mxu0 0
      %537 = vmatmul.mubr.bf16.gmra.mxu0 %v432
      %v538 = vpop.f32.mrf.mxu0
      %v539 = vadd.f32 0.0, %v538
      %v540 = vpop.f32.mrf.mxu0
      %v541 = vpop.f32.mrf.mxu0
      %v542 = vadd.f32 0.0, %v541
      %v543 = vpop.f32.mrf.mxu0
      %544 = vmatprep.mubr.bf16.mxu0 0
      %545 = vmatmul.mubr.bf16.gmra.mxu0 %v433
      %v546 = vpop.f32.mrf.mxu0
      %v547 = vadd.f32 0.0, %v546
      %v548 = vpop.f32.mrf.mxu0
      %v549 = vpop.f32.mrf.mxu0
      %v550 = vadd.f32 0.0, %v549
      %v551 = vpop.f32.mrf.mxu0
      %552 = vmatprep.mubr.bf16.mxu0 0
      %553 = vmatmul.mubr.bf16.gmra.mxu0 %v434
      %v554 = vpop.f32.mrf.mxu0
      %v555 = vadd.f32 0.0, %v554
      %v556 = vpop.f32.mrf.mxu0
      %v557 = vpop.f32.mrf.mxu0
      %v558 = vadd.f32 0.0, %v557
      %v559 = vpop.f32.mrf.mxu0
      %560 = vmatprep.mubr.bf16.mxu0 0
      %561 = vmatmul.mubr.bf16.gmra.mxu0 %v435
      %v562 = vpop.f32.mrf.mxu0
      %v563 = vadd.f32 0.0, %v562
      %v564 = vpop.f32.mrf.mxu0
      %v565 = vpop.f32.mrf.mxu0
      %v566 = vadd.f32 0.0, %v565
      %v567 = vpop.f32.mrf.mxu0
      %568 = vmatprep.mubr.bf16.mxu0 0
      %569 = vmatmul.mubr.bf16.gmra.mxu0 %v436
      %v570 = vpop.f32.mrf.mxu0
      %v571 = vadd.f32 0.0, %v570
      %v572 = vpop.f32.mrf.mxu0
      %v573 = vpop.f32.mrf.mxu0
      %v574 = vadd.f32 0.0, %v573
      %v575 = vpop.f32.mrf.mxu0
      %576 = vmatprep.mubr.bf16.mxu0 0
      %577 = vmatmul.mubr.bf16.gmra.mxu0 %v437
      %v578 = vpop.f32.mrf.mxu0
      %v579 = vadd.f32 0.0, %v578
      %v580 = vpop.f32.mrf.mxu0
      %v581 = vpop.f32.mrf.mxu0
      %v582 = vadd.f32 0.0, %v581
      %v583 = vpop.f32.mrf.mxu0
      %584 = vmatprep.mubr.bf16.mxu0 0
      %585 = vmatmul.mubr.bf16.gmra.mxu0 %v438
      %v586 = vpop.f32.mrf.mxu0
      %v587 = vadd.f32 0.0, %v586
      %v588 = vpop.f32.mrf.mxu0
      %v589 = vpop.f32.mrf.mxu0
      %v590 = vadd.f32 0.0, %v589
      %v591 = vpop.f32.mrf.mxu0
      %592 = vmatprep.mubr.bf16.mxu0 0
      %593 = vmatmul.mubr.bf16.gmra.mxu0 %v439
      %v594 = vpop.f32.mrf.mxu0
      %v595 = vadd.f32 0.0, %v594
      %v596 = vpop.f32.mrf.mxu0
      %v597 = vpop.f32.mrf.mxu0
      %v598 = vadd.f32 0.0, %v597
      %v599 = vpop.f32.mrf.mxu0
      %600 = vdwg.mxu0
      %v601 = vpack.c.bf16 %v542, %v539
      %v602 = vpack.c.bf16 %v550, %v547
      %v603 = vpack.c.bf16 %v558, %v555
      %v604 = vpack.c.bf16 %v566, %v563
      %v605 = vpack.c.bf16 %v574, %v571
      %v606 = vpack.c.bf16 %v582, %v579
      %v607 = vpack.c.bf16 %v590, %v587
      %v608 = vpack.c.bf16 %v598, %v595
      %v617 = vunpack.c.l.b16 %v601
      %v618 = vunpack.c.h.b16 %v601
      %v619 = vunpack.c.l.b16 %v602
      %v620 = vunpack.c.h.b16 %v602
      %v621 = vunpack.c.l.b16 %v603
      %v622 = vunpack.c.h.b16 %v603
      %v623 = vunpack.c.l.b16 %v604
      %v624 = vunpack.c.h.b16 %v604
      %v625 = vunpack.c.l.b16 %v605
      %v626 = vunpack.c.h.b16 %v605
      %v627 = vunpack.c.l.b16 %v606
      %v628 = vunpack.c.h.b16 %v606
      %v629 = vunpack.c.l.b16 %v607
      %v630 = vunpack.c.h.b16 %v607
      %v631 = vunpack.c.l.b16 %v608
      %v632 = vunpack.c.h.b16 %v608
      %v633 = vpack.c.b16 %v617, %v617
      %v634 = vpack.c.b16 %v618, %v618
      %v635 = vpack.c.b16 %v619, %v619
      %v636 = vpack.c.b16 %v620, %v620
      %v637 = vpack.c.b16 %v621, %v621
      %v638 = vpack.c.b16 %v622, %v622
      %v639 = vpack.c.b16 %v623, %v623
      %v640 = vpack.c.b16 %v624, %v624
      %v641 = vpack.c.b16 %v625, %v625
      %v642 = vpack.c.b16 %v626, %v626
      %v643 = vpack.c.b16 %v627, %v627
      %v644 = vpack.c.b16 %v628, %v628
      %v645 = vpack.c.b16 %v629, %v629
      %v646 = vpack.c.b16 %v630, %v630
      %v647 = vpack.c.b16 %v631, %v631
      %v648 = vpack.c.b16 %v632, %v632
      %665 = vst [vmem:[%s325] sm:$0xf] %v633
      %666 = vst [vmem:[%s325 + $0x4] sm:$0xf] %v634
      %667 = vst [vmem:[%s325 + $0x8] sm:$0xf] %v635
      %668 = vst [vmem:[%s325 + $0xc] sm:$0xf] %v636
      %669 = vst [vmem:[%s325 + $0x10] sm:$0xf] %v637
      %670 = vst [vmem:[%s325 + $0x14] sm:$0xf] %v638
      %671 = vst [vmem:[%s325 + $0x18] sm:$0xf] %v639
      %672 = vst [vmem:[%s325 + $0x1c] sm:$0xf] %v640
      %673 = vst [vmem:[%s325 + $0x20] sm:$0xf] %v641
      %674 = vst [vmem:[%s325 + $0x24] sm:$0xf] %v642
      %675 = vst [vmem:[%s325 + $0x28] sm:$0xf] %v643
      %676 = vst [vmem:[%s325 + $0x2c] sm:$0xf] %v644
      %677 = vst [vmem:[%s325 + $0x30] sm:$0xf] %v645
      %678 = vst [vmem:[%s325 + $0x34] sm:$0xf] %v646
      %679 = vst [vmem:[%s325 + $0x38] sm:$0xf] %v647
      %680 = vst [vmem:[%s325 + $0x3c] sm:$0xf] %v648
      %v681 = vlaneseq
      %v682 = vshrl.u32 %v681, 7
      %v683 = vadd.s32 %v682, 8
      %v684 = vadd.s32 %v682, 16
      %v685 = vadd.s32 %v682, 24
      %v686 = vadd.s32 %v682, 32
      %v687 = vadd.s32 %v682, 40
      %v688 = vadd.s32 %v682, 48
      %v689 = vadd.s32 %v682, 56
      %v690 = vadd.s32 %v682, 64
      %v691 = vadd.s32 %v682, 72
      %v692 = vadd.s32 %v682, 80
      %v693 = vadd.s32 %v682, 88
      %v694 = vadd.s32 %v682, 96
      %v695 = vadd.s32 %v682, 104
      %v696 = vadd.s32 %v682, 112
      %v697 = vadd.s32 %v682, 120
      %s698 = smul.u32 %s23, 128
      %v699 = vstv %s698
      %v700 = vadd.s32 %v682, %v699
      %v701 = vadd.s32 %v683, %v699
      %v702 = vadd.s32 %v684, %v699
      %v703 = vadd.s32 %v685, %v699
      %v704 = vadd.s32 %v686, %v699
      %v705 = vadd.s32 %v687, %v699
      %v706 = vadd.s32 %v688, %v699
      %v707 = vadd.s32 %v689, %v699
      %v708 = vadd.s32 %v690, %v699
      %v709 = vadd.s32 %v691, %v699
      %v710 = vadd.s32 %v692, %v699
      %v711 = vadd.s32 %v693, %v699
      %v712 = vadd.s32 %v694, %v699
      %v713 = vadd.s32 %v695, %v699
      %v714 = vadd.s32 %v696, %v699
      %v715 = vadd.s32 %v697, %v699
      %vm716 = vcmp.lt.s32.totalorder %v700, 128
      %vm717 = vcmp.lt.s32.totalorder %v701, 128
      %vm718 = vcmp.lt.s32.totalorder %v702, 128
      %vm719 = vcmp.lt.s32.totalorder %v703, 128
      %vm720 = vcmp.lt.s32.totalorder %v704, 128
      %vm721 = vcmp.lt.s32.totalorder %v705, 128
      %vm722 = vcmp.lt.s32.totalorder %v706, 128
      %vm723 = vcmp.lt.s32.totalorder %v707, 128
      %vm724 = vcmp.lt.s32.totalorder %v708, 128
      %vm725 = vcmp.lt.s32.totalorder %v709, 128
      %vm726 = vcmp.lt.s32.totalorder %v710, 128
      %vm727 = vcmp.lt.s32.totalorder %v711, 128
      %vm728 = vcmp.lt.s32.totalorder %v712, 128
      %vm729 = vcmp.lt.s32.totalorder %v713, 128
      %vm730 = vcmp.lt.s32.totalorder %v714, 128
      %vm731 = vcmp.lt.s32.totalorder %v715, 128
      %v732 = vsel %vm716, %v539, 0.0
      %v733 = vsel %vm717, %v542, 0.0
      %v734 = vsel %vm718, %v547, 0.0
      %v735 = vsel %vm719, %v550, 0.0
      %v736 = vsel %vm720, %v555, 0.0
      %v737 = vsel %vm721, %v558, 0.0
      %v738 = vsel %vm722, %v563, 0.0
      %v739 = vsel %vm723, %v566, 0.0
      %v740 = vsel %vm724, %v571, 0.0
      %v741 = vsel %vm725, %v574, 0.0
      %v742 = vsel %vm726, %v579, 0.0
      %v743 = vsel %vm727, %v582, 0.0
      %v744 = vsel %vm728, %v587, 0.0
      %v745 = vsel %vm729, %v590, 0.0
      %v746 = vsel %vm730, %v595, 0.0
      %v747 = vsel %vm731, %v598, 0.0
      %v748 = vadd.f32 %v732, %v733
      %v749 = vadd.f32 %v748, %v734
      %v750 = vadd.f32 %v749, %v735
      %v751 = vadd.f32 %v750, %v736
      %v752 = vadd.f32 %v751, %v737
      %v753 = vadd.f32 %v752, %v738
      %v754 = vadd.f32 %v753, %v739
      %v755 = vadd.f32 %v754, %v740
      %v756 = vadd.f32 %v755, %v741
      %v757 = vadd.f32 %v756, %v742
      %v758 = vadd.f32 %v757, %v743
      %v759 = vadd.f32 %v758, %v744
      %v760 = vadd.f32 %v759, %v745
      %v761 = vadd.f32 %v760, %v746
      %v762 = vadd.f32 %v761, %v747
      %v763 = vrot.slane %v762, 4
      %v764 = vadd.f32 %v762, %v763
      %v765 = vrot.slane %v764, 2
      %v766 = vadd.f32 %v764, %v765
      %v767 = vrot.slane %v766, 1
      %v768 = vadd.f32 %v766, %v767
      %v769 = vmul.f32 %v732, %v732
      %v770 = vmul.f32 %v733, %v733
      %v771 = vmul.f32 %v734, %v734
      %v772 = vmul.f32 %v735, %v735
      %v773 = vmul.f32 %v736, %v736
      %v774 = vmul.f32 %v737, %v737
      %v775 = vmul.f32 %v738, %v738
      %v776 = vmul.f32 %v739, %v739
      %v777 = vmul.f32 %v740, %v740
      %v778 = vmul.f32 %v741, %v741
      %v779 = vmul.f32 %v742, %v742
      %v780 = vmul.f32 %v743, %v743
      %v781 = vmul.f32 %v744, %v744
      %v782 = vmul.f32 %v745, %v745
      %v783 = vmul.f32 %v746, %v746
      %v784 = vmul.f32 %v747, %v747
      %v785 = vadd.f32 %v769, %v770
      %v786 = vadd.f32 %v785, %v771
      %v787 = vadd.f32 %v786, %v772
      %v788 = vadd.f32 %v787, %v773
      %v789 = vadd.f32 %v788, %v774
      %v790 = vadd.f32 %v789, %v775
      %v791 = vadd.f32 %v790, %v776
      %v792 = vadd.f32 %v791, %v777
      %v793 = vadd.f32 %v792, %v778
      %v794 = vadd.f32 %v793, %v779
      %v795 = vadd.f32 %v794, %v780
      %v796 = vadd.f32 %v795, %v781
      %v797 = vadd.f32 %v796, %v782
      %v798 = vadd.f32 %v797, %v783
      %v799 = vadd.f32 %v798, %v784
      %v800 = vrot.slane %v799, 4
      %v801 = vadd.f32 %v799, %v800
      %v802 = vrot.slane %v801, 2
      %v803 = vadd.f32 %v801, %v802
      %v804 = vrot.slane %v803, 1
      %v805 = vadd.f32 %v803, %v804
      %vm806 = vcmask 1040384
      %v807 = vsel %vm806, %v768, %v805
      %808 = vst [vmem:[%s336] sm:$0x3] %v807
      %s809 = smul.u32 16, %s23
      %p810 = scmp.lt.s32.totalorder %s22, 3
      %s811 = scalar_select %p810, %s22, 3
      %p812 = scmp.lt.s32.totalorder %s809, 15
      %s813 = scalar_select %p812, %s809, 15
      %p814 = scmp.lt.s32.totalorder %s24, 0
      %s815 = scalar_select %p814, %s24, 0
      %s816 = sadd.s32 %s815, %s813
      %s817 = smul.addr %s811, 16
      %s818 = sadd.s32 %s816, %s817
      %s819 = smul.addr %s818, 4
      %s820 = scalar_lea.vmem %s4, %s819
      %p821 = scmp.lt.s32.totalorder %s22, 3
      %s822 = scalar_select %p821, %s22, 3
      %p823 = scmp.lt.s32.totalorder %s23, 0
      %s824 = scalar_select %p823, %s23, 0
      %p825 = scmp.lt.s32.totalorder %s24, 0
      %s826 = scalar_select %p825, %s24, 0
      %s827 = sadd.s32 %s826, %s824
      %s828 = sadd.s32 %s827, %s822
      %s829 = smul.addr %s828, 2
      %s830 = scalar_lea.vmem %s5, %s829
      // Predicated region
      $region37: #{_lambda_.18} parent=35 // pred_check
        %p831 = pneg %p156
      $region38: #{_lambda_.18} parent=35 // pred_check_branch
        %833 = sbr.rel (%p831) target = $region40
      $region39: #{_lambda_.18} parent=35 // pred_region
        %s834 = smul.u32 16, %s23
      $region40: #{_lambda_.18} parent=35 // pred_fallthru
        _
      // Predicated region
      $region41: #{_lambda_.18} parent=35 // pred_check
        %p835 = pneg %p186
      $region42: #{_lambda_.18} parent=35 // pred_check_branch
        %837 = sbr.rel (%p835) target = $region44
      $region43: #{_lambda_.18} parent=35 // pred_region
        _
      $region44: #{_lambda_.18} parent=35 // pred_fallthru
        _
    $region36: #{_lambda_.18} parent=5 // pred_fallthru
      _
    %p838 = scmp.le.s32.totalorder 2, %s12
    // Predicated region
    $region45: #{_lambda_.18} parent=5 // pred_check
      %p839 = pneg %p838
    $region46: #{_lambda_.18} parent=5 // pred_check_branch
      %841 = sbr.rel (%p839) target = $region48
    $region47: #{_lambda_.18} parent=5 // pred_region
      %s842 = ssub.s32 %s12, 2
      // Predicated region
      $region49: #{_lambda_.18} parent=47 // pred_check
        %p843 = pneg %p162
      $region50: #{_lambda_.18} parent=47 // pred_check_branch
        %845 = sbr.rel (%p843) target = $region52
      $region51: #{_lambda_.18} parent=47 // pred_region
        %s846 = smul.u32 16, %s26
        %p847 = scmp.lt.s32.totalorder %s25, 3
        %s848 = scalar_select %p847, %s25, 3
        %p849 = scmp.lt.s32.totalorder %s846, 15
        %s850 = scalar_select %p849, %s846, 15
        %p851 = scmp.lt.s32.totalorder %s27, 0
        %s852 = scalar_select %p851, %s27, 0
        %s853 = sadd.s32 %s852, %s850
        %s854 = smul.addr %s848, 16
        %s855 = sadd.s32 %s853, %s854
        %s856 = smul.addr %s855, 4
        %s857 = scalar_lea.vmem %s4, %s856
      $region52: #{_lambda_.18} parent=47 // pred_fallthru
        _
      // Predicated region
      $region53: #{_lambda_.18} parent=47 // pred_check
        %p858 = pneg %p192
      $region54: #{_lambda_.18} parent=47 // pred_check_branch
        %860 = sbr.rel (%p858) target = $region56
      $region55: #{_lambda_.18} parent=47 // pred_region
        %p861 = scmp.lt.s32.totalorder %s25, 3
        %s862 = scalar_select %p861, %s25, 3
        %p863 = scmp.lt.s32.totalorder %s26, 0
        %s864 = scalar_select %p863, %s26, 0
        %p865 = scmp.lt.s32.totalorder %s27, 0
        %s866 = scalar_select %p865, %s27, 0
        %s867 = sadd.s32 %s866, %s864
        %s868 = sadd.s32 %s867, %s862
        %s869 = smul.addr %s868, 2
        %s870 = scalar_lea.vmem %s5, %s869
      $region56: #{_lambda_.18} parent=47 // pred_fallthru
        _
    $region48: #{_lambda_.18} parent=5 // pred_fallthru
      _
  $region6: #{_lambda_.18} parent=0 // loop_footer
    %s16 = sadd.s32 1, %s12
  $region7: #{_lambda_.18} parent=0 // loop_footer_branch
    %11 = sbr.rel target = $region3
  $region8: #{_lambda_.18} parent=0 // loop_exit
    _

// kernel: _lambda_.19
$region0: #{_lambda_.19}
  #allocation0 [shape = 'u32[]', space=smem, size = 0x4, offset = 0x4, fixed_abs, tag = 'smem constant byte address 0x4 - core index']
  #allocation1 [shape = 'u32[144,128]{1,0:T(1,128)}', space=vmem, size = 0x12000, scoped, tag = 'internal scratch']
  %s0 = inlined_call_operand.vmem [shape: bf16[4,512,64], index: 0, kind: input, shape index: {}]
  %s1 = inlined_call_operand.vmem [shape: bf16[4,64,128], index: 1, kind: input, shape index: {}]
  %s2 = inlined_call_operand.vmem [shape: f32[1,128], index: 2, kind: input, shape index: {}]
  %s3 = inlined_call_operand.vmem [shape: f32[1,64], index: 3, kind: input, shape index: {}]
  %s4 = inlined_call_operand.vmem [shape: f32[1,64], index: 4, kind: input, shape index: {}]
  %s5 = inlined_call_operand.vmem [shape: bf16[4,512,128], index: 5, kind: output, shape index: {}]
  %s6 = sld [smem:[#allocation0]]
  $region53: #{_lambda_.19} parent=0
    _
  %s8 = ssub.s32 1, %s6
  %s9 = scalar_select 0, %s8, %s6
  loop: start=0, step=1, limit=6
  $region2: #{_lambda_.19} parent=0 // loop_pre_header
    _
  $region3: #{_lambda_.19} parent=0 // loop_header
    %s11 = sphi 0, %s15
    %p12 = scmp.ge.s32.totalorder %s11, 6
    %s18 = sphi 0, %s37
    %s19 = sphi 0, %s33
    %s20 = sphi 0, %s29
    %s21 = sphi 0, %s18
    %s22 = sphi 0, %s19
    %s23 = sphi 0, %s20
    %s24 = sphi 0, %s21
    %s25 = sphi 0, %s22
    %s26 = sphi 0, %s23
    %s42 = sphi 0, %s44
    %s45 = sphi 0, %s42
    %s46 = sphi 0, %s45
    %s62 = sphi 0, %s46
    %s70 = sphi 0, %s72
    %s73 = sphi 0, %s70
    %s74 = sphi 0, %s73
    %s90 = sphi 0, %s74
    %s96 = sphi 0, %s98
    %s99 = sphi 0, %s96
    %s100 = sphi 0, %s99
    %s116 = sphi 0, %s100
    %s120 = sphi 0, %s120
    %s122 = sphi 0, %s120
    %s123 = sphi 0, %s122
    %s137 = sphi 0, %s123
    %s141 = sphi 0, %s141
    %s143 = sphi 0, %s141
    %s144 = sphi 0, %s143
    %s158 = sphi 0, %s144
    %s168 = sphi 0, %s170
    %s171 = sphi 0, %s168
    %s172 = sphi 0, %s171
    %s188 = sphi 0, %s172
  $region4: #{_lambda_.19} parent=0 // loop_header_branch
    %14 = sbr.rel (%p12) target = $region8
  $region5: #{_lambda_.19} parent=0 // loop_body
    %s16 = ssub.s32 %s11, 1
    %s17 = ssub.s32 %s11, 2
    %s27 = sadd.s32 1, %s20
    %p28 = scmp.ge.s32.totalorder %s27, 1
    %s29 = scalar_select %p28, 0, %s27
    %s30 = sadd.s32 1, %s19
    %s31 = scalar_select %p28, %s30, %s19
    %p32 = scmp.ge.s32.totalorder %s31, 1
    %s33 = scalar_select %p32, 0, %s31
    %s34 = sadd.s32 1, %s18
    %s35 = scalar_select %p32, %s34, %s18
    %p36 = scmp.ge.s32.totalorder %s35, 4
    %s37 = scalar_select %p36, 0, %s35
    %s38 = ssub.s32 %s18, %s37
    %s39 = ssub.s32 %s19, %s33
    %s40 = sor.u32 %s38, %s39
    %p41 = scmp.eq.s32.totalorder %s40, 0
    %s43 = sadd.s32 %s42, 1
    %s44 = scalar_select %p41, %s42, %s43
    %p47 = pneg %p41
    %p48 = scmp.eq.s32.totalorder %s11, 3
    %p49 = por %p47, %p48
    %p50 = scmp.ne.s32.totalorder %s42, %s45
    %p51 = scmp.eq.s32.totalorder %s11, 0
    %p52 = por %p50, %p51
    %p53 = scmp.ne.s32.totalorder %s42, %s45
    %p54 = scmp.eq.s32.totalorder %s16, 3
    %p55 = por %p53, %p54
    %p56 = scmp.ne.s32.totalorder %s45, %s46
    %p57 = scmp.eq.s32.totalorder %s16, 0
    %p58 = por %p56, %p57
    %p59 = scmp.ne.s32.totalorder %s45, %s46
    %p60 = scmp.eq.s32.totalorder %s17, 3
    %p61 = por %p59, %p60
    %p63 = scmp.ne.s32.totalorder %s46, %s62
    %p64 = scmp.eq.s32.totalorder %s17, 0
    %p65 = por %p63, %p64
    %s66 = ssub.s32 %s18, %s37
    %s67 = ssub.s32 %s20, %s29
    %s68 = sor.u32 %s66, %s67
    %p69 = scmp.eq.s32.totalorder %s68, 0
    %s71 = sadd.s32 %s70, 1
    %s72 = scalar_select %p69, %s70, %s71
    %p75 = pneg %p69
    %p76 = scmp.eq.s32.totalorder %s11, 3
    %p77 = por %p75, %p76
    %p78 = scmp.ne.s32.totalorder %s70, %s73
    %p79 = scmp.eq.s32.totalorder %s11, 0
    %p80 = por %p78, %p79
    %p81 = scmp.ne.s32.totalorder %s70, %s73
    %p82 = scmp.eq.s32.totalorder %s16, 3
    %p83 = por %p81, %p82
    %p84 = scmp.ne.s32.totalorder %s73, %s74
    %p85 = scmp.eq.s32.totalorder %s16, 0
    %p86 = por %p84, %p85
    %p87 = scmp.ne.s32.totalorder %s73, %s74
    %p88 = scmp.eq.s32.totalorder %s17, 3
    %p89 = por %p87, %p88
    %p91 = scmp.ne.s32.totalorder %s74, %s90
    %p92 = scmp.eq.s32.totalorder %s17, 0
    %p93 = por %p91, %p92
    %s94 = ssub.s32 %s20, %s29
    %p95 = scmp.eq.s32.totalorder %s94, 0
    %s97 = sadd.s32 %s96, 1
    %s98 = scalar_select %p95, %s96, %s97
    %p101 = pneg %p95
    %p102 = scmp.eq.s32.totalorder %s11, 3
    %p103 = por %p101, %p102
    %p104 = scmp.ne.s32.totalorder %s96, %s99
    %p105 = scmp.eq.s32.totalorder %s11, 0
    %p106 = por %p104, %p105
    %p107 = scmp.ne.s32.totalorder %s96, %s99
    %p108 = scmp.eq.s32.totalorder %s16, 3
    %p109 = por %p107, %p108
    %p110 = scmp.ne.s32.totalorder %s99, %s100
    %p111 = scmp.eq.s32.totalorder %s16, 0
    %p112 = por %p110, %p111
    %p113 = scmp.ne.s32.totalorder %s99, %s100
    %p114 = scmp.eq.s32.totalorder %s17, 3
    %p115 = por %p113, %p114
    %p117 = scmp.ne.s32.totalorder %s100, %s116
    %p118 = scmp.eq.s32.totalorder %s17, 0
    %p119 = por %p117, %p118
    %s121 = sadd.s32 %s120, 1
    %p124 = scmp.eq.s32.totalorder %s11, 3
    %p125 = scmp.ne.s32.totalorder %s120, %s122
    %p126 = scmp.eq.s32.totalorder %s11, 0
    %p127 = por %p125, %p126
    %p128 = scmp.ne.s32.totalorder %s120, %s122
    %p129 = scmp.eq.s32.totalorder %s16, 3
    %p130 = por %p128, %p129
    %p131 = scmp.ne.s32.totalorder %s122, %s123
    %p132 = scmp.eq.s32.totalorder %s16, 0
    %p133 = por %p131, %p132
    %p134 = scmp.ne.s32.totalorder %s122, %s123
    %p135 = scmp.eq.s32.totalorder %s17, 3
    %p136 = por %p134, %p135
    %p138 = scmp.ne.s32.totalorder %s123, %s137
    %p139 = scmp.eq.s32.totalorder %s17, 0
    %p140 = por %p138, %p139
    %s142 = sadd.s32 %s141, 1
    %p145 = scmp.eq.s32.totalorder %s11, 3
    %p146 = scmp.ne.s32.totalorder %s141, %s143
    %p147 = scmp.eq.s32.totalorder %s11, 0
    %p148 = por %p146, %p147
    %p149 = scmp.ne.s32.totalorder %s141, %s143
    %p150 = scmp.eq.s32.totalorder %s16, 3
    %p151 = por %p149, %p150
    %p152 = scmp.ne.s32.totalorder %s143, %s144
    %p153 = scmp.eq.s32.totalorder %s16, 0
    %p154 = por %p152, %p153
    %p155 = scmp.ne.s32.totalorder %s143, %s144
    %p156 = scmp.eq.s32.totalorder %s17, 3
    %p157 = por %p155, %p156
    %p159 = scmp.ne.s32.totalorder %s144, %s158
    %p160 = scmp.eq.s32.totalorder %s17, 0
    %p161 = por %p159, %p160
    %s162 = ssub.s32 %s18, %s37
    %s163 = ssub.s32 %s19, %s33
    %s164 = sor.u32 %s162, %s163
    %s165 = ssub.s32 %s20, %s29
    %s166 = sor.u32 %s164, %s165
    %p167 = scmp.eq.s32.totalorder %s166, 0
    %s169 = sadd.s32 %s168, 1
    %s170 = scalar_select %p167, %s168, %s169
    %p173 = pneg %p167
    %p174 = scmp.eq.s32.totalorder %s11, 3
    %p175 = por %p173, %p174
    %p176 = scmp.ne.s32.totalorder %s168, %s171
    %p177 = scmp.eq.s32.totalorder %s11, 0
    %p178 = por %p176, %p177
    %p179 = scmp.ne.s32.totalorder %s168, %s171
    %p180 = scmp.eq.s32.totalorder %s16, 3
    %p181 = por %p179, %p180
    %p182 = scmp.ne.s32.totalorder %s171, %s172
    %p183 = scmp.eq.s32.totalorder %s16, 0
    %p184 = por %p182, %p183
    %p185 = scmp.ne.s32.totalorder %s171, %s172
    %p186 = scmp.eq.s32.totalorder %s17, 3
    %p187 = por %p185, %p186
    %p189 = scmp.ne.s32.totalorder %s172, %s188
    %p190 = scmp.eq.s32.totalorder %s17, 0
    %p191 = por %p189, %p190
    %p192 = scmp.le.s32.totalorder 1, %s11
    %p193 = scmp.lt.s32.totalorder %s11, 5
    %p194 = pnand %p192, %p193
    %p195 = pneg %p194
    // Predicated region
    $region9: #{_lambda_.19} parent=5 // pred_check
      _
    $region10: #{_lambda_.19} parent=5 // pred_check_branch
      %197 = sbr.rel (%p194) target = $region12
    $region11: #{_lambda_.19} parent=5 // pred_region
      %s198 = ssub.s32 %s11, 1
      // Predicated region
      $region13: #{_lambda_.19} parent=11 // pred_check
        %p199 = pneg %p112
      $region14: #{_lambda_.19} parent=11 // pred_check_branch
        %201 = sbr.rel (%p199) target = $region16
      $region15: #{_lambda_.19} parent=11 // pred_region
        %p202 = scmp.lt.s32.totalorder %s23, 0
        %s203 = scalar_select %p202, %s23, 0
        %s204 = scalar_lea.vmem %s2, %s203
      $region16: #{_lambda_.19} parent=11 // pred_fallthru
        _
      // Predicated region
      $region17: #{_lambda_.19} parent=11 // pred_check
        %p205 = pneg %p133
      $region18: #{_lambda_.19} parent=11 // pred_check_branch
        %207 = sbr.rel (%p205) target = $region20
      $region19: #{_lambda_.19} parent=11 // pred_region
        _
      $region20: #{_lambda_.19} parent=11 // pred_fallthru
        _
      // Predicated region
      $region21: #{_lambda_.19} parent=11 // pred_check
        %p208 = pneg %p154
      $region22: #{_lambda_.19} parent=11 // pred_check_branch
        %210 = sbr.rel (%p208) target = $region24
      $region23: #{_lambda_.19} parent=11 // pred_region
        _
      $region24: #{_lambda_.19} parent=11 // pred_fallthru
        _
    $region12: #{_lambda_.19} parent=5 // pred_fallthru
      _
    %p211 = scmp.lt.s32.totalorder %s11, 4
    // Predicated region
    $region25: #{_lambda_.19} parent=5 // pred_check
      %p212 = pneg %p211
    $region26: #{_lambda_.19} parent=5 // pred_check_branch
      %214 = sbr.rel (%p212) target = $region28
    $region27: #{_lambda_.19} parent=5 // pred_region
      // Predicated region
      $region29: #{_lambda_.19} parent=27 // pred_check
        %p215 = pneg %p52
      $region30: #{_lambda_.19} parent=27 // pred_check_branch
        %217 = sbr.rel (%p215) target = $region32
      $region31: #{_lambda_.19} parent=27 // pred_region
        %s218 = smul.u32 64, %s19
        %p219 = scmp.lt.s32.totalorder %s18, 3
        %s220 = scalar_select %p219, %s18, 3
        %p221 = scmp.lt.s32.totalorder %s218, 63
        %s222 = scalar_select %p221, %s218, 63
        %s223 = smul.addr %s220, 64
        %s224 = sadd.s32 %s222, %s223
        %s225 = smul.addr %s224, 4
        %s226 = scalar_lea.vmem %s0, %s225
        %s227 = smul.u32 64, %s19
      $region32: #{_lambda_.19} parent=27 // pred_fallthru
        _
      // Predicated region
      $region33: #{_lambda_.19} parent=27 // pred_check
        %p228 = pneg %p80
      $region34: #{_lambda_.19} parent=27 // pred_check_branch
        %230 = sbr.rel (%p228) target = $region36
      $region35: #{_lambda_.19} parent=27 // pred_region
        %p231 = scmp.lt.s32.totalorder %s18, 3
        %s232 = scalar_select %p231, %s18, 3
        %p233 = scmp.lt.s32.totalorder %s20, 0
        %s234 = scalar_select %p233, %s20, 0
        %s235 = smul.addr %s232, 8
        %s236 = sadd.s32 %s234, %s235
        %s237 = smul.addr %s236, 4
        %s238 = scalar_lea.vmem %s1, %s237
      $region36: #{_lambda_.19} parent=27 // pred_fallthru
        _
    $region28: #{_lambda_.19} parent=5 // pred_fallthru
      _
    %p239 = scmp.le.s32.totalorder 1, %s11
    %p240 = scmp.lt.s32.totalorder %s11, 5
    %p241 = pnand %p239, %p240
    %p242 = pneg %p241
    // Predicated region
    $region37: #{_lambda_.19} parent=5 // pred_check
      _
    $region38: #{_lambda_.19} parent=5 // pred_check_branch
      %244 = sbr.rel (%p241) target = $region40
    $region39: #{_lambda_.19} parent=5 // pred_region
      %s245 = ssub.s32 %s11, 1
      %s246 = smul.u32 64, %s22
      %p247 = scmp.lt.s32.totalorder %s21, 3
      %s248 = scalar_select %p247, %s21, 3
      %p249 = scmp.lt.s32.totalorder %s246, 63
      %s250 = scalar_select %p249, %s246, 63
      %s251 = smul.addr %s248, 64
      %s252 = sadd.s32 %s250, %s251
      %s253 = smul.addr %s252, 4
      %s254 = scalar_lea.vmem %s0, %s253
      %p255 = pneg %p58
      %p256 = pneg %p55
      %p257 = scmp.lt.s32.totalorder %s21, 3
      %s258 = scalar_select %p257, %s21, 3
      %p259 = scmp.lt.s32.totalorder %s23, 0
      %s260 = scalar_select %p259, %s23, 0
      %s261 = smul.addr %s258, 8
      %s262 = sadd.s32 %s260, %s261
      %s263 = smul.addr %s262, 4
      %s264 = scalar_lea.vmem %s1, %s263
      %p265 = pneg %p86
      %p266 = pneg %p83
      %p267 = scmp.lt.s32.totalorder %s23, 0
      %s268 = scalar_select %p267, %s23, 0
      %s269 = scalar_lea.vmem %s2, %s268
      %p270 = pneg %p112
      %p271 = pneg %p109
      %p272 = pneg %p133
      %p273 = pneg %p130
      %p274 = pneg %p154
      %p275 = pneg %p151
      %p276 = pneg %p184
      %p277 = pneg %p181
      %s278 = smul.u32 64, %s22
      %p279 = scmp.lt.s32.totalorder %s21, 3
      %s280 = scalar_select %p279, %s21, 3
      %p281 = scmp.lt.s32.totalorder %s278, 63
      %s282 = scalar_select %p281, %s278, 63
      %p283 = scmp.lt.s32.totalorder %s23, 0
      %s284 = scalar_select %p283, %s23, 0
      %s285 = sadd.s32 %s284, %s282
      %s286 = smul.addr %s280, 64
      %s287 = sadd.s32 %s285, %s286
      %s288 = smul.addr %s287, 4
      %s289 = scalar_lea.vmem %s5, %s288
      %s290 = smul.u32 64, %s22
      %p291 = scmp.lt.s32.totalorder %s21, 3
      %s292 = scalar_select %p291, %s21, 3
      %p293 = scmp.lt.s32.totalorder %s290, 63
      %s294 = scalar_select %p293, %s290, 63
      %s295 = smul.addr %s292, 64
      %s296 = sadd.s32 %s294, %s295
      %s297 = smul.addr %s296, 4
      %s298 = scalar_lea.vmem %s0, %s297
      %s299 = smul.u32 64, %s22
      %p300 = scmp.lt.s32.totalorder %s21, 3
      %s301 = scalar_select %p300, %s21, 3
      %p302 = scmp.lt.s32.totalorder %s23, 0
      %s303 = scalar_select %p302, %s23, 0
      %s304 = smul.addr %s301, 8
      %s305 = sadd.s32 %s303, %s304
      %s306 = smul.addr %s305, 4
      %s307 = scalar_lea.vmem %s1, %s306
      %p308 = scmp.lt.s32.totalorder %s23, 0
      %s309 = scalar_select %p308, %s23, 0
      %s310 = scalar_lea.vmem %s2, %s309
      %s311 = smul.u32 64, %s22
      %p312 = scmp.lt.s32.totalorder %s21, 3
      %s313 = scalar_select %p312, %s21, 3
      %p314 = scmp.lt.s32.totalorder %s311, 63
      %s315 = scalar_select %p314, %s311, 63
      %p316 = scmp.lt.s32.totalorder %s23, 0
      %s317 = scalar_select %p316, %s23, 0
      %s318 = sadd.s32 %s317, %s315
      %s319 = smul.addr %s313, 64
      %s320 = sadd.s32 %s318, %s319
      %s321 = smul.addr %s320, 4
      %s322 = scalar_lea.vmem %s5, %s321
      %s323 = smul.u32 64, %s22
      %v325 = vld [vmem:[%s298] sm:$0xf]
      %v326 = vld [vmem:[%s298 + $0x4] sm:$0xf]
      %v327 = vld [vmem:[%s298 + $0x8] sm:$0xf]
      %v328 = vld [vmem:[%s298 + $0xc] sm:$0xf]
      %v329 = vld [vmem:[%s298 + $0x10] sm:$0xf]
      %v330 = vld [vmem:[%s298 + $0x14] sm:$0xf]
      %v331 = vld [vmem:[%s298 + $0x18] sm:$0xf]
      %v332 = vld [vmem:[%s298 + $0x1c] sm:$0xf]
      %v333 = vld [vmem:[%s298 + $0x20] sm:$0xf]
      %v334 = vld [vmem:[%s298 + $0x24] sm:$0xf]
      %v335 = vld [vmem:[%s298 + $0x28] sm:$0xf]
      %v336 = vld [vmem:[%s298 + $0x2c] sm:$0xf]
      %v337 = vld [vmem:[%s298 + $0x30] sm:$0xf]
      %v338 = vld [vmem:[%s298 + $0x34] sm:$0xf]
      %v339 = vld [vmem:[%s298 + $0x38] sm:$0xf]
      %v340 = vld [vmem:[%s298 + $0x3c] sm:$0xf]
      %v341 = vld [vmem:[%s298 + $0x40] sm:$0xf]
      %v342 = vld [vmem:[%s298 + $0x44] sm:$0xf]
      %v343 = vld [vmem:[%s298 + $0x48] sm:$0xf]
      %v344 = vld [vmem:[%s298 + $0x4c] sm:$0xf]
      %v345 = vld [vmem:[%s298 + $0x50] sm:$0xf]
      %v346 = vld [vmem:[%s298 + $0x54] sm:$0xf]
      %v347 = vld [vmem:[%s298 + $0x58] sm:$0xf]
      %v348 = vld [vmem:[%s298 + $0x5c] sm:$0xf]
      %v349 = vld [vmem:[%s298 + $0x60] sm:$0xf]
      %v350 = vld [vmem:[%s298 + $0x64] sm:$0xf]
      %v351 = vld [vmem:[%s298 + $0x68] sm:$0xf]
      %v352 = vld [vmem:[%s298 + $0x6c] sm:$0xf]
      %v353 = vld [vmem:[%s298 + $0x70] sm:$0xf]
      %v354 = vld [vmem:[%s298 + $0x74] sm:$0xf]
      %v355 = vld [vmem:[%s298 + $0x78] sm:$0xf]
      %v356 = vld [vmem:[%s298 + $0x7c] sm:$0xf]
      %v357 = vld [vmem:[%s298 + $0x80] sm:$0xf]
      %v358 = vld [vmem:[%s298 + $0x84] sm:$0xf]
      %v359 = vld [vmem:[%s298 + $0x88] sm:$0xf]
      %v360 = vld [vmem:[%s298 + $0x8c] sm:$0xf]
      %v361 = vld [vmem:[%s298 + $0x90] sm:$0xf]
      %v362 = vld [vmem:[%s298 + $0x94] sm:$0xf]
      %v363 = vld [vmem:[%s298 + $0x98] sm:$0xf]
      %v364 = vld [vmem:[%s298 + $0x9c] sm:$0xf]
      %v365 = vld [vmem:[%s298 + $0xa0] sm:$0xf]
      %v366 = vld [vmem:[%s298 + $0xa4] sm:$0xf]
      %v367 = vld [vmem:[%s298 + $0xa8] sm:$0xf]
      %v368 = vld [vmem:[%s298 + $0xac] sm:$0xf]
      %v369 = vld [vmem:[%s298 + $0xb0] sm:$0xf]
      %v370 = vld [vmem:[%s298 + $0xb4] sm:$0xf]
      %v371 = vld [vmem:[%s298 + $0xb8] sm:$0xf]
      %v372 = vld [vmem:[%s298 + $0xbc] sm:$0xf]
      %v373 = vld [vmem:[%s298 + $0xc0] sm:$0xf]
      %v374 = vld [vmem:[%s298 + $0xc4] sm:$0xf]
      %v375 = vld [vmem:[%s298 + $0xc8] sm:$0xf]
      %v376 = vld [vmem:[%s298 + $0xcc] sm:$0xf]
      %v377 = vld [vmem:[%s298 + $0xd0] sm:$0xf]
      %v378 = vld [vmem:[%s298 + $0xd4] sm:$0xf]
      %v379 = vld [vmem:[%s298 + $0xd8] sm:$0xf]
      %v380 = vld [vmem:[%s298 + $0xdc] sm:$0xf]
      %v381 = vld [vmem:[%s298 + $0xe0] sm:$0xf]
      %v382 = vld [vmem:[%s298 + $0xe4] sm:$0xf]
      %v383 = vld [vmem:[%s298 + $0xe8] sm:$0xf]
      %v384 = vld [vmem:[%s298 + $0xec] sm:$0xf]
      %v385 = vld [vmem:[%s298 + $0xf0] sm:$0xf]
      %v386 = vld [vmem:[%s298 + $0xf4] sm:$0xf]
      %v387 = vld [vmem:[%s298 + $0xf8] sm:$0xf]
      %v388 = vld [vmem:[%s298 + $0xfc] sm:$0xf]
      %v389 = vunpack.c.l.bf16 %v325
      %v390 = vunpack.c.l.bf16 %v326
      %v391 = vunpack.c.l.bf16 %v327
      %v392 = vunpack.c.l.bf16 %v328
      %v393 = vunpack.c.l.bf16 %v329
      %v394 = vunpack.c.l.bf16 %v330
      %v395 = vunpack.c.l.bf16 %v331
      %v396 = vunpack.c.l.bf16 %v332
      %v397 = vunpack.c.l.bf16 %v333
      %v398 = vunpack.c.l.bf16 %v334
      %v399 = vunpack.c.l.bf16 %v335
      %v400 = vunpack.c.l.bf16 %v336
      %v401 = vunpack.c.l.bf16 %v337
      %v402 = vunpack.c.l.bf16 %v338
      %v403 = vunpack.c.l.bf16 %v339
      %v404 = vunpack.c.l.bf16 %v340
      %v405 = vunpack.c.l.bf16 %v341
      %v406 = vunpack.c.l.bf16 %v342
      %v407 = vunpack.c.l.bf16 %v343
      %v408 = vunpack.c.l.bf16 %v344
      %v409 = vunpack.c.l.bf16 %v345
      %v410 = vunpack.c.l.bf16 %v346
      %v411 = vunpack.c.l.bf16 %v347
      %v412 = vunpack.c.l.bf16 %v348
      %v413 = vunpack.c.l.bf16 %v349
      %v414 = vunpack.c.l.bf16 %v350
      %v415 = vunpack.c.l.bf16 %v351
      %v416 = vunpack.c.l.bf16 %v352
      %v417 = vunpack.c.l.bf16 %v353
      %v418 = vunpack.c.l.bf16 %v354
      %v419 = vunpack.c.l.bf16 %v355
      %v420 = vunpack.c.l.bf16 %v356
      %v421 = vunpack.c.l.bf16 %v357
      %v422 = vunpack.c.l.bf16 %v358
      %v423 = vunpack.c.l.bf16 %v359
      %v424 = vunpack.c.l.bf16 %v360
      %v425 = vunpack.c.l.bf16 %v361
      %v426 = vunpack.c.l.bf16 %v362
      %v427 = vunpack.c.l.bf16 %v363
      %v428 = vunpack.c.l.bf16 %v364
      %v429 = vunpack.c.l.bf16 %v365
      %v430 = vunpack.c.l.bf16 %v366
      %v431 = vunpack.c.l.bf16 %v367
      %v432 = vunpack.c.l.bf16 %v368
      %v433 = vunpack.c.l.bf16 %v369
      %v434 = vunpack.c.l.bf16 %v370
      %v435 = vunpack.c.l.bf16 %v371
      %v436 = vunpack.c.l.bf16 %v372
      %v437 = vunpack.c.l.bf16 %v373
      %v438 = vunpack.c.l.bf16 %v374
      %v439 = vunpack.c.l.bf16 %v375
      %v440 = vunpack.c.l.bf16 %v376
      %v441 = vunpack.c.l.bf16 %v377
      %v442 = vunpack.c.l.bf16 %v378
      %v443 = vunpack.c.l.bf16 %v379
      %v444 = vunpack.c.l.bf16 %v380
      %v445 = vunpack.c.l.bf16 %v381
      %v446 = vunpack.c.l.bf16 %v382
      %v447 = vunpack.c.l.bf16 %v383
      %v448 = vunpack.c.l.bf16 %v384
      %v449 = vunpack.c.l.bf16 %v385
      %v450 = vunpack.c.l.bf16 %v386
      %v451 = vunpack.c.l.bf16 %v387
      %v452 = vunpack.c.l.bf16 %v388
      %v453 = vld [vmem:[%s3] sm:$0x1]
      %v455 = vlaneseq
      %v456 = vshrl.u32 %v455, 7
      %v457 = vsub.s32 0, %v456
      %v458 = vrot.slane %v453, %v457
      %v460 = vmul.f32 %v389, %v458
      %v461 = vmul.f32 %v390, %v458
      %v462 = vmul.f32 %v391, %v458
      %v463 = vmul.f32 %v392, %v458
      %v464 = vmul.f32 %v393, %v458
      %v465 = vmul.f32 %v394, %v458
      %v466 = vmul.f32 %v395, %v458
      %v467 = vmul.f32 %v396, %v458
      %v468 = vmul.f32 %v397, %v458
      %v469 = vmul.f32 %v398, %v458
      %v470 = vmul.f32 %v399, %v458
      %v471 = vmul.f32 %v400, %v458
      %v472 = vmul.f32 %v401, %v458
      %v473 = vmul.f32 %v402, %v458
      %v474 = vmul.f32 %v403, %v458
      %v475 = vmul.f32 %v404, %v458
      %v476 = vmul.f32 %v405, %v458
      %v477 = vmul.f32 %v406, %v458
      %v478 = vmul.f32 %v407, %v458
      %v479 = vmul.f32 %v408, %v458
      %v480 = vmul.f32 %v409, %v458
      %v481 = vmul.f32 %v410, %v458
      %v482 = vmul.f32 %v411, %v458
      %v483 = vmul.f32 %v412, %v458
      %v484 = vmul.f32 %v413, %v458
      %v485 = vmul.f32 %v414, %v458
      %v486 = vmul.f32 %v415, %v458
      %v487 = vmul.f32 %v416, %v458
      %v488 = vmul.f32 %v417, %v458
      %v489 = vmul.f32 %v418, %v458
      %v490 = vmul.f32 %v419, %v458
      %v491 = vmul.f32 %v420, %v458
      %v492 = vmul.f32 %v421, %v458
      %v493 = vmul.f32 %v422, %v458
      %v494 = vmul.f32 %v423, %v458
      %v495 = vmul.f32 %v424, %v458
      %v496 = vmul.f32 %v425, %v458
      %v497 = vmul.f32 %v426, %v458
      %v498 = vmul.f32 %v427, %v458
      %v499 = vmul.f32 %v428, %v458
      %v500 = vmul.f32 %v429, %v458
      %v501 = vmul.f32 %v430, %v458
      %v502 = vmul.f32 %v431, %v458
      %v503 = vmul.f32 %v432, %v458
      %v504 = vmul.f32 %v433, %v458
      %v505 = vmul.f32 %v434, %v458
      %v506 = vmul.f32 %v435, %v458
      %v507 = vmul.f32 %v436, %v458
      %v508 = vmul.f32 %v437, %v458
      %v509 = vmul.f32 %v438, %v458
      %v510 = vmul.f32 %v439, %v458
      %v511 = vmul.f32 %v440, %v458
      %v512 = vmul.f32 %v441, %v458
      %v513 = vmul.f32 %v442, %v458
      %v514 = vmul.f32 %v443, %v458
      %v515 = vmul.f32 %v444, %v458
      %v516 = vmul.f32 %v445, %v458
      %v517 = vmul.f32 %v446, %v458
      %v518 = vmul.f32 %v447, %v458
      %v519 = vmul.f32 %v448, %v458
      %v520 = vmul.f32 %v449, %v458
      %v521 = vmul.f32 %v450, %v458
      %v522 = vmul.f32 %v451, %v458
      %v523 = vmul.f32 %v452, %v458
      %v524 = vld [vmem:[%s4] sm:$0x1]
      %v526 = vlaneseq
      %v527 = vshrl.u32 %v526, 7
      %v528 = vsub.s32 0, %v527
      %v529 = vrot.slane %v524, %v528
      %v531 = vadd.f32 %v460, %v529
      %v532 = vadd.f32 %v461, %v529
      %v533 = vadd.f32 %v462, %v529
      %v534 = vadd.f32 %v463, %v529
      %v535 = vadd.f32 %v464, %v529
      %v536 = vadd.f32 %v465, %v529
      %v537 = vadd.f32 %v466, %v529
      %v538 = vadd.f32 %v467, %v529
      %v539 = vadd.f32 %v468, %v529
      %v540 = vadd.f32 %v469, %v529
      %v541 = vadd.f32 %v470, %v529
      %v542 = vadd.f32 %v471, %v529
      %v543 = vadd.f32 %v472, %v529
      %v544 = vadd.f32 %v473, %v529
      %v545 = vadd.f32 %v474, %v529
      %v546 = vadd.f32 %v475, %v529
      %v547 = vadd.f32 %v476, %v529
      %v548 = vadd.f32 %v477, %v529
      %v549 = vadd.f32 %v478, %v529
      %v550 = vadd.f32 %v479, %v529
      %v551 = vadd.f32 %v480, %v529
      %v552 = vadd.f32 %v481, %v529
      %v553 = vadd.f32 %v482, %v529
      %v554 = vadd.f32 %v483, %v529
      %v555 = vadd.f32 %v484, %v529
      %v556 = vadd.f32 %v485, %v529
      %v557 = vadd.f32 %v486, %v529
      %v558 = vadd.f32 %v487, %v529
      %v559 = vadd.f32 %v488, %v529
      %v560 = vadd.f32 %v489, %v529
      %v561 = vadd.f32 %v490, %v529
      %v562 = vadd.f32 %v491, %v529
      %v563 = vadd.f32 %v492, %v529
      %v564 = vadd.f32 %v493, %v529
      %v565 = vadd.f32 %v494, %v529
      %v566 = vadd.f32 %v495, %v529
      %v567 = vadd.f32 %v496, %v529
      %v568 = vadd.f32 %v497, %v529
      %v569 = vadd.f32 %v498, %v529
      %v570 = vadd.f32 %v499, %v529
      %v571 = vadd.f32 %v500, %v529
      %v572 = vadd.f32 %v501, %v529
      %v573 = vadd.f32 %v502, %v529
      %v574 = vadd.f32 %v503, %v529
      %v575 = vadd.f32 %v504, %v529
      %v576 = vadd.f32 %v505, %v529
      %v577 = vadd.f32 %v506, %v529
      %v578 = vadd.f32 %v507, %v529
      %v579 = vadd.f32 %v508, %v529
      %v580 = vadd.f32 %v509, %v529
      %v581 = vadd.f32 %v510, %v529
      %v582 = vadd.f32 %v511, %v529
      %v583 = vadd.f32 %v512, %v529
      %v584 = vadd.f32 %v513, %v529
      %v585 = vadd.f32 %v514, %v529
      %v586 = vadd.f32 %v515, %v529
      %v587 = vadd.f32 %v516, %v529
      %v588 = vadd.f32 %v517, %v529
      %v589 = vadd.f32 %v518, %v529
      %v590 = vadd.f32 %v519, %v529
      %v591 = vadd.f32 %v520, %v529
      %v592 = vadd.f32 %v521, %v529
      %v593 = vadd.f32 %v522, %v529
      %v594 = vadd.f32 %v523, %v529
      %v595 = vmax.f32 %v531, 0.0
      %v596 = vmax.f32 %v532, 0.0
      %v597 = vmax.f32 %v533, 0.0
      %v598 = vmax.f32 %v534, 0.0
      %v599 = vmax.f32 %v535, 0.0
      %v600 = vmax.f32 %v536, 0.0
      %v601 = vmax.f32 %v537, 0.0
      %v602 = vmax.f32 %v538, 0.0
      %v603 = vmax.f32 %v539, 0.0
      %v604 = vmax.f32 %v540, 0.0
      %v605 = vmax.f32 %v541, 0.0
      %v606 = vmax.f32 %v542, 0.0
      %v607 = vmax.f32 %v543, 0.0
      %v608 = vmax.f32 %v544, 0.0
      %v609 = vmax.f32 %v545, 0.0
      %v610 = vmax.f32 %v546, 0.0
      %v611 = vmax.f32 %v547, 0.0
      %v612 = vmax.f32 %v548, 0.0
      %v613 = vmax.f32 %v549, 0.0
      %v614 = vmax.f32 %v550, 0.0
      %v615 = vmax.f32 %v551, 0.0
      %v616 = vmax.f32 %v552, 0.0
      %v617 = vmax.f32 %v553, 0.0
      %v618 = vmax.f32 %v554, 0.0
      %v619 = vmax.f32 %v555, 0.0
      %v620 = vmax.f32 %v556, 0.0
      %v621 = vmax.f32 %v557, 0.0
      %v622 = vmax.f32 %v558, 0.0
      %v623 = vmax.f32 %v559, 0.0
      %v624 = vmax.f32 %v560, 0.0
      %v625 = vmax.f32 %v561, 0.0
      %v626 = vmax.f32 %v562, 0.0
      %v627 = vmax.f32 %v563, 0.0
      %v628 = vmax.f32 %v564, 0.0
      %v629 = vmax.f32 %v565, 0.0
      %v630 = vmax.f32 %v566, 0.0
      %v631 = vmax.f32 %v567, 0.0
      %v632 = vmax.f32 %v568, 0.0
      %v633 = vmax.f32 %v569, 0.0
      %v634 = vmax.f32 %v570, 0.0
      %v635 = vmax.f32 %v571, 0.0
      %v636 = vmax.f32 %v572, 0.0
      %v637 = vmax.f32 %v573, 0.0
      %v638 = vmax.f32 %v574, 0.0
      %v639 = vmax.f32 %v575, 0.0
      %v640 = vmax.f32 %v576, 0.0
      %v641 = vmax.f32 %v577, 0.0
      %v642 = vmax.f32 %v578, 0.0
      %v643 = vmax.f32 %v579, 0.0
      %v644 = vmax.f32 %v580, 0.0
      %v645 = vmax.f32 %v581, 0.0
      %v646 = vmax.f32 %v582, 0.0
      %v647 = vmax.f32 %v583, 0.0
      %v648 = vmax.f32 %v584, 0.0
      %v649 = vmax.f32 %v585, 0.0
      %v650 = vmax.f32 %v586, 0.0
      %v651 = vmax.f32 %v587, 0.0
      %v652 = vmax.f32 %v588, 0.0
      %v653 = vmax.f32 %v589, 0.0
      %v654 = vmax.f32 %v590, 0.0
      %v655 = vmax.f32 %v591, 0.0
      %v656 = vmax.f32 %v592, 0.0
      %v657 = vmax.f32 %v593, 0.0
      %v658 = vmax.f32 %v594, 0.0
      %v659 = vpack.c.bf16 %v596, %v595
      %v660 = vpack.c.bf16 %v598, %v597
      %v661 = vpack.c.bf16 %v600, %v599
      %v662 = vpack.c.bf16 %v602, %v601
      %v663 = vpack.c.bf16 %v604, %v603
      %v664 = vpack.c.bf16 %v606, %v605
      %v665 = vpack.c.bf16 %v608, %v607
      %v666 = vpack.c.bf16 %v610, %v609
      %v667 = vpack.c.bf16 %v612, %v611
      %v668 = vpack.c.bf16 %v614, %v613
      %v669 = vpack.c.bf16 %v616, %v615
      %v670 = vpack.c.bf16 %v618, %v617
      %v671 = vpack.c.bf16 %v620, %v619
      %v672 = vpack.c.bf16 %v622, %v621
      %v673 = vpack.c.bf16 %v624, %v623
      %v674 = vpack.c.bf16 %v626, %v625
      %v675 = vpack.c.bf16 %v628, %v627
      %v676 = vpack.c.bf16 %v630, %v629
      %v677 = vpack.c.bf16 %v632, %v631
      %v678 = vpack.c.bf16 %v634, %v633
      %v679 = vpack.c.bf16 %v636, %v635
      %v680 = vpack.c.bf16 %v638, %v637
      %v681 = vpack.c.bf16 %v640, %v639
      %v682 = vpack.c.bf16 %v642, %v641
      %v683 = vpack.c.bf16 %v644, %v643
      %v684 = vpack.c.bf16 %v646, %v645
      %v685 = vpack.c.bf16 %v648, %v647
      %v686 = vpack.c.bf16 %v650, %v649
      %v687 = vpack.c.bf16 %v652, %v651
      %v688 = vpack.c.bf16 %v654, %v653
      %v689 = vpack.c.bf16 %v656, %v655
      %v690 = vpack.c.bf16 %v658, %v657
      %v691 = vld [vmem:[%s307] sm:$0xf]
      %v692 = vld [vmem:[%s307 + $0x4] sm:$0xf]
      %v693 = vld [vmem:[%s307 + $0x8] sm:$0xf]
      %v694 = vld [vmem:[%s307 + $0xc] sm:$0xf]
      %v695 = vld [vmem:[%s307 + $0x10] sm:$0xf]
      %v696 = vld [vmem:[%s307 + $0x14] sm:$0xf]
      %v697 = vld [vmem:[%s307 + $0x18] sm:$0xf]
      %v698 = vld [vmem:[%s307 + $0x1c] sm:$0xf]
      %v699 = vld [vmem:[%s310] sm:$0x1]
      %v701 = vlaneseq
      %v702 = vshrl.u32 %v701, 7
      %v703 = vsub.s32 0, %v702
      %v704 = vrot.slane %v699, %v703
      %v714 = vunpack.c.l.b16 %v691
      %v715 = vunpack.c.l.b16 %v692
      %v716 = vunpack.c.l.b16 %v693
      %v717 = vunpack.c.l.b16 %v694
      %v718 = vunpack.c.l.b16 %v695
      %v719 = vunpack.c.l.b16 %v696
      %v720 = vunpack.c.l.b16 %v697
      %v721 = vunpack.c.l.b16 %v698
      %v722 = vpack.c.b16 %v715, %v714
      %v723 = vpack.c.b16 %v717, %v716
      %v724 = vpack.c.b16 %v719, %v718
      %v725 = vpack.c.b16 %v721, %v720
      %vm730 = vcmask 523264
      %v732 = vsel %vm730, %v659, 0
      %v735 = vsel %vm730, %v660, 0
      %v738 = vsel %vm730, %v661, 0
      %v741 = vsel %vm730, %v662, 0
      %v744 = vsel %vm730, %v663, 0
      %v747 = vsel %vm730, %v664, 0
      %v750 = vsel %vm730, %v665, 0
      %v753 = vsel %vm730, %v666, 0
      %v756 = vsel %vm730, %v667, 0
      %v759 = vsel %vm730, %v668, 0
      %v762 = vsel %vm730, %v669, 0
      %v765 = vsel %vm730, %v670, 0
      %v768 = vsel %vm730, %v671, 0
      %v771 = vsel %vm730, %v672, 0
      %v774 = vsel %vm730, %v673, 0
      %v777 = vsel %vm730, %v674, 0
      %v780 = vsel %vm730, %v675, 0
      %v783 = vsel %vm730, %v676, 0
      %v786 = vsel %vm730, %v677, 0
      %v789 = vsel %vm730, %v678, 0
      %v792 = vsel %vm730, %v679, 0
      %v795 = vsel %vm730, %v680, 0
      %v798 = vsel %vm730, %v681, 0
      %v801 = vsel %vm730, %v682, 0
      %v804 = vsel %vm730, %v683, 0
      %v807 = vsel %vm730, %v684, 0
      %v810 = vsel %vm730, %v685, 0
      %v813 = vsel %vm730, %v686, 0
      %v816 = vsel %vm730, %v687, 0
      %v819 = vsel %vm730, %v688, 0
      %v822 = vsel %vm730, %v689, 0
      %v825 = vsel %vm730, %v690, 0
      %827 = vmatprep.subr.bf16.mxu0 0
      %828 = vmatpush1.bf16.msra.mxu0 0
      %829 = vmatprep.subr.bf16.mxu0 0
      %830 = vmatpush1.bf16.msra.mxu0 0
      %831 = vmatprep.subr.bf16.mxu0 0
      %832 = vmatpush1.bf16.msra.mxu0 0
      %833 = vmatprep.subr.bf16.mxu0 0
      %834 = vmatpush1.bf16.msra.mxu0 0
      %835 = vmatprep.subr.bf16.mxu0 0
      %836 = vmatpush1.bf16.msra.mxu0 %v725
      %837 = vmatprep.subr.bf16.mxu0 0
      %838 = vmatpush1.bf16.msra.mxu0 %v724
      %839 = vmatprep.subr.bf16.mxu0 0
      %840 = vmatpush1.bf16.msra.mxu0 %v723
      %841 = vmatprep.subr.bf16.mxu0 0
      %842 = vmatpush1.bf16.msra.mxu0 %v722
      %843 = vmatprep.subr.bf16.mxu0 0
      %844 = vmatpush2.bf16.msra.mxu0 0
      %845 = vmatprep.subr.bf16.mxu0 0
      %846 = vmatpush2.bf16.msra.mxu0 0
      %847 = vmatprep.subr.bf16.mxu0 0
      %848 = vmatpush2.bf16.msra.mxu0 0
      %849 = vmatprep.subr.bf16.mxu0 0
      %850 = vmatpush2.bf16.msra.mxu0 0
      %851 = vmatprep.subr.bf16.mxu0 0
      %852 = vmatpush2.bf16.msra.mxu0 0
      %853 = vmatprep.subr.bf16.mxu0 0
      %854 = vmatpush2.bf16.msra.mxu0 0
      %855 = vmatprep.subr.bf16.mxu0 0
      %856 = vmatpush2.bf16.msra.mxu0 0
      %857 = vmatprep.subr.bf16.mxu0 0
      %858 = vmatpush2.bf16.msra.mxu0 0
      %859 = vmatprep.mubr.bf16.mxu0 0
      %860 = vmatmul.mubr.bf16.gmra.mxu0 %v732
      %v861 = vpop.f32.mrf.mxu0
      %v862 = vadd.f32 %v704, %v861
      %v863 = vpop.f32.mrf.mxu0
      %v864 = vpop.f32.mrf.mxu0
      %v865 = vadd.f32 %v704, %v864
      %v866 = vpop.f32.mrf.mxu0
      %867 = vmatprep.mubr.bf16.mxu0 0
      %868 = vmatmul.mubr.bf16.gmra.mxu0 %v735
      %v869 = vpop.f32.mrf.mxu0
      %v870 = vadd.f32 %v704, %v869
      %v871 = vpop.f32.mrf.mxu0
      %v872 = vpop.f32.mrf.mxu0
      %v873 = vadd.f32 %v704, %v872
      %v874 = vpop.f32.mrf.mxu0
      %875 = vmatprep.mubr.bf16.mxu0 0
      %876 = vmatmul.mubr.bf16.gmra.mxu0 %v738
      %v877 = vpop.f32.mrf.mxu0
      %v878 = vadd.f32 %v704, %v877
      %v879 = vpop.f32.mrf.mxu0
      %v880 = vpop.f32.mrf.mxu0
      %v881 = vadd.f32 %v704, %v880
      %v882 = vpop.f32.mrf.mxu0
      %883 = vmatprep.mubr.bf16.mxu0 0
      %884 = vmatmul.mubr.bf16.gmra.mxu0 %v741
      %v885 = vpop.f32.mrf.mxu0
      %v886 = vadd.f32 %v704, %v885
      %v887 = vpop.f32.mrf.mxu0
      %v888 = vpop.f32.mrf.mxu0
      %v889 = vadd.f32 %v704, %v888
      %v890 = vpop.f32.mrf.mxu0
      %891 = vmatprep.mubr.bf16.mxu0 0
      %892 = vmatmul.mubr.bf16.gmra.mxu0 %v744
      %v893 = vpop.f32.mrf.mxu0
      %v894 = vadd.f32 %v704, %v893
      %v895 = vpop.f32.mrf.mxu0
      %v896 = vpop.f32.mrf.mxu0
      %v897 = vadd.f32 %v704, %v896
      %v898 = vpop.f32.mrf.mxu0
      %899 = vmatprep.mubr.bf16.mxu0 0
      %900 = vmatmul.mubr.bf16.gmra.mxu0 %v747
      %v901 = vpop.f32.mrf.mxu0
      %v902 = vadd.f32 %v704, %v901
      %v903 = vpop.f32.mrf.mxu0
      %v904 = vpop.f32.mrf.mxu0
      %v905 = vadd.f32 %v704, %v904
      %v906 = vpop.f32.mrf.mxu0
      %907 = vmatprep.mubr.bf16.mxu0 0
      %908 = vmatmul.mubr.bf16.gmra.mxu0 %v750
      %v909 = vpop.f32.mrf.mxu0
      %v910 = vadd.f32 %v704, %v909
      %v911 = vpop.f32.mrf.mxu0
      %v912 = vpop.f32.mrf.mxu0
      %v913 = vadd.f32 %v704, %v912
      %v914 = vpop.f32.mrf.mxu0
      %915 = vmatprep.mubr.bf16.mxu0 0
      %916 = vmatmul.mubr.bf16.gmra.mxu0 %v753
      %v917 = vpop.f32.mrf.mxu0
      %v918 = vadd.f32 %v704, %v917
      %v919 = vpop.f32.mrf.mxu0
      %v920 = vpop.f32.mrf.mxu0
      %v921 = vadd.f32 %v704, %v920
      %v922 = vpop.f32.mrf.mxu0
      %923 = vmatprep.mubr.bf16.mxu0 0
      %924 = vmatmul.mubr.bf16.gmra.mxu0 %v756
      %v925 = vpop.f32.mrf.mxu0
      %v926 = vadd.f32 %v704, %v925
      %v927 = vpop.f32.mrf.mxu0
      %v928 = vpop.f32.mrf.mxu0
      %v929 = vadd.f32 %v704, %v928
      %v930 = vpop.f32.mrf.mxu0
      %931 = vmatprep.mubr.bf16.mxu0 0
      %932 = vmatmul.mubr.bf16.gmra.mxu0 %v759
      %v933 = vpop.f32.mrf.mxu0
      %v934 = vadd.f32 %v704, %v933
      %v935 = vpop.f32.mrf.mxu0
      %v936 = vpop.f32.mrf.mxu0
      %v937 = vadd.f32 %v704, %v936
      %v938 = vpop.f32.mrf.mxu0
      %939 = vmatprep.mubr.bf16.mxu0 0
      %940 = vmatmul.mubr.bf16.gmra.mxu0 %v762
      %v941 = vpop.f32.mrf.mxu0
      %v942 = vadd.f32 %v704, %v941
      %v943 = vpop.f32.mrf.mxu0
      %v944 = vpop.f32.mrf.mxu0
      %v945 = vadd.f32 %v704, %v944
      %v946 = vpop.f32.mrf.mxu0
      %947 = vmatprep.mubr.bf16.mxu0 0
      %948 = vmatmul.mubr.bf16.gmra.mxu0 %v765
      %v949 = vpop.f32.mrf.mxu0
      %v950 = vadd.f32 %v704, %v949
      %v951 = vpop.f32.mrf.mxu0
      %v952 = vpop.f32.mrf.mxu0
      %v953 = vadd.f32 %v704, %v952
      %v954 = vpop.f32.mrf.mxu0
      %955 = vmatprep.mubr.bf16.mxu0 0
      %956 = vmatmul.mubr.bf16.gmra.mxu0 %v768
      %v957 = vpop.f32.mrf.mxu0
      %v958 = vadd.f32 %v704, %v957
      %v959 = vpop.f32.mrf.mxu0
      %v960 = vpop.f32.mrf.mxu0
      %v961 = vadd.f32 %v704, %v960
      %v962 = vpop.f32.mrf.mxu0
      %963 = vmatprep.mubr.bf16.mxu0 0
      %964 = vmatmul.mubr.bf16.gmra.mxu0 %v771
      %v965 = vpop.f32.mrf.mxu0
      %v966 = vadd.f32 %v704, %v965
      %v967 = vpop.f32.mrf.mxu0
      %v968 = vpop.f32.mrf.mxu0
      %v969 = vadd.f32 %v704, %v968
      %v970 = vpop.f32.mrf.mxu0
      %971 = vmatprep.mubr.bf16.mxu0 0
      %972 = vmatmul.mubr.bf16.gmra.mxu0 %v774
      %v973 = vpop.f32.mrf.mxu0
      %v974 = vadd.f32 %v704, %v973
      %v975 = vpop.f32.mrf.mxu0
      %v976 = vpop.f32.mrf.mxu0
      %v977 = vadd.f32 %v704, %v976
      %v978 = vpop.f32.mrf.mxu0
      %979 = vmatprep.mubr.bf16.mxu0 0
      %980 = vmatmul.mubr.bf16.gmra.mxu0 %v777
      %v981 = vpop.f32.mrf.mxu0
      %v982 = vadd.f32 %v704, %v981
      %v983 = vpop.f32.mrf.mxu0
      %v984 = vpop.f32.mrf.mxu0
      %v985 = vadd.f32 %v704, %v984
      %v986 = vpop.f32.mrf.mxu0
      %987 = vmatprep.mubr.bf16.mxu0 0
      %988 = vmatmul.mubr.bf16.gmra.mxu0 %v780
      %v989 = vpop.f32.mrf.mxu0
      %v990 = vadd.f32 %v704, %v989
      %v991 = vpop.f32.mrf.mxu0
      %v992 = vpop.f32.mrf.mxu0
      %v993 = vadd.f32 %v704, %v992
      %v994 = vpop.f32.mrf.mxu0
      %995 = vmatprep.mubr.bf16.mxu0 0
      %996 = vmatmul.mubr.bf16.gmra.mxu0 %v783
      %v997 = vpop.f32.mrf.mxu0
      %v998 = vadd.f32 %v704, %v997
      %v999 = vpop.f32.mrf.mxu0
      %v1000 = vpop.f32.mrf.mxu0
      %v1001 = vadd.f32 %v704, %v1000
      %v1002 = vpop.f32.mrf.mxu0
      %1003 = vmatprep.mubr.bf16.mxu0 0
      %1004 = vmatmul.mubr.bf16.gmra.mxu0 %v786
      %v1005 = vpop.f32.mrf.mxu0
      %v1006 = vadd.f32 %v704, %v1005
      %v1007 = vpop.f32.mrf.mxu0
      %v1008 = vpop.f32.mrf.mxu0
      %v1009 = vadd.f32 %v704, %v1008
      %v1010 = vpop.f32.mrf.mxu0
      %1011 = vmatprep.mubr.bf16.mxu0 0
      %1012 = vmatmul.mubr.bf16.gmra.mxu0 %v789
      %v1013 = vpop.f32.mrf.mxu0
      %v1014 = vadd.f32 %v704, %v1013
      %v1015 = vpop.f32.mrf.mxu0
      %v1016 = vpop.f32.mrf.mxu0
      %v1017 = vadd.f32 %v704, %v1016
      %v1018 = vpop.f32.mrf.mxu0
      %1019 = vmatprep.mubr.bf16.mxu0 0
      %1020 = vmatmul.mubr.bf16.gmra.mxu0 %v792
      %v1021 = vpop.f32.mrf.mxu0
      %v1022 = vadd.f32 %v704, %v1021
      %v1023 = vpop.f32.mrf.mxu0
      %v1024 = vpop.f32.mrf.mxu0
      %v1025 = vadd.f32 %v704, %v1024
      %v1026 = vpop.f32.mrf.mxu0
      %1027 = vmatprep.mubr.bf16.mxu0 0
      %1028 = vmatmul.mubr.bf16.gmra.mxu0 %v795
      %v1029 = vpop.f32.mrf.mxu0
      %v1030 = vadd.f32 %v704, %v1029
      %v1031 = vpop.f32.mrf.mxu0
      %v1032 = vpop.f32.mrf.mxu0
      %v1033 = vadd.f32 %v704, %v1032
      %v1034 = vpop.f32.mrf.mxu0
      %1035 = vmatprep.mubr.bf16.mxu0 0
      %1036 = vmatmul.mubr.bf16.gmra.mxu0 %v798
      %v1037 = vpop.f32.mrf.mxu0
      %v1038 = vadd.f32 %v704, %v1037
      %v1039 = vpop.f32.mrf.mxu0
      %v1040 = vpop.f32.mrf.mxu0
      %v1041 = vadd.f32 %v704, %v1040
      %v1042 = vpop.f32.mrf.mxu0
      %1043 = vmatprep.mubr.bf16.mxu0 0
      %1044 = vmatmul.mubr.bf16.gmra.mxu0 %v801
      %v1045 = vpop.f32.mrf.mxu0
      %v1046 = vadd.f32 %v704, %v1045
      %v1047 = vpop.f32.mrf.mxu0
      %v1048 = vpop.f32.mrf.mxu0
      %v1049 = vadd.f32 %v704, %v1048
      %v1050 = vpop.f32.mrf.mxu0
      %1051 = vmatprep.mubr.bf16.mxu0 0
      %1052 = vmatmul.mubr.bf16.gmra.mxu0 %v804
      %v1053 = vpop.f32.mrf.mxu0
      %v1054 = vadd.f32 %v704, %v1053
      %v1055 = vpop.f32.mrf.mxu0
      %v1056 = vpop.f32.mrf.mxu0
      %v1057 = vadd.f32 %v704, %v1056
      %v1058 = vpop.f32.mrf.mxu0
      %1059 = vmatprep.mubr.bf16.mxu0 0
      %1060 = vmatmul.mubr.bf16.gmra.mxu0 %v807
      %v1061 = vpop.f32.mrf.mxu0
      %v1062 = vadd.f32 %v704, %v1061
      %v1063 = vpop.f32.mrf.mxu0
      %v1064 = vpop.f32.mrf.mxu0
      %v1065 = vadd.f32 %v704, %v1064
      %v1066 = vpop.f32.mrf.mxu0
      %1067 = vmatprep.mubr.bf16.mxu0 0
      %1068 = vmatmul.mubr.bf16.gmra.mxu0 %v810
      %v1069 = vpop.f32.mrf.mxu0
      %v1070 = vadd.f32 %v704, %v1069
      %v1071 = vpop.f32.mrf.mxu0
      %v1072 = vpop.f32.mrf.mxu0
      %v1073 = vadd.f32 %v704, %v1072
      %v1074 = vpop.f32.mrf.mxu0
      %1075 = vmatprep.mubr.bf16.mxu0 0
      %1076 = vmatmul.mubr.bf16.gmra.mxu0 %v813
      %v1077 = vpop.f32.mrf.mxu0
      %v1078 = vadd.f32 %v704, %v1077
      %v1079 = vpop.f32.mrf.mxu0
      %v1080 = vpop.f32.mrf.mxu0
      %v1081 = vadd.f32 %v704, %v1080
      %v1082 = vpop.f32.mrf.mxu0
      %1083 = vmatprep.mubr.bf16.mxu0 0
      %1084 = vmatmul.mubr.bf16.gmra.mxu0 %v816
      %v1085 = vpop.f32.mrf.mxu0
      %v1086 = vadd.f32 %v704, %v1085
      %v1087 = vpop.f32.mrf.mxu0
      %v1088 = vpop.f32.mrf.mxu0
      %v1089 = vadd.f32 %v704, %v1088
      %v1090 = vpop.f32.mrf.mxu0
      %1091 = vmatprep.mubr.bf16.mxu0 0
      %1092 = vmatmul.mubr.bf16.gmra.mxu0 %v819
      %v1093 = vpop.f32.mrf.mxu0
      %v1094 = vadd.f32 %v704, %v1093
      %v1095 = vpop.f32.mrf.mxu0
      %v1096 = vpop.f32.mrf.mxu0
      %v1097 = vadd.f32 %v704, %v1096
      %v1098 = vpop.f32.mrf.mxu0
      %1099 = vmatprep.mubr.bf16.mxu0 0
      %1100 = vmatmul.mubr.bf16.gmra.mxu0 %v822
      %v1101 = vpop.f32.mrf.mxu0
      %v1102 = vadd.f32 %v704, %v1101
      %v1103 = vpop.f32.mrf.mxu0
      %v1104 = vpop.f32.mrf.mxu0
      %v1105 = vadd.f32 %v704, %v1104
      %v1106 = vpop.f32.mrf.mxu0
      %1107 = vmatprep.mubr.bf16.mxu0 0
      %1108 = vmatmul.mubr.bf16.gmra.mxu0 %v825
      %v1109 = vpop.f32.mrf.mxu0
      %v1110 = vadd.f32 %v704, %v1109
      %v1111 = vpop.f32.mrf.mxu0
      %v1112 = vpop.f32.mrf.mxu0
      %v1113 = vadd.f32 %v704, %v1112
      %v1114 = vpop.f32.mrf.mxu0
      %1115 = vdwg.mxu0
      %v1116 = vtanh.pop %v862
      %v1117 = vtanh.pop %v865
      %v1118 = vtanh.pop %v870
      %v1119 = vtanh.pop %v873
      %v1120 = vtanh.pop %v878
      %v1121 = vtanh.pop %v881
      %v1122 = vtanh.pop %v886
      %v1123 = vtanh.pop %v889
      %v1124 = vtanh.pop %v894
      %v1125 = vtanh.pop %v897
      %v1126 = vtanh.pop %v902
      %v1127 = vtanh.pop %v905
      %v1128 = vtanh.pop %v910
      %v1129 = vtanh.pop %v913
      %v1130 = vtanh.pop %v918
      %v1131 = vtanh.pop %v921
      %v1132 = vtanh.pop %v926
      %v1133 = vtanh.pop %v929
      %v1134 = vtanh.pop %v934
      %v1135 = vtanh.pop %v937
      %v1136 = vtanh.pop %v942
      %v1137 = vtanh.pop %v945
      %v1138 = vtanh.pop %v950
      %v1139 = vtanh.pop %v953
      %v1140 = vtanh.pop %v958
      %v1141 = vtanh.pop %v961
      %v1142 = vtanh.pop %v966
      %v1143 = vtanh.pop %v969
      %v1144 = vtanh.pop %v974
      %v1145 = vtanh.pop %v977
      %v1146 = vtanh.pop %v982
      %v1147 = vtanh.pop %v985
      %v1148 = vtanh.pop %v990
      %v1149 = vtanh.pop %v993
      %v1150 = vtanh.pop %v998
      %v1151 = vtanh.pop %v1001
      %v1152 = vtanh.pop %v1006
      %v1153 = vtanh.pop %v1009
      %v1154 = vtanh.pop %v1014
      %v1155 = vtanh.pop %v1017
      %v1156 = vtanh.pop %v1022
      %v1157 = vtanh.pop %v1025
      %v1158 = vtanh.pop %v1030
      %v1159 = vtanh.pop %v1033
      %v1160 = vtanh.pop %v1038
      %v1161 = vtanh.pop %v1041
      %v1162 = vtanh.pop %v1046
      %v1163 = vtanh.pop %v1049
      %v1164 = vtanh.pop %v1054
      %v1165 = vtanh.pop %v1057
      %v1166 = vtanh.pop %v1062
      %v1167 = vtanh.pop %v1065
      %v1168 = vtanh.pop %v1070
      %v1169 = vtanh.pop %v1073
      %v1170 = vtanh.pop %v1078
      %v1171 = vtanh.pop %v1081
      %v1172 = vtanh.pop %v1086
      %v1173 = vtanh.pop %v1089
      %v1174 = vtanh.pop %v1094
      %v1175 = vtanh.pop %v1097
      %v1176 = vtanh.pop %v1102
      %v1177 = vtanh.pop %v1105
      %v1178 = vtanh.pop %v1110
      %v1179 = vtanh.pop %v1113
      %v1180 = vpack.c.bf16 %v1117, %v1116
      %v1181 = vpack.c.bf16 %v1119, %v1118
      %v1182 = vpack.c.bf16 %v1121, %v1120
      %v1183 = vpack.c.bf16 %v1123, %v1122
      %v1184 = vpack.c.bf16 %v1125, %v1124
      %v1185 = vpack.c.bf16 %v1127, %v1126
      %v1186 = vpack.c.bf16 %v1129, %v1128
      %v1187 = vpack.c.bf16 %v1131, %v1130
      %v1188 = vpack.c.bf16 %v1133, %v1132
      %v1189 = vpack.c.bf16 %v1135, %v1134
      %v1190 = vpack.c.bf16 %v1137, %v1136
      %v1191 = vpack.c.bf16 %v1139, %v1138
      %v1192 = vpack.c.bf16 %v1141, %v1140
      %v1193 = vpack.c.bf16 %v1143, %v1142
      %v1194 = vpack.c.bf16 %v1145, %v1144
      %v1195 = vpack.c.bf16 %v1147, %v1146
      %v1196 = vpack.c.bf16 %v1149, %v1148
      %v1197 = vpack.c.bf16 %v1151, %v1150
      %v1198 = vpack.c.bf16 %v1153, %v1152
      %v1199 = vpack.c.bf16 %v1155, %v1154
      %v1200 = vpack.c.bf16 %v1157, %v1156
      %v1201 = vpack.c.bf16 %v1159, %v1158
      %v1202 = vpack.c.bf16 %v1161, %v1160
      %v1203 = vpack.c.bf16 %v1163, %v1162
      %v1204 = vpack.c.bf16 %v1165, %v1164
      %v1205 = vpack.c.bf16 %v1167, %v1166
      %v1206 = vpack.c.bf16 %v1169, %v1168
      %v1207 = vpack.c.bf16 %v1171, %v1170
      %v1208 = vpack.c.bf16 %v1173, %v1172
      %v1209 = vpack.c.bf16 %v1175, %v1174
      %v1210 = vpack.c.bf16 %v1177, %v1176
      %v1211 = vpack.c.bf16 %v1179, %v1178
      %v1244 = vunpack.c.l.b16 %v1180
      %v1245 = vunpack.c.h.b16 %v1180
      %v1246 = vunpack.c.l.b16 %v1181
      %v1247 = vunpack.c.h.b16 %v1181
      %v1248 = vunpack.c.l.b16 %v1182
      %v1249 = vunpack.c.h.b16 %v1182
      %v1250 = vunpack.c.l.b16 %v1183
      %v1251 = vunpack.c.h.b16 %v1183
      %v1252 = vunpack.c.l.b16 %v1184
      %v1253 = vunpack.c.h.b16 %v1184
      %v1254 = vunpack.c.l.b16 %v1185
      %v1255 = vunpack.c.h.b16 %v1185
      %v1256 = vunpack.c.l.b16 %v1186
      %v1257 = vunpack.c.h.b16 %v1186
      %v1258 = vunpack.c.l.b16 %v1187
      %v1259 = vunpack.c.h.b16 %v1187
      %v1260 = vunpack.c.l.b16 %v1188
      %v1261 = vunpack.c.h.b16 %v1188
      %v1262 = vunpack.c.l.b16 %v1189
      %v1263 = vunpack.c.h.b16 %v1189
      %v1264 = vunpack.c.l.b16 %v1190
      %v1265 = vunpack.c.h.b16 %v1190
      %v1266 = vunpack.c.l.b16 %v1191
      %v1267 = vunpack.c.h.b16 %v1191
      %v1268 = vunpack.c.l.b16 %v1192
      %v1269 = vunpack.c.h.b16 %v1192
      %v1270 = vunpack.c.l.b16 %v1193
      %v1271 = vunpack.c.h.b16 %v1193
      %v1272 = vunpack.c.l.b16 %v1194
      %v1273 = vunpack.c.h.b16 %v1194
      %v1274 = vunpack.c.l.b16 %v1195
      %v1275 = vunpack.c.h.b16 %v1195
      %v1276 = vunpack.c.l.b16 %v1196
      %v1277 = vunpack.c.h.b16 %v1196
      %v1278 = vunpack.c.l.b16 %v1197
      %v1279 = vunpack.c.h.b16 %v1197
      %v1280 = vunpack.c.l.b16 %v1198
      %v1281 = vunpack.c.h.b16 %v1198
      %v1282 = vunpack.c.l.b16 %v1199
      %v1283 = vunpack.c.h.b16 %v1199
      %v1284 = vunpack.c.l.b16 %v1200
      %v1285 = vunpack.c.h.b16 %v1200
      %v1286 = vunpack.c.l.b16 %v1201
      %v1287 = vunpack.c.h.b16 %v1201
      %v1288 = vunpack.c.l.b16 %v1202
      %v1289 = vunpack.c.h.b16 %v1202
      %v1290 = vunpack.c.l.b16 %v1203
      %v1291 = vunpack.c.h.b16 %v1203
      %v1292 = vunpack.c.l.b16 %v1204
      %v1293 = vunpack.c.h.b16 %v1204
      %v1294 = vunpack.c.l.b16 %v1205
      %v1295 = vunpack.c.h.b16 %v1205
      %v1296 = vunpack.c.l.b16 %v1206
      %v1297 = vunpack.c.h.b16 %v1206
      %v1298 = vunpack.c.l.b16 %v1207
      %v1299 = vunpack.c.h.b16 %v1207
      %v1300 = vunpack.c.l.b16 %v1208
      %v1301 = vunpack.c.h.b16 %v1208
      %v1302 = vunpack.c.l.b16 %v1209
      %v1303 = vunpack.c.h.b16 %v1209
      %v1304 = vunpack.c.l.b16 %v1210
      %v1305 = vunpack.c.h.b16 %v1210
      %v1306 = vunpack.c.l.b16 %v1211
      %v1307 = vunpack.c.h.b16 %v1211
      %v1308 = vpack.c.b16 %v1244, %v1244
      %v1309 = vpack.c.b16 %v1245, %v1245
      %v1310 = vpack.c.b16 %v1246, %v1246
      %v1311 = vpack.c.b16 %v1247, %v1247
      %v1312 = vpack.c.b16 %v1248, %v1248
      %v1313 = vpack.c.b16 %v1249, %v1249
      %v1314 = vpack.c.b16 %v1250, %v1250
      %v1315 = vpack.c.b16 %v1251, %v1251
      %v1316 = vpack.c.b16 %v1252, %v1252
      %v1317 = vpack.c.b16 %v1253, %v1253
      %v1318 = vpack.c.b16 %v1254, %v1254
      %v1319 = vpack.c.b16 %v1255, %v1255
      %v1320 = vpack.c.b16 %v1256, %v1256
      %v1321 = vpack.c.b16 %v1257, %v1257
      %v1322 = vpack.c.b16 %v1258, %v1258
      %v1323 = vpack.c.b16 %v1259, %v1259
      %v1324 = vpack.c.b16 %v1260, %v1260
      %v1325 = vpack.c.b16 %v1261, %v1261
      %v1326 = vpack.c.b16 %v1262, %v1262
      %v1327 = vpack.c.b16 %v1263, %v1263
      %v1328 = vpack.c.b16 %v1264, %v1264
      %v1329 = vpack.c.b16 %v1265, %v1265
      %v1330 = vpack.c.b16 %v1266, %v1266
      %v1331 = vpack.c.b16 %v1267, %v1267
      %v1332 = vpack.c.b16 %v1268, %v1268
      %v1333 = vpack.c.b16 %v1269, %v1269
      %v1334 = vpack.c.b16 %v1270, %v1270
      %v1335 = vpack.c.b16 %v1271, %v1271
      %v1336 = vpack.c.b16 %v1272, %v1272
      %v1337 = vpack.c.b16 %v1273, %v1273
      %v1338 = vpack.c.b16 %v1274, %v1274
      %v1339 = vpack.c.b16 %v1275, %v1275
      %v1340 = vpack.c.b16 %v1276, %v1276
      %v1341 = vpack.c.b16 %v1277, %v1277
      %v1342 = vpack.c.b16 %v1278, %v1278
      %v1343 = vpack.c.b16 %v1279, %v1279
      %v1344 = vpack.c.b16 %v1280, %v1280
      %v1345 = vpack.c.b16 %v1281, %v1281
      %v1346 = vpack.c.b16 %v1282, %v1282
      %v1347 = vpack.c.b16 %v1283, %v1283
      %v1348 = vpack.c.b16 %v1284, %v1284
      %v1349 = vpack.c.b16 %v1285, %v1285
      %v1350 = vpack.c.b16 %v1286, %v1286
      %v1351 = vpack.c.b16 %v1287, %v1287
      %v1352 = vpack.c.b16 %v1288, %v1288
      %v1353 = vpack.c.b16 %v1289, %v1289
      %v1354 = vpack.c.b16 %v1290, %v1290
      %v1355 = vpack.c.b16 %v1291, %v1291
      %v1356 = vpack.c.b16 %v1292, %v1292
      %v1357 = vpack.c.b16 %v1293, %v1293
      %v1358 = vpack.c.b16 %v1294, %v1294
      %v1359 = vpack.c.b16 %v1295, %v1295
      %v1360 = vpack.c.b16 %v1296, %v1296
      %v1361 = vpack.c.b16 %v1297, %v1297
      %v1362 = vpack.c.b16 %v1298, %v1298
      %v1363 = vpack.c.b16 %v1299, %v1299
      %v1364 = vpack.c.b16 %v1300, %v1300
      %v1365 = vpack.c.b16 %v1301, %v1301
      %v1366 = vpack.c.b16 %v1302, %v1302
      %v1367 = vpack.c.b16 %v1303, %v1303
      %v1368 = vpack.c.b16 %v1304, %v1304
      %v1369 = vpack.c.b16 %v1305, %v1305
      %v1370 = vpack.c.b16 %v1306, %v1306
      %v1371 = vpack.c.b16 %v1307, %v1307
      %1436 = vst [vmem:[%s322] sm:$0xf] %v1308
      %1437 = vst [vmem:[%s322 + $0x4] sm:$0xf] %v1309
      %1438 = vst [vmem:[%s322 + $0x8] sm:$0xf] %v1310
      %1439 = vst [vmem:[%s322 + $0xc] sm:$0xf] %v1311
      %1440 = vst [vmem:[%s322 + $0x10] sm:$0xf] %v1312
      %1441 = vst [vmem:[%s322 + $0x14] sm:$0xf] %v1313
      %1442 = vst [vmem:[%s322 + $0x18] sm:$0xf] %v1314
      %1443 = vst [vmem:[%s322 + $0x1c] sm:$0xf] %v1315
      %1444 = vst [vmem:[%s322 + $0x20] sm:$0xf] %v1316
      %1445 = vst [vmem:[%s322 + $0x24] sm:$0xf] %v1317
      %1446 = vst [vmem:[%s322 + $0x28] sm:$0xf] %v1318
      %1447 = vst [vmem:[%s322 + $0x2c] sm:$0xf] %v1319
      %1448 = vst [vmem:[%s322 + $0x30] sm:$0xf] %v1320
      %1449 = vst [vmem:[%s322 + $0x34] sm:$0xf] %v1321
      %1450 = vst [vmem:[%s322 + $0x38] sm:$0xf] %v1322
      %1451 = vst [vmem:[%s322 + $0x3c] sm:$0xf] %v1323
      %1452 = vst [vmem:[%s322 + $0x40] sm:$0xf] %v1324
      %1453 = vst [vmem:[%s322 + $0x44] sm:$0xf] %v1325
      %1454 = vst [vmem:[%s322 + $0x48] sm:$0xf] %v1326
      %1455 = vst [vmem:[%s322 + $0x4c] sm:$0xf] %v1327
      %1456 = vst [vmem:[%s322 + $0x50] sm:$0xf] %v1328
      %1457 = vst [vmem:[%s322 + $0x54] sm:$0xf] %v1329
      %1458 = vst [vmem:[%s322 + $0x58] sm:$0xf] %v1330
      %1459 = vst [vmem:[%s322 + $0x5c] sm:$0xf] %v1331
      %1460 = vst [vmem:[%s322 + $0x60] sm:$0xf] %v1332
      %1461 = vst [vmem:[%s322 + $0x64] sm:$0xf] %v1333
      %1462 = vst [vmem:[%s322 + $0x68] sm:$0xf] %v1334
      %1463 = vst [vmem:[%s322 + $0x6c] sm:$0xf] %v1335
      %1464 = vst [vmem:[%s322 + $0x70] sm:$0xf] %v1336
      %1465 = vst [vmem:[%s322 + $0x74] sm:$0xf] %v1337
      %1466 = vst [vmem:[%s322 + $0x78] sm:$0xf] %v1338
      %1467 = vst [vmem:[%s322 + $0x7c] sm:$0xf] %v1339
      %1468 = vst [vmem:[%s322 + $0x80] sm:$0xf] %v1340
      %1469 = vst [vmem:[%s322 + $0x84] sm:$0xf] %v1341
      %1470 = vst [vmem:[%s322 + $0x88] sm:$0xf] %v1342
      %1471 = vst [vmem:[%s322 + $0x8c] sm:$0xf] %v1343
      %1472 = vst [vmem:[%s322 + $0x90] sm:$0xf] %v1344
      %1473 = vst [vmem:[%s322 + $0x94] sm:$0xf] %v1345
      %1474 = vst [vmem:[%s322 + $0x98] sm:$0xf] %v1346
      %1475 = vst [vmem:[%s322 + $0x9c] sm:$0xf] %v1347
      %1476 = vst [vmem:[%s322 + $0xa0] sm:$0xf] %v1348
      %1477 = vst [vmem:[%s322 + $0xa4] sm:$0xf] %v1349
      %1478 = vst [vmem:[%s322 + $0xa8] sm:$0xf] %v1350
      %1479 = vst [vmem:[%s322 + $0xac] sm:$0xf] %v1351
      %1480 = vst [vmem:[%s322 + $0xb0] sm:$0xf] %v1352
      %1481 = vst [vmem:[%s322 + $0xb4] sm:$0xf] %v1353
      %1482 = vst [vmem:[%s322 + $0xb8] sm:$0xf] %v1354
      %1483 = vst [vmem:[%s322 + $0xbc] sm:$0xf] %v1355
      %1484 = vst [vmem:[%s322 + $0xc0] sm:$0xf] %v1356
      %1485 = vst [vmem:[%s322 + $0xc4] sm:$0xf] %v1357
      %1486 = vst [vmem:[%s322 + $0xc8] sm:$0xf] %v1358
      %1487 = vst [vmem:[%s322 + $0xcc] sm:$0xf] %v1359
      %1488 = vst [vmem:[%s322 + $0xd0] sm:$0xf] %v1360
      %1489 = vst [vmem:[%s322 + $0xd4] sm:$0xf] %v1361
      %1490 = vst [vmem:[%s322 + $0xd8] sm:$0xf] %v1362
      %1491 = vst [vmem:[%s322 + $0xdc] sm:$0xf] %v1363
      %1492 = vst [vmem:[%s322 + $0xe0] sm:$0xf] %v1364
      %1493 = vst [vmem:[%s322 + $0xe4] sm:$0xf] %v1365
      %1494 = vst [vmem:[%s322 + $0xe8] sm:$0xf] %v1366
      %1495 = vst [vmem:[%s322 + $0xec] sm:$0xf] %v1367
      %1496 = vst [vmem:[%s322 + $0xf0] sm:$0xf] %v1368
      %1497 = vst [vmem:[%s322 + $0xf4] sm:$0xf] %v1369
      %1498 = vst [vmem:[%s322 + $0xf8] sm:$0xf] %v1370
      %1499 = vst [vmem:[%s322 + $0xfc] sm:$0xf] %v1371
      %s1500 = smul.u32 64, %s22
      %p1501 = scmp.lt.s32.totalorder %s21, 3
      %s1502 = scalar_select %p1501, %s21, 3
      %p1503 = scmp.lt.s32.totalorder %s1500, 63
      %s1504 = scalar_select %p1503, %s1500, 63
      %p1505 = scmp.lt.s32.totalorder %s23, 0
      %s1506 = scalar_select %p1505, %s23, 0
      %s1507 = sadd.s32 %s1506, %s1504
      %s1508 = smul.addr %s1502, 64
      %s1509 = sadd.s32 %s1507, %s1508
      %s1510 = smul.addr %s1509, 4
      %s1511 = scalar_lea.vmem %s5, %s1510
      // Predicated region
      $region41: #{_lambda_.19} parent=39 // pred_check
        %p1512 = pneg %p181
      $region42: #{_lambda_.19} parent=39 // pred_check_branch
        %1514 = sbr.rel (%p1512) target = $region44
      $region43: #{_lambda_.19} parent=39 // pred_region
        %s1515 = smul.u32 64, %s22
      $region44: #{_lambda_.19} parent=39 // pred_fallthru
        _
    $region40: #{_lambda_.19} parent=5 // pred_fallthru
      _
    %p1516 = scmp.le.s32.totalorder 2, %s11
    // Predicated region
    $region45: #{_lambda_.19} parent=5 // pred_check
      %p1517 = pneg %p1516
    $region46: #{_lambda_.19} parent=5 // pred_check_branch
      %1519 = sbr.rel (%p1517) target = $region48
    $region47: #{_lambda_.19} parent=5 // pred_region
      %s1520 = ssub.s32 %s11, 2
      // Predicated region
      $region49: #{_lambda_.19} parent=47 // pred_check
        %p1521 = pneg %p187
      $region50: #{_lambda_.19} parent=47 // pred_check_branch
        %1523 = sbr.rel (%p1521) target = $region52
      $region51: #{_lambda_.19} parent=47 // pred_region
        %s1524 = smul.u32 64, %s25
        %p1525 = scmp.lt.s32.totalorder %s24, 3
        %s1526 = scalar_select %p1525, %s24, 3
        %p1527 = scmp.lt.s32.totalorder %s1524, 63
        %s1528 = scalar_select %p1527, %s1524, 63
        %p1529 = scmp.lt.s32.totalorder %s26, 0
        %s1530 = scalar_select %p1529, %s26, 0
        %s1531 = sadd.s32 %s1530, %s1528
        %s1532 = smul.addr %s1526, 64
        %s1533 = sadd.s32 %s1531, %s1532
        %s1534 = smul.addr %s1533, 4
        %s1535 = scalar_lea.vmem %s5, %s1534
      $region52: #{_lambda_.19} parent=47 // pred_fallthru
        _
    $region48: #{_lambda_.19} parent=5 // pred_fallthru
      _
  $region6: #{_lambda_.19} parent=0 // loop_footer
    %s15 = sadd.s32 1, %s11
  $region7: #{_lambda_.19} parent=0 // loop_footer_branch
    %10 = sbr.rel target = $region3
  $region8: #{_lambda_.19} parent=0 // loop_exit
    _

</llo_original>
